<compile_context>
chip_gen: v7x
topology: tpu7x:2x2x1
jax: 0.10.0
libtpu: 0.0.40
codegen_flags: <defaults>
</compile_context>

<pallas_src>
import jax
import jax.numpy as jnp
from jax.experimental import pallas as pl
from jax.experimental.pallas import tpu as pltpu

IN_FEATURES = 3 * 64 * 64  # 12288
H1 = 192
H2 = 24
OUT = 6


def mlp_kernel(x_ref, w1_ref, b1_ref, w2_ref, b2_ref, w3_ref, b3_ref, o_ref):
    # Cast the streamed x tile to bf16 *inside* the kernel (no extra HBM pass in
    # the wrapper); the MXU accumulates in f32.
    x = x_ref[...].astype(jnp.bfloat16)
    h1 = jnp.dot(x, w1_ref[...], preferred_element_type=jnp.float32)
    h1 = jnp.maximum(h1 + b1_ref[...], 0.0)                       # (TB, 192) f32
    # Tiny tail layers stay f32 (negligible bytes / FLOPs).
    h2 = jnp.dot(h1, w2_ref[...], preferred_element_type=jnp.float32)
    h2 = jnp.maximum(h2 + b2_ref[...], 0.0)                       # (TB, 24)
    o_ref[...] = (
        jnp.dot(h2, w3_ref[...], preferred_element_type=jnp.float32) + b3_ref[...]
    )                                                             # (TB, 6)


def _round_up(x, m):
    return (x + m - 1) // m * m


def mlp_classifier_forward(x_nchw, params, *, tile_b=256):
    """x_nchw: (B, 3, 64, 64) f32 (or bf16) -> (B, 6) float32.

    tile_b: max batch-tile rows. Default 256 keeps the double-buffered f32 x
    tile (~24 MiB) + in-kernel bf16 copy + resident bf16 W1 under ~40 MiB of
    VMEM (safe on v7x's 64 MiB/TC). On v5e/v6e (128 MiB) pass 512..1024.
    """
    w1, b1, w2, b2, w3, b3 = params
    B = x_nchw.shape[0]

    # torch.nn.Flatten equivalent (row-major over C, H, W); keep caller dtype —
    # the bf16 cast happens in-kernel so there is no extra wrapper HBM pass.
    x2d = x_nchw.reshape(B, IN_FEATURES)

    # W1 dominates weight bytes; only cast if the caller did not pre-cast.
    w1 = w1 if w1.dtype == jnp.bfloat16 else w1.astype(jnp.bfloat16)
    b1 = b1.reshape(1, H1).astype(jnp.float32)
    w2 = w2.astype(jnp.float32)
    b2 = b2.reshape(1, H2).astype(jnp.float32)
    w3 = w3.astype(jnp.float32)
    b3 = b3.reshape(1, OUT).astype(jnp.float32)

    # Batch tile: multiple of 16 (bf16 sublane packing), capped at cdiv(B,2) so
    # there are >= 2 grid steps whenever B > 16 (both v7x TCs get work).
    tb = _round_up(max(1, min(tile_b, pl.cdiv(B, 2))), 16)
    nb = pl.cdiv(B, tb)
    pb = nb * tb  # padded rows exist only in the tiny (pb, 6) f32 output

    x_bytes = jnp.dtype(x2d.dtype).itemsize
    vmem_need = (
        2 * tb * IN_FEATURES * x_bytes   # double-buffered streaming x tile
        + tb * IN_FEATURES * 2           # in-kernel bf16 copy of the tile
        + IN_FEATURES * H1 * 2           # W1 (bf16, single-buffered)
        + 2 * tb * OUT * 4               # double-buffered output tile
        + (2 << 20)                      # tail layers, biases, headroom
    )
    vmem_limit = int(min(112 << 20, max(48 << 20, (vmem_need * 6) // 5)))

    flops = 2 * B * (IN_FEATURES * H1 + H1 * H2 + H2 * OUT)
    bytes_accessed = (
        B * IN_FEATURES * x_bytes
        + IN_FEATURES * H1 * 2
        + (H1 * H2 + H2 * OUT + H1 + H2 + OUT) * 4
        + B * OUT * 4
    )

    const = lambda i: (0, 0)  # resident operands: same block every grid step

    def resident(shape):
        # Constant index map + single pipeline buffer: DMA'd once, stays in VMEM.
        return pl.BlockSpec(shape, const, pipeline_mode=pl.Buffered(1))

    out = pl.pallas_call(
        mlp_kernel,
        out_shape=jax.ShapeDtypeStruct((pb, OUT), jnp.float32),
        grid=(nb,),
        in_specs=[
            pl.BlockSpec((tb, IN_FEATURES), lambda i: (i, 0)),  # x: streamed, double-buffered
            resident((IN_FEATURES, H1)),                        # W1 (bf16)
            resident((1, H1)),                                  # b1
            resident((H1, H2)),                                 # W2
            resident((1, H2)),                                  # b2
            resident((H2, OUT)),                                # W3
            resident((1, OUT)),                                 # b3
        ],
        out_specs=pl.BlockSpec((tb, OUT), lambda i: (i, 0)),
        compiler_params=pltpu.CompilerParams(
            dimension_semantics=("parallel",),  # v7x shards batch tiles over 2 TCs
            vmem_limit_bytes=vmem_limit,
        ),
        cost_estimate=pl.CostEstimate(
            flops=flops, transcendentals=0, bytes_accessed=bytes_accessed
        ),
    )(x2d, w1, b1, w2, b2, w3, b3)
    return out[:B]  # drop the <tb padded garbage rows of the tiny output


def init_params(key):
    """Deterministic PyTorch-style (uniform +/- 1/sqrt(fan_in)) init, f32 master copy."""
    dims = [(IN_FEATURES, H1), (H1, H2), (H2, OUT)]
    params = []
    for fan_in, fan_out in dims:
        key, kw, kb = jax.random.split(key, 3)
        bound = 1.0 / jnp.sqrt(jnp.float32(fan_in))
        w = jax.random.uniform(kw, (fan_in, fan_out), jnp.float32, -bound, bound)
        b = jax.random.uniform(kb, (1, fan_out), jnp.float32, -bound, bound)
        params.extend([w, b])
    return tuple(params)


def reference_forward_f32(x_nchw, params):
    """Pure-JAX full-f32 reference (matches the PyTorch module semantics)."""
    w1, b1, w2, b2, w3, b3 = params
    x = x_nchw.reshape(x_nchw.shape[0], -1).astype(jnp.float32)
    h1 = jnp.maximum(x @ w1.astype(jnp.float32) + b1, 0.0)
    h2 = jnp.maximum(h1 @ w2 + b2, 0.0)
    return h2 @ w3 + b3


def reference_forward_bf16(x_nchw, params):
    """Pure-JAX reference with the SAME numerics as the kernel (bf16 x/W1, f32 accum)."""
    w1, b1, w2, b2, w3, b3 = params
    x = x_nchw.reshape(x_nchw.shape[0], -1).astype(jnp.bfloat16)
    h1 = jnp.dot(x, w1.astype(jnp.bfloat16), preferred_element_type=jnp.float32) + b1
    h1 = jnp.maximum(h1, 0.0)
    h2 = jnp.maximum(h1 @ w2 + b2, 0.0)
    return h2 @ w3 + b3


if __name__ == "__main__":
    key = jax.random.PRNGKey(0)
    key, kx = jax.random.split(key)
    params = init_params(key)
    # Pre-cast W1 to bf16 ONCE (avoids a ~14 MiB cast pass inside every forward).
    fast_params = (params[0].astype(jnp.bfloat16),) + params[1:]

    # Small test (B=2): single ragged tile (2 < 16 rows), grid=(1,).
    B = 2
    x = jax.random.normal(kx, (B, 3, 64, 64), dtype=jnp.float32)
    out = jax.block_until_ready(mlp_classifier_forward(x, fast_params))
    assert out.shape == (B, OUT), out.shape
    assert jnp.allclose(out, reference_forward_bf16(x, params), atol=1e-3, rtol=1e-3), \
        "mismatch vs bf16 reference"
    assert jnp.allclose(out, reference_forward_f32(x, params), atol=5e-2, rtol=5e-2), \
        "mismatch vs f32 reference"

    # Multi-tile test: B=96 with 32-row tiles -> grid=(3,), exact division.
    key, kx2 = jax.random.split(key)
    x2 = jax.random.normal(kx2, (96, 3, 64, 64), dtype=jnp.float32)
    out2 = jax.block_until_ready(mlp_classifier_forward(x2, fast_params, tile_b=32))
    assert out2.shape == (96, OUT), out2.shape
    assert jnp.allclose(out2, reference_forward_bf16(x2, params), atol=1e-3, rtol=1e-3), \
        "mismatch vs bf16 reference (tiled)"

    # Ragged multi-tile test: B=50 with 32-row tiles -> grid=(2,); the last tile
    # reads 14 out-of-bounds garbage rows that out[:B] discards.
    key, kx3 = jax.random.split(key)
    x3 = jax.random.normal(kx3, (50, 3, 64, 64), dtype=jnp.float32)
    out3 = jax.block_until_ready(mlp_classifier_forward(x3, fast_params, tile_b=32))
    assert out3.shape == (50, OUT), out3.shape
    assert jnp.allclose(out3, reference_forward_bf16(x3, params), atol=1e-3, rtol=1e-3), \
        "mismatch vs bf16 reference (ragged)"

    print("KERNEL_OK")
</pallas_src>

<mosaic_0001>
module attributes {stable_mosaic.version = 11 : i64} {
  func.func @mlp_kernel(%arg0: i32, %arg1: memref<16x12288xf32, #tpu.memory_space<vmem>>, %arg2: memref<12288x192xbf16, #tpu.memory_space<vmem>>, %arg3: memref<1x192xf32, #tpu.memory_space<vmem>>, %arg4: memref<192x24xf32, #tpu.memory_space<vmem>>, %arg5: memref<1x24xf32, #tpu.memory_space<vmem>>, %arg6: memref<24x6xf32, #tpu.memory_space<vmem>>, %arg7: memref<1x6xf32, #tpu.memory_space<vmem>>, %arg8: memref<16x6xf32, #tpu.memory_space<vmem>>) attributes {dimension_semantics = [#tpu.dimension_semantics<parallel>], iteration_bounds = array<i64: 1>, scalar_prefetch = 0 : i64, scratch_operands = 0 : i64, tpu.core_type = #tpu.core_type<tc>, window_params = [{transform_indices = @transform_0, window_bounds = array<i64: 16, 12288>}, {pipeline_mode = #tpu.pipeline_mode<synchronous>, transform_indices = @transform_1, window_bounds = array<i64: 12288, 192>}, {pipeline_mode = #tpu.pipeline_mode<synchronous>, transform_indices = @transform_2, window_bounds = array<i64: 1, 192>}, {pipeline_mode = #tpu.pipeline_mode<synchronous>, transform_indices = @transform_3, window_bounds = array<i64: 192, 24>}, {pipeline_mode = #tpu.pipeline_mode<synchronous>, transform_indices = @transform_4, window_bounds = array<i64: 1, 24>}, {pipeline_mode = #tpu.pipeline_mode<synchronous>, transform_indices = @transform_5, window_bounds = array<i64: 24, 6>}, {pipeline_mode = #tpu.pipeline_mode<synchronous>, transform_indices = @transform_6, window_bounds = array<i64: 1, 6>}, {transform_indices = @transform_7, window_bounds = array<i64: 16, 6>}]} {
    %c0 = arith.constant 0 : index
    %c0_0 = arith.constant 0 : index
    %0 = vector.load %arg1[%c0, %c0_0] : memref<16x12288xf32, #tpu.memory_space<vmem>>, vector<16x12288xf32>
    %1 = arith.truncf %0 : vector<16x12288xf32> to vector<16x12288xbf16>
    %c0_1 = arith.constant 0 : index
    %c0_2 = arith.constant 0 : index
    %2 = vector.load %arg2[%c0_1, %c0_2] : memref<12288x192xbf16, #tpu.memory_space<vmem>>, vector<12288x192xbf16>
    %cst = arith.constant dense<0.000000e+00> : vector<16x192xf32>
    %3 = tpu.matmul %1, %2, %cst {dimension_numbers = #tpu.dot_dimension_numbers<[1], [0], [0], [1], [0, 0, 1, 1], [], []>} : vector<16x12288xbf16>, vector<12288x192xbf16>, vector<16x192xf32> -> vector<16x192xf32>
    %c0_3 = arith.constant 0 : index
    %c0_4 = arith.constant 0 : index
    %4 = vector.load %arg3[%c0_3, %c0_4] : memref<1x192xf32, #tpu.memory_space<vmem>>, vector<1x192xf32>
    %5 = vector.broadcast %4 : vector<1x192xf32> to vector<16x192xf32>
    %6 = arith.addf %3, %5 : vector<16x192xf32>
    %cst_5 = arith.constant 0.000000e+00 : f32
    %7 = vector.broadcast %cst_5 : f32 to vector<16x192xf32>
    %8 = arith.maximumf %6, %7 : vector<16x192xf32>
    %c0_6 = arith.constant 0 : index
    %c0_7 = arith.constant 0 : index
    %9 = vector.load %arg4[%c0_6, %c0_7] : memref<192x24xf32, #tpu.memory_space<vmem>>, vector<192x24xf32>
    %cst_8 = arith.constant dense<0.000000e+00> : vector<16x24xf32>
    %10 = tpu.matmul %8, %9, %cst_8 {dimension_numbers = #tpu.dot_dimension_numbers<[1], [0], [0], [1], [0, 0, 1, 1], [], []>} : vector<16x192xf32>, vector<192x24xf32>, vector<16x24xf32> -> vector<16x24xf32>
    %c0_9 = arith.constant 0 : index
    %c0_10 = arith.constant 0 : index
    %11 = vector.load %arg5[%c0_9, %c0_10] : memref<1x24xf32, #tpu.memory_space<vmem>>, vector<1x24xf32>
    %12 = vector.broadcast %11 : vector<1x24xf32> to vector<16x24xf32>
    %13 = arith.addf %10, %12 : vector<16x24xf32>
    %cst_11 = arith.constant 0.000000e+00 : f32
    %14 = vector.broadcast %cst_11 : f32 to vector<16x24xf32>
    %15 = arith.maximumf %13, %14 : vector<16x24xf32>
    %c0_12 = arith.constant 0 : index
    %c0_13 = arith.constant 0 : index
    %16 = vector.load %arg6[%c0_12, %c0_13] : memref<24x6xf32, #tpu.memory_space<vmem>>, vector<24x6xf32>
    %cst_14 = arith.constant dense<0.000000e+00> : vector<16x6xf32>
    %17 = tpu.matmul %15, %16, %cst_14 {dimension_numbers = #tpu.dot_dimension_numbers<[1], [0], [0], [1], [0, 0, 1, 1], [], []>} : vector<16x24xf32>, vector<24x6xf32>, vector<16x6xf32> -> vector<16x6xf32>
    %c0_15 = arith.constant 0 : index
    %c0_16 = arith.constant 0 : index
    %18 = vector.load %arg7[%c0_15, %c0_16] : memref<1x6xf32, #tpu.memory_space<vmem>>, vector<1x6xf32>
    %19 = vector.broadcast %18 : vector<1x6xf32> to vector<16x6xf32>
    %20 = arith.addf %17, %19 : vector<16x6xf32>
    %c0_17 = arith.constant 0 : index
    %c0_18 = arith.constant 0 : index
    %21 = vector.load %arg8[%c0_17, %c0_18] : memref<16x6xf32, #tpu.memory_space<vmem>>, vector<16x6xf32>
    tpu.vector_store %arg8[%c0_17, %c0_18], %20 {strides = array<i32>} : memref<16x6xf32, #tpu.memory_space<vmem>>, vector<16x6xf32>,
    return
  }
  func.func @transform_0(%arg0: i32) -> (i32, i32) {
    %c0_i32 = arith.constant 0 : i32
    %c0_i32_0 = arith.constant 0 : i32
    return %arg0, %c0_i32 : i32, i32
  }
  func.func @transform_1(%arg0: i32) -> (i32, i32) {
    %c0_i32 = arith.constant 0 : i32
    %c0_i32_0 = arith.constant 0 : i32
    %c0_i32_1 = arith.constant 0 : i32
    return %c0_i32, %c0_i32_0 : i32, i32
  }
  func.func @transform_2(%arg0: i32) -> (i32, i32) {
    %c0_i32 = arith.constant 0 : i32
    %c0_i32_0 = arith.constant 0 : i32
    %c0_i32_1 = arith.constant 0 : i32
    return %c0_i32, %c0_i32_0 : i32, i32
  }
  func.func @transform_3(%arg0: i32) -> (i32, i32) {
    %c0_i32 = arith.constant 0 : i32
    %c0_i32_0 = arith.constant 0 : i32
    %c0_i32_1 = arith.constant 0 : i32
    return %c0_i32, %c0_i32_0 : i32, i32
  }
  func.func @transform_4(%arg0: i32) -> (i32, i32) {
    %c0_i32 = arith.constant 0 : i32
    %c0_i32_0 = arith.constant 0 : i32
    %c0_i32_1 = arith.constant 0 : i32
    return %c0_i32, %c0_i32_0 : i32, i32
  }
  func.func @transform_5(%arg0: i32) -> (i32, i32) {
    %c0_i32 = arith.constant 0 : i32
    %c0_i32_0 = arith.constant 0 : i32
    %c0_i32_1 = arith.constant 0 : i32
    return %c0_i32, %c0_i32_0 : i32, i32
  }
  func.func @transform_6(%arg0: i32) -> (i32, i32) {
    %c0_i32 = arith.constant 0 : i32
    %c0_i32_0 = arith.constant 0 : i32
    %c0_i32_1 = arith.constant 0 : i32
    return %c0_i32, %c0_i32_0 : i32, i32
  }
  func.func @transform_7(%arg0: i32) -> (i32, i32) {
    %c0_i32 = arith.constant 0 : i32
    %c0_i32_0 = arith.constant 0 : i32
    return %arg0, %c0_i32 : i32, i32
  }
}

</mosaic_0001>

<llo_original>
// kernel: tpu_custom_call.1
$region0: #{tpu_custom_call.1}
  #allocation0 [shape = 'u32[]', space=smem, size = 0x4, offset = 0x4, fixed_abs, tag = 'smem constant byte address 0x4 - core index']
  #allocation1 [shape = 'u32[144,128]{1,0:T(1,128)}', space=vmem, size = 0x12000, scoped, tag = 'internal scratch']
  %s0 = inlined_call_operand.vmem [shape: f32[2,12288], index: 0, kind: input, shape index: {}]
  %s1 = inlined_call_operand.vmem [shape: bf16[12288,192], index: 1, kind: input, shape index: {}]
  %s2 = inlined_call_operand.vmem [shape: f32[1,192], index: 2, kind: input, shape index: {}]
  %s3 = inlined_call_operand.vmem [shape: f32[192,24], index: 3, kind: input, shape index: {}]
  %s4 = inlined_call_operand.vmem [shape: f32[1,24], index: 4, kind: input, shape index: {}]
  %s5 = inlined_call_operand.vmem [shape: f32[24,6], index: 5, kind: input, shape index: {}]
  %s6 = inlined_call_operand.vmem [shape: f32[1,6], index: 6, kind: input, shape index: {}]
  %s7 = inlined_call_operand.vmem [shape: f32[16,6], index: 7, kind: output, shape index: {}]
  %s8 = sld [smem:[#allocation0]]
  $region38: #{tpu_custom_call.1} parent=0
    _
  %s10 = ssub.s32 1, %s8
  %s11 = scalar_select 0, %s10, %s8
  // Predicated region
  $region2: #{tpu_custom_call.1} parent=0 // pred_check
    _
  $region3: #{tpu_custom_call.1} parent=0 // pred_check_branch
    %13 = sbr.rel (0) target = $region5
  $region4: #{tpu_custom_call.1} parent=0 // pred_region
    _
  $region5: #{tpu_custom_call.1} parent=0 // pred_fallthru
    _
  // Predicated region
  $region6: #{tpu_custom_call.1} parent=0 // pred_check
    _
  $region7: #{tpu_custom_call.1} parent=0 // pred_check_branch
    %15 = sbr.rel (0) target = $region9
  $region8: #{tpu_custom_call.1} parent=0 // pred_region
    _
  $region9: #{tpu_custom_call.1} parent=0 // pred_fallthru
    _
  // Predicated region
  $region10: #{tpu_custom_call.1} parent=0 // pred_check
    _
  $region11: #{tpu_custom_call.1} parent=0 // pred_check_branch
    %17 = sbr.rel (0) target = $region13
  $region12: #{tpu_custom_call.1} parent=0 // pred_region
    _
  $region13: #{tpu_custom_call.1} parent=0 // pred_fallthru
    _
  // Predicated region
  $region14: #{tpu_custom_call.1} parent=0 // pred_check
    _
  $region15: #{tpu_custom_call.1} parent=0 // pred_check_branch
    %19 = sbr.rel (0) target = $region17
  $region16: #{tpu_custom_call.1} parent=0 // pred_region
    _
  $region17: #{tpu_custom_call.1} parent=0 // pred_fallthru
    _
  // Predicated region
  $region18: #{tpu_custom_call.1} parent=0 // pred_check
    _
  $region19: #{tpu_custom_call.1} parent=0 // pred_check_branch
    %21 = sbr.rel (0) target = $region21
  $region20: #{tpu_custom_call.1} parent=0 // pred_region
    _
  $region21: #{tpu_custom_call.1} parent=0 // pred_fallthru
    _
  // Predicated region
  $region22: #{tpu_custom_call.1} parent=0 // pred_check
    _
  $region23: #{tpu_custom_call.1} parent=0 // pred_check_branch
    %23 = sbr.rel (0) target = $region25
  $region24: #{tpu_custom_call.1} parent=0 // pred_region
    _
  $region25: #{tpu_custom_call.1} parent=0 // pred_fallthru
    _
  // Predicated region
  $region26: #{tpu_custom_call.1} parent=0 // pred_check
    _
  $region27: #{tpu_custom_call.1} parent=0 // pred_check_branch
    %25 = sbr.rel (0) target = $region29
  $region28: #{tpu_custom_call.1} parent=0 // pred_region
    _
  $region29: #{tpu_custom_call.1} parent=0 // pred_fallthru
    _
  %v26 = vld [vmem:[%s0] sm:$0xff]
  %v27 = vld [vmem:[%s0 + $0x8] sm:$0xff]
  %v28 = vld [vmem:[%s0 + $0x10] sm:$0xff]
  %v29 = vld [vmem:[%s0 + $0x18] sm:$0xff]
  %v30 = vld [vmem:[%s0 + $0x20] sm:$0xff]
  %v31 = vld [vmem:[%s0 + $0x28] sm:$0xff]
  %v32 = vld [vmem:[%s0 + $0x30] sm:$0xff]
  %v33 = vld [vmem:[%s0 + $0x38] sm:$0xff]
  %v34 = vld [vmem:[%s0 + $0x40] sm:$0xff]
  %v35 = vld [vmem:[%s0 + $0x48] sm:$0xff]
  %v36 = vld [vmem:[%s0 + $0x50] sm:$0xff]
  %v37 = vld [vmem:[%s0 + $0x58] sm:$0xff]
  %v38 = vld [vmem:[%s0 + $0x60] sm:$0xff]
  %v39 = vld [vmem:[%s0 + $0x68] sm:$0xff]
  %v40 = vld [vmem:[%s0 + $0x70] sm:$0xff]
  %v41 = vld [vmem:[%s0 + $0x78] sm:$0xff]
  %v42 = vld [vmem:[%s0 + $0x80] sm:$0xff]
  %v43 = vld [vmem:[%s0 + $0x88] sm:$0xff]
  %v44 = vld [vmem:[%s0 + $0x90] sm:$0xff]
  %v45 = vld [vmem:[%s0 + $0x98] sm:$0xff]
  %v46 = vld [vmem:[%s0 + $0xa0] sm:$0xff]
  %v47 = vld [vmem:[%s0 + $0xa8] sm:$0xff]
  %v48 = vld [vmem:[%s0 + $0xb0] sm:$0xff]
  %v49 = vld [vmem:[%s0 + $0xb8] sm:$0xff]
  %v50 = vld [vmem:[%s0 + $0xc0] sm:$0xff]
  %v51 = vld [vmem:[%s0 + $0xc8] sm:$0xff]
  %v52 = vld [vmem:[%s0 + $0xd0] sm:$0xff]
  %v53 = vld [vmem:[%s0 + $0xd8] sm:$0xff]
  %v54 = vld [vmem:[%s0 + $0xe0] sm:$0xff]
  %v55 = vld [vmem:[%s0 + $0xe8] sm:$0xff]
  %v56 = vld [vmem:[%s0 + $0xf0] sm:$0xff]
  %v57 = vld [vmem:[%s0 + $0xf8] sm:$0xff]
  %v58 = vld [vmem:[%s0 + $0x100] sm:$0xff]
  %v59 = vld [vmem:[%s0 + $0x108] sm:$0xff]
  %v60 = vld [vmem:[%s0 + $0x110] sm:$0xff]
  %v61 = vld [vmem:[%s0 + $0x118] sm:$0xff]
  %v62 = vld [vmem:[%s0 + $0x120] sm:$0xff]
  %v63 = vld [vmem:[%s0 + $0x128] sm:$0xff]
  %v64 = vld [vmem:[%s0 + $0x130] sm:$0xff]
  %v65 = vld [vmem:[%s0 + $0x138] sm:$0xff]
  %v66 = vld [vmem:[%s0 + $0x140] sm:$0xff]
  %v67 = vld [vmem:[%s0 + $0x148] sm:$0xff]
  %v68 = vld [vmem:[%s0 + $0x150] sm:$0xff]
  %v69 = vld [vmem:[%s0 + $0x158] sm:$0xff]
  %v70 = vld [vmem:[%s0 + $0x160] sm:$0xff]
  %v71 = vld [vmem:[%s0 + $0x168] sm:$0xff]
  %v72 = vld [vmem:[%s0 + $0x170] sm:$0xff]
  %v73 = vld [vmem:[%s0 + $0x178] sm:$0xff]
  %v74 = vld [vmem:[%s0 + $0x180] sm:$0xff]
  %v75 = vld [vmem:[%s0 + $0x188] sm:$0xff]
  %v76 = vld [vmem:[%s0 + $0x190] sm:$0xff]
  %v77 = vld [vmem:[%s0 + $0x198] sm:$0xff]
  %v78 = vld [vmem:[%s0 + $0x1a0] sm:$0xff]
  %v79 = vld [vmem:[%s0 + $0x1a8] sm:$0xff]
  %v80 = vld [vmem:[%s0 + $0x1b0] sm:$0xff]
  %v81 = vld [vmem:[%s0 + $0x1b8] sm:$0xff]
  %v82 = vld [vmem:[%s0 + $0x1c0] sm:$0xff]
  %v83 = vld [vmem:[%s0 + $0x1c8] sm:$0xff]
  %v84 = vld [vmem:[%s0 + $0x1d0] sm:$0xff]
  %v85 = vld [vmem:[%s0 + $0x1d8] sm:$0xff]
  %v86 = vld [vmem:[%s0 + $0x1e0] sm:$0xff]
  %v87 = vld [vmem:[%s0 + $0x1e8] sm:$0xff]
  %v88 = vld [vmem:[%s0 + $0x1f0] sm:$0xff]
  %v89 = vld [vmem:[%s0 + $0x1f8] sm:$0xff]
  %v90 = vld [vmem:[%s0 + $0x200] sm:$0xff]
  %v91 = vld [vmem:[%s0 + $0x208] sm:$0xff]
  %v92 = vld [vmem:[%s0 + $0x210] sm:$0xff]
  %v93 = vld [vmem:[%s0 + $0x218] sm:$0xff]
  %v94 = vld [vmem:[%s0 + $0x220] sm:$0xff]
  %v95 = vld [vmem:[%s0 + $0x228] sm:$0xff]
  %v96 = vld [vmem:[%s0 + $0x230] sm:$0xff]
  %v97 = vld [vmem:[%s0 + $0x238] sm:$0xff]
  %v98 = vld [vmem:[%s0 + $0x240] sm:$0xff]
  %v99 = vld [vmem:[%s0 + $0x248] sm:$0xff]
  %v100 = vld [vmem:[%s0 + $0x250] sm:$0xff]
  %v101 = vld [vmem:[%s0 + $0x258] sm:$0xff]
  %v102 = vld [vmem:[%s0 + $0x260] sm:$0xff]
  %v103 = vld [vmem:[%s0 + $0x268] sm:$0xff]
  %v104 = vld [vmem:[%s0 + $0x270] sm:$0xff]
  %v105 = vld [vmem:[%s0 + $0x278] sm:$0xff]
  %v106 = vld [vmem:[%s0 + $0x280] sm:$0xff]
  %v107 = vld [vmem:[%s0 + $0x288] sm:$0xff]
  %v108 = vld [vmem:[%s0 + $0x290] sm:$0xff]
  %v109 = vld [vmem:[%s0 + $0x298] sm:$0xff]
  %v110 = vld [vmem:[%s0 + $0x2a0] sm:$0xff]
  %v111 = vld [vmem:[%s0 + $0x2a8] sm:$0xff]
  %v112 = vld [vmem:[%s0 + $0x2b0] sm:$0xff]
  %v113 = vld [vmem:[%s0 + $0x2b8] sm:$0xff]
  %v114 = vld [vmem:[%s0 + $0x2c0] sm:$0xff]
  %v115 = vld [vmem:[%s0 + $0x2c8] sm:$0xff]
  %v116 = vld [vmem:[%s0 + $0x2d0] sm:$0xff]
  %v117 = vld [vmem:[%s0 + $0x2d8] sm:$0xff]
  %v118 = vld [vmem:[%s0 + $0x2e0] sm:$0xff]
  %v119 = vld [vmem:[%s0 + $0x2e8] sm:$0xff]
  %v120 = vld [vmem:[%s0 + $0x2f0] sm:$0xff]
  %v121 = vld [vmem:[%s0 + $0x2f8] sm:$0xff]
  %v122 = vld [vmem:[%s0 + $0x300] sm:$0xff]
  %v123 = vld [vmem:[%s0 + $0x308] sm:$0xff]
  %v124 = vld [vmem:[%s0 + $0x310] sm:$0xff]
  %v125 = vld [vmem:[%s0 + $0x318] sm:$0xff]
  %v126 = vld [vmem:[%s0 + $0x320] sm:$0xff]
  %v127 = vld [vmem:[%s0 + $0x328] sm:$0xff]
  %v128 = vld [vmem:[%s0 + $0x330] sm:$0xff]
  %v129 = vld [vmem:[%s0 + $0x338] sm:$0xff]
  %v130 = vld [vmem:[%s0 + $0x340] sm:$0xff]
  %v131 = vld [vmem:[%s0 + $0x348] sm:$0xff]
  %v132 = vld [vmem:[%s0 + $0x350] sm:$0xff]
  %v133 = vld [vmem:[%s0 + $0x358] sm:$0xff]
  %v134 = vld [vmem:[%s0 + $0x360] sm:$0xff]
  %v135 = vld [vmem:[%s0 + $0x368] sm:$0xff]
  %v136 = vld [vmem:[%s0 + $0x370] sm:$0xff]
  %v137 = vld [vmem:[%s0 + $0x378] sm:$0xff]
  %v138 = vld [vmem:[%s0 + $0x380] sm:$0xff]
  %v139 = vld [vmem:[%s0 + $0x388] sm:$0xff]
  %v140 = vld [vmem:[%s0 + $0x390] sm:$0xff]
  %v141 = vld [vmem:[%s0 + $0x398] sm:$0xff]
  %v142 = vld [vmem:[%s0 + $0x3a0] sm:$0xff]
  %v143 = vld [vmem:[%s0 + $0x3a8] sm:$0xff]
  %v144 = vld [vmem:[%s0 + $0x3b0] sm:$0xff]
  %v145 = vld [vmem:[%s0 + $0x3b8] sm:$0xff]
  %v146 = vld [vmem:[%s0 + $0x3c0] sm:$0xff]
  %v147 = vld [vmem:[%s0 + $0x3c8] sm:$0xff]
  %v148 = vld [vmem:[%s0 + $0x3d0] sm:$0xff]
  %v149 = vld [vmem:[%s0 + $0x3d8] sm:$0xff]
  %v150 = vld [vmem:[%s0 + $0x3e0] sm:$0xff]
  %v151 = vld [vmem:[%s0 + $0x3e8] sm:$0xff]
  %v152 = vld [vmem:[%s0 + $0x3f0] sm:$0xff]
  %v153 = vld [vmem:[%s0 + $0x3f8] sm:$0xff]
  %v154 = vld [vmem:[%s0 + $0x400] sm:$0xff]
  %v155 = vld [vmem:[%s0 + $0x408] sm:$0xff]
  %v156 = vld [vmem:[%s0 + $0x410] sm:$0xff]
  %v157 = vld [vmem:[%s0 + $0x418] sm:$0xff]
  %v158 = vld [vmem:[%s0 + $0x420] sm:$0xff]
  %v159 = vld [vmem:[%s0 + $0x428] sm:$0xff]
  %v160 = vld [vmem:[%s0 + $0x430] sm:$0xff]
  %v161 = vld [vmem:[%s0 + $0x438] sm:$0xff]
  %v162 = vld [vmem:[%s0 + $0x440] sm:$0xff]
  %v163 = vld [vmem:[%s0 + $0x448] sm:$0xff]
  %v164 = vld [vmem:[%s0 + $0x450] sm:$0xff]
  %v165 = vld [vmem:[%s0 + $0x458] sm:$0xff]
  %v166 = vld [vmem:[%s0 + $0x460] sm:$0xff]
  %v167 = vld [vmem:[%s0 + $0x468] sm:$0xff]
  %v168 = vld [vmem:[%s0 + $0x470] sm:$0xff]
  %v169 = vld [vmem:[%s0 + $0x478] sm:$0xff]
  %v170 = vld [vmem:[%s0 + $0x480] sm:$0xff]
  %v171 = vld [vmem:[%s0 + $0x488] sm:$0xff]
  %v172 = vld [vmem:[%s0 + $0x490] sm:$0xff]
  %v173 = vld [vmem:[%s0 + $0x498] sm:$0xff]
  %v174 = vld [vmem:[%s0 + $0x4a0] sm:$0xff]
  %v175 = vld [vmem:[%s0 + $0x4a8] sm:$0xff]
  %v176 = vld [vmem:[%s0 + $0x4b0] sm:$0xff]
  %v177 = vld [vmem:[%s0 + $0x4b8] sm:$0xff]
  %v178 = vld [vmem:[%s0 + $0x4c0] sm:$0xff]
  %v179 = vld [vmem:[%s0 + $0x4c8] sm:$0xff]
  %v180 = vld [vmem:[%s0 + $0x4d0] sm:$0xff]
  %v181 = vld [vmem:[%s0 + $0x4d8] sm:$0xff]
  %v182 = vld [vmem:[%s0 + $0x4e0] sm:$0xff]
  %v183 = vld [vmem:[%s0 + $0x4e8] sm:$0xff]
  %v184 = vld [vmem:[%s0 + $0x4f0] sm:$0xff]
  %v185 = vld [vmem:[%s0 + $0x4f8] sm:$0xff]
  %v186 = vld [vmem:[%s0 + $0x500] sm:$0xff]
  %v187 = vld [vmem:[%s0 + $0x508] sm:$0xff]
  %v188 = vld [vmem:[%s0 + $0x510] sm:$0xff]
  %v189 = vld [vmem:[%s0 + $0x518] sm:$0xff]
  %v190 = vld [vmem:[%s0 + $0x520] sm:$0xff]
  %v191 = vld [vmem:[%s0 + $0x528] sm:$0xff]
  %v192 = vld [vmem:[%s0 + $0x530] sm:$0xff]
  %v193 = vld [vmem:[%s0 + $0x538] sm:$0xff]
  %v194 = vld [vmem:[%s0 + $0x540] sm:$0xff]
  %v195 = vld [vmem:[%s0 + $0x548] sm:$0xff]
  %v196 = vld [vmem:[%s0 + $0x550] sm:$0xff]
  %v197 = vld [vmem:[%s0 + $0x558] sm:$0xff]
  %v198 = vld [vmem:[%s0 + $0x560] sm:$0xff]
  %v199 = vld [vmem:[%s0 + $0x568] sm:$0xff]
  %v200 = vld [vmem:[%s0 + $0x570] sm:$0xff]
  %v201 = vld [vmem:[%s0 + $0x578] sm:$0xff]
  %v202 = vld [vmem:[%s0 + $0x580] sm:$0xff]
  %v203 = vld [vmem:[%s0 + $0x588] sm:$0xff]
  %v204 = vld [vmem:[%s0 + $0x590] sm:$0xff]
  %v205 = vld [vmem:[%s0 + $0x598] sm:$0xff]
  %v206 = vld [vmem:[%s0 + $0x5a0] sm:$0xff]
  %v207 = vld [vmem:[%s0 + $0x5a8] sm:$0xff]
  %v208 = vld [vmem:[%s0 + $0x5b0] sm:$0xff]
  %v209 = vld [vmem:[%s0 + $0x5b8] sm:$0xff]
  %v210 = vld [vmem:[%s0 + $0x5c0] sm:$0xff]
  %v211 = vld [vmem:[%s0 + $0x5c8] sm:$0xff]
  %v212 = vld [vmem:[%s0 + $0x5d0] sm:$0xff]
  %v213 = vld [vmem:[%s0 + $0x5d8] sm:$0xff]
  %v214 = vld [vmem:[%s0 + $0x5e0] sm:$0xff]
  %v215 = vld [vmem:[%s0 + $0x5e8] sm:$0xff]
  %v216 = vld [vmem:[%s0 + $0x5f0] sm:$0xff]
  %v217 = vld [vmem:[%s0 + $0x5f8] sm:$0xff]
  %v410 = vcombine.low %v26, %v50
  %v411 = vcombine.high %v26, %v50
  %v412 = vcombine.low %v74, %v98
  %v413 = vcombine.high %v74, %v98
  %v415 = vunpack.c.l.s4 1983009808
  %v416 = vunpack.c.0.s8 %v415
  %v417 = vlaneseq
  %v418 = vshrl.u32 %v417, 7
  %v419 = vsub.s32 %v416, %v418
  %v420 = vrot.slane %v410, %v419
  %v422 = vunpack.c.l.s4 1983009808
  %v423 = vunpack.c.0.s8 %v422
  %v424 = vlaneseq
  %v425 = vshrl.u32 %v424, 7
  %v426 = vsub.s32 %v423, %v425
  %v427 = vrot.slane %v411, %v426
  %v429 = vunpack.c.l.s4 1983009808
  %v430 = vunpack.c.0.s8 %v429
  %v431 = vlaneseq
  %v432 = vshrl.u32 %v431, 7
  %v433 = vsub.s32 %v430, %v432
  %v434 = vrot.slane %v412, %v433
  %v436 = vunpack.c.l.s4 1983009808
  %v437 = vunpack.c.0.s8 %v436
  %v438 = vlaneseq
  %v439 = vshrl.u32 %v438, 7
  %v440 = vsub.s32 %v437, %v439
  %v441 = vrot.slane %v413, %v440
  %v442 = vcombine.low %v420, %v434
  %v443 = vcombine.high %v420, %v434
  %v444 = vcombine.low %v427, %v441
  %v445 = vcombine.high %v427, %v441
  %v446 = vcombine.low %v27, %v51
  %v447 = vcombine.high %v27, %v51
  %v448 = vcombine.low %v75, %v99
  %v449 = vcombine.high %v75, %v99
  %v451 = vunpack.c.l.s4 1983009808
  %v452 = vunpack.c.0.s8 %v451
  %v453 = vlaneseq
  %v454 = vshrl.u32 %v453, 7
  %v455 = vsub.s32 %v452, %v454
  %v456 = vrot.slane %v446, %v455
  %v458 = vunpack.c.l.s4 1983009808
  %v459 = vunpack.c.0.s8 %v458
  %v460 = vlaneseq
  %v461 = vshrl.u32 %v460, 7
  %v462 = vsub.s32 %v459, %v461
  %v463 = vrot.slane %v447, %v462
  %v465 = vunpack.c.l.s4 1983009808
  %v466 = vunpack.c.0.s8 %v465
  %v467 = vlaneseq
  %v468 = vshrl.u32 %v467, 7
  %v469 = vsub.s32 %v466, %v468
  %v470 = vrot.slane %v448, %v469
  %v472 = vunpack.c.l.s4 1983009808
  %v473 = vunpack.c.0.s8 %v472
  %v474 = vlaneseq
  %v475 = vshrl.u32 %v474, 7
  %v476 = vsub.s32 %v473, %v475
  %v477 = vrot.slane %v449, %v476
  %v478 = vcombine.low %v456, %v470
  %v479 = vcombine.high %v456, %v470
  %v480 = vcombine.low %v463, %v477
  %v481 = vcombine.high %v463, %v477
  %v482 = vcombine.low %v28, %v52
  %v483 = vcombine.high %v28, %v52
  %v484 = vcombine.low %v76, %v100
  %v485 = vcombine.high %v76, %v100
  %v487 = vunpack.c.l.s4 1983009808
  %v488 = vunpack.c.0.s8 %v487
  %v489 = vlaneseq
  %v490 = vshrl.u32 %v489, 7
  %v491 = vsub.s32 %v488, %v490
  %v492 = vrot.slane %v482, %v491
  %v494 = vunpack.c.l.s4 1983009808
  %v495 = vunpack.c.0.s8 %v494
  %v496 = vlaneseq
  %v497 = vshrl.u32 %v496, 7
  %v498 = vsub.s32 %v495, %v497
  %v499 = vrot.slane %v483, %v498
  %v501 = vunpack.c.l.s4 1983009808
  %v502 = vunpack.c.0.s8 %v501
  %v503 = vlaneseq
  %v504 = vshrl.u32 %v503, 7
  %v505 = vsub.s32 %v502, %v504
  %v506 = vrot.slane %v484, %v505
  %v508 = vunpack.c.l.s4 1983009808
  %v509 = vunpack.c.0.s8 %v508
  %v510 = vlaneseq
  %v511 = vshrl.u32 %v510, 7
  %v512 = vsub.s32 %v509, %v511
  %v513 = vrot.slane %v485, %v512
  %v514 = vcombine.low %v492, %v506
  %v515 = vcombine.high %v492, %v506
  %v516 = vcombine.low %v499, %v513
  %v517 = vcombine.high %v499, %v513
  %v518 = vcombine.low %v29, %v53
  %v519 = vcombine.high %v29, %v53
  %v520 = vcombine.low %v77, %v101
  %v521 = vcombine.high %v77, %v101
  %v523 = vunpack.c.l.s4 1983009808
  %v524 = vunpack.c.0.s8 %v523
  %v525 = vlaneseq
  %v526 = vshrl.u32 %v525, 7
  %v527 = vsub.s32 %v524, %v526
  %v528 = vrot.slane %v518, %v527
  %v530 = vunpack.c.l.s4 1983009808
  %v531 = vunpack.c.0.s8 %v530
  %v532 = vlaneseq
  %v533 = vshrl.u32 %v532, 7
  %v534 = vsub.s32 %v531, %v533
  %v535 = vrot.slane %v519, %v534
  %v537 = vunpack.c.l.s4 1983009808
  %v538 = vunpack.c.0.s8 %v537
  %v539 = vlaneseq
  %v540 = vshrl.u32 %v539, 7
  %v541 = vsub.s32 %v538, %v540
  %v542 = vrot.slane %v520, %v541
  %v544 = vunpack.c.l.s4 1983009808
  %v545 = vunpack.c.0.s8 %v544
  %v546 = vlaneseq
  %v547 = vshrl.u32 %v546, 7
  %v548 = vsub.s32 %v545, %v547
  %v549 = vrot.slane %v521, %v548
  %v550 = vcombine.low %v528, %v542
  %v551 = vcombine.high %v528, %v542
  %v552 = vcombine.low %v535, %v549
  %v553 = vcombine.high %v535, %v549
  %v554 = vcombine.low %v30, %v54
  %v555 = vcombine.high %v30, %v54
  %v556 = vcombine.low %v78, %v102
  %v557 = vcombine.high %v78, %v102
  %v559 = vunpack.c.l.s4 1983009808
  %v560 = vunpack.c.0.s8 %v559
  %v561 = vlaneseq
  %v562 = vshrl.u32 %v561, 7
  %v563 = vsub.s32 %v560, %v562
  %v564 = vrot.slane %v554, %v563
  %v566 = vunpack.c.l.s4 1983009808
  %v567 = vunpack.c.0.s8 %v566
  %v568 = vlaneseq
  %v569 = vshrl.u32 %v568, 7
  %v570 = vsub.s32 %v567, %v569
  %v571 = vrot.slane %v555, %v570
  %v573 = vunpack.c.l.s4 1983009808
  %v574 = vunpack.c.0.s8 %v573
  %v575 = vlaneseq
  %v576 = vshrl.u32 %v575, 7
  %v577 = vsub.s32 %v574, %v576
  %v578 = vrot.slane %v556, %v577
  %v580 = vunpack.c.l.s4 1983009808
  %v581 = vunpack.c.0.s8 %v580
  %v582 = vlaneseq
  %v583 = vshrl.u32 %v582, 7
  %v584 = vsub.s32 %v581, %v583
  %v585 = vrot.slane %v557, %v584
  %v586 = vcombine.low %v564, %v578
  %v587 = vcombine.high %v564, %v578
  %v588 = vcombine.low %v571, %v585
  %v589 = vcombine.high %v571, %v585
  %v590 = vcombine.low %v31, %v55
  %v591 = vcombine.high %v31, %v55
  %v592 = vcombine.low %v79, %v103
  %v593 = vcombine.high %v79, %v103
  %v595 = vunpack.c.l.s4 1983009808
  %v596 = vunpack.c.0.s8 %v595
  %v597 = vlaneseq
  %v598 = vshrl.u32 %v597, 7
  %v599 = vsub.s32 %v596, %v598
  %v600 = vrot.slane %v590, %v599
  %v602 = vunpack.c.l.s4 1983009808
  %v603 = vunpack.c.0.s8 %v602
  %v604 = vlaneseq
  %v605 = vshrl.u32 %v604, 7
  %v606 = vsub.s32 %v603, %v605
  %v607 = vrot.slane %v591, %v606
  %v609 = vunpack.c.l.s4 1983009808
  %v610 = vunpack.c.0.s8 %v609
  %v611 = vlaneseq
  %v612 = vshrl.u32 %v611, 7
  %v613 = vsub.s32 %v610, %v612
  %v614 = vrot.slane %v592, %v613
  %v616 = vunpack.c.l.s4 1983009808
  %v617 = vunpack.c.0.s8 %v616
  %v618 = vlaneseq
  %v619 = vshrl.u32 %v618, 7
  %v620 = vsub.s32 %v617, %v619
  %v621 = vrot.slane %v593, %v620
  %v622 = vcombine.low %v600, %v614
  %v623 = vcombine.high %v600, %v614
  %v624 = vcombine.low %v607, %v621
  %v625 = vcombine.high %v607, %v621
  %v626 = vcombine.low %v32, %v56
  %v627 = vcombine.high %v32, %v56
  %v628 = vcombine.low %v80, %v104
  %v629 = vcombine.high %v80, %v104
  %v631 = vunpack.c.l.s4 1983009808
  %v632 = vunpack.c.0.s8 %v631
  %v633 = vlaneseq
  %v634 = vshrl.u32 %v633, 7
  %v635 = vsub.s32 %v632, %v634
  %v636 = vrot.slane %v626, %v635
  %v638 = vunpack.c.l.s4 1983009808
  %v639 = vunpack.c.0.s8 %v638
  %v640 = vlaneseq
  %v641 = vshrl.u32 %v640, 7
  %v642 = vsub.s32 %v639, %v641
  %v643 = vrot.slane %v627, %v642
  %v645 = vunpack.c.l.s4 1983009808
  %v646 = vunpack.c.0.s8 %v645
  %v647 = vlaneseq
  %v648 = vshrl.u32 %v647, 7
  %v649 = vsub.s32 %v646, %v648
  %v650 = vrot.slane %v628, %v649
  %v652 = vunpack.c.l.s4 1983009808
  %v653 = vunpack.c.0.s8 %v652
  %v654 = vlaneseq
  %v655 = vshrl.u32 %v654, 7
  %v656 = vsub.s32 %v653, %v655
  %v657 = vrot.slane %v629, %v656
  %v658 = vcombine.low %v636, %v650
  %v659 = vcombine.high %v636, %v650
  %v660 = vcombine.low %v643, %v657
  %v661 = vcombine.high %v643, %v657
  %v662 = vcombine.low %v33, %v57
  %v663 = vcombine.high %v33, %v57
  %v664 = vcombine.low %v81, %v105
  %v665 = vcombine.high %v81, %v105
  %v667 = vunpack.c.l.s4 1983009808
  %v668 = vunpack.c.0.s8 %v667
  %v669 = vlaneseq
  %v670 = vshrl.u32 %v669, 7
  %v671 = vsub.s32 %v668, %v670
  %v672 = vrot.slane %v662, %v671
  %v674 = vunpack.c.l.s4 1983009808
  %v675 = vunpack.c.0.s8 %v674
  %v676 = vlaneseq
  %v677 = vshrl.u32 %v676, 7
  %v678 = vsub.s32 %v675, %v677
  %v679 = vrot.slane %v663, %v678
  %v681 = vunpack.c.l.s4 1983009808
  %v682 = vunpack.c.0.s8 %v681
  %v683 = vlaneseq
  %v684 = vshrl.u32 %v683, 7
  %v685 = vsub.s32 %v682, %v684
  %v686 = vrot.slane %v664, %v685
  %v688 = vunpack.c.l.s4 1983009808
  %v689 = vunpack.c.0.s8 %v688
  %v690 = vlaneseq
  %v691 = vshrl.u32 %v690, 7
  %v692 = vsub.s32 %v689, %v691
  %v693 = vrot.slane %v665, %v692
  %v694 = vcombine.low %v672, %v686
  %v695 = vcombine.high %v672, %v686
  %v696 = vcombine.low %v679, %v693
  %v697 = vcombine.high %v679, %v693
  %v698 = vcombine.low %v34, %v58
  %v699 = vcombine.high %v34, %v58
  %v700 = vcombine.low %v82, %v106
  %v701 = vcombine.high %v82, %v106
  %v703 = vunpack.c.l.s4 1983009808
  %v704 = vunpack.c.0.s8 %v703
  %v705 = vlaneseq
  %v706 = vshrl.u32 %v705, 7
  %v707 = vsub.s32 %v704, %v706
  %v708 = vrot.slane %v698, %v707
  %v710 = vunpack.c.l.s4 1983009808
  %v711 = vunpack.c.0.s8 %v710
  %v712 = vlaneseq
  %v713 = vshrl.u32 %v712, 7
  %v714 = vsub.s32 %v711, %v713
  %v715 = vrot.slane %v699, %v714
  %v717 = vunpack.c.l.s4 1983009808
  %v718 = vunpack.c.0.s8 %v717
  %v719 = vlaneseq
  %v720 = vshrl.u32 %v719, 7
  %v721 = vsub.s32 %v718, %v720
  %v722 = vrot.slane %v700, %v721
  %v724 = vunpack.c.l.s4 1983009808
  %v725 = vunpack.c.0.s8 %v724
  %v726 = vlaneseq
  %v727 = vshrl.u32 %v726, 7
  %v728 = vsub.s32 %v725, %v727
  %v729 = vrot.slane %v701, %v728
  %v730 = vcombine.low %v708, %v722
  %v731 = vcombine.high %v708, %v722
  %v732 = vcombine.low %v715, %v729
  %v733 = vcombine.high %v715, %v729
  %v734 = vcombine.low %v35, %v59
  %v735 = vcombine.high %v35, %v59
  %v736 = vcombine.low %v83, %v107
  %v737 = vcombine.high %v83, %v107
  %v739 = vunpack.c.l.s4 1983009808
  %v740 = vunpack.c.0.s8 %v739
  %v741 = vlaneseq
  %v742 = vshrl.u32 %v741, 7
  %v743 = vsub.s32 %v740, %v742
  %v744 = vrot.slane %v734, %v743
  %v746 = vunpack.c.l.s4 1983009808
  %v747 = vunpack.c.0.s8 %v746
  %v748 = vlaneseq
  %v749 = vshrl.u32 %v748, 7
  %v750 = vsub.s32 %v747, %v749
  %v751 = vrot.slane %v735, %v750
  %v753 = vunpack.c.l.s4 1983009808
  %v754 = vunpack.c.0.s8 %v753
  %v755 = vlaneseq
  %v756 = vshrl.u32 %v755, 7
  %v757 = vsub.s32 %v754, %v756
  %v758 = vrot.slane %v736, %v757
  %v760 = vunpack.c.l.s4 1983009808
  %v761 = vunpack.c.0.s8 %v760
  %v762 = vlaneseq
  %v763 = vshrl.u32 %v762, 7
  %v764 = vsub.s32 %v761, %v763
  %v765 = vrot.slane %v737, %v764
  %v766 = vcombine.low %v744, %v758
  %v767 = vcombine.high %v744, %v758
  %v768 = vcombine.low %v751, %v765
  %v769 = vcombine.high %v751, %v765
  %v770 = vcombine.low %v36, %v60
  %v771 = vcombine.high %v36, %v60
  %v772 = vcombine.low %v84, %v108
  %v773 = vcombine.high %v84, %v108
  %v775 = vunpack.c.l.s4 1983009808
  %v776 = vunpack.c.0.s8 %v775
  %v777 = vlaneseq
  %v778 = vshrl.u32 %v777, 7
  %v779 = vsub.s32 %v776, %v778
  %v780 = vrot.slane %v770, %v779
  %v782 = vunpack.c.l.s4 1983009808
  %v783 = vunpack.c.0.s8 %v782
  %v784 = vlaneseq
  %v785 = vshrl.u32 %v784, 7
  %v786 = vsub.s32 %v783, %v785
  %v787 = vrot.slane %v771, %v786
  %v789 = vunpack.c.l.s4 1983009808
  %v790 = vunpack.c.0.s8 %v789
  %v791 = vlaneseq
  %v792 = vshrl.u32 %v791, 7
  %v793 = vsub.s32 %v790, %v792
  %v794 = vrot.slane %v772, %v793
  %v796 = vunpack.c.l.s4 1983009808
  %v797 = vunpack.c.0.s8 %v796
  %v798 = vlaneseq
  %v799 = vshrl.u32 %v798, 7
  %v800 = vsub.s32 %v797, %v799
  %v801 = vrot.slane %v773, %v800
  %v802 = vcombine.low %v780, %v794
  %v803 = vcombine.high %v780, %v794
  %v804 = vcombine.low %v787, %v801
  %v805 = vcombine.high %v787, %v801
  %v806 = vcombine.low %v37, %v61
  %v807 = vcombine.high %v37, %v61
  %v808 = vcombine.low %v85, %v109
  %v809 = vcombine.high %v85, %v109
  %v811 = vunpack.c.l.s4 1983009808
  %v812 = vunpack.c.0.s8 %v811
  %v813 = vlaneseq
  %v814 = vshrl.u32 %v813, 7
  %v815 = vsub.s32 %v812, %v814
  %v816 = vrot.slane %v806, %v815
  %v818 = vunpack.c.l.s4 1983009808
  %v819 = vunpack.c.0.s8 %v818
  %v820 = vlaneseq
  %v821 = vshrl.u32 %v820, 7
  %v822 = vsub.s32 %v819, %v821
  %v823 = vrot.slane %v807, %v822
  %v825 = vunpack.c.l.s4 1983009808
  %v826 = vunpack.c.0.s8 %v825
  %v827 = vlaneseq
  %v828 = vshrl.u32 %v827, 7
  %v829 = vsub.s32 %v826, %v828
  %v830 = vrot.slane %v808, %v829
  %v832 = vunpack.c.l.s4 1983009808
  %v833 = vunpack.c.0.s8 %v832
  %v834 = vlaneseq
  %v835 = vshrl.u32 %v834, 7
  %v836 = vsub.s32 %v833, %v835
  %v837 = vrot.slane %v809, %v836
  %v838 = vcombine.low %v816, %v830
  %v839 = vcombine.high %v816, %v830
  %v840 = vcombine.low %v823, %v837
  %v841 = vcombine.high %v823, %v837
  %v842 = vcombine.low %v38, %v62
  %v843 = vcombine.high %v38, %v62
  %v844 = vcombine.low %v86, %v110
  %v845 = vcombine.high %v86, %v110
  %v847 = vunpack.c.l.s4 1983009808
  %v848 = vunpack.c.0.s8 %v847
  %v849 = vlaneseq
  %v850 = vshrl.u32 %v849, 7
  %v851 = vsub.s32 %v848, %v850
  %v852 = vrot.slane %v842, %v851
  %v854 = vunpack.c.l.s4 1983009808
  %v855 = vunpack.c.0.s8 %v854
  %v856 = vlaneseq
  %v857 = vshrl.u32 %v856, 7
  %v858 = vsub.s32 %v855, %v857
  %v859 = vrot.slane %v843, %v858
  %v861 = vunpack.c.l.s4 1983009808
  %v862 = vunpack.c.0.s8 %v861
  %v863 = vlaneseq
  %v864 = vshrl.u32 %v863, 7
  %v865 = vsub.s32 %v862, %v864
  %v866 = vrot.slane %v844, %v865
  %v868 = vunpack.c.l.s4 1983009808
  %v869 = vunpack.c.0.s8 %v868
  %v870 = vlaneseq
  %v871 = vshrl.u32 %v870, 7
  %v872 = vsub.s32 %v869, %v871
  %v873 = vrot.slane %v845, %v872
  %v874 = vcombine.low %v852, %v866
  %v875 = vcombine.high %v852, %v866
  %v876 = vcombine.low %v859, %v873
  %v877 = vcombine.high %v859, %v873
  %v878 = vcombine.low %v39, %v63
  %v879 = vcombine.high %v39, %v63
  %v880 = vcombine.low %v87, %v111
  %v881 = vcombine.high %v87, %v111
  %v883 = vunpack.c.l.s4 1983009808
  %v884 = vunpack.c.0.s8 %v883
  %v885 = vlaneseq
  %v886 = vshrl.u32 %v885, 7
  %v887 = vsub.s32 %v884, %v886
  %v888 = vrot.slane %v878, %v887
  %v890 = vunpack.c.l.s4 1983009808
  %v891 = vunpack.c.0.s8 %v890
  %v892 = vlaneseq
  %v893 = vshrl.u32 %v892, 7
  %v894 = vsub.s32 %v891, %v893
  %v895 = vrot.slane %v879, %v894
  %v897 = vunpack.c.l.s4 1983009808
  %v898 = vunpack.c.0.s8 %v897
  %v899 = vlaneseq
  %v900 = vshrl.u32 %v899, 7
  %v901 = vsub.s32 %v898, %v900
  %v902 = vrot.slane %v880, %v901
  %v904 = vunpack.c.l.s4 1983009808
  %v905 = vunpack.c.0.s8 %v904
  %v906 = vlaneseq
  %v907 = vshrl.u32 %v906, 7
  %v908 = vsub.s32 %v905, %v907
  %v909 = vrot.slane %v881, %v908
  %v910 = vcombine.low %v888, %v902
  %v911 = vcombine.high %v888, %v902
  %v912 = vcombine.low %v895, %v909
  %v913 = vcombine.high %v895, %v909
  %v914 = vcombine.low %v40, %v64
  %v915 = vcombine.high %v40, %v64
  %v916 = vcombine.low %v88, %v112
  %v917 = vcombine.high %v88, %v112
  %v919 = vunpack.c.l.s4 1983009808
  %v920 = vunpack.c.0.s8 %v919
  %v921 = vlaneseq
  %v922 = vshrl.u32 %v921, 7
  %v923 = vsub.s32 %v920, %v922
  %v924 = vrot.slane %v914, %v923
  %v926 = vunpack.c.l.s4 1983009808
  %v927 = vunpack.c.0.s8 %v926
  %v928 = vlaneseq
  %v929 = vshrl.u32 %v928, 7
  %v930 = vsub.s32 %v927, %v929
  %v931 = vrot.slane %v915, %v930
  %v933 = vunpack.c.l.s4 1983009808
  %v934 = vunpack.c.0.s8 %v933
  %v935 = vlaneseq
  %v936 = vshrl.u32 %v935, 7
  %v937 = vsub.s32 %v934, %v936
  %v938 = vrot.slane %v916, %v937
  %v940 = vunpack.c.l.s4 1983009808
  %v941 = vunpack.c.0.s8 %v940
  %v942 = vlaneseq
  %v943 = vshrl.u32 %v942, 7
  %v944 = vsub.s32 %v941, %v943
  %v945 = vrot.slane %v917, %v944
  %v946 = vcombine.low %v924, %v938
  %v947 = vcombine.high %v924, %v938
  %v948 = vcombine.low %v931, %v945
  %v949 = vcombine.high %v931, %v945
  %v950 = vcombine.low %v41, %v65
  %v951 = vcombine.high %v41, %v65
  %v952 = vcombine.low %v89, %v113
  %v953 = vcombine.high %v89, %v113
  %v955 = vunpack.c.l.s4 1983009808
  %v956 = vunpack.c.0.s8 %v955
  %v957 = vlaneseq
  %v958 = vshrl.u32 %v957, 7
  %v959 = vsub.s32 %v956, %v958
  %v960 = vrot.slane %v950, %v959
  %v962 = vunpack.c.l.s4 1983009808
  %v963 = vunpack.c.0.s8 %v962
  %v964 = vlaneseq
  %v965 = vshrl.u32 %v964, 7
  %v966 = vsub.s32 %v963, %v965
  %v967 = vrot.slane %v951, %v966
  %v969 = vunpack.c.l.s4 1983009808
  %v970 = vunpack.c.0.s8 %v969
  %v971 = vlaneseq
  %v972 = vshrl.u32 %v971, 7
  %v973 = vsub.s32 %v970, %v972
  %v974 = vrot.slane %v952, %v973
  %v976 = vunpack.c.l.s4 1983009808
  %v977 = vunpack.c.0.s8 %v976
  %v978 = vlaneseq
  %v979 = vshrl.u32 %v978, 7
  %v980 = vsub.s32 %v977, %v979
  %v981 = vrot.slane %v953, %v980
  %v982 = vcombine.low %v960, %v974
  %v983 = vcombine.high %v960, %v974
  %v984 = vcombine.low %v967, %v981
  %v985 = vcombine.high %v967, %v981
  %v986 = vcombine.low %v42, %v66
  %v987 = vcombine.high %v42, %v66
  %v988 = vcombine.low %v90, %v114
  %v989 = vcombine.high %v90, %v114
  %v991 = vunpack.c.l.s4 1983009808
  %v992 = vunpack.c.0.s8 %v991
  %v993 = vlaneseq
  %v994 = vshrl.u32 %v993, 7
  %v995 = vsub.s32 %v992, %v994
  %v996 = vrot.slane %v986, %v995
  %v998 = vunpack.c.l.s4 1983009808
  %v999 = vunpack.c.0.s8 %v998
  %v1000 = vlaneseq
  %v1001 = vshrl.u32 %v1000, 7
  %v1002 = vsub.s32 %v999, %v1001
  %v1003 = vrot.slane %v987, %v1002
  %v1005 = vunpack.c.l.s4 1983009808
  %v1006 = vunpack.c.0.s8 %v1005
  %v1007 = vlaneseq
  %v1008 = vshrl.u32 %v1007, 7
  %v1009 = vsub.s32 %v1006, %v1008
  %v1010 = vrot.slane %v988, %v1009
  %v1012 = vunpack.c.l.s4 1983009808
  %v1013 = vunpack.c.0.s8 %v1012
  %v1014 = vlaneseq
  %v1015 = vshrl.u32 %v1014, 7
  %v1016 = vsub.s32 %v1013, %v1015
  %v1017 = vrot.slane %v989, %v1016
  %v1018 = vcombine.low %v996, %v1010
  %v1019 = vcombine.high %v996, %v1010
  %v1020 = vcombine.low %v1003, %v1017
  %v1021 = vcombine.high %v1003, %v1017
  %v1022 = vcombine.low %v43, %v67
  %v1023 = vcombine.high %v43, %v67
  %v1024 = vcombine.low %v91, %v115
  %v1025 = vcombine.high %v91, %v115
  %v1027 = vunpack.c.l.s4 1983009808
  %v1028 = vunpack.c.0.s8 %v1027
  %v1029 = vlaneseq
  %v1030 = vshrl.u32 %v1029, 7
  %v1031 = vsub.s32 %v1028, %v1030
  %v1032 = vrot.slane %v1022, %v1031
  %v1034 = vunpack.c.l.s4 1983009808
  %v1035 = vunpack.c.0.s8 %v1034
  %v1036 = vlaneseq
  %v1037 = vshrl.u32 %v1036, 7
  %v1038 = vsub.s32 %v1035, %v1037
  %v1039 = vrot.slane %v1023, %v1038
  %v1041 = vunpack.c.l.s4 1983009808
  %v1042 = vunpack.c.0.s8 %v1041
  %v1043 = vlaneseq
  %v1044 = vshrl.u32 %v1043, 7
  %v1045 = vsub.s32 %v1042, %v1044
  %v1046 = vrot.slane %v1024, %v1045
  %v1048 = vunpack.c.l.s4 1983009808
  %v1049 = vunpack.c.0.s8 %v1048
  %v1050 = vlaneseq
  %v1051 = vshrl.u32 %v1050, 7
  %v1052 = vsub.s32 %v1049, %v1051
  %v1053 = vrot.slane %v1025, %v1052
  %v1054 = vcombine.low %v1032, %v1046
  %v1055 = vcombine.high %v1032, %v1046
  %v1056 = vcombine.low %v1039, %v1053
  %v1057 = vcombine.high %v1039, %v1053
  %v1058 = vcombine.low %v44, %v68
  %v1059 = vcombine.high %v44, %v68
  %v1060 = vcombine.low %v92, %v116
  %v1061 = vcombine.high %v92, %v116
  %v1063 = vunpack.c.l.s4 1983009808
  %v1064 = vunpack.c.0.s8 %v1063
  %v1065 = vlaneseq
  %v1066 = vshrl.u32 %v1065, 7
  %v1067 = vsub.s32 %v1064, %v1066
  %v1068 = vrot.slane %v1058, %v1067
  %v1070 = vunpack.c.l.s4 1983009808
  %v1071 = vunpack.c.0.s8 %v1070
  %v1072 = vlaneseq
  %v1073 = vshrl.u32 %v1072, 7
  %v1074 = vsub.s32 %v1071, %v1073
  %v1075 = vrot.slane %v1059, %v1074
  %v1077 = vunpack.c.l.s4 1983009808
  %v1078 = vunpack.c.0.s8 %v1077
  %v1079 = vlaneseq
  %v1080 = vshrl.u32 %v1079, 7
  %v1081 = vsub.s32 %v1078, %v1080
  %v1082 = vrot.slane %v1060, %v1081
  %v1084 = vunpack.c.l.s4 1983009808
  %v1085 = vunpack.c.0.s8 %v1084
  %v1086 = vlaneseq
  %v1087 = vshrl.u32 %v1086, 7
  %v1088 = vsub.s32 %v1085, %v1087
  %v1089 = vrot.slane %v1061, %v1088
  %v1090 = vcombine.low %v1068, %v1082
  %v1091 = vcombine.high %v1068, %v1082
  %v1092 = vcombine.low %v1075, %v1089
  %v1093 = vcombine.high %v1075, %v1089
  %v1094 = vcombine.low %v45, %v69
  %v1095 = vcombine.high %v45, %v69
  %v1096 = vcombine.low %v93, %v117
  %v1097 = vcombine.high %v93, %v117
  %v1099 = vunpack.c.l.s4 1983009808
  %v1100 = vunpack.c.0.s8 %v1099
  %v1101 = vlaneseq
  %v1102 = vshrl.u32 %v1101, 7
  %v1103 = vsub.s32 %v1100, %v1102
  %v1104 = vrot.slane %v1094, %v1103
  %v1106 = vunpack.c.l.s4 1983009808
  %v1107 = vunpack.c.0.s8 %v1106
  %v1108 = vlaneseq
  %v1109 = vshrl.u32 %v1108, 7
  %v1110 = vsub.s32 %v1107, %v1109
  %v1111 = vrot.slane %v1095, %v1110
  %v1113 = vunpack.c.l.s4 1983009808
  %v1114 = vunpack.c.0.s8 %v1113
  %v1115 = vlaneseq
  %v1116 = vshrl.u32 %v1115, 7
  %v1117 = vsub.s32 %v1114, %v1116
  %v1118 = vrot.slane %v1096, %v1117
  %v1120 = vunpack.c.l.s4 1983009808
  %v1121 = vunpack.c.0.s8 %v1120
  %v1122 = vlaneseq
  %v1123 = vshrl.u32 %v1122, 7
  %v1124 = vsub.s32 %v1121, %v1123
  %v1125 = vrot.slane %v1097, %v1124
  %v1126 = vcombine.low %v1104, %v1118
  %v1127 = vcombine.high %v1104, %v1118
  %v1128 = vcombine.low %v1111, %v1125
  %v1129 = vcombine.high %v1111, %v1125
  %v1130 = vcombine.low %v46, %v70
  %v1131 = vcombine.high %v46, %v70
  %v1132 = vcombine.low %v94, %v118
  %v1133 = vcombine.high %v94, %v118
  %v1135 = vunpack.c.l.s4 1983009808
  %v1136 = vunpack.c.0.s8 %v1135
  %v1137 = vlaneseq
  %v1138 = vshrl.u32 %v1137, 7
  %v1139 = vsub.s32 %v1136, %v1138
  %v1140 = vrot.slane %v1130, %v1139
  %v1142 = vunpack.c.l.s4 1983009808
  %v1143 = vunpack.c.0.s8 %v1142
  %v1144 = vlaneseq
  %v1145 = vshrl.u32 %v1144, 7
  %v1146 = vsub.s32 %v1143, %v1145
  %v1147 = vrot.slane %v1131, %v1146
  %v1149 = vunpack.c.l.s4 1983009808
  %v1150 = vunpack.c.0.s8 %v1149
  %v1151 = vlaneseq
  %v1152 = vshrl.u32 %v1151, 7
  %v1153 = vsub.s32 %v1150, %v1152
  %v1154 = vrot.slane %v1132, %v1153
  %v1156 = vunpack.c.l.s4 1983009808
  %v1157 = vunpack.c.0.s8 %v1156
  %v1158 = vlaneseq
  %v1159 = vshrl.u32 %v1158, 7
  %v1160 = vsub.s32 %v1157, %v1159
  %v1161 = vrot.slane %v1133, %v1160
  %v1162 = vcombine.low %v1140, %v1154
  %v1163 = vcombine.high %v1140, %v1154
  %v1164 = vcombine.low %v1147, %v1161
  %v1165 = vcombine.high %v1147, %v1161
  %v1166 = vcombine.low %v47, %v71
  %v1167 = vcombine.high %v47, %v71
  %v1168 = vcombine.low %v95, %v119
  %v1169 = vcombine.high %v95, %v119
  %v1171 = vunpack.c.l.s4 1983009808
  %v1172 = vunpack.c.0.s8 %v1171
  %v1173 = vlaneseq
  %v1174 = vshrl.u32 %v1173, 7
  %v1175 = vsub.s32 %v1172, %v1174
  %v1176 = vrot.slane %v1166, %v1175
  %v1178 = vunpack.c.l.s4 1983009808
  %v1179 = vunpack.c.0.s8 %v1178
  %v1180 = vlaneseq
  %v1181 = vshrl.u32 %v1180, 7
  %v1182 = vsub.s32 %v1179, %v1181
  %v1183 = vrot.slane %v1167, %v1182
  %v1185 = vunpack.c.l.s4 1983009808
  %v1186 = vunpack.c.0.s8 %v1185
  %v1187 = vlaneseq
  %v1188 = vshrl.u32 %v1187, 7
  %v1189 = vsub.s32 %v1186, %v1188
  %v1190 = vrot.slane %v1168, %v1189
  %v1192 = vunpack.c.l.s4 1983009808
  %v1193 = vunpack.c.0.s8 %v1192
  %v1194 = vlaneseq
  %v1195 = vshrl.u32 %v1194, 7
  %v1196 = vsub.s32 %v1193, %v1195
  %v1197 = vrot.slane %v1169, %v1196
  %v1198 = vcombine.low %v1176, %v1190
  %v1199 = vcombine.high %v1176, %v1190
  %v1200 = vcombine.low %v1183, %v1197
  %v1201 = vcombine.high %v1183, %v1197
  %v1202 = vcombine.low %v48, %v72
  %v1203 = vcombine.high %v48, %v72
  %v1204 = vcombine.low %v96, %v120
  %v1205 = vcombine.high %v96, %v120
  %v1207 = vunpack.c.l.s4 1983009808
  %v1208 = vunpack.c.0.s8 %v1207
  %v1209 = vlaneseq
  %v1210 = vshrl.u32 %v1209, 7
  %v1211 = vsub.s32 %v1208, %v1210
  %v1212 = vrot.slane %v1202, %v1211
  %v1214 = vunpack.c.l.s4 1983009808
  %v1215 = vunpack.c.0.s8 %v1214
  %v1216 = vlaneseq
  %v1217 = vshrl.u32 %v1216, 7
  %v1218 = vsub.s32 %v1215, %v1217
  %v1219 = vrot.slane %v1203, %v1218
  %v1221 = vunpack.c.l.s4 1983009808
  %v1222 = vunpack.c.0.s8 %v1221
  %v1223 = vlaneseq
  %v1224 = vshrl.u32 %v1223, 7
  %v1225 = vsub.s32 %v1222, %v1224
  %v1226 = vrot.slane %v1204, %v1225
  %v1228 = vunpack.c.l.s4 1983009808
  %v1229 = vunpack.c.0.s8 %v1228
  %v1230 = vlaneseq
  %v1231 = vshrl.u32 %v1230, 7
  %v1232 = vsub.s32 %v1229, %v1231
  %v1233 = vrot.slane %v1205, %v1232
  %v1234 = vcombine.low %v1212, %v1226
  %v1235 = vcombine.high %v1212, %v1226
  %v1236 = vcombine.low %v1219, %v1233
  %v1237 = vcombine.high %v1219, %v1233
  %v1238 = vcombine.low %v49, %v73
  %v1239 = vcombine.high %v49, %v73
  %v1240 = vcombine.low %v97, %v121
  %v1241 = vcombine.high %v97, %v121
  %v1243 = vunpack.c.l.s4 1983009808
  %v1244 = vunpack.c.0.s8 %v1243
  %v1245 = vlaneseq
  %v1246 = vshrl.u32 %v1245, 7
  %v1247 = vsub.s32 %v1244, %v1246
  %v1248 = vrot.slane %v1238, %v1247
  %v1250 = vunpack.c.l.s4 1983009808
  %v1251 = vunpack.c.0.s8 %v1250
  %v1252 = vlaneseq
  %v1253 = vshrl.u32 %v1252, 7
  %v1254 = vsub.s32 %v1251, %v1253
  %v1255 = vrot.slane %v1239, %v1254
  %v1257 = vunpack.c.l.s4 1983009808
  %v1258 = vunpack.c.0.s8 %v1257
  %v1259 = vlaneseq
  %v1260 = vshrl.u32 %v1259, 7
  %v1261 = vsub.s32 %v1258, %v1260
  %v1262 = vrot.slane %v1240, %v1261
  %v1264 = vunpack.c.l.s4 1983009808
  %v1265 = vunpack.c.0.s8 %v1264
  %v1266 = vlaneseq
  %v1267 = vshrl.u32 %v1266, 7
  %v1268 = vsub.s32 %v1265, %v1267
  %v1269 = vrot.slane %v1241, %v1268
  %v1270 = vcombine.low %v1248, %v1262
  %v1271 = vcombine.high %v1248, %v1262
  %v1272 = vcombine.low %v1255, %v1269
  %v1273 = vcombine.high %v1255, %v1269
  %v1274 = vcombine.low %v122, %v146
  %v1275 = vcombine.high %v122, %v146
  %v1276 = vcombine.low %v170, %v194
  %v1277 = vcombine.high %v170, %v194
  %v1279 = vunpack.c.l.s4 1983009808
  %v1280 = vunpack.c.0.s8 %v1279
  %v1281 = vlaneseq
  %v1282 = vshrl.u32 %v1281, 7
  %v1283 = vsub.s32 %v1280, %v1282
  %v1284 = vrot.slane %v1274, %v1283
  %v1286 = vunpack.c.l.s4 1983009808
  %v1287 = vunpack.c.0.s8 %v1286
  %v1288 = vlaneseq
  %v1289 = vshrl.u32 %v1288, 7
  %v1290 = vsub.s32 %v1287, %v1289
  %v1291 = vrot.slane %v1275, %v1290
  %v1293 = vunpack.c.l.s4 1983009808
  %v1294 = vunpack.c.0.s8 %v1293
  %v1295 = vlaneseq
  %v1296 = vshrl.u32 %v1295, 7
  %v1297 = vsub.s32 %v1294, %v1296
  %v1298 = vrot.slane %v1276, %v1297
  %v1300 = vunpack.c.l.s4 1983009808
  %v1301 = vunpack.c.0.s8 %v1300
  %v1302 = vlaneseq
  %v1303 = vshrl.u32 %v1302, 7
  %v1304 = vsub.s32 %v1301, %v1303
  %v1305 = vrot.slane %v1277, %v1304
  %v1306 = vcombine.low %v1284, %v1298
  %v1307 = vcombine.high %v1284, %v1298
  %v1308 = vcombine.low %v1291, %v1305
  %v1309 = vcombine.high %v1291, %v1305
  %v1310 = vcombine.low %v123, %v147
  %v1311 = vcombine.high %v123, %v147
  %v1312 = vcombine.low %v171, %v195
  %v1313 = vcombine.high %v171, %v195
  %v1315 = vunpack.c.l.s4 1983009808
  %v1316 = vunpack.c.0.s8 %v1315
  %v1317 = vlaneseq
  %v1318 = vshrl.u32 %v1317, 7
  %v1319 = vsub.s32 %v1316, %v1318
  %v1320 = vrot.slane %v1310, %v1319
  %v1322 = vunpack.c.l.s4 1983009808
  %v1323 = vunpack.c.0.s8 %v1322
  %v1324 = vlaneseq
  %v1325 = vshrl.u32 %v1324, 7
  %v1326 = vsub.s32 %v1323, %v1325
  %v1327 = vrot.slane %v1311, %v1326
  %v1329 = vunpack.c.l.s4 1983009808
  %v1330 = vunpack.c.0.s8 %v1329
  %v1331 = vlaneseq
  %v1332 = vshrl.u32 %v1331, 7
  %v1333 = vsub.s32 %v1330, %v1332
  %v1334 = vrot.slane %v1312, %v1333
  %v1336 = vunpack.c.l.s4 1983009808
  %v1337 = vunpack.c.0.s8 %v1336
  %v1338 = vlaneseq
  %v1339 = vshrl.u32 %v1338, 7
  %v1340 = vsub.s32 %v1337, %v1339
  %v1341 = vrot.slane %v1313, %v1340
  %v1342 = vcombine.low %v1320, %v1334
  %v1343 = vcombine.high %v1320, %v1334
  %v1344 = vcombine.low %v1327, %v1341
  %v1345 = vcombine.high %v1327, %v1341
  %v1346 = vcombine.low %v124, %v148
  %v1347 = vcombine.high %v124, %v148
  %v1348 = vcombine.low %v172, %v196
  %v1349 = vcombine.high %v172, %v196
  %v1351 = vunpack.c.l.s4 1983009808
  %v1352 = vunpack.c.0.s8 %v1351
  %v1353 = vlaneseq
  %v1354 = vshrl.u32 %v1353, 7
  %v1355 = vsub.s32 %v1352, %v1354
  %v1356 = vrot.slane %v1346, %v1355
  %v1358 = vunpack.c.l.s4 1983009808
  %v1359 = vunpack.c.0.s8 %v1358
  %v1360 = vlaneseq
  %v1361 = vshrl.u32 %v1360, 7
  %v1362 = vsub.s32 %v1359, %v1361
  %v1363 = vrot.slane %v1347, %v1362
  %v1365 = vunpack.c.l.s4 1983009808
  %v1366 = vunpack.c.0.s8 %v1365
  %v1367 = vlaneseq
  %v1368 = vshrl.u32 %v1367, 7
  %v1369 = vsub.s32 %v1366, %v1368
  %v1370 = vrot.slane %v1348, %v1369
  %v1372 = vunpack.c.l.s4 1983009808
  %v1373 = vunpack.c.0.s8 %v1372
  %v1374 = vlaneseq
  %v1375 = vshrl.u32 %v1374, 7
  %v1376 = vsub.s32 %v1373, %v1375
  %v1377 = vrot.slane %v1349, %v1376
  %v1378 = vcombine.low %v1356, %v1370
  %v1379 = vcombine.high %v1356, %v1370
  %v1380 = vcombine.low %v1363, %v1377
  %v1381 = vcombine.high %v1363, %v1377
  %v1382 = vcombine.low %v125, %v149
  %v1383 = vcombine.high %v125, %v149
  %v1384 = vcombine.low %v173, %v197
  %v1385 = vcombine.high %v173, %v197
  %v1387 = vunpack.c.l.s4 1983009808
  %v1388 = vunpack.c.0.s8 %v1387
  %v1389 = vlaneseq
  %v1390 = vshrl.u32 %v1389, 7
  %v1391 = vsub.s32 %v1388, %v1390
  %v1392 = vrot.slane %v1382, %v1391
  %v1394 = vunpack.c.l.s4 1983009808
  %v1395 = vunpack.c.0.s8 %v1394
  %v1396 = vlaneseq
  %v1397 = vshrl.u32 %v1396, 7
  %v1398 = vsub.s32 %v1395, %v1397
  %v1399 = vrot.slane %v1383, %v1398
  %v1401 = vunpack.c.l.s4 1983009808
  %v1402 = vunpack.c.0.s8 %v1401
  %v1403 = vlaneseq
  %v1404 = vshrl.u32 %v1403, 7
  %v1405 = vsub.s32 %v1402, %v1404
  %v1406 = vrot.slane %v1384, %v1405
  %v1408 = vunpack.c.l.s4 1983009808
  %v1409 = vunpack.c.0.s8 %v1408
  %v1410 = vlaneseq
  %v1411 = vshrl.u32 %v1410, 7
  %v1412 = vsub.s32 %v1409, %v1411
  %v1413 = vrot.slane %v1385, %v1412
  %v1414 = vcombine.low %v1392, %v1406
  %v1415 = vcombine.high %v1392, %v1406
  %v1416 = vcombine.low %v1399, %v1413
  %v1417 = vcombine.high %v1399, %v1413
  %v1418 = vcombine.low %v126, %v150
  %v1419 = vcombine.high %v126, %v150
  %v1420 = vcombine.low %v174, %v198
  %v1421 = vcombine.high %v174, %v198
  %v1423 = vunpack.c.l.s4 1983009808
  %v1424 = vunpack.c.0.s8 %v1423
  %v1425 = vlaneseq
  %v1426 = vshrl.u32 %v1425, 7
  %v1427 = vsub.s32 %v1424, %v1426
  %v1428 = vrot.slane %v1418, %v1427
  %v1430 = vunpack.c.l.s4 1983009808
  %v1431 = vunpack.c.0.s8 %v1430
  %v1432 = vlaneseq
  %v1433 = vshrl.u32 %v1432, 7
  %v1434 = vsub.s32 %v1431, %v1433
  %v1435 = vrot.slane %v1419, %v1434
  %v1437 = vunpack.c.l.s4 1983009808
  %v1438 = vunpack.c.0.s8 %v1437
  %v1439 = vlaneseq
  %v1440 = vshrl.u32 %v1439, 7
  %v1441 = vsub.s32 %v1438, %v1440
  %v1442 = vrot.slane %v1420, %v1441
  %v1444 = vunpack.c.l.s4 1983009808
  %v1445 = vunpack.c.0.s8 %v1444
  %v1446 = vlaneseq
  %v1447 = vshrl.u32 %v1446, 7
  %v1448 = vsub.s32 %v1445, %v1447
  %v1449 = vrot.slane %v1421, %v1448
  %v1450 = vcombine.low %v1428, %v1442
  %v1451 = vcombine.high %v1428, %v1442
  %v1452 = vcombine.low %v1435, %v1449
  %v1453 = vcombine.high %v1435, %v1449
  %v1454 = vcombine.low %v127, %v151
  %v1455 = vcombine.high %v127, %v151
  %v1456 = vcombine.low %v175, %v199
  %v1457 = vcombine.high %v175, %v199
  %v1459 = vunpack.c.l.s4 1983009808
  %v1460 = vunpack.c.0.s8 %v1459
  %v1461 = vlaneseq
  %v1462 = vshrl.u32 %v1461, 7
  %v1463 = vsub.s32 %v1460, %v1462
  %v1464 = vrot.slane %v1454, %v1463
  %v1466 = vunpack.c.l.s4 1983009808
  %v1467 = vunpack.c.0.s8 %v1466
  %v1468 = vlaneseq
  %v1469 = vshrl.u32 %v1468, 7
  %v1470 = vsub.s32 %v1467, %v1469
  %v1471 = vrot.slane %v1455, %v1470
  %v1473 = vunpack.c.l.s4 1983009808
  %v1474 = vunpack.c.0.s8 %v1473
  %v1475 = vlaneseq
  %v1476 = vshrl.u32 %v1475, 7
  %v1477 = vsub.s32 %v1474, %v1476
  %v1478 = vrot.slane %v1456, %v1477
  %v1480 = vunpack.c.l.s4 1983009808
  %v1481 = vunpack.c.0.s8 %v1480
  %v1482 = vlaneseq
  %v1483 = vshrl.u32 %v1482, 7
  %v1484 = vsub.s32 %v1481, %v1483
  %v1485 = vrot.slane %v1457, %v1484
  %v1486 = vcombine.low %v1464, %v1478
  %v1487 = vcombine.high %v1464, %v1478
  %v1488 = vcombine.low %v1471, %v1485
  %v1489 = vcombine.high %v1471, %v1485
  %v1490 = vcombine.low %v128, %v152
  %v1491 = vcombine.high %v128, %v152
  %v1492 = vcombine.low %v176, %v200
  %v1493 = vcombine.high %v176, %v200
  %v1495 = vunpack.c.l.s4 1983009808
  %v1496 = vunpack.c.0.s8 %v1495
  %v1497 = vlaneseq
  %v1498 = vshrl.u32 %v1497, 7
  %v1499 = vsub.s32 %v1496, %v1498
  %v1500 = vrot.slane %v1490, %v1499
  %v1502 = vunpack.c.l.s4 1983009808
  %v1503 = vunpack.c.0.s8 %v1502
  %v1504 = vlaneseq
  %v1505 = vshrl.u32 %v1504, 7
  %v1506 = vsub.s32 %v1503, %v1505
  %v1507 = vrot.slane %v1491, %v1506
  %v1509 = vunpack.c.l.s4 1983009808
  %v1510 = vunpack.c.0.s8 %v1509
  %v1511 = vlaneseq
  %v1512 = vshrl.u32 %v1511, 7
  %v1513 = vsub.s32 %v1510, %v1512
  %v1514 = vrot.slane %v1492, %v1513
  %v1516 = vunpack.c.l.s4 1983009808
  %v1517 = vunpack.c.0.s8 %v1516
  %v1518 = vlaneseq
  %v1519 = vshrl.u32 %v1518, 7
  %v1520 = vsub.s32 %v1517, %v1519
  %v1521 = vrot.slane %v1493, %v1520
  %v1522 = vcombine.low %v1500, %v1514
  %v1523 = vcombine.high %v1500, %v1514
  %v1524 = vcombine.low %v1507, %v1521
  %v1525 = vcombine.high %v1507, %v1521
  %v1526 = vcombine.low %v129, %v153
  %v1527 = vcombine.high %v129, %v153
  %v1528 = vcombine.low %v177, %v201
  %v1529 = vcombine.high %v177, %v201
  %v1531 = vunpack.c.l.s4 1983009808
  %v1532 = vunpack.c.0.s8 %v1531
  %v1533 = vlaneseq
  %v1534 = vshrl.u32 %v1533, 7
  %v1535 = vsub.s32 %v1532, %v1534
  %v1536 = vrot.slane %v1526, %v1535
  %v1538 = vunpack.c.l.s4 1983009808
  %v1539 = vunpack.c.0.s8 %v1538
  %v1540 = vlaneseq
  %v1541 = vshrl.u32 %v1540, 7
  %v1542 = vsub.s32 %v1539, %v1541
  %v1543 = vrot.slane %v1527, %v1542
  %v1545 = vunpack.c.l.s4 1983009808
  %v1546 = vunpack.c.0.s8 %v1545
  %v1547 = vlaneseq
  %v1548 = vshrl.u32 %v1547, 7
  %v1549 = vsub.s32 %v1546, %v1548
  %v1550 = vrot.slane %v1528, %v1549
  %v1552 = vunpack.c.l.s4 1983009808
  %v1553 = vunpack.c.0.s8 %v1552
  %v1554 = vlaneseq
  %v1555 = vshrl.u32 %v1554, 7
  %v1556 = vsub.s32 %v1553, %v1555
  %v1557 = vrot.slane %v1529, %v1556
  %v1558 = vcombine.low %v1536, %v1550
  %v1559 = vcombine.high %v1536, %v1550
  %v1560 = vcombine.low %v1543, %v1557
  %v1561 = vcombine.high %v1543, %v1557
  %v1562 = vcombine.low %v130, %v154
  %v1563 = vcombine.high %v130, %v154
  %v1564 = vcombine.low %v178, %v202
  %v1565 = vcombine.high %v178, %v202
  %v1567 = vunpack.c.l.s4 1983009808
  %v1568 = vunpack.c.0.s8 %v1567
  %v1569 = vlaneseq
  %v1570 = vshrl.u32 %v1569, 7
  %v1571 = vsub.s32 %v1568, %v1570
  %v1572 = vrot.slane %v1562, %v1571
  %v1574 = vunpack.c.l.s4 1983009808
  %v1575 = vunpack.c.0.s8 %v1574
  %v1576 = vlaneseq
  %v1577 = vshrl.u32 %v1576, 7
  %v1578 = vsub.s32 %v1575, %v1577
  %v1579 = vrot.slane %v1563, %v1578
  %v1581 = vunpack.c.l.s4 1983009808
  %v1582 = vunpack.c.0.s8 %v1581
  %v1583 = vlaneseq
  %v1584 = vshrl.u32 %v1583, 7
  %v1585 = vsub.s32 %v1582, %v1584
  %v1586 = vrot.slane %v1564, %v1585
  %v1588 = vunpack.c.l.s4 1983009808
  %v1589 = vunpack.c.0.s8 %v1588
  %v1590 = vlaneseq
  %v1591 = vshrl.u32 %v1590, 7
  %v1592 = vsub.s32 %v1589, %v1591
  %v1593 = vrot.slane %v1565, %v1592
  %v1594 = vcombine.low %v1572, %v1586
  %v1595 = vcombine.high %v1572, %v1586
  %v1596 = vcombine.low %v1579, %v1593
  %v1597 = vcombine.high %v1579, %v1593
  %v1598 = vcombine.low %v131, %v155
  %v1599 = vcombine.high %v131, %v155
  %v1600 = vcombine.low %v179, %v203
  %v1601 = vcombine.high %v179, %v203
  %v1603 = vunpack.c.l.s4 1983009808
  %v1604 = vunpack.c.0.s8 %v1603
  %v1605 = vlaneseq
  %v1606 = vshrl.u32 %v1605, 7
  %v1607 = vsub.s32 %v1604, %v1606
  %v1608 = vrot.slane %v1598, %v1607
  %v1610 = vunpack.c.l.s4 1983009808
  %v1611 = vunpack.c.0.s8 %v1610
  %v1612 = vlaneseq
  %v1613 = vshrl.u32 %v1612, 7
  %v1614 = vsub.s32 %v1611, %v1613
  %v1615 = vrot.slane %v1599, %v1614
  %v1617 = vunpack.c.l.s4 1983009808
  %v1618 = vunpack.c.0.s8 %v1617
  %v1619 = vlaneseq
  %v1620 = vshrl.u32 %v1619, 7
  %v1621 = vsub.s32 %v1618, %v1620
  %v1622 = vrot.slane %v1600, %v1621
  %v1624 = vunpack.c.l.s4 1983009808
  %v1625 = vunpack.c.0.s8 %v1624
  %v1626 = vlaneseq
  %v1627 = vshrl.u32 %v1626, 7
  %v1628 = vsub.s32 %v1625, %v1627
  %v1629 = vrot.slane %v1601, %v1628
  %v1630 = vcombine.low %v1608, %v1622
  %v1631 = vcombine.high %v1608, %v1622
  %v1632 = vcombine.low %v1615, %v1629
  %v1633 = vcombine.high %v1615, %v1629
  %v1634 = vcombine.low %v132, %v156
  %v1635 = vcombine.high %v132, %v156
  %v1636 = vcombine.low %v180, %v204
  %v1637 = vcombine.high %v180, %v204
  %v1639 = vunpack.c.l.s4 1983009808
  %v1640 = vunpack.c.0.s8 %v1639
  %v1641 = vlaneseq
  %v1642 = vshrl.u32 %v1641, 7
  %v1643 = vsub.s32 %v1640, %v1642
  %v1644 = vrot.slane %v1634, %v1643
  %v1646 = vunpack.c.l.s4 1983009808
  %v1647 = vunpack.c.0.s8 %v1646
  %v1648 = vlaneseq
  %v1649 = vshrl.u32 %v1648, 7
  %v1650 = vsub.s32 %v1647, %v1649
  %v1651 = vrot.slane %v1635, %v1650
  %v1653 = vunpack.c.l.s4 1983009808
  %v1654 = vunpack.c.0.s8 %v1653
  %v1655 = vlaneseq
  %v1656 = vshrl.u32 %v1655, 7
  %v1657 = vsub.s32 %v1654, %v1656
  %v1658 = vrot.slane %v1636, %v1657
  %v1660 = vunpack.c.l.s4 1983009808
  %v1661 = vunpack.c.0.s8 %v1660
  %v1662 = vlaneseq
  %v1663 = vshrl.u32 %v1662, 7
  %v1664 = vsub.s32 %v1661, %v1663
  %v1665 = vrot.slane %v1637, %v1664
  %v1666 = vcombine.low %v1644, %v1658
  %v1667 = vcombine.high %v1644, %v1658
  %v1668 = vcombine.low %v1651, %v1665
  %v1669 = vcombine.high %v1651, %v1665
  %v1670 = vcombine.low %v133, %v157
  %v1671 = vcombine.high %v133, %v157
  %v1672 = vcombine.low %v181, %v205
  %v1673 = vcombine.high %v181, %v205
  %v1675 = vunpack.c.l.s4 1983009808
  %v1676 = vunpack.c.0.s8 %v1675
  %v1677 = vlaneseq
  %v1678 = vshrl.u32 %v1677, 7
  %v1679 = vsub.s32 %v1676, %v1678
  %v1680 = vrot.slane %v1670, %v1679
  %v1682 = vunpack.c.l.s4 1983009808
  %v1683 = vunpack.c.0.s8 %v1682
  %v1684 = vlaneseq
  %v1685 = vshrl.u32 %v1684, 7
  %v1686 = vsub.s32 %v1683, %v1685
  %v1687 = vrot.slane %v1671, %v1686
  %v1689 = vunpack.c.l.s4 1983009808
  %v1690 = vunpack.c.0.s8 %v1689
  %v1691 = vlaneseq
  %v1692 = vshrl.u32 %v1691, 7
  %v1693 = vsub.s32 %v1690, %v1692
  %v1694 = vrot.slane %v1672, %v1693
  %v1696 = vunpack.c.l.s4 1983009808
  %v1697 = vunpack.c.0.s8 %v1696
  %v1698 = vlaneseq
  %v1699 = vshrl.u32 %v1698, 7
  %v1700 = vsub.s32 %v1697, %v1699
  %v1701 = vrot.slane %v1673, %v1700
  %v1702 = vcombine.low %v1680, %v1694
  %v1703 = vcombine.high %v1680, %v1694
  %v1704 = vcombine.low %v1687, %v1701
  %v1705 = vcombine.high %v1687, %v1701
  %v1706 = vcombine.low %v134, %v158
  %v1707 = vcombine.high %v134, %v158
  %v1708 = vcombine.low %v182, %v206
  %v1709 = vcombine.high %v182, %v206
  %v1711 = vunpack.c.l.s4 1983009808
  %v1712 = vunpack.c.0.s8 %v1711
  %v1713 = vlaneseq
  %v1714 = vshrl.u32 %v1713, 7
  %v1715 = vsub.s32 %v1712, %v1714
  %v1716 = vrot.slane %v1706, %v1715
  %v1718 = vunpack.c.l.s4 1983009808
  %v1719 = vunpack.c.0.s8 %v1718
  %v1720 = vlaneseq
  %v1721 = vshrl.u32 %v1720, 7
  %v1722 = vsub.s32 %v1719, %v1721
  %v1723 = vrot.slane %v1707, %v1722
  %v1725 = vunpack.c.l.s4 1983009808
  %v1726 = vunpack.c.0.s8 %v1725
  %v1727 = vlaneseq
  %v1728 = vshrl.u32 %v1727, 7
  %v1729 = vsub.s32 %v1726, %v1728
  %v1730 = vrot.slane %v1708, %v1729
  %v1732 = vunpack.c.l.s4 1983009808
  %v1733 = vunpack.c.0.s8 %v1732
  %v1734 = vlaneseq
  %v1735 = vshrl.u32 %v1734, 7
  %v1736 = vsub.s32 %v1733, %v1735
  %v1737 = vrot.slane %v1709, %v1736
  %v1738 = vcombine.low %v1716, %v1730
  %v1739 = vcombine.high %v1716, %v1730
  %v1740 = vcombine.low %v1723, %v1737
  %v1741 = vcombine.high %v1723, %v1737
  %v1742 = vcombine.low %v135, %v159
  %v1743 = vcombine.high %v135, %v159
  %v1744 = vcombine.low %v183, %v207
  %v1745 = vcombine.high %v183, %v207
  %v1747 = vunpack.c.l.s4 1983009808
  %v1748 = vunpack.c.0.s8 %v1747
  %v1749 = vlaneseq
  %v1750 = vshrl.u32 %v1749, 7
  %v1751 = vsub.s32 %v1748, %v1750
  %v1752 = vrot.slane %v1742, %v1751
  %v1754 = vunpack.c.l.s4 1983009808
  %v1755 = vunpack.c.0.s8 %v1754
  %v1756 = vlaneseq
  %v1757 = vshrl.u32 %v1756, 7
  %v1758 = vsub.s32 %v1755, %v1757
  %v1759 = vrot.slane %v1743, %v1758
  %v1761 = vunpack.c.l.s4 1983009808
  %v1762 = vunpack.c.0.s8 %v1761
  %v1763 = vlaneseq
  %v1764 = vshrl.u32 %v1763, 7
  %v1765 = vsub.s32 %v1762, %v1764
  %v1766 = vrot.slane %v1744, %v1765
  %v1768 = vunpack.c.l.s4 1983009808
  %v1769 = vunpack.c.0.s8 %v1768
  %v1770 = vlaneseq
  %v1771 = vshrl.u32 %v1770, 7
  %v1772 = vsub.s32 %v1769, %v1771
  %v1773 = vrot.slane %v1745, %v1772
  %v1774 = vcombine.low %v1752, %v1766
  %v1775 = vcombine.high %v1752, %v1766
  %v1776 = vcombine.low %v1759, %v1773
  %v1777 = vcombine.high %v1759, %v1773
  %v1778 = vcombine.low %v136, %v160
  %v1779 = vcombine.high %v136, %v160
  %v1780 = vcombine.low %v184, %v208
  %v1781 = vcombine.high %v184, %v208
  %v1783 = vunpack.c.l.s4 1983009808
  %v1784 = vunpack.c.0.s8 %v1783
  %v1785 = vlaneseq
  %v1786 = vshrl.u32 %v1785, 7
  %v1787 = vsub.s32 %v1784, %v1786
  %v1788 = vrot.slane %v1778, %v1787
  %v1790 = vunpack.c.l.s4 1983009808
  %v1791 = vunpack.c.0.s8 %v1790
  %v1792 = vlaneseq
  %v1793 = vshrl.u32 %v1792, 7
  %v1794 = vsub.s32 %v1791, %v1793
  %v1795 = vrot.slane %v1779, %v1794
  %v1797 = vunpack.c.l.s4 1983009808
  %v1798 = vunpack.c.0.s8 %v1797
  %v1799 = vlaneseq
  %v1800 = vshrl.u32 %v1799, 7
  %v1801 = vsub.s32 %v1798, %v1800
  %v1802 = vrot.slane %v1780, %v1801
  %v1804 = vunpack.c.l.s4 1983009808
  %v1805 = vunpack.c.0.s8 %v1804
  %v1806 = vlaneseq
  %v1807 = vshrl.u32 %v1806, 7
  %v1808 = vsub.s32 %v1805, %v1807
  %v1809 = vrot.slane %v1781, %v1808
  %v1810 = vcombine.low %v1788, %v1802
  %v1811 = vcombine.high %v1788, %v1802
  %v1812 = vcombine.low %v1795, %v1809
  %v1813 = vcombine.high %v1795, %v1809
  %v1814 = vcombine.low %v137, %v161
  %v1815 = vcombine.high %v137, %v161
  %v1816 = vcombine.low %v185, %v209
  %v1817 = vcombine.high %v185, %v209
  %v1819 = vunpack.c.l.s4 1983009808
  %v1820 = vunpack.c.0.s8 %v1819
  %v1821 = vlaneseq
  %v1822 = vshrl.u32 %v1821, 7
  %v1823 = vsub.s32 %v1820, %v1822
  %v1824 = vrot.slane %v1814, %v1823
  %v1826 = vunpack.c.l.s4 1983009808
  %v1827 = vunpack.c.0.s8 %v1826
  %v1828 = vlaneseq
  %v1829 = vshrl.u32 %v1828, 7
  %v1830 = vsub.s32 %v1827, %v1829
  %v1831 = vrot.slane %v1815, %v1830
  %v1833 = vunpack.c.l.s4 1983009808
  %v1834 = vunpack.c.0.s8 %v1833
  %v1835 = vlaneseq
  %v1836 = vshrl.u32 %v1835, 7
  %v1837 = vsub.s32 %v1834, %v1836
  %v1838 = vrot.slane %v1816, %v1837
  %v1840 = vunpack.c.l.s4 1983009808
  %v1841 = vunpack.c.0.s8 %v1840
  %v1842 = vlaneseq
  %v1843 = vshrl.u32 %v1842, 7
  %v1844 = vsub.s32 %v1841, %v1843
  %v1845 = vrot.slane %v1817, %v1844
  %v1846 = vcombine.low %v1824, %v1838
  %v1847 = vcombine.high %v1824, %v1838
  %v1848 = vcombine.low %v1831, %v1845
  %v1849 = vcombine.high %v1831, %v1845
  %v1850 = vcombine.low %v138, %v162
  %v1851 = vcombine.high %v138, %v162
  %v1852 = vcombine.low %v186, %v210
  %v1853 = vcombine.high %v186, %v210
  %v1855 = vunpack.c.l.s4 1983009808
  %v1856 = vunpack.c.0.s8 %v1855
  %v1857 = vlaneseq
  %v1858 = vshrl.u32 %v1857, 7
  %v1859 = vsub.s32 %v1856, %v1858
  %v1860 = vrot.slane %v1850, %v1859
  %v1862 = vunpack.c.l.s4 1983009808
  %v1863 = vunpack.c.0.s8 %v1862
  %v1864 = vlaneseq
  %v1865 = vshrl.u32 %v1864, 7
  %v1866 = vsub.s32 %v1863, %v1865
  %v1867 = vrot.slane %v1851, %v1866
  %v1869 = vunpack.c.l.s4 1983009808
  %v1870 = vunpack.c.0.s8 %v1869
  %v1871 = vlaneseq
  %v1872 = vshrl.u32 %v1871, 7
  %v1873 = vsub.s32 %v1870, %v1872
  %v1874 = vrot.slane %v1852, %v1873
  %v1876 = vunpack.c.l.s4 1983009808
  %v1877 = vunpack.c.0.s8 %v1876
  %v1878 = vlaneseq
  %v1879 = vshrl.u32 %v1878, 7
  %v1880 = vsub.s32 %v1877, %v1879
  %v1881 = vrot.slane %v1853, %v1880
  %v1882 = vcombine.low %v1860, %v1874
  %v1883 = vcombine.high %v1860, %v1874
  %v1884 = vcombine.low %v1867, %v1881
  %v1885 = vcombine.high %v1867, %v1881
  %v1886 = vcombine.low %v139, %v163
  %v1887 = vcombine.high %v139, %v163
  %v1888 = vcombine.low %v187, %v211
  %v1889 = vcombine.high %v187, %v211
  %v1891 = vunpack.c.l.s4 1983009808
  %v1892 = vunpack.c.0.s8 %v1891
  %v1893 = vlaneseq
  %v1894 = vshrl.u32 %v1893, 7
  %v1895 = vsub.s32 %v1892, %v1894
  %v1896 = vrot.slane %v1886, %v1895
  %v1898 = vunpack.c.l.s4 1983009808
  %v1899 = vunpack.c.0.s8 %v1898
  %v1900 = vlaneseq
  %v1901 = vshrl.u32 %v1900, 7
  %v1902 = vsub.s32 %v1899, %v1901
  %v1903 = vrot.slane %v1887, %v1902
  %v1905 = vunpack.c.l.s4 1983009808
  %v1906 = vunpack.c.0.s8 %v1905
  %v1907 = vlaneseq
  %v1908 = vshrl.u32 %v1907, 7
  %v1909 = vsub.s32 %v1906, %v1908
  %v1910 = vrot.slane %v1888, %v1909
  %v1912 = vunpack.c.l.s4 1983009808
  %v1913 = vunpack.c.0.s8 %v1912
  %v1914 = vlaneseq
  %v1915 = vshrl.u32 %v1914, 7
  %v1916 = vsub.s32 %v1913, %v1915
  %v1917 = vrot.slane %v1889, %v1916
  %v1918 = vcombine.low %v1896, %v1910
  %v1919 = vcombine.high %v1896, %v1910
  %v1920 = vcombine.low %v1903, %v1917
  %v1921 = vcombine.high %v1903, %v1917
  %v1922 = vcombine.low %v140, %v164
  %v1923 = vcombine.high %v140, %v164
  %v1924 = vcombine.low %v188, %v212
  %v1925 = vcombine.high %v188, %v212
  %v1927 = vunpack.c.l.s4 1983009808
  %v1928 = vunpack.c.0.s8 %v1927
  %v1929 = vlaneseq
  %v1930 = vshrl.u32 %v1929, 7
  %v1931 = vsub.s32 %v1928, %v1930
  %v1932 = vrot.slane %v1922, %v1931
  %v1934 = vunpack.c.l.s4 1983009808
  %v1935 = vunpack.c.0.s8 %v1934
  %v1936 = vlaneseq
  %v1937 = vshrl.u32 %v1936, 7
  %v1938 = vsub.s32 %v1935, %v1937
  %v1939 = vrot.slane %v1923, %v1938
  %v1941 = vunpack.c.l.s4 1983009808
  %v1942 = vunpack.c.0.s8 %v1941
  %v1943 = vlaneseq
  %v1944 = vshrl.u32 %v1943, 7
  %v1945 = vsub.s32 %v1942, %v1944
  %v1946 = vrot.slane %v1924, %v1945
  %v1948 = vunpack.c.l.s4 1983009808
  %v1949 = vunpack.c.0.s8 %v1948
  %v1950 = vlaneseq
  %v1951 = vshrl.u32 %v1950, 7
  %v1952 = vsub.s32 %v1949, %v1951
  %v1953 = vrot.slane %v1925, %v1952
  %v1954 = vcombine.low %v1932, %v1946
  %v1955 = vcombine.high %v1932, %v1946
  %v1956 = vcombine.low %v1939, %v1953
  %v1957 = vcombine.high %v1939, %v1953
  %v1958 = vcombine.low %v141, %v165
  %v1959 = vcombine.high %v141, %v165
  %v1960 = vcombine.low %v189, %v213
  %v1961 = vcombine.high %v189, %v213
  %v1963 = vunpack.c.l.s4 1983009808
  %v1964 = vunpack.c.0.s8 %v1963
  %v1965 = vlaneseq
  %v1966 = vshrl.u32 %v1965, 7
  %v1967 = vsub.s32 %v1964, %v1966
  %v1968 = vrot.slane %v1958, %v1967
  %v1970 = vunpack.c.l.s4 1983009808
  %v1971 = vunpack.c.0.s8 %v1970
  %v1972 = vlaneseq
  %v1973 = vshrl.u32 %v1972, 7
  %v1974 = vsub.s32 %v1971, %v1973
  %v1975 = vrot.slane %v1959, %v1974
  %v1977 = vunpack.c.l.s4 1983009808
  %v1978 = vunpack.c.0.s8 %v1977
  %v1979 = vlaneseq
  %v1980 = vshrl.u32 %v1979, 7
  %v1981 = vsub.s32 %v1978, %v1980
  %v1982 = vrot.slane %v1960, %v1981
  %v1984 = vunpack.c.l.s4 1983009808
  %v1985 = vunpack.c.0.s8 %v1984
  %v1986 = vlaneseq
  %v1987 = vshrl.u32 %v1986, 7
  %v1988 = vsub.s32 %v1985, %v1987
  %v1989 = vrot.slane %v1961, %v1988
  %v1990 = vcombine.low %v1968, %v1982
  %v1991 = vcombine.high %v1968, %v1982
  %v1992 = vcombine.low %v1975, %v1989
  %v1993 = vcombine.high %v1975, %v1989
  %v1994 = vcombine.low %v142, %v166
  %v1995 = vcombine.high %v142, %v166
  %v1996 = vcombine.low %v190, %v214
  %v1997 = vcombine.high %v190, %v214
  %v1999 = vunpack.c.l.s4 1983009808
  %v2000 = vunpack.c.0.s8 %v1999
  %v2001 = vlaneseq
  %v2002 = vshrl.u32 %v2001, 7
  %v2003 = vsub.s32 %v2000, %v2002
  %v2004 = vrot.slane %v1994, %v2003
  %v2006 = vunpack.c.l.s4 1983009808
  %v2007 = vunpack.c.0.s8 %v2006
  %v2008 = vlaneseq
  %v2009 = vshrl.u32 %v2008, 7
  %v2010 = vsub.s32 %v2007, %v2009
  %v2011 = vrot.slane %v1995, %v2010
  %v2013 = vunpack.c.l.s4 1983009808
  %v2014 = vunpack.c.0.s8 %v2013
  %v2015 = vlaneseq
  %v2016 = vshrl.u32 %v2015, 7
  %v2017 = vsub.s32 %v2014, %v2016
  %v2018 = vrot.slane %v1996, %v2017
  %v2020 = vunpack.c.l.s4 1983009808
  %v2021 = vunpack.c.0.s8 %v2020
  %v2022 = vlaneseq
  %v2023 = vshrl.u32 %v2022, 7
  %v2024 = vsub.s32 %v2021, %v2023
  %v2025 = vrot.slane %v1997, %v2024
  %v2026 = vcombine.low %v2004, %v2018
  %v2027 = vcombine.high %v2004, %v2018
  %v2028 = vcombine.low %v2011, %v2025
  %v2029 = vcombine.high %v2011, %v2025
  %v2030 = vcombine.low %v143, %v167
  %v2031 = vcombine.high %v143, %v167
  %v2032 = vcombine.low %v191, %v215
  %v2033 = vcombine.high %v191, %v215
  %v2035 = vunpack.c.l.s4 1983009808
  %v2036 = vunpack.c.0.s8 %v2035
  %v2037 = vlaneseq
  %v2038 = vshrl.u32 %v2037, 7
  %v2039 = vsub.s32 %v2036, %v2038
  %v2040 = vrot.slane %v2030, %v2039
  %v2042 = vunpack.c.l.s4 1983009808
  %v2043 = vunpack.c.0.s8 %v2042
  %v2044 = vlaneseq
  %v2045 = vshrl.u32 %v2044, 7
  %v2046 = vsub.s32 %v2043, %v2045
  %v2047 = vrot.slane %v2031, %v2046
  %v2049 = vunpack.c.l.s4 1983009808
  %v2050 = vunpack.c.0.s8 %v2049
  %v2051 = vlaneseq
  %v2052 = vshrl.u32 %v2051, 7
  %v2053 = vsub.s32 %v2050, %v2052
  %v2054 = vrot.slane %v2032, %v2053
  %v2056 = vunpack.c.l.s4 1983009808
  %v2057 = vunpack.c.0.s8 %v2056
  %v2058 = vlaneseq
  %v2059 = vshrl.u32 %v2058, 7
  %v2060 = vsub.s32 %v2057, %v2059
  %v2061 = vrot.slane %v2033, %v2060
  %v2062 = vcombine.low %v2040, %v2054
  %v2063 = vcombine.high %v2040, %v2054
  %v2064 = vcombine.low %v2047, %v2061
  %v2065 = vcombine.high %v2047, %v2061
  %v2066 = vcombine.low %v144, %v168
  %v2067 = vcombine.high %v144, %v168
  %v2068 = vcombine.low %v192, %v216
  %v2069 = vcombine.high %v192, %v216
  %v2071 = vunpack.c.l.s4 1983009808
  %v2072 = vunpack.c.0.s8 %v2071
  %v2073 = vlaneseq
  %v2074 = vshrl.u32 %v2073, 7
  %v2075 = vsub.s32 %v2072, %v2074
  %v2076 = vrot.slane %v2066, %v2075
  %v2078 = vunpack.c.l.s4 1983009808
  %v2079 = vunpack.c.0.s8 %v2078
  %v2080 = vlaneseq
  %v2081 = vshrl.u32 %v2080, 7
  %v2082 = vsub.s32 %v2079, %v2081
  %v2083 = vrot.slane %v2067, %v2082
  %v2085 = vunpack.c.l.s4 1983009808
  %v2086 = vunpack.c.0.s8 %v2085
  %v2087 = vlaneseq
  %v2088 = vshrl.u32 %v2087, 7
  %v2089 = vsub.s32 %v2086, %v2088
  %v2090 = vrot.slane %v2068, %v2089
  %v2092 = vunpack.c.l.s4 1983009808
  %v2093 = vunpack.c.0.s8 %v2092
  %v2094 = vlaneseq
  %v2095 = vshrl.u32 %v2094, 7
  %v2096 = vsub.s32 %v2093, %v2095
  %v2097 = vrot.slane %v2069, %v2096
  %v2098 = vcombine.low %v2076, %v2090
  %v2099 = vcombine.high %v2076, %v2090
  %v2100 = vcombine.low %v2083, %v2097
  %v2101 = vcombine.high %v2083, %v2097
  %v2102 = vcombine.low %v145, %v169
  %v2103 = vcombine.high %v145, %v169
  %v2104 = vcombine.low %v193, %v217
  %v2105 = vcombine.high %v193, %v217
  %v2107 = vunpack.c.l.s4 1983009808
  %v2108 = vunpack.c.0.s8 %v2107
  %v2109 = vlaneseq
  %v2110 = vshrl.u32 %v2109, 7
  %v2111 = vsub.s32 %v2108, %v2110
  %v2112 = vrot.slane %v2102, %v2111
  %v2114 = vunpack.c.l.s4 1983009808
  %v2115 = vunpack.c.0.s8 %v2114
  %v2116 = vlaneseq
  %v2117 = vshrl.u32 %v2116, 7
  %v2118 = vsub.s32 %v2115, %v2117
  %v2119 = vrot.slane %v2103, %v2118
  %v2121 = vunpack.c.l.s4 1983009808
  %v2122 = vunpack.c.0.s8 %v2121
  %v2123 = vlaneseq
  %v2124 = vshrl.u32 %v2123, 7
  %v2125 = vsub.s32 %v2122, %v2124
  %v2126 = vrot.slane %v2104, %v2125
  %v2128 = vunpack.c.l.s4 1983009808
  %v2129 = vunpack.c.0.s8 %v2128
  %v2130 = vlaneseq
  %v2131 = vshrl.u32 %v2130, 7
  %v2132 = vsub.s32 %v2129, %v2131
  %v2133 = vrot.slane %v2105, %v2132
  %v2134 = vcombine.low %v2112, %v2126
  %v2135 = vcombine.high %v2112, %v2126
  %v2136 = vcombine.low %v2119, %v2133
  %v2137 = vcombine.high %v2119, %v2133
  %v2330 = vpack.c.bf16 %v1306, %v442
  %v2331 = vpack.c.bf16 %v1307, %v443
  %v2332 = vpack.c.bf16 %v1308, %v444
  %v2333 = vpack.c.bf16 %v1309, %v445
  %v2334 = vpack.c.bf16 %v1342, %v478
  %v2335 = vpack.c.bf16 %v1343, %v479
  %v2336 = vpack.c.bf16 %v1344, %v480
  %v2337 = vpack.c.bf16 %v1345, %v481
  %v2338 = vpack.c.bf16 %v1378, %v514
  %v2339 = vpack.c.bf16 %v1379, %v515
  %v2340 = vpack.c.bf16 %v1380, %v516
  %v2341 = vpack.c.bf16 %v1381, %v517
  %v2342 = vpack.c.bf16 %v1414, %v550
  %v2343 = vpack.c.bf16 %v1415, %v551
  %v2344 = vpack.c.bf16 %v1416, %v552
  %v2345 = vpack.c.bf16 %v1417, %v553
  %v2346 = vpack.c.bf16 %v1450, %v586
  %v2347 = vpack.c.bf16 %v1451, %v587
  %v2348 = vpack.c.bf16 %v1452, %v588
  %v2349 = vpack.c.bf16 %v1453, %v589
  %v2350 = vpack.c.bf16 %v1486, %v622
  %v2351 = vpack.c.bf16 %v1487, %v623
  %v2352 = vpack.c.bf16 %v1488, %v624
  %v2353 = vpack.c.bf16 %v1489, %v625
  %v2354 = vpack.c.bf16 %v1522, %v658
  %v2355 = vpack.c.bf16 %v1523, %v659
  %v2356 = vpack.c.bf16 %v1524, %v660
  %v2357 = vpack.c.bf16 %v1525, %v661
  %v2358 = vpack.c.bf16 %v1558, %v694
  %v2359 = vpack.c.bf16 %v1559, %v695
  %v2360 = vpack.c.bf16 %v1560, %v696
  %v2361 = vpack.c.bf16 %v1561, %v697
  %v2362 = vpack.c.bf16 %v1594, %v730
  %v2363 = vpack.c.bf16 %v1595, %v731
  %v2364 = vpack.c.bf16 %v1596, %v732
  %v2365 = vpack.c.bf16 %v1597, %v733
  %v2366 = vpack.c.bf16 %v1630, %v766
  %v2367 = vpack.c.bf16 %v1631, %v767
  %v2368 = vpack.c.bf16 %v1632, %v768
  %v2369 = vpack.c.bf16 %v1633, %v769
  %v2370 = vpack.c.bf16 %v1666, %v802
  %v2371 = vpack.c.bf16 %v1667, %v803
  %v2372 = vpack.c.bf16 %v1668, %v804
  %v2373 = vpack.c.bf16 %v1669, %v805
  %v2374 = vpack.c.bf16 %v1702, %v838
  %v2375 = vpack.c.bf16 %v1703, %v839
  %v2376 = vpack.c.bf16 %v1704, %v840
  %v2377 = vpack.c.bf16 %v1705, %v841
  %v2378 = vpack.c.bf16 %v1738, %v874
  %v2379 = vpack.c.bf16 %v1739, %v875
  %v2380 = vpack.c.bf16 %v1740, %v876
  %v2381 = vpack.c.bf16 %v1741, %v877
  %v2382 = vpack.c.bf16 %v1774, %v910
  %v2383 = vpack.c.bf16 %v1775, %v911
  %v2384 = vpack.c.bf16 %v1776, %v912
  %v2385 = vpack.c.bf16 %v1777, %v913
  %v2386 = vpack.c.bf16 %v1810, %v946
  %v2387 = vpack.c.bf16 %v1811, %v947
  %v2388 = vpack.c.bf16 %v1812, %v948
  %v2389 = vpack.c.bf16 %v1813, %v949
  %v2390 = vpack.c.bf16 %v1846, %v982
  %v2391 = vpack.c.bf16 %v1847, %v983
  %v2392 = vpack.c.bf16 %v1848, %v984
  %v2393 = vpack.c.bf16 %v1849, %v985
  %v2394 = vpack.c.bf16 %v1882, %v1018
  %v2395 = vpack.c.bf16 %v1883, %v1019
  %v2396 = vpack.c.bf16 %v1884, %v1020
  %v2397 = vpack.c.bf16 %v1885, %v1021
  %v2398 = vpack.c.bf16 %v1918, %v1054
  %v2399 = vpack.c.bf16 %v1919, %v1055
  %v2400 = vpack.c.bf16 %v1920, %v1056
  %v2401 = vpack.c.bf16 %v1921, %v1057
  %v2402 = vpack.c.bf16 %v1954, %v1090
  %v2403 = vpack.c.bf16 %v1955, %v1091
  %v2404 = vpack.c.bf16 %v1956, %v1092
  %v2405 = vpack.c.bf16 %v1957, %v1093
  %v2406 = vpack.c.bf16 %v1990, %v1126
  %v2407 = vpack.c.bf16 %v1991, %v1127
  %v2408 = vpack.c.bf16 %v1992, %v1128
  %v2409 = vpack.c.bf16 %v1993, %v1129
  %v2410 = vpack.c.bf16 %v2026, %v1162
  %v2411 = vpack.c.bf16 %v2027, %v1163
  %v2412 = vpack.c.bf16 %v2028, %v1164
  %v2413 = vpack.c.bf16 %v2029, %v1165
  %v2414 = vpack.c.bf16 %v2062, %v1198
  %v2415 = vpack.c.bf16 %v2063, %v1199
  %v2416 = vpack.c.bf16 %v2064, %v1200
  %v2417 = vpack.c.bf16 %v2065, %v1201
  %v2418 = vpack.c.bf16 %v2098, %v1234
  %v2419 = vpack.c.bf16 %v2099, %v1235
  %v2420 = vpack.c.bf16 %v2100, %v1236
  %v2421 = vpack.c.bf16 %v2101, %v1237
  %v2422 = vpack.c.bf16 %v2134, %v1270
  %v2423 = vpack.c.bf16 %v2135, %v1271
  %v2424 = vpack.c.bf16 %v2136, %v1272
  %v2425 = vpack.c.bf16 %v2137, %v1273
  %v2426 = vld [vmem:[%s1] sm:$0xff]
  %v2427 = vld [vmem:[%s1 + $0x8] sm:$0xff]
  %v2428 = vld [vmem:[%s1 + $0x10] sm:$0xff]
  %v2429 = vld [vmem:[%s1 + $0x18] sm:$0xff]
  %v2430 = vld [vmem:[%s1 + $0x20] sm:$0xff]
  %v2431 = vld [vmem:[%s1 + $0x28] sm:$0xff]
  %v2432 = vld [vmem:[%s1 + $0x30] sm:$0xff]
  %v2433 = vld [vmem:[%s1 + $0x38] sm:$0xff]
  %v2434 = vld [vmem:[%s1 + $0x40] sm:$0xff]
  %v2435 = vld [vmem:[%s1 + $0x48] sm:$0xff]
  %v2436 = vld [vmem:[%s1 + $0x50] sm:$0xff]
  %v2437 = vld [vmem:[%s1 + $0x58] sm:$0xff]
  %v2438 = vld [vmem:[%s1 + $0x60] sm:$0xff]
  %v2439 = vld [vmem:[%s1 + $0x68] sm:$0xff]
  %v2440 = vld [vmem:[%s1 + $0x70] sm:$0xff]
  %v2441 = vld [vmem:[%s1 + $0x78] sm:$0xff]
  %v2442 = vld [vmem:[%s1 + $0x80] sm:$0xff]
  %v2443 = vld [vmem:[%s1 + $0x88] sm:$0xff]
  %v2444 = vld [vmem:[%s1 + $0x90] sm:$0xff]
  %v2445 = vld [vmem:[%s1 + $0x98] sm:$0xff]
  %v2446 = vld [vmem:[%s1 + $0xa0] sm:$0xff]
  %v2447 = vld [vmem:[%s1 + $0xa8] sm:$0xff]
  %v2448 = vld [vmem:[%s1 + $0xb0] sm:$0xff]
  %v2449 = vld [vmem:[%s1 + $0xb8] sm:$0xff]
  %v2450 = vld [vmem:[%s1 + $0xc0] sm:$0xff]
  %v2451 = vld [vmem:[%s1 + $0xc8] sm:$0xff]
  %v2452 = vld [vmem:[%s1 + $0xd0] sm:$0xff]
  %v2453 = vld [vmem:[%s1 + $0xd8] sm:$0xff]
  %v2454 = vld [vmem:[%s1 + $0xe0] sm:$0xff]
  %v2455 = vld [vmem:[%s1 + $0xe8] sm:$0xff]
  %v2456 = vld [vmem:[%s1 + $0xf0] sm:$0xff]
  %v2457 = vld [vmem:[%s1 + $0xf8] sm:$0xff]
  %v2458 = vld [vmem:[%s1 + $0x100] sm:$0xff]
  %v2459 = vld [vmem:[%s1 + $0x108] sm:$0xff]
  %v2460 = vld [vmem:[%s1 + $0x110] sm:$0xff]
  %v2461 = vld [vmem:[%s1 + $0x118] sm:$0xff]
  %v2462 = vld [vmem:[%s1 + $0x120] sm:$0xff]
  %v2463 = vld [vmem:[%s1 + $0x128] sm:$0xff]
  %v2464 = vld [vmem:[%s1 + $0x130] sm:$0xff]
  %v2465 = vld [vmem:[%s1 + $0x138] sm:$0xff]
  %v2466 = vld [vmem:[%s1 + $0x140] sm:$0xff]
  %v2467 = vld [vmem:[%s1 + $0x148] sm:$0xff]
  %v2468 = vld [vmem:[%s1 + $0x150] sm:$0xff]
  %v2469 = vld [vmem:[%s1 + $0x158] sm:$0xff]
  %v2470 = vld [vmem:[%s1 + $0x160] sm:$0xff]
  %v2471 = vld [vmem:[%s1 + $0x168] sm:$0xff]
  %v2472 = vld [vmem:[%s1 + $0x170] sm:$0xff]
  %v2473 = vld [vmem:[%s1 + $0x178] sm:$0xff]
  %v2474 = vld [vmem:[%s1 + $0x180] sm:$0xff]
  %v2475 = vld [vmem:[%s1 + $0x188] sm:$0xff]
  %v2476 = vld [vmem:[%s1 + $0x190] sm:$0xff]
  %v2477 = vld [vmem:[%s1 + $0x198] sm:$0xff]
  %v2478 = vld [vmem:[%s1 + $0x1a0] sm:$0xff]
  %v2479 = vld [vmem:[%s1 + $0x1a8] sm:$0xff]
  %v2480 = vld [vmem:[%s1 + $0x1b0] sm:$0xff]
  %v2481 = vld [vmem:[%s1 + $0x1b8] sm:$0xff]
  %v2482 = vld [vmem:[%s1 + $0x1c0] sm:$0xff]
  %v2483 = vld [vmem:[%s1 + $0x1c8] sm:$0xff]
  %v2484 = vld [vmem:[%s1 + $0x1d0] sm:$0xff]
  %v2485 = vld [vmem:[%s1 + $0x1d8] sm:$0xff]
  %v2486 = vld [vmem:[%s1 + $0x1e0] sm:$0xff]
  %v2487 = vld [vmem:[%s1 + $0x1e8] sm:$0xff]
  %v2488 = vld [vmem:[%s1 + $0x1f0] sm:$0xff]
  %v2489 = vld [vmem:[%s1 + $0x1f8] sm:$0xff]
  %v2490 = vld [vmem:[%s1 + $0x200] sm:$0xff]
  %v2491 = vld [vmem:[%s1 + $0x208] sm:$0xff]
  %v2492 = vld [vmem:[%s1 + $0x210] sm:$0xff]
  %v2493 = vld [vmem:[%s1 + $0x218] sm:$0xff]
  %v2494 = vld [vmem:[%s1 + $0x220] sm:$0xff]
  %v2495 = vld [vmem:[%s1 + $0x228] sm:$0xff]
  %v2496 = vld [vmem:[%s1 + $0x230] sm:$0xff]
  %v2497 = vld [vmem:[%s1 + $0x238] sm:$0xff]
  %v2498 = vld [vmem:[%s1 + $0x240] sm:$0xff]
  %v2499 = vld [vmem:[%s1 + $0x248] sm:$0xff]
  %v2500 = vld [vmem:[%s1 + $0x250] sm:$0xff]
  %v2501 = vld [vmem:[%s1 + $0x258] sm:$0xff]
  %v2502 = vld [vmem:[%s1 + $0x260] sm:$0xff]
  %v2503 = vld [vmem:[%s1 + $0x268] sm:$0xff]
  %v2504 = vld [vmem:[%s1 + $0x270] sm:$0xff]
  %v2505 = vld [vmem:[%s1 + $0x278] sm:$0xff]
  %v2506 = vld [vmem:[%s1 + $0x280] sm:$0xff]
  %v2507 = vld [vmem:[%s1 + $0x288] sm:$0xff]
  %v2508 = vld [vmem:[%s1 + $0x290] sm:$0xff]
  %v2509 = vld [vmem:[%s1 + $0x298] sm:$0xff]
  %v2510 = vld [vmem:[%s1 + $0x2a0] sm:$0xff]
  %v2511 = vld [vmem:[%s1 + $0x2a8] sm:$0xff]
  %v2512 = vld [vmem:[%s1 + $0x2b0] sm:$0xff]
  %v2513 = vld [vmem:[%s1 + $0x2b8] sm:$0xff]
  %v2514 = vld [vmem:[%s1 + $0x2c0] sm:$0xff]
  %v2515 = vld [vmem:[%s1 + $0x2c8] sm:$0xff]
  %v2516 = vld [vmem:[%s1 + $0x2d0] sm:$0xff]
  %v2517 = vld [vmem:[%s1 + $0x2d8] sm:$0xff]
  %v2518 = vld [vmem:[%s1 + $0x2e0] sm:$0xff]
  %v2519 = vld [vmem:[%s1 + $0x2e8] sm:$0xff]
  %v2520 = vld [vmem:[%s1 + $0x2f0] sm:$0xff]
  %v2521 = vld [vmem:[%s1 + $0x2f8] sm:$0xff]
  %v2522 = vld [vmem:[%s1 + $0x300] sm:$0xff]
  %v2523 = vld [vmem:[%s1 + $0x308] sm:$0xff]
  %v2524 = vld [vmem:[%s1 + $0x310] sm:$0xff]
  %v2525 = vld [vmem:[%s1 + $0x318] sm:$0xff]
  %v2526 = vld [vmem:[%s1 + $0x320] sm:$0xff]
  %v2527 = vld [vmem:[%s1 + $0x328] sm:$0xff]
  %v2528 = vld [vmem:[%s1 + $0x330] sm:$0xff]
  %v2529 = vld [vmem:[%s1 + $0x338] sm:$0xff]
  %v2530 = vld [vmem:[%s1 + $0x340] sm:$0xff]
  %v2531 = vld [vmem:[%s1 + $0x348] sm:$0xff]
  %v2532 = vld [vmem:[%s1 + $0x350] sm:$0xff]
  %v2533 = vld [vmem:[%s1 + $0x358] sm:$0xff]
  %v2534 = vld [vmem:[%s1 + $0x360] sm:$0xff]
  %v2535 = vld [vmem:[%s1 + $0x368] sm:$0xff]
  %v2536 = vld [vmem:[%s1 + $0x370] sm:$0xff]
  %v2537 = vld [vmem:[%s1 + $0x378] sm:$0xff]
  %v2538 = vld [vmem:[%s1 + $0x380] sm:$0xff]
  %v2539 = vld [vmem:[%s1 + $0x388] sm:$0xff]
  %v2540 = vld [vmem:[%s1 + $0x390] sm:$0xff]
  %v2541 = vld [vmem:[%s1 + $0x398] sm:$0xff]
  %v2542 = vld [vmem:[%s1 + $0x3a0] sm:$0xff]
  %v2543 = vld [vmem:[%s1 + $0x3a8] sm:$0xff]
  %v2544 = vld [vmem:[%s1 + $0x3b0] sm:$0xff]
  %v2545 = vld [vmem:[%s1 + $0x3b8] sm:$0xff]
  %v2546 = vld [vmem:[%s1 + $0x3c0] sm:$0xff]
  %v2547 = vld [vmem:[%s1 + $0x3c8] sm:$0xff]
  %v2548 = vld [vmem:[%s1 + $0x3d0] sm:$0xff]
  %v2549 = vld [vmem:[%s1 + $0x3d8] sm:$0xff]
  %v2550 = vld [vmem:[%s1 + $0x3e0] sm:$0xff]
  %v2551 = vld [vmem:[%s1 + $0x3e8] sm:$0xff]
  %v2552 = vld [vmem:[%s1 + $0x3f0] sm:$0xff]
  %v2553 = vld [vmem:[%s1 + $0x3f8] sm:$0xff]
  %v2554 = vld [vmem:[%s1 + $0x400] sm:$0xff]
  %v2555 = vld [vmem:[%s1 + $0x408] sm:$0xff]
  %v2556 = vld [vmem:[%s1 + $0x410] sm:$0xff]
  %v2557 = vld [vmem:[%s1 + $0x418] sm:$0xff]
  %v2558 = vld [vmem:[%s1 + $0x420] sm:$0xff]
  %v2559 = vld [vmem:[%s1 + $0x428] sm:$0xff]
  %v2560 = vld [vmem:[%s1 + $0x430] sm:$0xff]
  %v2561 = vld [vmem:[%s1 + $0x438] sm:$0xff]
  %v2562 = vld [vmem:[%s1 + $0x440] sm:$0xff]
  %v2563 = vld [vmem:[%s1 + $0x448] sm:$0xff]
  %v2564 = vld [vmem:[%s1 + $0x450] sm:$0xff]
  %v2565 = vld [vmem:[%s1 + $0x458] sm:$0xff]
  %v2566 = vld [vmem:[%s1 + $0x460] sm:$0xff]
  %v2567 = vld [vmem:[%s1 + $0x468] sm:$0xff]
  %v2568 = vld [vmem:[%s1 + $0x470] sm:$0xff]
  %v2569 = vld [vmem:[%s1 + $0x478] sm:$0xff]
  %v2570 = vld [vmem:[%s1 + $0x480] sm:$0xff]
  %v2571 = vld [vmem:[%s1 + $0x488] sm:$0xff]
  %v2572 = vld [vmem:[%s1 + $0x490] sm:$0xff]
  %v2573 = vld [vmem:[%s1 + $0x498] sm:$0xff]
  %v2574 = vld [vmem:[%s1 + $0x4a0] sm:$0xff]
  %v2575 = vld [vmem:[%s1 + $0x4a8] sm:$0xff]
  %v2576 = vld [vmem:[%s1 + $0x4b0] sm:$0xff]
  %v2577 = vld [vmem:[%s1 + $0x4b8] sm:$0xff]
  %v2578 = vld [vmem:[%s1 + $0x4c0] sm:$0xff]
  %v2579 = vld [vmem:[%s1 + $0x4c8] sm:$0xff]
  %v2580 = vld [vmem:[%s1 + $0x4d0] sm:$0xff]
  %v2581 = vld [vmem:[%s1 + $0x4d8] sm:$0xff]
  %v2582 = vld [vmem:[%s1 + $0x4e0] sm:$0xff]
  %v2583 = vld [vmem:[%s1 + $0x4e8] sm:$0xff]
  %v2584 = vld [vmem:[%s1 + $0x4f0] sm:$0xff]
  %v2585 = vld [vmem:[%s1 + $0x4f8] sm:$0xff]
  %v2586 = vld [vmem:[%s1 + $0x500] sm:$0xff]
  %v2587 = vld [vmem:[%s1 + $0x508] sm:$0xff]
  %v2588 = vld [vmem:[%s1 + $0x510] sm:$0xff]
  %v2589 = vld [vmem:[%s1 + $0x518] sm:$0xff]
  %v2590 = vld [vmem:[%s1 + $0x520] sm:$0xff]
  %v2591 = vld [vmem:[%s1 + $0x528] sm:$0xff]
  %v2592 = vld [vmem:[%s1 + $0x530] sm:$0xff]
  %v2593 = vld [vmem:[%s1 + $0x538] sm:$0xff]
  %v2594 = vld [vmem:[%s1 + $0x540] sm:$0xff]
  %v2595 = vld [vmem:[%s1 + $0x548] sm:$0xff]
  %v2596 = vld [vmem:[%s1 + $0x550] sm:$0xff]
  %v2597 = vld [vmem:[%s1 + $0x558] sm:$0xff]
  %v2598 = vld [vmem:[%s1 + $0x560] sm:$0xff]
  %v2599 = vld [vmem:[%s1 + $0x568] sm:$0xff]
  %v2600 = vld [vmem:[%s1 + $0x570] sm:$0xff]
  %v2601 = vld [vmem:[%s1 + $0x578] sm:$0xff]
  %v2602 = vld [vmem:[%s1 + $0x580] sm:$0xff]
  %v2603 = vld [vmem:[%s1 + $0x588] sm:$0xff]
  %v2604 = vld [vmem:[%s1 + $0x590] sm:$0xff]
  %v2605 = vld [vmem:[%s1 + $0x598] sm:$0xff]
  %v2606 = vld [vmem:[%s1 + $0x5a0] sm:$0xff]
  %v2607 = vld [vmem:[%s1 + $0x5a8] sm:$0xff]
  %v2608 = vld [vmem:[%s1 + $0x5b0] sm:$0xff]
  %v2609 = vld [vmem:[%s1 + $0x5b8] sm:$0xff]
  %v2610 = vld [vmem:[%s1 + $0x5c0] sm:$0xff]
  %v2611 = vld [vmem:[%s1 + $0x5c8] sm:$0xff]
  %v2612 = vld [vmem:[%s1 + $0x5d0] sm:$0xff]
  %v2613 = vld [vmem:[%s1 + $0x5d8] sm:$0xff]
  %v2614 = vld [vmem:[%s1 + $0x5e0] sm:$0xff]
  %v2615 = vld [vmem:[%s1 + $0x5e8] sm:$0xff]
  %v2616 = vld [vmem:[%s1 + $0x5f0] sm:$0xff]
  %v2617 = vld [vmem:[%s1 + $0x5f8] sm:$0xff]
  %v2618 = vld [vmem:[%s1 + $0x600] sm:$0xff]
  %v2619 = vld [vmem:[%s1 + $0x608] sm:$0xff]
  %v2620 = vld [vmem:[%s1 + $0x610] sm:$0xff]
  %v2621 = vld [vmem:[%s1 + $0x618] sm:$0xff]
  %v2622 = vld [vmem:[%s1 + $0x620] sm:$0xff]
  %v2623 = vld [vmem:[%s1 + $0x628] sm:$0xff]
  %v2624 = vld [vmem:[%s1 + $0x630] sm:$0xff]
  %v2625 = vld [vmem:[%s1 + $0x638] sm:$0xff]
  %v2626 = vld [vmem:[%s1 + $0x640] sm:$0xff]
  %v2627 = vld [vmem:[%s1 + $0x648] sm:$0xff]
  %v2628 = vld [vmem:[%s1 + $0x650] sm:$0xff]
  %v2629 = vld [vmem:[%s1 + $0x658] sm:$0xff]
  %v2630 = vld [vmem:[%s1 + $0x660] sm:$0xff]
  %v2631 = vld [vmem:[%s1 + $0x668] sm:$0xff]
  %v2632 = vld [vmem:[%s1 + $0x670] sm:$0xff]
  %v2633 = vld [vmem:[%s1 + $0x678] sm:$0xff]
  %v2634 = vld [vmem:[%s1 + $0x680] sm:$0xff]
  %v2635 = vld [vmem:[%s1 + $0x688] sm:$0xff]
  %v2636 = vld [vmem:[%s1 + $0x690] sm:$0xff]
  %v2637 = vld [vmem:[%s1 + $0x698] sm:$0xff]
  %v2638 = vld [vmem:[%s1 + $0x6a0] sm:$0xff]
  %v2639 = vld [vmem:[%s1 + $0x6a8] sm:$0xff]
  %v2640 = vld [vmem:[%s1 + $0x6b0] sm:$0xff]
  %v2641 = vld [vmem:[%s1 + $0x6b8] sm:$0xff]
  %v2642 = vld [vmem:[%s1 + $0x6c0] sm:$0xff]
  %v2643 = vld [vmem:[%s1 + $0x6c8] sm:$0xff]
  %v2644 = vld [vmem:[%s1 + $0x6d0] sm:$0xff]
  %v2645 = vld [vmem:[%s1 + $0x6d8] sm:$0xff]
  %v2646 = vld [vmem:[%s1 + $0x6e0] sm:$0xff]
  %v2647 = vld [vmem:[%s1 + $0x6e8] sm:$0xff]
  %v2648 = vld [vmem:[%s1 + $0x6f0] sm:$0xff]
  %v2649 = vld [vmem:[%s1 + $0x6f8] sm:$0xff]
  %v2650 = vld [vmem:[%s1 + $0x700] sm:$0xff]
  %v2651 = vld [vmem:[%s1 + $0x708] sm:$0xff]
  %v2652 = vld [vmem:[%s1 + $0x710] sm:$0xff]
  %v2653 = vld [vmem:[%s1 + $0x718] sm:$0xff]
  %v2654 = vld [vmem:[%s1 + $0x720] sm:$0xff]
  %v2655 = vld [vmem:[%s1 + $0x728] sm:$0xff]
  %v2656 = vld [vmem:[%s1 + $0x730] sm:$0xff]
  %v2657 = vld [vmem:[%s1 + $0x738] sm:$0xff]
  %v2658 = vld [vmem:[%s1 + $0x740] sm:$0xff]
  %v2659 = vld [vmem:[%s1 + $0x748] sm:$0xff]
  %v2660 = vld [vmem:[%s1 + $0x750] sm:$0xff]
  %v2661 = vld [vmem:[%s1 + $0x758] sm:$0xff]
  %v2662 = vld [vmem:[%s1 + $0x760] sm:$0xff]
  %v2663 = vld [vmem:[%s1 + $0x768] sm:$0xff]
  %v2664 = vld [vmem:[%s1 + $0x770] sm:$0xff]
  %v2665 = vld [vmem:[%s1 + $0x778] sm:$0xff]
  %v2666 = vld [vmem:[%s1 + $0x780] sm:$0xff]
  %v2667 = vld [vmem:[%s1 + $0x788] sm:$0xff]
  %v2668 = vld [vmem:[%s1 + $0x790] sm:$0xff]
  %v2669 = vld [vmem:[%s1 + $0x798] sm:$0xff]
  %v2670 = vld [vmem:[%s1 + $0x7a0] sm:$0xff]
  %v2671 = vld [vmem:[%s1 + $0x7a8] sm:$0xff]
  %v2672 = vld [vmem:[%s1 + $0x7b0] sm:$0xff]
  %v2673 = vld [vmem:[%s1 + $0x7b8] sm:$0xff]
  %v2674 = vld [vmem:[%s1 + $0x7c0] sm:$0xff]
  %v2675 = vld [vmem:[%s1 + $0x7c8] sm:$0xff]
  %v2676 = vld [vmem:[%s1 + $0x7d0] sm:$0xff]
  %v2677 = vld [vmem:[%s1 + $0x7d8] sm:$0xff]
  %v2678 = vld [vmem:[%s1 + $0x7e0] sm:$0xff]
  %v2679 = vld [vmem:[%s1 + $0x7e8] sm:$0xff]
  %v2680 = vld [vmem:[%s1 + $0x7f0] sm:$0xff]
  %v2681 = vld [vmem:[%s1 + $0x7f8] sm:$0xff]
  %v2682 = vld [vmem:[%s1 + $0x800] sm:$0xff]
  %v2683 = vld [vmem:[%s1 + $0x808] sm:$0xff]
  %v2684 = vld [vmem:[%s1 + $0x810] sm:$0xff]
  %v2685 = vld [vmem:[%s1 + $0x818] sm:$0xff]
  %v2686 = vld [vmem:[%s1 + $0x820] sm:$0xff]
  %v2687 = vld [vmem:[%s1 + $0x828] sm:$0xff]
  %v2688 = vld [vmem:[%s1 + $0x830] sm:$0xff]
  %v2689 = vld [vmem:[%s1 + $0x838] sm:$0xff]
  %v2690 = vld [vmem:[%s1 + $0x840] sm:$0xff]
  %v2691 = vld [vmem:[%s1 + $0x848] sm:$0xff]
  %v2692 = vld [vmem:[%s1 + $0x850] sm:$0xff]
  %v2693 = vld [vmem:[%s1 + $0x858] sm:$0xff]
  %v2694 = vld [vmem:[%s1 + $0x860] sm:$0xff]
  %v2695 = vld [vmem:[%s1 + $0x868] sm:$0xff]
  %v2696 = vld [vmem:[%s1 + $0x870] sm:$0xff]
  %v2697 = vld [vmem:[%s1 + $0x878] sm:$0xff]
  %v2698 = vld [vmem:[%s1 + $0x880] sm:$0xff]
  %v2699 = vld [vmem:[%s1 + $0x888] sm:$0xff]
  %v2700 = vld [vmem:[%s1 + $0x890] sm:$0xff]
  %v2701 = vld [vmem:[%s1 + $0x898] sm:$0xff]
  %v2702 = vld [vmem:[%s1 + $0x8a0] sm:$0xff]
  %v2703 = vld [vmem:[%s1 + $0x8a8] sm:$0xff]
  %v2704 = vld [vmem:[%s1 + $0x8b0] sm:$0xff]
  %v2705 = vld [vmem:[%s1 + $0x8b8] sm:$0xff]
  %v2706 = vld [vmem:[%s1 + $0x8c0] sm:$0xff]
  %v2707 = vld [vmem:[%s1 + $0x8c8] sm:$0xff]
  %v2708 = vld [vmem:[%s1 + $0x8d0] sm:$0xff]
  %v2709 = vld [vmem:[%s1 + $0x8d8] sm:$0xff]
  %v2710 = vld [vmem:[%s1 + $0x8e0] sm:$0xff]
  %v2711 = vld [vmem:[%s1 + $0x8e8] sm:$0xff]
  %v2712 = vld [vmem:[%s1 + $0x8f0] sm:$0xff]
  %v2713 = vld [vmem:[%s1 + $0x8f8] sm:$0xff]
  %v2714 = vld [vmem:[%s1 + $0x900] sm:$0xff]
  %v2715 = vld [vmem:[%s1 + $0x908] sm:$0xff]
  %v2716 = vld [vmem:[%s1 + $0x910] sm:$0xff]
  %v2717 = vld [vmem:[%s1 + $0x918] sm:$0xff]
  %v2718 = vld [vmem:[%s1 + $0x920] sm:$0xff]
  %v2719 = vld [vmem:[%s1 + $0x928] sm:$0xff]
  %v2720 = vld [vmem:[%s1 + $0x930] sm:$0xff]
  %v2721 = vld [vmem:[%s1 + $0x938] sm:$0xff]
  %v2722 = vld [vmem:[%s1 + $0x940] sm:$0xff]
  %v2723 = vld [vmem:[%s1 + $0x948] sm:$0xff]
  %v2724 = vld [vmem:[%s1 + $0x950] sm:$0xff]
  %v2725 = vld [vmem:[%s1 + $0x958] sm:$0xff]
  %v2726 = vld [vmem:[%s1 + $0x960] sm:$0xff]
  %v2727 = vld [vmem:[%s1 + $0x968] sm:$0xff]
  %v2728 = vld [vmem:[%s1 + $0x970] sm:$0xff]
  %v2729 = vld [vmem:[%s1 + $0x978] sm:$0xff]
  %v2730 = vld [vmem:[%s1 + $0x980] sm:$0xff]
  %v2731 = vld [vmem:[%s1 + $0x988] sm:$0xff]
  %v2732 = vld [vmem:[%s1 + $0x990] sm:$0xff]
  %v2733 = vld [vmem:[%s1 + $0x998] sm:$0xff]
  %v2734 = vld [vmem:[%s1 + $0x9a0] sm:$0xff]
  %v2735 = vld [vmem:[%s1 + $0x9a8] sm:$0xff]
  %v2736 = vld [vmem:[%s1 + $0x9b0] sm:$0xff]
  %v2737 = vld [vmem:[%s1 + $0x9b8] sm:$0xff]
  %v2738 = vld [vmem:[%s1 + $0x9c0] sm:$0xff]
  %v2739 = vld [vmem:[%s1 + $0x9c8] sm:$0xff]
  %v2740 = vld [vmem:[%s1 + $0x9d0] sm:$0xff]
  %v2741 = vld [vmem:[%s1 + $0x9d8] sm:$0xff]
  %v2742 = vld [vmem:[%s1 + $0x9e0] sm:$0xff]
  %v2743 = vld [vmem:[%s1 + $0x9e8] sm:$0xff]
  %v2744 = vld [vmem:[%s1 + $0x9f0] sm:$0xff]
  %v2745 = vld [vmem:[%s1 + $0x9f8] sm:$0xff]
  %v2746 = vld [vmem:[%s1 + $0xa00] sm:$0xff]
  %v2747 = vld [vmem:[%s1 + $0xa08] sm:$0xff]
  %v2748 = vld [vmem:[%s1 + $0xa10] sm:$0xff]
  %v2749 = vld [vmem:[%s1 + $0xa18] sm:$0xff]
  %v2750 = vld [vmem:[%s1 + $0xa20] sm:$0xff]
  %v2751 = vld [vmem:[%s1 + $0xa28] sm:$0xff]
  %v2752 = vld [vmem:[%s1 + $0xa30] sm:$0xff]
  %v2753 = vld [vmem:[%s1 + $0xa38] sm:$0xff]
  %v2754 = vld [vmem:[%s1 + $0xa40] sm:$0xff]
  %v2755 = vld [vmem:[%s1 + $0xa48] sm:$0xff]
  %v2756 = vld [vmem:[%s1 + $0xa50] sm:$0xff]
  %v2757 = vld [vmem:[%s1 + $0xa58] sm:$0xff]
  %v2758 = vld [vmem:[%s1 + $0xa60] sm:$0xff]
  %v2759 = vld [vmem:[%s1 + $0xa68] sm:$0xff]
  %v2760 = vld [vmem:[%s1 + $0xa70] sm:$0xff]
  %v2761 = vld [vmem:[%s1 + $0xa78] sm:$0xff]
  %v2762 = vld [vmem:[%s1 + $0xa80] sm:$0xff]
  %v2763 = vld [vmem:[%s1 + $0xa88] sm:$0xff]
  %v2764 = vld [vmem:[%s1 + $0xa90] sm:$0xff]
  %v2765 = vld [vmem:[%s1 + $0xa98] sm:$0xff]
  %v2766 = vld [vmem:[%s1 + $0xaa0] sm:$0xff]
  %v2767 = vld [vmem:[%s1 + $0xaa8] sm:$0xff]
  %v2768 = vld [vmem:[%s1 + $0xab0] sm:$0xff]
  %v2769 = vld [vmem:[%s1 + $0xab8] sm:$0xff]
  %v2770 = vld [vmem:[%s1 + $0xac0] sm:$0xff]
  %v2771 = vld [vmem:[%s1 + $0xac8] sm:$0xff]
  %v2772 = vld [vmem:[%s1 + $0xad0] sm:$0xff]
  %v2773 = vld [vmem:[%s1 + $0xad8] sm:$0xff]
  %v2774 = vld [vmem:[%s1 + $0xae0] sm:$0xff]
  %v2775 = vld [vmem:[%s1 + $0xae8] sm:$0xff]
  %v2776 = vld [vmem:[%s1 + $0xaf0] sm:$0xff]
  %v2777 = vld [vmem:[%s1 + $0xaf8] sm:$0xff]
  %v2778 = vld [vmem:[%s1 + $0xb00] sm:$0xff]
  %v2779 = vld [vmem:[%s1 + $0xb08] sm:$0xff]
  %v2780 = vld [vmem:[%s1 + $0xb10] sm:$0xff]
  %v2781 = vld [vmem:[%s1 + $0xb18] sm:$0xff]
  %v2782 = vld [vmem:[%s1 + $0xb20] sm:$0xff]
  %v2783 = vld [vmem:[%s1 + $0xb28] sm:$0xff]
  %v2784 = vld [vmem:[%s1 + $0xb30] sm:$0xff]
  %v2785 = vld [vmem:[%s1 + $0xb38] sm:$0xff]
  %v2786 = vld [vmem:[%s1 + $0xb40] sm:$0xff]
  %v2787 = vld [vmem:[%s1 + $0xb48] sm:$0xff]
  %v2788 = vld [vmem:[%s1 + $0xb50] sm:$0xff]
  %v2789 = vld [vmem:[%s1 + $0xb58] sm:$0xff]
  %v2790 = vld [vmem:[%s1 + $0xb60] sm:$0xff]
  %v2791 = vld [vmem:[%s1 + $0xb68] sm:$0xff]
  %v2792 = vld [vmem:[%s1 + $0xb70] sm:$0xff]
  %v2793 = vld [vmem:[%s1 + $0xb78] sm:$0xff]
  %v2794 = vld [vmem:[%s1 + $0xb80] sm:$0xff]
  %v2795 = vld [vmem:[%s1 + $0xb88] sm:$0xff]
  %v2796 = vld [vmem:[%s1 + $0xb90] sm:$0xff]
  %v2797 = vld [vmem:[%s1 + $0xb98] sm:$0xff]
  %v2798 = vld [vmem:[%s1 + $0xba0] sm:$0xff]
  %v2799 = vld [vmem:[%s1 + $0xba8] sm:$0xff]
  %v2800 = vld [vmem:[%s1 + $0xbb0] sm:$0xff]
  %v2801 = vld [vmem:[%s1 + $0xbb8] sm:$0xff]
  %v2802 = vld [vmem:[%s1 + $0xbc0] sm:$0xff]
  %v2803 = vld [vmem:[%s1 + $0xbc8] sm:$0xff]
  %v2804 = vld [vmem:[%s1 + $0xbd0] sm:$0xff]
  %v2805 = vld [vmem:[%s1 + $0xbd8] sm:$0xff]
  %v2806 = vld [vmem:[%s1 + $0xbe0] sm:$0xff]
  %v2807 = vld [vmem:[%s1 + $0xbe8] sm:$0xff]
  %v2808 = vld [vmem:[%s1 + $0xbf0] sm:$0xff]
  %v2809 = vld [vmem:[%s1 + $0xbf8] sm:$0xff]
  %v2810 = vld [vmem:[%s1 + $0xc00] sm:$0xff]
  %v2811 = vld [vmem:[%s1 + $0xc08] sm:$0xff]
  %v2812 = vld [vmem:[%s1 + $0xc10] sm:$0xff]
  %v2813 = vld [vmem:[%s1 + $0xc18] sm:$0xff]
  %v2814 = vld [vmem:[%s1 + $0xc20] sm:$0xff]
  %v2815 = vld [vmem:[%s1 + $0xc28] sm:$0xff]
  %v2816 = vld [vmem:[%s1 + $0xc30] sm:$0xff]
  %v2817 = vld [vmem:[%s1 + $0xc38] sm:$0xff]
  %v2818 = vld [vmem:[%s1 + $0xc40] sm:$0xff]
  %v2819 = vld [vmem:[%s1 + $0xc48] sm:$0xff]
  %v2820 = vld [vmem:[%s1 + $0xc50] sm:$0xff]
  %v2821 = vld [vmem:[%s1 + $0xc58] sm:$0xff]
  %v2822 = vld [vmem:[%s1 + $0xc60] sm:$0xff]
  %v2823 = vld [vmem:[%s1 + $0xc68] sm:$0xff]
  %v2824 = vld [vmem:[%s1 + $0xc70] sm:$0xff]
  %v2825 = vld [vmem:[%s1 + $0xc78] sm:$0xff]
  %v2826 = vld [vmem:[%s1 + $0xc80] sm:$0xff]
  %v2827 = vld [vmem:[%s1 + $0xc88] sm:$0xff]
  %v2828 = vld [vmem:[%s1 + $0xc90] sm:$0xff]
  %v2829 = vld [vmem:[%s1 + $0xc98] sm:$0xff]
  %v2830 = vld [vmem:[%s1 + $0xca0] sm:$0xff]
  %v2831 = vld [vmem:[%s1 + $0xca8] sm:$0xff]
  %v2832 = vld [vmem:[%s1 + $0xcb0] sm:$0xff]
  %v2833 = vld [vmem:[%s1 + $0xcb8] sm:$0xff]
  %v2834 = vld [vmem:[%s1 + $0xcc0] sm:$0xff]
  %v2835 = vld [vmem:[%s1 + $0xcc8] sm:$0xff]
  %v2836 = vld [vmem:[%s1 + $0xcd0] sm:$0xff]
  %v2837 = vld [vmem:[%s1 + $0xcd8] sm:$0xff]
  %v2838 = vld [vmem:[%s1 + $0xce0] sm:$0xff]
  %v2839 = vld [vmem:[%s1 + $0xce8] sm:$0xff]
  %v2840 = vld [vmem:[%s1 + $0xcf0] sm:$0xff]
  %v2841 = vld [vmem:[%s1 + $0xcf8] sm:$0xff]
  %v2842 = vld [vmem:[%s1 + $0xd00] sm:$0xff]
  %v2843 = vld [vmem:[%s1 + $0xd08] sm:$0xff]
  %v2844 = vld [vmem:[%s1 + $0xd10] sm:$0xff]
  %v2845 = vld [vmem:[%s1 + $0xd18] sm:$0xff]
  %v2846 = vld [vmem:[%s1 + $0xd20] sm:$0xff]
  %v2847 = vld [vmem:[%s1 + $0xd28] sm:$0xff]
  %v2848 = vld [vmem:[%s1 + $0xd30] sm:$0xff]
  %v2849 = vld [vmem:[%s1 + $0xd38] sm:$0xff]
  %v2850 = vld [vmem:[%s1 + $0xd40] sm:$0xff]
  %v2851 = vld [vmem:[%s1 + $0xd48] sm:$0xff]
  %v2852 = vld [vmem:[%s1 + $0xd50] sm:$0xff]
  %v2853 = vld [vmem:[%s1 + $0xd58] sm:$0xff]
  %v2854 = vld [vmem:[%s1 + $0xd60] sm:$0xff]
  %v2855 = vld [vmem:[%s1 + $0xd68] sm:$0xff]
  %v2856 = vld [vmem:[%s1 + $0xd70] sm:$0xff]
  %v2857 = vld [vmem:[%s1 + $0xd78] sm:$0xff]
  %v2858 = vld [vmem:[%s1 + $0xd80] sm:$0xff]
  %v2859 = vld [vmem:[%s1 + $0xd88] sm:$0xff]
  %v2860 = vld [vmem:[%s1 + $0xd90] sm:$0xff]
  %v2861 = vld [vmem:[%s1 + $0xd98] sm:$0xff]
  %v2862 = vld [vmem:[%s1 + $0xda0] sm:$0xff]
  %v2863 = vld [vmem:[%s1 + $0xda8] sm:$0xff]
  %v2864 = vld [vmem:[%s1 + $0xdb0] sm:$0xff]
  %v2865 = vld [vmem:[%s1 + $0xdb8] sm:$0xff]
  %v2866 = vld [vmem:[%s1 + $0xdc0] sm:$0xff]
  %v2867 = vld [vmem:[%s1 + $0xdc8] sm:$0xff]
  %v2868 = vld [vmem:[%s1 + $0xdd0] sm:$0xff]
  %v2869 = vld [vmem:[%s1 + $0xdd8] sm:$0xff]
  %v2870 = vld [vmem:[%s1 + $0xde0] sm:$0xff]
  %v2871 = vld [vmem:[%s1 + $0xde8] sm:$0xff]
  %v2872 = vld [vmem:[%s1 + $0xdf0] sm:$0xff]
  %v2873 = vld [vmem:[%s1 + $0xdf8] sm:$0xff]
  %v2874 = vld [vmem:[%s1 + $0xe00] sm:$0xff]
  %v2875 = vld [vmem:[%s1 + $0xe08] sm:$0xff]
  %v2876 = vld [vmem:[%s1 + $0xe10] sm:$0xff]
  %v2877 = vld [vmem:[%s1 + $0xe18] sm:$0xff]
  %v2878 = vld [vmem:[%s1 + $0xe20] sm:$0xff]
  %v2879 = vld [vmem:[%s1 + $0xe28] sm:$0xff]
  %v2880 = vld [vmem:[%s1 + $0xe30] sm:$0xff]
  %v2881 = vld [vmem:[%s1 + $0xe38] sm:$0xff]
  %v2882 = vld [vmem:[%s1 + $0xe40] sm:$0xff]
  %v2883 = vld [vmem:[%s1 + $0xe48] sm:$0xff]
  %v2884 = vld [vmem:[%s1 + $0xe50] sm:$0xff]
  %v2885 = vld [vmem:[%s1 + $0xe58] sm:$0xff]
  %v2886 = vld [vmem:[%s1 + $0xe60] sm:$0xff]
  %v2887 = vld [vmem:[%s1 + $0xe68] sm:$0xff]
  %v2888 = vld [vmem:[%s1 + $0xe70] sm:$0xff]
  %v2889 = vld [vmem:[%s1 + $0xe78] sm:$0xff]
  %v2890 = vld [vmem:[%s1 + $0xe80] sm:$0xff]
  %v2891 = vld [vmem:[%s1 + $0xe88] sm:$0xff]
  %v2892 = vld [vmem:[%s1 + $0xe90] sm:$0xff]
  %v2893 = vld [vmem:[%s1 + $0xe98] sm:$0xff]
  %v2894 = vld [vmem:[%s1 + $0xea0] sm:$0xff]
  %v2895 = vld [vmem:[%s1 + $0xea8] sm:$0xff]
  %v2896 = vld [vmem:[%s1 + $0xeb0] sm:$0xff]
  %v2897 = vld [vmem:[%s1 + $0xeb8] sm:$0xff]
  %v2898 = vld [vmem:[%s1 + $0xec0] sm:$0xff]
  %v2899 = vld [vmem:[%s1 + $0xec8] sm:$0xff]
  %v2900 = vld [vmem:[%s1 + $0xed0] sm:$0xff]
  %v2901 = vld [vmem:[%s1 + $0xed8] sm:$0xff]
  %v2902 = vld [vmem:[%s1 + $0xee0] sm:$0xff]
  %v2903 = vld [vmem:[%s1 + $0xee8] sm:$0xff]
  %v2904 = vld [vmem:[%s1 + $0xef0] sm:$0xff]
  %v2905 = vld [vmem:[%s1 + $0xef8] sm:$0xff]
  %v2906 = vld [vmem:[%s1 + $0xf00] sm:$0xff]
  %v2907 = vld [vmem:[%s1 + $0xf08] sm:$0xff]
  %v2908 = vld [vmem:[%s1 + $0xf10] sm:$0xff]
  %v2909 = vld [vmem:[%s1 + $0xf18] sm:$0xff]
  %v2910 = vld [vmem:[%s1 + $0xf20] sm:$0xff]
  %v2911 = vld [vmem:[%s1 + $0xf28] sm:$0xff]
  %v2912 = vld [vmem:[%s1 + $0xf30] sm:$0xff]
  %v2913 = vld [vmem:[%s1 + $0xf38] sm:$0xff]
  %v2914 = vld [vmem:[%s1 + $0xf40] sm:$0xff]
  %v2915 = vld [vmem:[%s1 + $0xf48] sm:$0xff]
  %v2916 = vld [vmem:[%s1 + $0xf50] sm:$0xff]
  %v2917 = vld [vmem:[%s1 + $0xf58] sm:$0xff]
  %v2918 = vld [vmem:[%s1 + $0xf60] sm:$0xff]
  %v2919 = vld [vmem:[%s1 + $0xf68] sm:$0xff]
  %v2920 = vld [vmem:[%s1 + $0xf70] sm:$0xff]
  %v2921 = vld [vmem:[%s1 + $0xf78] sm:$0xff]
  %v2922 = vld [vmem:[%s1 + $0xf80] sm:$0xff]
  %v2923 = vld [vmem:[%s1 + $0xf88] sm:$0xff]
  %v2924 = vld [vmem:[%s1 + $0xf90] sm:$0xff]
  %v2925 = vld [vmem:[%s1 + $0xf98] sm:$0xff]
  %v2926 = vld [vmem:[%s1 + $0xfa0] sm:$0xff]
  %v2927 = vld [vmem:[%s1 + $0xfa8] sm:$0xff]
  %v2928 = vld [vmem:[%s1 + $0xfb0] sm:$0xff]
  %v2929 = vld [vmem:[%s1 + $0xfb8] sm:$0xff]
  %v2930 = vld [vmem:[%s1 + $0xfc0] sm:$0xff]
  %v2931 = vld [vmem:[%s1 + $0xfc8] sm:$0xff]
  %v2932 = vld [vmem:[%s1 + $0xfd0] sm:$0xff]
  %v2933 = vld [vmem:[%s1 + $0xfd8] sm:$0xff]
  %v2934 = vld [vmem:[%s1 + $0xfe0] sm:$0xff]
  %v2935 = vld [vmem:[%s1 + $0xfe8] sm:$0xff]
  %v2936 = vld [vmem:[%s1 + $0xff0] sm:$0xff]
  %v2937 = vld [vmem:[%s1 + $0xff8] sm:$0xff]
  %v2938 = vld [vmem:[%s1 + $0x1000] sm:$0xff]
  %v2939 = vld [vmem:[%s1 + $0x1008] sm:$0xff]
  %v2940 = vld [vmem:[%s1 + $0x1010] sm:$0xff]
  %v2941 = vld [vmem:[%s1 + $0x1018] sm:$0xff]
  %v2942 = vld [vmem:[%s1 + $0x1020] sm:$0xff]
  %v2943 = vld [vmem:[%s1 + $0x1028] sm:$0xff]
  %v2944 = vld [vmem:[%s1 + $0x1030] sm:$0xff]
  %v2945 = vld [vmem:[%s1 + $0x1038] sm:$0xff]
  %v2946 = vld [vmem:[%s1 + $0x1040] sm:$0xff]
  %v2947 = vld [vmem:[%s1 + $0x1048] sm:$0xff]
  %v2948 = vld [vmem:[%s1 + $0x1050] sm:$0xff]
  %v2949 = vld [vmem:[%s1 + $0x1058] sm:$0xff]
  %v2950 = vld [vmem:[%s1 + $0x1060] sm:$0xff]
  %v2951 = vld [vmem:[%s1 + $0x1068] sm:$0xff]
  %v2952 = vld [vmem:[%s1 + $0x1070] sm:$0xff]
  %v2953 = vld [vmem:[%s1 + $0x1078] sm:$0xff]
  %v2954 = vld [vmem:[%s1 + $0x1080] sm:$0xff]
  %v2955 = vld [vmem:[%s1 + $0x1088] sm:$0xff]
  %v2956 = vld [vmem:[%s1 + $0x1090] sm:$0xff]
  %v2957 = vld [vmem:[%s1 + $0x1098] sm:$0xff]
  %v2958 = vld [vmem:[%s1 + $0x10a0] sm:$0xff]
  %v2959 = vld [vmem:[%s1 + $0x10a8] sm:$0xff]
  %v2960 = vld [vmem:[%s1 + $0x10b0] sm:$0xff]
  %v2961 = vld [vmem:[%s1 + $0x10b8] sm:$0xff]
  %v2962 = vld [vmem:[%s1 + $0x10c0] sm:$0xff]
  %v2963 = vld [vmem:[%s1 + $0x10c8] sm:$0xff]
  %v2964 = vld [vmem:[%s1 + $0x10d0] sm:$0xff]
  %v2965 = vld [vmem:[%s1 + $0x10d8] sm:$0xff]
  %v2966 = vld [vmem:[%s1 + $0x10e0] sm:$0xff]
  %v2967 = vld [vmem:[%s1 + $0x10e8] sm:$0xff]
  %v2968 = vld [vmem:[%s1 + $0x10f0] sm:$0xff]
  %v2969 = vld [vmem:[%s1 + $0x10f8] sm:$0xff]
  %v2970 = vld [vmem:[%s1 + $0x1100] sm:$0xff]
  %v2971 = vld [vmem:[%s1 + $0x1108] sm:$0xff]
  %v2972 = vld [vmem:[%s1 + $0x1110] sm:$0xff]
  %v2973 = vld [vmem:[%s1 + $0x1118] sm:$0xff]
  %v2974 = vld [vmem:[%s1 + $0x1120] sm:$0xff]
  %v2975 = vld [vmem:[%s1 + $0x1128] sm:$0xff]
  %v2976 = vld [vmem:[%s1 + $0x1130] sm:$0xff]
  %v2977 = vld [vmem:[%s1 + $0x1138] sm:$0xff]
  %v2978 = vld [vmem:[%s1 + $0x1140] sm:$0xff]
  %v2979 = vld [vmem:[%s1 + $0x1148] sm:$0xff]
  %v2980 = vld [vmem:[%s1 + $0x1150] sm:$0xff]
  %v2981 = vld [vmem:[%s1 + $0x1158] sm:$0xff]
  %v2982 = vld [vmem:[%s1 + $0x1160] sm:$0xff]
  %v2983 = vld [vmem:[%s1 + $0x1168] sm:$0xff]
  %v2984 = vld [vmem:[%s1 + $0x1170] sm:$0xff]
  %v2985 = vld [vmem:[%s1 + $0x1178] sm:$0xff]
  %v2986 = vld [vmem:[%s1 + $0x1180] sm:$0xff]
  %v2987 = vld [vmem:[%s1 + $0x1188] sm:$0xff]
  %v2988 = vld [vmem:[%s1 + $0x1190] sm:$0xff]
  %v2989 = vld [vmem:[%s1 + $0x1198] sm:$0xff]
  %v2990 = vld [vmem:[%s1 + $0x11a0] sm:$0xff]
  %v2991 = vld [vmem:[%s1 + $0x11a8] sm:$0xff]
  %v2992 = vld [vmem:[%s1 + $0x11b0] sm:$0xff]
  %v2993 = vld [vmem:[%s1 + $0x11b8] sm:$0xff]
  %v2994 = vld [vmem:[%s1 + $0x11c0] sm:$0xff]
  %v2995 = vld [vmem:[%s1 + $0x11c8] sm:$0xff]
  %v2996 = vld [vmem:[%s1 + $0x11d0] sm:$0xff]
  %v2997 = vld [vmem:[%s1 + $0x11d8] sm:$0xff]
  %v2998 = vld [vmem:[%s1 + $0x11e0] sm:$0xff]
  %v2999 = vld [vmem:[%s1 + $0x11e8] sm:$0xff]
  %v3000 = vld [vmem:[%s1 + $0x11f0] sm:$0xff]
  %v3001 = vld [vmem:[%s1 + $0x11f8] sm:$0xff]
  %v3002 = vld [vmem:[%s1 + $0x1200] sm:$0xff]
  %v3003 = vld [vmem:[%s1 + $0x1208] sm:$0xff]
  %v3004 = vld [vmem:[%s1 + $0x1210] sm:$0xff]
  %v3005 = vld [vmem:[%s1 + $0x1218] sm:$0xff]
  %v3006 = vld [vmem:[%s1 + $0x1220] sm:$0xff]
  %v3007 = vld [vmem:[%s1 + $0x1228] sm:$0xff]
  %v3008 = vld [vmem:[%s1 + $0x1230] sm:$0xff]
  %v3009 = vld [vmem:[%s1 + $0x1238] sm:$0xff]
  %v3010 = vld [vmem:[%s1 + $0x1240] sm:$0xff]
  %v3011 = vld [vmem:[%s1 + $0x1248] sm:$0xff]
  %v3012 = vld [vmem:[%s1 + $0x1250] sm:$0xff]
  %v3013 = vld [vmem:[%s1 + $0x1258] sm:$0xff]
  %v3014 = vld [vmem:[%s1 + $0x1260] sm:$0xff]
  %v3015 = vld [vmem:[%s1 + $0x1268] sm:$0xff]
  %v3016 = vld [vmem:[%s1 + $0x1270] sm:$0xff]
  %v3017 = vld [vmem:[%s1 + $0x1278] sm:$0xff]
  %v3018 = vld [vmem:[%s1 + $0x1280] sm:$0xff]
  %v3019 = vld [vmem:[%s1 + $0x1288] sm:$0xff]
  %v3020 = vld [vmem:[%s1 + $0x1290] sm:$0xff]
  %v3021 = vld [vmem:[%s1 + $0x1298] sm:$0xff]
  %v3022 = vld [vmem:[%s1 + $0x12a0] sm:$0xff]
  %v3023 = vld [vmem:[%s1 + $0x12a8] sm:$0xff]
  %v3024 = vld [vmem:[%s1 + $0x12b0] sm:$0xff]
  %v3025 = vld [vmem:[%s1 + $0x12b8] sm:$0xff]
  %v3026 = vld [vmem:[%s1 + $0x12c0] sm:$0xff]
  %v3027 = vld [vmem:[%s1 + $0x12c8] sm:$0xff]
  %v3028 = vld [vmem:[%s1 + $0x12d0] sm:$0xff]
  %v3029 = vld [vmem:[%s1 + $0x12d8] sm:$0xff]
  %v3030 = vld [vmem:[%s1 + $0x12e0] sm:$0xff]
  %v3031 = vld [vmem:[%s1 + $0x12e8] sm:$0xff]
  %v3032 = vld [vmem:[%s1 + $0x12f0] sm:$0xff]
  %v3033 = vld [vmem:[%s1 + $0x12f8] sm:$0xff]
  %v3034 = vld [vmem:[%s1 + $0x1300] sm:$0xff]
  %v3035 = vld [vmem:[%s1 + $0x1308] sm:$0xff]
  %v3036 = vld [vmem:[%s1 + $0x1310] sm:$0xff]
  %v3037 = vld [vmem:[%s1 + $0x1318] sm:$0xff]
  %v3038 = vld [vmem:[%s1 + $0x1320] sm:$0xff]
  %v3039 = vld [vmem:[%s1 + $0x1328] sm:$0xff]
  %v3040 = vld [vmem:[%s1 + $0x1330] sm:$0xff]
  %v3041 = vld [vmem:[%s1 + $0x1338] sm:$0xff]
  %v3042 = vld [vmem:[%s1 + $0x1340] sm:$0xff]
  %v3043 = vld [vmem:[%s1 + $0x1348] sm:$0xff]
  %v3044 = vld [vmem:[%s1 + $0x1350] sm:$0xff]
  %v3045 = vld [vmem:[%s1 + $0x1358] sm:$0xff]
  %v3046 = vld [vmem:[%s1 + $0x1360] sm:$0xff]
  %v3047 = vld [vmem:[%s1 + $0x1368] sm:$0xff]
  %v3048 = vld [vmem:[%s1 + $0x1370] sm:$0xff]
  %v3049 = vld [vmem:[%s1 + $0x1378] sm:$0xff]
  %v3050 = vld [vmem:[%s1 + $0x1380] sm:$0xff]
  %v3051 = vld [vmem:[%s1 + $0x1388] sm:$0xff]
  %v3052 = vld [vmem:[%s1 + $0x1390] sm:$0xff]
  %v3053 = vld [vmem:[%s1 + $0x1398] sm:$0xff]
  %v3054 = vld [vmem:[%s1 + $0x13a0] sm:$0xff]
  %v3055 = vld [vmem:[%s1 + $0x13a8] sm:$0xff]
  %v3056 = vld [vmem:[%s1 + $0x13b0] sm:$0xff]
  %v3057 = vld [vmem:[%s1 + $0x13b8] sm:$0xff]
  %v3058 = vld [vmem:[%s1 + $0x13c0] sm:$0xff]
  %v3059 = vld [vmem:[%s1 + $0x13c8] sm:$0xff]
  %v3060 = vld [vmem:[%s1 + $0x13d0] sm:$0xff]
  %v3061 = vld [vmem:[%s1 + $0x13d8] sm:$0xff]
  %v3062 = vld [vmem:[%s1 + $0x13e0] sm:$0xff]
  %v3063 = vld [vmem:[%s1 + $0x13e8] sm:$0xff]
  %v3064 = vld [vmem:[%s1 + $0x13f0] sm:$0xff]
  %v3065 = vld [vmem:[%s1 + $0x13f8] sm:$0xff]
  %v3066 = vld [vmem:[%s1 + $0x1400] sm:$0xff]
  %v3067 = vld [vmem:[%s1 + $0x1408] sm:$0xff]
  %v3068 = vld [vmem:[%s1 + $0x1410] sm:$0xff]
  %v3069 = vld [vmem:[%s1 + $0x1418] sm:$0xff]
  %v3070 = vld [vmem:[%s1 + $0x1420] sm:$0xff]
  %v3071 = vld [vmem:[%s1 + $0x1428] sm:$0xff]
  %v3072 = vld [vmem:[%s1 + $0x1430] sm:$0xff]
  %v3073 = vld [vmem:[%s1 + $0x1438] sm:$0xff]
  %v3074 = vld [vmem:[%s1 + $0x1440] sm:$0xff]
  %v3075 = vld [vmem:[%s1 + $0x1448] sm:$0xff]
  %v3076 = vld [vmem:[%s1 + $0x1450] sm:$0xff]
  %v3077 = vld [vmem:[%s1 + $0x1458] sm:$0xff]
  %v3078 = vld [vmem:[%s1 + $0x1460] sm:$0xff]
  %v3079 = vld [vmem:[%s1 + $0x1468] sm:$0xff]
  %v3080 = vld [vmem:[%s1 + $0x1470] sm:$0xff]
  %v3081 = vld [vmem:[%s1 + $0x1478] sm:$0xff]
  %v3082 = vld [vmem:[%s1 + $0x1480] sm:$0xff]
  %v3083 = vld [vmem:[%s1 + $0x1488] sm:$0xff]
  %v3084 = vld [vmem:[%s1 + $0x1490] sm:$0xff]
  %v3085 = vld [vmem:[%s1 + $0x1498] sm:$0xff]
  %v3086 = vld [vmem:[%s1 + $0x14a0] sm:$0xff]
  %v3087 = vld [vmem:[%s1 + $0x14a8] sm:$0xff]
  %v3088 = vld [vmem:[%s1 + $0x14b0] sm:$0xff]
  %v3089 = vld [vmem:[%s1 + $0x14b8] sm:$0xff]
  %v3090 = vld [vmem:[%s1 + $0x14c0] sm:$0xff]
  %v3091 = vld [vmem:[%s1 + $0x14c8] sm:$0xff]
  %v3092 = vld [vmem:[%s1 + $0x14d0] sm:$0xff]
  %v3093 = vld [vmem:[%s1 + $0x14d8] sm:$0xff]
  %v3094 = vld [vmem:[%s1 + $0x14e0] sm:$0xff]
  %v3095 = vld [vmem:[%s1 + $0x14e8] sm:$0xff]
  %v3096 = vld [vmem:[%s1 + $0x14f0] sm:$0xff]
  %v3097 = vld [vmem:[%s1 + $0x14f8] sm:$0xff]
  %v3098 = vld [vmem:[%s1 + $0x1500] sm:$0xff]
  %v3099 = vld [vmem:[%s1 + $0x1508] sm:$0xff]
  %v3100 = vld [vmem:[%s1 + $0x1510] sm:$0xff]
  %v3101 = vld [vmem:[%s1 + $0x1518] sm:$0xff]
  %v3102 = vld [vmem:[%s1 + $0x1520] sm:$0xff]
  %v3103 = vld [vmem:[%s1 + $0x1528] sm:$0xff]
  %v3104 = vld [vmem:[%s1 + $0x1530] sm:$0xff]
  %v3105 = vld [vmem:[%s1 + $0x1538] sm:$0xff]
  %v3106 = vld [vmem:[%s1 + $0x1540] sm:$0xff]
  %v3107 = vld [vmem:[%s1 + $0x1548] sm:$0xff]
  %v3108 = vld [vmem:[%s1 + $0x1550] sm:$0xff]
  %v3109 = vld [vmem:[%s1 + $0x1558] sm:$0xff]
  %v3110 = vld [vmem:[%s1 + $0x1560] sm:$0xff]
  %v3111 = vld [vmem:[%s1 + $0x1568] sm:$0xff]
  %v3112 = vld [vmem:[%s1 + $0x1570] sm:$0xff]
  %v3113 = vld [vmem:[%s1 + $0x1578] sm:$0xff]
  %v3114 = vld [vmem:[%s1 + $0x1580] sm:$0xff]
  %v3115 = vld [vmem:[%s1 + $0x1588] sm:$0xff]
  %v3116 = vld [vmem:[%s1 + $0x1590] sm:$0xff]
  %v3117 = vld [vmem:[%s1 + $0x1598] sm:$0xff]
  %v3118 = vld [vmem:[%s1 + $0x15a0] sm:$0xff]
  %v3119 = vld [vmem:[%s1 + $0x15a8] sm:$0xff]
  %v3120 = vld [vmem:[%s1 + $0x15b0] sm:$0xff]
  %v3121 = vld [vmem:[%s1 + $0x15b8] sm:$0xff]
  %v3122 = vld [vmem:[%s1 + $0x15c0] sm:$0xff]
  %v3123 = vld [vmem:[%s1 + $0x15c8] sm:$0xff]
  %v3124 = vld [vmem:[%s1 + $0x15d0] sm:$0xff]
  %v3125 = vld [vmem:[%s1 + $0x15d8] sm:$0xff]
  %v3126 = vld [vmem:[%s1 + $0x15e0] sm:$0xff]
  %v3127 = vld [vmem:[%s1 + $0x15e8] sm:$0xff]
  %v3128 = vld [vmem:[%s1 + $0x15f0] sm:$0xff]
  %v3129 = vld [vmem:[%s1 + $0x15f8] sm:$0xff]
  %v3130 = vld [vmem:[%s1 + $0x1600] sm:$0xff]
  %v3131 = vld [vmem:[%s1 + $0x1608] sm:$0xff]
  %v3132 = vld [vmem:[%s1 + $0x1610] sm:$0xff]
  %v3133 = vld [vmem:[%s1 + $0x1618] sm:$0xff]
  %v3134 = vld [vmem:[%s1 + $0x1620] sm:$0xff]
  %v3135 = vld [vmem:[%s1 + $0x1628] sm:$0xff]
  %v3136 = vld [vmem:[%s1 + $0x1630] sm:$0xff]
  %v3137 = vld [vmem:[%s1 + $0x1638] sm:$0xff]
  %v3138 = vld [vmem:[%s1 + $0x1640] sm:$0xff]
  %v3139 = vld [vmem:[%s1 + $0x1648] sm:$0xff]
  %v3140 = vld [vmem:[%s1 + $0x1650] sm:$0xff]
  %v3141 = vld [vmem:[%s1 + $0x1658] sm:$0xff]
  %v3142 = vld [vmem:[%s1 + $0x1660] sm:$0xff]
  %v3143 = vld [vmem:[%s1 + $0x1668] sm:$0xff]
  %v3144 = vld [vmem:[%s1 + $0x1670] sm:$0xff]
  %v3145 = vld [vmem:[%s1 + $0x1678] sm:$0xff]
  %v3146 = vld [vmem:[%s1 + $0x1680] sm:$0xff]
  %v3147 = vld [vmem:[%s1 + $0x1688] sm:$0xff]
  %v3148 = vld [vmem:[%s1 + $0x1690] sm:$0xff]
  %v3149 = vld [vmem:[%s1 + $0x1698] sm:$0xff]
  %v3150 = vld [vmem:[%s1 + $0x16a0] sm:$0xff]
  %v3151 = vld [vmem:[%s1 + $0x16a8] sm:$0xff]
  %v3152 = vld [vmem:[%s1 + $0x16b0] sm:$0xff]
  %v3153 = vld [vmem:[%s1 + $0x16b8] sm:$0xff]
  %v3154 = vld [vmem:[%s1 + $0x16c0] sm:$0xff]
  %v3155 = vld [vmem:[%s1 + $0x16c8] sm:$0xff]
  %v3156 = vld [vmem:[%s1 + $0x16d0] sm:$0xff]
  %v3157 = vld [vmem:[%s1 + $0x16d8] sm:$0xff]
  %v3158 = vld [vmem:[%s1 + $0x16e0] sm:$0xff]
  %v3159 = vld [vmem:[%s1 + $0x16e8] sm:$0xff]
  %v3160 = vld [vmem:[%s1 + $0x16f0] sm:$0xff]
  %v3161 = vld [vmem:[%s1 + $0x16f8] sm:$0xff]
  %v3162 = vld [vmem:[%s1 + $0x1700] sm:$0xff]
  %v3163 = vld [vmem:[%s1 + $0x1708] sm:$0xff]
  %v3164 = vld [vmem:[%s1 + $0x1710] sm:$0xff]
  %v3165 = vld [vmem:[%s1 + $0x1718] sm:$0xff]
  %v3166 = vld [vmem:[%s1 + $0x1720] sm:$0xff]
  %v3167 = vld [vmem:[%s1 + $0x1728] sm:$0xff]
  %v3168 = vld [vmem:[%s1 + $0x1730] sm:$0xff]
  %v3169 = vld [vmem:[%s1 + $0x1738] sm:$0xff]
  %v3170 = vld [vmem:[%s1 + $0x1740] sm:$0xff]
  %v3171 = vld [vmem:[%s1 + $0x1748] sm:$0xff]
  %v3172 = vld [vmem:[%s1 + $0x1750] sm:$0xff]
  %v3173 = vld [vmem:[%s1 + $0x1758] sm:$0xff]
  %v3174 = vld [vmem:[%s1 + $0x1760] sm:$0xff]
  %v3175 = vld [vmem:[%s1 + $0x1768] sm:$0xff]
  %v3176 = vld [vmem:[%s1 + $0x1770] sm:$0xff]
  %v3177 = vld [vmem:[%s1 + $0x1778] sm:$0xff]
  %v3178 = vld [vmem:[%s1 + $0x1780] sm:$0xff]
  %v3179 = vld [vmem:[%s1 + $0x1788] sm:$0xff]
  %v3180 = vld [vmem:[%s1 + $0x1790] sm:$0xff]
  %v3181 = vld [vmem:[%s1 + $0x1798] sm:$0xff]
  %v3182 = vld [vmem:[%s1 + $0x17a0] sm:$0xff]
  %v3183 = vld [vmem:[%s1 + $0x17a8] sm:$0xff]
  %v3184 = vld [vmem:[%s1 + $0x17b0] sm:$0xff]
  %v3185 = vld [vmem:[%s1 + $0x17b8] sm:$0xff]
  %v3186 = vld [vmem:[%s1 + $0x17c0] sm:$0xff]
  %v3187 = vld [vmem:[%s1 + $0x17c8] sm:$0xff]
  %v3188 = vld [vmem:[%s1 + $0x17d0] sm:$0xff]
  %v3189 = vld [vmem:[%s1 + $0x17d8] sm:$0xff]
  %v3190 = vld [vmem:[%s1 + $0x17e0] sm:$0xff]
  %v3191 = vld [vmem:[%s1 + $0x17e8] sm:$0xff]
  %v3192 = vld [vmem:[%s1 + $0x17f0] sm:$0xff]
  %v3193 = vld [vmem:[%s1 + $0x17f8] sm:$0xff]
  %v3194 = vld [vmem:[%s1 + $0x1800] sm:$0xff]
  %v3195 = vld [vmem:[%s1 + $0x1808] sm:$0xff]
  %v3196 = vld [vmem:[%s1 + $0x1810] sm:$0xff]
  %v3197 = vld [vmem:[%s1 + $0x1818] sm:$0xff]
  %v3198 = vld [vmem:[%s1 + $0x1820] sm:$0xff]
  %v3199 = vld [vmem:[%s1 + $0x1828] sm:$0xff]
  %v3200 = vld [vmem:[%s1 + $0x1830] sm:$0xff]
  %v3201 = vld [vmem:[%s1 + $0x1838] sm:$0xff]
  %v3202 = vld [vmem:[%s1 + $0x1840] sm:$0xff]
  %v3203 = vld [vmem:[%s1 + $0x1848] sm:$0xff]
  %v3204 = vld [vmem:[%s1 + $0x1850] sm:$0xff]
  %v3205 = vld [vmem:[%s1 + $0x1858] sm:$0xff]
  %v3206 = vld [vmem:[%s1 + $0x1860] sm:$0xff]
  %v3207 = vld [vmem:[%s1 + $0x1868] sm:$0xff]
  %v3208 = vld [vmem:[%s1 + $0x1870] sm:$0xff]
  %v3209 = vld [vmem:[%s1 + $0x1878] sm:$0xff]
  %v3210 = vld [vmem:[%s1 + $0x1880] sm:$0xff]
  %v3211 = vld [vmem:[%s1 + $0x1888] sm:$0xff]
  %v3212 = vld [vmem:[%s1 + $0x1890] sm:$0xff]
  %v3213 = vld [vmem:[%s1 + $0x1898] sm:$0xff]
  %v3214 = vld [vmem:[%s1 + $0x18a0] sm:$0xff]
  %v3215 = vld [vmem:[%s1 + $0x18a8] sm:$0xff]
  %v3216 = vld [vmem:[%s1 + $0x18b0] sm:$0xff]
  %v3217 = vld [vmem:[%s1 + $0x18b8] sm:$0xff]
  %v3218 = vld [vmem:[%s1 + $0x18c0] sm:$0xff]
  %v3219 = vld [vmem:[%s1 + $0x18c8] sm:$0xff]
  %v3220 = vld [vmem:[%s1 + $0x18d0] sm:$0xff]
  %v3221 = vld [vmem:[%s1 + $0x18d8] sm:$0xff]
  %v3222 = vld [vmem:[%s1 + $0x18e0] sm:$0xff]
  %v3223 = vld [vmem:[%s1 + $0x18e8] sm:$0xff]
  %v3224 = vld [vmem:[%s1 + $0x18f0] sm:$0xff]
  %v3225 = vld [vmem:[%s1 + $0x18f8] sm:$0xff]
  %v3226 = vld [vmem:[%s1 + $0x1900] sm:$0xff]
  %v3227 = vld [vmem:[%s1 + $0x1908] sm:$0xff]
  %v3228 = vld [vmem:[%s1 + $0x1910] sm:$0xff]
  %v3229 = vld [vmem:[%s1 + $0x1918] sm:$0xff]
  %v3230 = vld [vmem:[%s1 + $0x1920] sm:$0xff]
  %v3231 = vld [vmem:[%s1 + $0x1928] sm:$0xff]
  %v3232 = vld [vmem:[%s1 + $0x1930] sm:$0xff]
  %v3233 = vld [vmem:[%s1 + $0x1938] sm:$0xff]
  %v3234 = vld [vmem:[%s1 + $0x1940] sm:$0xff]
  %v3235 = vld [vmem:[%s1 + $0x1948] sm:$0xff]
  %v3236 = vld [vmem:[%s1 + $0x1950] sm:$0xff]
  %v3237 = vld [vmem:[%s1 + $0x1958] sm:$0xff]
  %v3238 = vld [vmem:[%s1 + $0x1960] sm:$0xff]
  %v3239 = vld [vmem:[%s1 + $0x1968] sm:$0xff]
  %v3240 = vld [vmem:[%s1 + $0x1970] sm:$0xff]
  %v3241 = vld [vmem:[%s1 + $0x1978] sm:$0xff]
  %v3242 = vld [vmem:[%s1 + $0x1980] sm:$0xff]
  %v3243 = vld [vmem:[%s1 + $0x1988] sm:$0xff]
  %v3244 = vld [vmem:[%s1 + $0x1990] sm:$0xff]
  %v3245 = vld [vmem:[%s1 + $0x1998] sm:$0xff]
  %v3246 = vld [vmem:[%s1 + $0x19a0] sm:$0xff]
  %v3247 = vld [vmem:[%s1 + $0x19a8] sm:$0xff]
  %v3248 = vld [vmem:[%s1 + $0x19b0] sm:$0xff]
  %v3249 = vld [vmem:[%s1 + $0x19b8] sm:$0xff]
  %v3250 = vld [vmem:[%s1 + $0x19c0] sm:$0xff]
  %v3251 = vld [vmem:[%s1 + $0x19c8] sm:$0xff]
  %v3252 = vld [vmem:[%s1 + $0x19d0] sm:$0xff]
  %v3253 = vld [vmem:[%s1 + $0x19d8] sm:$0xff]
  %v3254 = vld [vmem:[%s1 + $0x19e0] sm:$0xff]
  %v3255 = vld [vmem:[%s1 + $0x19e8] sm:$0xff]
  %v3256 = vld [vmem:[%s1 + $0x19f0] sm:$0xff]
  %v3257 = vld [vmem:[%s1 + $0x19f8] sm:$0xff]
  %v3258 = vld [vmem:[%s1 + $0x1a00] sm:$0xff]
  %v3259 = vld [vmem:[%s1 + $0x1a08] sm:$0xff]
  %v3260 = vld [vmem:[%s1 + $0x1a10] sm:$0xff]
  %v3261 = vld [vmem:[%s1 + $0x1a18] sm:$0xff]
  %v3262 = vld [vmem:[%s1 + $0x1a20] sm:$0xff]
  %v3263 = vld [vmem:[%s1 + $0x1a28] sm:$0xff]
  %v3264 = vld [vmem:[%s1 + $0x1a30] sm:$0xff]
  %v3265 = vld [vmem:[%s1 + $0x1a38] sm:$0xff]
  %v3266 = vld [vmem:[%s1 + $0x1a40] sm:$0xff]
  %v3267 = vld [vmem:[%s1 + $0x1a48] sm:$0xff]
  %v3268 = vld [vmem:[%s1 + $0x1a50] sm:$0xff]
  %v3269 = vld [vmem:[%s1 + $0x1a58] sm:$0xff]
  %v3270 = vld [vmem:[%s1 + $0x1a60] sm:$0xff]
  %v3271 = vld [vmem:[%s1 + $0x1a68] sm:$0xff]
  %v3272 = vld [vmem:[%s1 + $0x1a70] sm:$0xff]
  %v3273 = vld [vmem:[%s1 + $0x1a78] sm:$0xff]
  %v3274 = vld [vmem:[%s1 + $0x1a80] sm:$0xff]
  %v3275 = vld [vmem:[%s1 + $0x1a88] sm:$0xff]
  %v3276 = vld [vmem:[%s1 + $0x1a90] sm:$0xff]
  %v3277 = vld [vmem:[%s1 + $0x1a98] sm:$0xff]
  %v3278 = vld [vmem:[%s1 + $0x1aa0] sm:$0xff]
  %v3279 = vld [vmem:[%s1 + $0x1aa8] sm:$0xff]
  %v3280 = vld [vmem:[%s1 + $0x1ab0] sm:$0xff]
  %v3281 = vld [vmem:[%s1 + $0x1ab8] sm:$0xff]
  %v3282 = vld [vmem:[%s1 + $0x1ac0] sm:$0xff]
  %v3283 = vld [vmem:[%s1 + $0x1ac8] sm:$0xff]
  %v3284 = vld [vmem:[%s1 + $0x1ad0] sm:$0xff]
  %v3285 = vld [vmem:[%s1 + $0x1ad8] sm:$0xff]
  %v3286 = vld [vmem:[%s1 + $0x1ae0] sm:$0xff]
  %v3287 = vld [vmem:[%s1 + $0x1ae8] sm:$0xff]
  %v3288 = vld [vmem:[%s1 + $0x1af0] sm:$0xff]
  %v3289 = vld [vmem:[%s1 + $0x1af8] sm:$0xff]
  %v3290 = vld [vmem:[%s1 + $0x1b00] sm:$0xff]
  %v3291 = vld [vmem:[%s1 + $0x1b08] sm:$0xff]
  %v3292 = vld [vmem:[%s1 + $0x1b10] sm:$0xff]
  %v3293 = vld [vmem:[%s1 + $0x1b18] sm:$0xff]
  %v3294 = vld [vmem:[%s1 + $0x1b20] sm:$0xff]
  %v3295 = vld [vmem:[%s1 + $0x1b28] sm:$0xff]
  %v3296 = vld [vmem:[%s1 + $0x1b30] sm:$0xff]
  %v3297 = vld [vmem:[%s1 + $0x1b38] sm:$0xff]
  %v3298 = vld [vmem:[%s1 + $0x1b40] sm:$0xff]
  %v3299 = vld [vmem:[%s1 + $0x1b48] sm:$0xff]
  %v3300 = vld [vmem:[%s1 + $0x1b50] sm:$0xff]
  %v3301 = vld [vmem:[%s1 + $0x1b58] sm:$0xff]
  %v3302 = vld [vmem:[%s1 + $0x1b60] sm:$0xff]
  %v3303 = vld [vmem:[%s1 + $0x1b68] sm:$0xff]
  %v3304 = vld [vmem:[%s1 + $0x1b70] sm:$0xff]
  %v3305 = vld [vmem:[%s1 + $0x1b78] sm:$0xff]
  %v3306 = vld [vmem:[%s1 + $0x1b80] sm:$0xff]
  %v3307 = vld [vmem:[%s1 + $0x1b88] sm:$0xff]
  %v3308 = vld [vmem:[%s1 + $0x1b90] sm:$0xff]
  %v3309 = vld [vmem:[%s1 + $0x1b98] sm:$0xff]
  %v3310 = vld [vmem:[%s1 + $0x1ba0] sm:$0xff]
  %v3311 = vld [vmem:[%s1 + $0x1ba8] sm:$0xff]
  %v3312 = vld [vmem:[%s1 + $0x1bb0] sm:$0xff]
  %v3313 = vld [vmem:[%s1 + $0x1bb8] sm:$0xff]
  %v3314 = vld [vmem:[%s1 + $0x1bc0] sm:$0xff]
  %v3315 = vld [vmem:[%s1 + $0x1bc8] sm:$0xff]
  %v3316 = vld [vmem:[%s1 + $0x1bd0] sm:$0xff]
  %v3317 = vld [vmem:[%s1 + $0x1bd8] sm:$0xff]
  %v3318 = vld [vmem:[%s1 + $0x1be0] sm:$0xff]
  %v3319 = vld [vmem:[%s1 + $0x1be8] sm:$0xff]
  %v3320 = vld [vmem:[%s1 + $0x1bf0] sm:$0xff]
  %v3321 = vld [vmem:[%s1 + $0x1bf8] sm:$0xff]
  %v3322 = vld [vmem:[%s1 + $0x1c00] sm:$0xff]
  %v3323 = vld [vmem:[%s1 + $0x1c08] sm:$0xff]
  %v3324 = vld [vmem:[%s1 + $0x1c10] sm:$0xff]
  %v3325 = vld [vmem:[%s1 + $0x1c18] sm:$0xff]
  %v3326 = vld [vmem:[%s1 + $0x1c20] sm:$0xff]
  %v3327 = vld [vmem:[%s1 + $0x1c28] sm:$0xff]
  %v3328 = vld [vmem:[%s1 + $0x1c30] sm:$0xff]
  %v3329 = vld [vmem:[%s1 + $0x1c38] sm:$0xff]
  %v3330 = vld [vmem:[%s1 + $0x1c40] sm:$0xff]
  %v3331 = vld [vmem:[%s1 + $0x1c48] sm:$0xff]
  %v3332 = vld [vmem:[%s1 + $0x1c50] sm:$0xff]
  %v3333 = vld [vmem:[%s1 + $0x1c58] sm:$0xff]
  %v3334 = vld [vmem:[%s1 + $0x1c60] sm:$0xff]
  %v3335 = vld [vmem:[%s1 + $0x1c68] sm:$0xff]
  %v3336 = vld [vmem:[%s1 + $0x1c70] sm:$0xff]
  %v3337 = vld [vmem:[%s1 + $0x1c78] sm:$0xff]
  %v3338 = vld [vmem:[%s1 + $0x1c80] sm:$0xff]
  %v3339 = vld [vmem:[%s1 + $0x1c88] sm:$0xff]
  %v3340 = vld [vmem:[%s1 + $0x1c90] sm:$0xff]
  %v3341 = vld [vmem:[%s1 + $0x1c98] sm:$0xff]
  %v3342 = vld [vmem:[%s1 + $0x1ca0] sm:$0xff]
  %v3343 = vld [vmem:[%s1 + $0x1ca8] sm:$0xff]
  %v3344 = vld [vmem:[%s1 + $0x1cb0] sm:$0xff]
  %v3345 = vld [vmem:[%s1 + $0x1cb8] sm:$0xff]
  %v3346 = vld [vmem:[%s1 + $0x1cc0] sm:$0xff]
  %v3347 = vld [vmem:[%s1 + $0x1cc8] sm:$0xff]
  %v3348 = vld [vmem:[%s1 + $0x1cd0] sm:$0xff]
  %v3349 = vld [vmem:[%s1 + $0x1cd8] sm:$0xff]
  %v3350 = vld [vmem:[%s1 + $0x1ce0] sm:$0xff]
  %v3351 = vld [vmem:[%s1 + $0x1ce8] sm:$0xff]
  %v3352 = vld [vmem:[%s1 + $0x1cf0] sm:$0xff]
  %v3353 = vld [vmem:[%s1 + $0x1cf8] sm:$0xff]
  %v3354 = vld [vmem:[%s1 + $0x1d00] sm:$0xff]
  %v3355 = vld [vmem:[%s1 + $0x1d08] sm:$0xff]
  %v3356 = vld [vmem:[%s1 + $0x1d10] sm:$0xff]
  %v3357 = vld [vmem:[%s1 + $0x1d18] sm:$0xff]
  %v3358 = vld [vmem:[%s1 + $0x1d20] sm:$0xff]
  %v3359 = vld [vmem:[%s1 + $0x1d28] sm:$0xff]
  %v3360 = vld [vmem:[%s1 + $0x1d30] sm:$0xff]
  %v3361 = vld [vmem:[%s1 + $0x1d38] sm:$0xff]
  %v3362 = vld [vmem:[%s1 + $0x1d40] sm:$0xff]
  %v3363 = vld [vmem:[%s1 + $0x1d48] sm:$0xff]
  %v3364 = vld [vmem:[%s1 + $0x1d50] sm:$0xff]
  %v3365 = vld [vmem:[%s1 + $0x1d58] sm:$0xff]
  %v3366 = vld [vmem:[%s1 + $0x1d60] sm:$0xff]
  %v3367 = vld [vmem:[%s1 + $0x1d68] sm:$0xff]
  %v3368 = vld [vmem:[%s1 + $0x1d70] sm:$0xff]
  %v3369 = vld [vmem:[%s1 + $0x1d78] sm:$0xff]
  %v3370 = vld [vmem:[%s1 + $0x1d80] sm:$0xff]
  %v3371 = vld [vmem:[%s1 + $0x1d88] sm:$0xff]
  %v3372 = vld [vmem:[%s1 + $0x1d90] sm:$0xff]
  %v3373 = vld [vmem:[%s1 + $0x1d98] sm:$0xff]
  %v3374 = vld [vmem:[%s1 + $0x1da0] sm:$0xff]
  %v3375 = vld [vmem:[%s1 + $0x1da8] sm:$0xff]
  %v3376 = vld [vmem:[%s1 + $0x1db0] sm:$0xff]
  %v3377 = vld [vmem:[%s1 + $0x1db8] sm:$0xff]
  %v3378 = vld [vmem:[%s1 + $0x1dc0] sm:$0xff]
  %v3379 = vld [vmem:[%s1 + $0x1dc8] sm:$0xff]
  %v3380 = vld [vmem:[%s1 + $0x1dd0] sm:$0xff]
  %v3381 = vld [vmem:[%s1 + $0x1dd8] sm:$0xff]
  %v3382 = vld [vmem:[%s1 + $0x1de0] sm:$0xff]
  %v3383 = vld [vmem:[%s1 + $0x1de8] sm:$0xff]
  %v3384 = vld [vmem:[%s1 + $0x1df0] sm:$0xff]
  %v3385 = vld [vmem:[%s1 + $0x1df8] sm:$0xff]
  %v3386 = vld [vmem:[%s1 + $0x1e00] sm:$0xff]
  %v3387 = vld [vmem:[%s1 + $0x1e08] sm:$0xff]
  %v3388 = vld [vmem:[%s1 + $0x1e10] sm:$0xff]
  %v3389 = vld [vmem:[%s1 + $0x1e18] sm:$0xff]
  %v3390 = vld [vmem:[%s1 + $0x1e20] sm:$0xff]
  %v3391 = vld [vmem:[%s1 + $0x1e28] sm:$0xff]
  %v3392 = vld [vmem:[%s1 + $0x1e30] sm:$0xff]
  %v3393 = vld [vmem:[%s1 + $0x1e38] sm:$0xff]
  %v3394 = vld [vmem:[%s1 + $0x1e40] sm:$0xff]
  %v3395 = vld [vmem:[%s1 + $0x1e48] sm:$0xff]
  %v3396 = vld [vmem:[%s1 + $0x1e50] sm:$0xff]
  %v3397 = vld [vmem:[%s1 + $0x1e58] sm:$0xff]
  %v3398 = vld [vmem:[%s1 + $0x1e60] sm:$0xff]
  %v3399 = vld [vmem:[%s1 + $0x1e68] sm:$0xff]
  %v3400 = vld [vmem:[%s1 + $0x1e70] sm:$0xff]
  %v3401 = vld [vmem:[%s1 + $0x1e78] sm:$0xff]
  %v3402 = vld [vmem:[%s1 + $0x1e80] sm:$0xff]
  %v3403 = vld [vmem:[%s1 + $0x1e88] sm:$0xff]
  %v3404 = vld [vmem:[%s1 + $0x1e90] sm:$0xff]
  %v3405 = vld [vmem:[%s1 + $0x1e98] sm:$0xff]
  %v3406 = vld [vmem:[%s1 + $0x1ea0] sm:$0xff]
  %v3407 = vld [vmem:[%s1 + $0x1ea8] sm:$0xff]
  %v3408 = vld [vmem:[%s1 + $0x1eb0] sm:$0xff]
  %v3409 = vld [vmem:[%s1 + $0x1eb8] sm:$0xff]
  %v3410 = vld [vmem:[%s1 + $0x1ec0] sm:$0xff]
  %v3411 = vld [vmem:[%s1 + $0x1ec8] sm:$0xff]
  %v3412 = vld [vmem:[%s1 + $0x1ed0] sm:$0xff]
  %v3413 = vld [vmem:[%s1 + $0x1ed8] sm:$0xff]
  %v3414 = vld [vmem:[%s1 + $0x1ee0] sm:$0xff]
  %v3415 = vld [vmem:[%s1 + $0x1ee8] sm:$0xff]
  %v3416 = vld [vmem:[%s1 + $0x1ef0] sm:$0xff]
  %v3417 = vld [vmem:[%s1 + $0x1ef8] sm:$0xff]
  %v3418 = vld [vmem:[%s1 + $0x1f00] sm:$0xff]
  %v3419 = vld [vmem:[%s1 + $0x1f08] sm:$0xff]
  %v3420 = vld [vmem:[%s1 + $0x1f10] sm:$0xff]
  %v3421 = vld [vmem:[%s1 + $0x1f18] sm:$0xff]
  %v3422 = vld [vmem:[%s1 + $0x1f20] sm:$0xff]
  %v3423 = vld [vmem:[%s1 + $0x1f28] sm:$0xff]
  %v3424 = vld [vmem:[%s1 + $0x1f30] sm:$0xff]
  %v3425 = vld [vmem:[%s1 + $0x1f38] sm:$0xff]
  %v3426 = vld [vmem:[%s1 + $0x1f40] sm:$0xff]
  %v3427 = vld [vmem:[%s1 + $0x1f48] sm:$0xff]
  %v3428 = vld [vmem:[%s1 + $0x1f50] sm:$0xff]
  %v3429 = vld [vmem:[%s1 + $0x1f58] sm:$0xff]
  %v3430 = vld [vmem:[%s1 + $0x1f60] sm:$0xff]
  %v3431 = vld [vmem:[%s1 + $0x1f68] sm:$0xff]
  %v3432 = vld [vmem:[%s1 + $0x1f70] sm:$0xff]
  %v3433 = vld [vmem:[%s1 + $0x1f78] sm:$0xff]
  %v3434 = vld [vmem:[%s1 + $0x1f80] sm:$0xff]
  %v3435 = vld [vmem:[%s1 + $0x1f88] sm:$0xff]
  %v3436 = vld [vmem:[%s1 + $0x1f90] sm:$0xff]
  %v3437 = vld [vmem:[%s1 + $0x1f98] sm:$0xff]
  %v3438 = vld [vmem:[%s1 + $0x1fa0] sm:$0xff]
  %v3439 = vld [vmem:[%s1 + $0x1fa8] sm:$0xff]
  %v3440 = vld [vmem:[%s1 + $0x1fb0] sm:$0xff]
  %v3441 = vld [vmem:[%s1 + $0x1fb8] sm:$0xff]
  %v3442 = vld [vmem:[%s1 + $0x1fc0] sm:$0xff]
  %v3443 = vld [vmem:[%s1 + $0x1fc8] sm:$0xff]
  %v3444 = vld [vmem:[%s1 + $0x1fd0] sm:$0xff]
  %v3445 = vld [vmem:[%s1 + $0x1fd8] sm:$0xff]
  %v3446 = vld [vmem:[%s1 + $0x1fe0] sm:$0xff]
  %v3447 = vld [vmem:[%s1 + $0x1fe8] sm:$0xff]
  %v3448 = vld [vmem:[%s1 + $0x1ff0] sm:$0xff]
  %v3449 = vld [vmem:[%s1 + $0x1ff8] sm:$0xff]
  %v3450 = vld [vmem:[%s1 + $0x2000] sm:$0xff]
  %v3451 = vld [vmem:[%s1 + $0x2008] sm:$0xff]
  %v3452 = vld [vmem:[%s1 + $0x2010] sm:$0xff]
  %v3453 = vld [vmem:[%s1 + $0x2018] sm:$0xff]
  %v3454 = vld [vmem:[%s1 + $0x2020] sm:$0xff]
  %v3455 = vld [vmem:[%s1 + $0x2028] sm:$0xff]
  %v3456 = vld [vmem:[%s1 + $0x2030] sm:$0xff]
  %v3457 = vld [vmem:[%s1 + $0x2038] sm:$0xff]
  %v3458 = vld [vmem:[%s1 + $0x2040] sm:$0xff]
  %v3459 = vld [vmem:[%s1 + $0x2048] sm:$0xff]
  %v3460 = vld [vmem:[%s1 + $0x2050] sm:$0xff]
  %v3461 = vld [vmem:[%s1 + $0x2058] sm:$0xff]
  %v3462 = vld [vmem:[%s1 + $0x2060] sm:$0xff]
  %v3463 = vld [vmem:[%s1 + $0x2068] sm:$0xff]
  %v3464 = vld [vmem:[%s1 + $0x2070] sm:$0xff]
  %v3465 = vld [vmem:[%s1 + $0x2078] sm:$0xff]
  %v3466 = vld [vmem:[%s1 + $0x2080] sm:$0xff]
  %v3467 = vld [vmem:[%s1 + $0x2088] sm:$0xff]
  %v3468 = vld [vmem:[%s1 + $0x2090] sm:$0xff]
  %v3469 = vld [vmem:[%s1 + $0x2098] sm:$0xff]
  %v3470 = vld [vmem:[%s1 + $0x20a0] sm:$0xff]
  %v3471 = vld [vmem:[%s1 + $0x20a8] sm:$0xff]
  %v3472 = vld [vmem:[%s1 + $0x20b0] sm:$0xff]
  %v3473 = vld [vmem:[%s1 + $0x20b8] sm:$0xff]
  %v3474 = vld [vmem:[%s1 + $0x20c0] sm:$0xff]
  %v3475 = vld [vmem:[%s1 + $0x20c8] sm:$0xff]
  %v3476 = vld [vmem:[%s1 + $0x20d0] sm:$0xff]
  %v3477 = vld [vmem:[%s1 + $0x20d8] sm:$0xff]
  %v3478 = vld [vmem:[%s1 + $0x20e0] sm:$0xff]
  %v3479 = vld [vmem:[%s1 + $0x20e8] sm:$0xff]
  %v3480 = vld [vmem:[%s1 + $0x20f0] sm:$0xff]
  %v3481 = vld [vmem:[%s1 + $0x20f8] sm:$0xff]
  %v3482 = vld [vmem:[%s1 + $0x2100] sm:$0xff]
  %v3483 = vld [vmem:[%s1 + $0x2108] sm:$0xff]
  %v3484 = vld [vmem:[%s1 + $0x2110] sm:$0xff]
  %v3485 = vld [vmem:[%s1 + $0x2118] sm:$0xff]
  %v3486 = vld [vmem:[%s1 + $0x2120] sm:$0xff]
  %v3487 = vld [vmem:[%s1 + $0x2128] sm:$0xff]
  %v3488 = vld [vmem:[%s1 + $0x2130] sm:$0xff]
  %v3489 = vld [vmem:[%s1 + $0x2138] sm:$0xff]
  %v3490 = vld [vmem:[%s1 + $0x2140] sm:$0xff]
  %v3491 = vld [vmem:[%s1 + $0x2148] sm:$0xff]
  %v3492 = vld [vmem:[%s1 + $0x2150] sm:$0xff]
  %v3493 = vld [vmem:[%s1 + $0x2158] sm:$0xff]
  %v3494 = vld [vmem:[%s1 + $0x2160] sm:$0xff]
  %v3495 = vld [vmem:[%s1 + $0x2168] sm:$0xff]
  %v3496 = vld [vmem:[%s1 + $0x2170] sm:$0xff]
  %v3497 = vld [vmem:[%s1 + $0x2178] sm:$0xff]
  %v3498 = vld [vmem:[%s1 + $0x2180] sm:$0xff]
  %v3499 = vld [vmem:[%s1 + $0x2188] sm:$0xff]
  %v3500 = vld [vmem:[%s1 + $0x2190] sm:$0xff]
  %v3501 = vld [vmem:[%s1 + $0x2198] sm:$0xff]
  %v3502 = vld [vmem:[%s1 + $0x21a0] sm:$0xff]
  %v3503 = vld [vmem:[%s1 + $0x21a8] sm:$0xff]
  %v3504 = vld [vmem:[%s1 + $0x21b0] sm:$0xff]
  %v3505 = vld [vmem:[%s1 + $0x21b8] sm:$0xff]
  %v3506 = vld [vmem:[%s1 + $0x21c0] sm:$0xff]
  %v3507 = vld [vmem:[%s1 + $0x21c8] sm:$0xff]
  %v3508 = vld [vmem:[%s1 + $0x21d0] sm:$0xff]
  %v3509 = vld [vmem:[%s1 + $0x21d8] sm:$0xff]
  %v3510 = vld [vmem:[%s1 + $0x21e0] sm:$0xff]
  %v3511 = vld [vmem:[%s1 + $0x21e8] sm:$0xff]
  %v3512 = vld [vmem:[%s1 + $0x21f0] sm:$0xff]
  %v3513 = vld [vmem:[%s1 + $0x21f8] sm:$0xff]
  %v3514 = vld [vmem:[%s1 + $0x2200] sm:$0xff]
  %v3515 = vld [vmem:[%s1 + $0x2208] sm:$0xff]
  %v3516 = vld [vmem:[%s1 + $0x2210] sm:$0xff]
  %v3517 = vld [vmem:[%s1 + $0x2218] sm:$0xff]
  %v3518 = vld [vmem:[%s1 + $0x2220] sm:$0xff]
  %v3519 = vld [vmem:[%s1 + $0x2228] sm:$0xff]
  %v3520 = vld [vmem:[%s1 + $0x2230] sm:$0xff]
  %v3521 = vld [vmem:[%s1 + $0x2238] sm:$0xff]
  %v3522 = vld [vmem:[%s1 + $0x2240] sm:$0xff]
  %v3523 = vld [vmem:[%s1 + $0x2248] sm:$0xff]
  %v3524 = vld [vmem:[%s1 + $0x2250] sm:$0xff]
  %v3525 = vld [vmem:[%s1 + $0x2258] sm:$0xff]
  %v3526 = vld [vmem:[%s1 + $0x2260] sm:$0xff]
  %v3527 = vld [vmem:[%s1 + $0x2268] sm:$0xff]
  %v3528 = vld [vmem:[%s1 + $0x2270] sm:$0xff]
  %v3529 = vld [vmem:[%s1 + $0x2278] sm:$0xff]
  %v3530 = vld [vmem:[%s1 + $0x2280] sm:$0xff]
  %v3531 = vld [vmem:[%s1 + $0x2288] sm:$0xff]
  %v3532 = vld [vmem:[%s1 + $0x2290] sm:$0xff]
  %v3533 = vld [vmem:[%s1 + $0x2298] sm:$0xff]
  %v3534 = vld [vmem:[%s1 + $0x22a0] sm:$0xff]
  %v3535 = vld [vmem:[%s1 + $0x22a8] sm:$0xff]
  %v3536 = vld [vmem:[%s1 + $0x22b0] sm:$0xff]
  %v3537 = vld [vmem:[%s1 + $0x22b8] sm:$0xff]
  %v3538 = vld [vmem:[%s1 + $0x22c0] sm:$0xff]
  %v3539 = vld [vmem:[%s1 + $0x22c8] sm:$0xff]
  %v3540 = vld [vmem:[%s1 + $0x22d0] sm:$0xff]
  %v3541 = vld [vmem:[%s1 + $0x22d8] sm:$0xff]
  %v3542 = vld [vmem:[%s1 + $0x22e0] sm:$0xff]
  %v3543 = vld [vmem:[%s1 + $0x22e8] sm:$0xff]
  %v3544 = vld [vmem:[%s1 + $0x22f0] sm:$0xff]
  %v3545 = vld [vmem:[%s1 + $0x22f8] sm:$0xff]
  %v3546 = vld [vmem:[%s1 + $0x2300] sm:$0xff]
  %v3547 = vld [vmem:[%s1 + $0x2308] sm:$0xff]
  %v3548 = vld [vmem:[%s1 + $0x2310] sm:$0xff]
  %v3549 = vld [vmem:[%s1 + $0x2318] sm:$0xff]
  %v3550 = vld [vmem:[%s1 + $0x2320] sm:$0xff]
  %v3551 = vld [vmem:[%s1 + $0x2328] sm:$0xff]
  %v3552 = vld [vmem:[%s1 + $0x2330] sm:$0xff]
  %v3553 = vld [vmem:[%s1 + $0x2338] sm:$0xff]
  %v3554 = vld [vmem:[%s1 + $0x2340] sm:$0xff]
  %v3555 = vld [vmem:[%s1 + $0x2348] sm:$0xff]
  %v3556 = vld [vmem:[%s1 + $0x2350] sm:$0xff]
  %v3557 = vld [vmem:[%s1 + $0x2358] sm:$0xff]
  %v3558 = vld [vmem:[%s1 + $0x2360] sm:$0xff]
  %v3559 = vld [vmem:[%s1 + $0x2368] sm:$0xff]
  %v3560 = vld [vmem:[%s1 + $0x2370] sm:$0xff]
  %v3561 = vld [vmem:[%s1 + $0x2378] sm:$0xff]
  %v3562 = vld [vmem:[%s1 + $0x2380] sm:$0xff]
  %v3563 = vld [vmem:[%s1 + $0x2388] sm:$0xff]
  %v3564 = vld [vmem:[%s1 + $0x2390] sm:$0xff]
  %v3565 = vld [vmem:[%s1 + $0x2398] sm:$0xff]
  %v3566 = vld [vmem:[%s1 + $0x23a0] sm:$0xff]
  %v3567 = vld [vmem:[%s1 + $0x23a8] sm:$0xff]
  %v3568 = vld [vmem:[%s1 + $0x23b0] sm:$0xff]
  %v3569 = vld [vmem:[%s1 + $0x23b8] sm:$0xff]
  %v3570 = vld [vmem:[%s1 + $0x23c0] sm:$0xff]
  %v3571 = vld [vmem:[%s1 + $0x23c8] sm:$0xff]
  %v3572 = vld [vmem:[%s1 + $0x23d0] sm:$0xff]
  %v3573 = vld [vmem:[%s1 + $0x23d8] sm:$0xff]
  %v3574 = vld [vmem:[%s1 + $0x23e0] sm:$0xff]
  %v3575 = vld [vmem:[%s1 + $0x23e8] sm:$0xff]
  %v3576 = vld [vmem:[%s1 + $0x23f0] sm:$0xff]
  %v3577 = vld [vmem:[%s1 + $0x23f8] sm:$0xff]
  %v3578 = vld [vmem:[%s1 + $0x2400] sm:$0xff]
  %v3579 = vld [vmem:[%s1 + $0x2408] sm:$0xff]
  %v3580 = vld [vmem:[%s1 + $0x2410] sm:$0xff]
  %v3581 = vld [vmem:[%s1 + $0x2418] sm:$0xff]
  %v3582 = vld [vmem:[%s1 + $0x2420] sm:$0xff]
  %v3583 = vld [vmem:[%s1 + $0x2428] sm:$0xff]
  %v3584 = vld [vmem:[%s1 + $0x2430] sm:$0xff]
  %v3585 = vld [vmem:[%s1 + $0x2438] sm:$0xff]
  %v3586 = vld [vmem:[%s1 + $0x2440] sm:$0xff]
  %v3587 = vld [vmem:[%s1 + $0x2448] sm:$0xff]
  %v3588 = vld [vmem:[%s1 + $0x2450] sm:$0xff]
  %v3589 = vld [vmem:[%s1 + $0x2458] sm:$0xff]
  %v3590 = vld [vmem:[%s1 + $0x2460] sm:$0xff]
  %v3591 = vld [vmem:[%s1 + $0x2468] sm:$0xff]
  %v3592 = vld [vmem:[%s1 + $0x2470] sm:$0xff]
  %v3593 = vld [vmem:[%s1 + $0x2478] sm:$0xff]
  %v3594 = vld [vmem:[%s1 + $0x2480] sm:$0xff]
  %v3595 = vld [vmem:[%s1 + $0x2488] sm:$0xff]
  %v3596 = vld [vmem:[%s1 + $0x2490] sm:$0xff]
  %v3597 = vld [vmem:[%s1 + $0x2498] sm:$0xff]
  %v3598 = vld [vmem:[%s1 + $0x24a0] sm:$0xff]
  %v3599 = vld [vmem:[%s1 + $0x24a8] sm:$0xff]
  %v3600 = vld [vmem:[%s1 + $0x24b0] sm:$0xff]
  %v3601 = vld [vmem:[%s1 + $0x24b8] sm:$0xff]
  %v3602 = vld [vmem:[%s1 + $0x24c0] sm:$0xff]
  %v3603 = vld [vmem:[%s1 + $0x24c8] sm:$0xff]
  %v3604 = vld [vmem:[%s1 + $0x24d0] sm:$0xff]
  %v3605 = vld [vmem:[%s1 + $0x24d8] sm:$0xff]
  %v3606 = vld [vmem:[%s1 + $0x24e0] sm:$0xff]
  %v3607 = vld [vmem:[%s1 + $0x24e8] sm:$0xff]
  %v3608 = vld [vmem:[%s1 + $0x24f0] sm:$0xff]
  %v3609 = vld [vmem:[%s1 + $0x24f8] sm:$0xff]
  %v3610 = vld [vmem:[%s1 + $0x2500] sm:$0xff]
  %v3611 = vld [vmem:[%s1 + $0x2508] sm:$0xff]
  %v3612 = vld [vmem:[%s1 + $0x2510] sm:$0xff]
  %v3613 = vld [vmem:[%s1 + $0x2518] sm:$0xff]
  %v3614 = vld [vmem:[%s1 + $0x2520] sm:$0xff]
  %v3615 = vld [vmem:[%s1 + $0x2528] sm:$0xff]
  %v3616 = vld [vmem:[%s1 + $0x2530] sm:$0xff]
  %v3617 = vld [vmem:[%s1 + $0x2538] sm:$0xff]
  %v3618 = vld [vmem:[%s1 + $0x2540] sm:$0xff]
  %v3619 = vld [vmem:[%s1 + $0x2548] sm:$0xff]
  %v3620 = vld [vmem:[%s1 + $0x2550] sm:$0xff]
  %v3621 = vld [vmem:[%s1 + $0x2558] sm:$0xff]
  %v3622 = vld [vmem:[%s1 + $0x2560] sm:$0xff]
  %v3623 = vld [vmem:[%s1 + $0x2568] sm:$0xff]
  %v3624 = vld [vmem:[%s1 + $0x2570] sm:$0xff]
  %v3625 = vld [vmem:[%s1 + $0x2578] sm:$0xff]
  %v3626 = vld [vmem:[%s1 + $0x2580] sm:$0xff]
  %v3627 = vld [vmem:[%s1 + $0x2588] sm:$0xff]
  %v3628 = vld [vmem:[%s1 + $0x2590] sm:$0xff]
  %v3629 = vld [vmem:[%s1 + $0x2598] sm:$0xff]
  %v3630 = vld [vmem:[%s1 + $0x25a0] sm:$0xff]
  %v3631 = vld [vmem:[%s1 + $0x25a8] sm:$0xff]
  %v3632 = vld [vmem:[%s1 + $0x25b0] sm:$0xff]
  %v3633 = vld [vmem:[%s1 + $0x25b8] sm:$0xff]
  %v3634 = vld [vmem:[%s1 + $0x25c0] sm:$0xff]
  %v3635 = vld [vmem:[%s1 + $0x25c8] sm:$0xff]
  %v3636 = vld [vmem:[%s1 + $0x25d0] sm:$0xff]
  %v3637 = vld [vmem:[%s1 + $0x25d8] sm:$0xff]
  %v3638 = vld [vmem:[%s1 + $0x25e0] sm:$0xff]
  %v3639 = vld [vmem:[%s1 + $0x25e8] sm:$0xff]
  %v3640 = vld [vmem:[%s1 + $0x25f0] sm:$0xff]
  %v3641 = vld [vmem:[%s1 + $0x25f8] sm:$0xff]
  %v3642 = vld [vmem:[%s1 + $0x2600] sm:$0xff]
  %v3643 = vld [vmem:[%s1 + $0x2608] sm:$0xff]
  %v3644 = vld [vmem:[%s1 + $0x2610] sm:$0xff]
  %v3645 = vld [vmem:[%s1 + $0x2618] sm:$0xff]
  %v3646 = vld [vmem:[%s1 + $0x2620] sm:$0xff]
  %v3647 = vld [vmem:[%s1 + $0x2628] sm:$0xff]
  %v3648 = vld [vmem:[%s1 + $0x2630] sm:$0xff]
  %v3649 = vld [vmem:[%s1 + $0x2638] sm:$0xff]
  %v3650 = vld [vmem:[%s1 + $0x2640] sm:$0xff]
  %v3651 = vld [vmem:[%s1 + $0x2648] sm:$0xff]
  %v3652 = vld [vmem:[%s1 + $0x2650] sm:$0xff]
  %v3653 = vld [vmem:[%s1 + $0x2658] sm:$0xff]
  %v3654 = vld [vmem:[%s1 + $0x2660] sm:$0xff]
  %v3655 = vld [vmem:[%s1 + $0x2668] sm:$0xff]
  %v3656 = vld [vmem:[%s1 + $0x2670] sm:$0xff]
  %v3657 = vld [vmem:[%s1 + $0x2678] sm:$0xff]
  %v3658 = vld [vmem:[%s1 + $0x2680] sm:$0xff]
  %v3659 = vld [vmem:[%s1 + $0x2688] sm:$0xff]
  %v3660 = vld [vmem:[%s1 + $0x2690] sm:$0xff]
  %v3661 = vld [vmem:[%s1 + $0x2698] sm:$0xff]
  %v3662 = vld [vmem:[%s1 + $0x26a0] sm:$0xff]
  %v3663 = vld [vmem:[%s1 + $0x26a8] sm:$0xff]
  %v3664 = vld [vmem:[%s1 + $0x26b0] sm:$0xff]
  %v3665 = vld [vmem:[%s1 + $0x26b8] sm:$0xff]
  %v3666 = vld [vmem:[%s1 + $0x26c0] sm:$0xff]
  %v3667 = vld [vmem:[%s1 + $0x26c8] sm:$0xff]
  %v3668 = vld [vmem:[%s1 + $0x26d0] sm:$0xff]
  %v3669 = vld [vmem:[%s1 + $0x26d8] sm:$0xff]
  %v3670 = vld [vmem:[%s1 + $0x26e0] sm:$0xff]
  %v3671 = vld [vmem:[%s1 + $0x26e8] sm:$0xff]
  %v3672 = vld [vmem:[%s1 + $0x26f0] sm:$0xff]
  %v3673 = vld [vmem:[%s1 + $0x26f8] sm:$0xff]
  %v3674 = vld [vmem:[%s1 + $0x2700] sm:$0xff]
  %v3675 = vld [vmem:[%s1 + $0x2708] sm:$0xff]
  %v3676 = vld [vmem:[%s1 + $0x2710] sm:$0xff]
  %v3677 = vld [vmem:[%s1 + $0x2718] sm:$0xff]
  %v3678 = vld [vmem:[%s1 + $0x2720] sm:$0xff]
  %v3679 = vld [vmem:[%s1 + $0x2728] sm:$0xff]
  %v3680 = vld [vmem:[%s1 + $0x2730] sm:$0xff]
  %v3681 = vld [vmem:[%s1 + $0x2738] sm:$0xff]
  %v3682 = vld [vmem:[%s1 + $0x2740] sm:$0xff]
  %v3683 = vld [vmem:[%s1 + $0x2748] sm:$0xff]
  %v3684 = vld [vmem:[%s1 + $0x2750] sm:$0xff]
  %v3685 = vld [vmem:[%s1 + $0x2758] sm:$0xff]
  %v3686 = vld [vmem:[%s1 + $0x2760] sm:$0xff]
  %v3687 = vld [vmem:[%s1 + $0x2768] sm:$0xff]
  %v3688 = vld [vmem:[%s1 + $0x2770] sm:$0xff]
  %v3689 = vld [vmem:[%s1 + $0x2778] sm:$0xff]
  %v3690 = vld [vmem:[%s1 + $0x2780] sm:$0xff]
  %v3691 = vld [vmem:[%s1 + $0x2788] sm:$0xff]
  %v3692 = vld [vmem:[%s1 + $0x2790] sm:$0xff]
  %v3693 = vld [vmem:[%s1 + $0x2798] sm:$0xff]
  %v3694 = vld [vmem:[%s1 + $0x27a0] sm:$0xff]
  %v3695 = vld [vmem:[%s1 + $0x27a8] sm:$0xff]
  %v3696 = vld [vmem:[%s1 + $0x27b0] sm:$0xff]
  %v3697 = vld [vmem:[%s1 + $0x27b8] sm:$0xff]
  %v3698 = vld [vmem:[%s1 + $0x27c0] sm:$0xff]
  %v3699 = vld [vmem:[%s1 + $0x27c8] sm:$0xff]
  %v3700 = vld [vmem:[%s1 + $0x27d0] sm:$0xff]
  %v3701 = vld [vmem:[%s1 + $0x27d8] sm:$0xff]
  %v3702 = vld [vmem:[%s1 + $0x27e0] sm:$0xff]
  %v3703 = vld [vmem:[%s1 + $0x27e8] sm:$0xff]
  %v3704 = vld [vmem:[%s1 + $0x27f0] sm:$0xff]
  %v3705 = vld [vmem:[%s1 + $0x27f8] sm:$0xff]
  %v3706 = vld [vmem:[%s1 + $0x2800] sm:$0xff]
  %v3707 = vld [vmem:[%s1 + $0x2808] sm:$0xff]
  %v3708 = vld [vmem:[%s1 + $0x2810] sm:$0xff]
  %v3709 = vld [vmem:[%s1 + $0x2818] sm:$0xff]
  %v3710 = vld [vmem:[%s1 + $0x2820] sm:$0xff]
  %v3711 = vld [vmem:[%s1 + $0x2828] sm:$0xff]
  %v3712 = vld [vmem:[%s1 + $0x2830] sm:$0xff]
  %v3713 = vld [vmem:[%s1 + $0x2838] sm:$0xff]
  %v3714 = vld [vmem:[%s1 + $0x2840] sm:$0xff]
  %v3715 = vld [vmem:[%s1 + $0x2848] sm:$0xff]
  %v3716 = vld [vmem:[%s1 + $0x2850] sm:$0xff]
  %v3717 = vld [vmem:[%s1 + $0x2858] sm:$0xff]
  %v3718 = vld [vmem:[%s1 + $0x2860] sm:$0xff]
  %v3719 = vld [vmem:[%s1 + $0x2868] sm:$0xff]
  %v3720 = vld [vmem:[%s1 + $0x2870] sm:$0xff]
  %v3721 = vld [vmem:[%s1 + $0x2878] sm:$0xff]
  %v3722 = vld [vmem:[%s1 + $0x2880] sm:$0xff]
  %v3723 = vld [vmem:[%s1 + $0x2888] sm:$0xff]
  %v3724 = vld [vmem:[%s1 + $0x2890] sm:$0xff]
  %v3725 = vld [vmem:[%s1 + $0x2898] sm:$0xff]
  %v3726 = vld [vmem:[%s1 + $0x28a0] sm:$0xff]
  %v3727 = vld [vmem:[%s1 + $0x28a8] sm:$0xff]
  %v3728 = vld [vmem:[%s1 + $0x28b0] sm:$0xff]
  %v3729 = vld [vmem:[%s1 + $0x28b8] sm:$0xff]
  %v3730 = vld [vmem:[%s1 + $0x28c0] sm:$0xff]
  %v3731 = vld [vmem:[%s1 + $0x28c8] sm:$0xff]
  %v3732 = vld [vmem:[%s1 + $0x28d0] sm:$0xff]
  %v3733 = vld [vmem:[%s1 + $0x28d8] sm:$0xff]
  %v3734 = vld [vmem:[%s1 + $0x28e0] sm:$0xff]
  %v3735 = vld [vmem:[%s1 + $0x28e8] sm:$0xff]
  %v3736 = vld [vmem:[%s1 + $0x28f0] sm:$0xff]
  %v3737 = vld [vmem:[%s1 + $0x28f8] sm:$0xff]
  %v3738 = vld [vmem:[%s1 + $0x2900] sm:$0xff]
  %v3739 = vld [vmem:[%s1 + $0x2908] sm:$0xff]
  %v3740 = vld [vmem:[%s1 + $0x2910] sm:$0xff]
  %v3741 = vld [vmem:[%s1 + $0x2918] sm:$0xff]
  %v3742 = vld [vmem:[%s1 + $0x2920] sm:$0xff]
  %v3743 = vld [vmem:[%s1 + $0x2928] sm:$0xff]
  %v3744 = vld [vmem:[%s1 + $0x2930] sm:$0xff]
  %v3745 = vld [vmem:[%s1 + $0x2938] sm:$0xff]
  %v3746 = vld [vmem:[%s1 + $0x2940] sm:$0xff]
  %v3747 = vld [vmem:[%s1 + $0x2948] sm:$0xff]
  %v3748 = vld [vmem:[%s1 + $0x2950] sm:$0xff]
  %v3749 = vld [vmem:[%s1 + $0x2958] sm:$0xff]
  %v3750 = vld [vmem:[%s1 + $0x2960] sm:$0xff]
  %v3751 = vld [vmem:[%s1 + $0x2968] sm:$0xff]
  %v3752 = vld [vmem:[%s1 + $0x2970] sm:$0xff]
  %v3753 = vld [vmem:[%s1 + $0x2978] sm:$0xff]
  %v3754 = vld [vmem:[%s1 + $0x2980] sm:$0xff]
  %v3755 = vld [vmem:[%s1 + $0x2988] sm:$0xff]
  %v3756 = vld [vmem:[%s1 + $0x2990] sm:$0xff]
  %v3757 = vld [vmem:[%s1 + $0x2998] sm:$0xff]
  %v3758 = vld [vmem:[%s1 + $0x29a0] sm:$0xff]
  %v3759 = vld [vmem:[%s1 + $0x29a8] sm:$0xff]
  %v3760 = vld [vmem:[%s1 + $0x29b0] sm:$0xff]
  %v3761 = vld [vmem:[%s1 + $0x29b8] sm:$0xff]
  %v3762 = vld [vmem:[%s1 + $0x29c0] sm:$0xff]
  %v3763 = vld [vmem:[%s1 + $0x29c8] sm:$0xff]
  %v3764 = vld [vmem:[%s1 + $0x29d0] sm:$0xff]
  %v3765 = vld [vmem:[%s1 + $0x29d8] sm:$0xff]
  %v3766 = vld [vmem:[%s1 + $0x29e0] sm:$0xff]
  %v3767 = vld [vmem:[%s1 + $0x29e8] sm:$0xff]
  %v3768 = vld [vmem:[%s1 + $0x29f0] sm:$0xff]
  %v3769 = vld [vmem:[%s1 + $0x29f8] sm:$0xff]
  %v3770 = vld [vmem:[%s1 + $0x2a00] sm:$0xff]
  %v3771 = vld [vmem:[%s1 + $0x2a08] sm:$0xff]
  %v3772 = vld [vmem:[%s1 + $0x2a10] sm:$0xff]
  %v3773 = vld [vmem:[%s1 + $0x2a18] sm:$0xff]
  %v3774 = vld [vmem:[%s1 + $0x2a20] sm:$0xff]
  %v3775 = vld [vmem:[%s1 + $0x2a28] sm:$0xff]
  %v3776 = vld [vmem:[%s1 + $0x2a30] sm:$0xff]
  %v3777 = vld [vmem:[%s1 + $0x2a38] sm:$0xff]
  %v3778 = vld [vmem:[%s1 + $0x2a40] sm:$0xff]
  %v3779 = vld [vmem:[%s1 + $0x2a48] sm:$0xff]
  %v3780 = vld [vmem:[%s1 + $0x2a50] sm:$0xff]
  %v3781 = vld [vmem:[%s1 + $0x2a58] sm:$0xff]
  %v3782 = vld [vmem:[%s1 + $0x2a60] sm:$0xff]
  %v3783 = vld [vmem:[%s1 + $0x2a68] sm:$0xff]
  %v3784 = vld [vmem:[%s1 + $0x2a70] sm:$0xff]
  %v3785 = vld [vmem:[%s1 + $0x2a78] sm:$0xff]
  %v3786 = vld [vmem:[%s1 + $0x2a80] sm:$0xff]
  %v3787 = vld [vmem:[%s1 + $0x2a88] sm:$0xff]
  %v3788 = vld [vmem:[%s1 + $0x2a90] sm:$0xff]
  %v3789 = vld [vmem:[%s1 + $0x2a98] sm:$0xff]
  %v3790 = vld [vmem:[%s1 + $0x2aa0] sm:$0xff]
  %v3791 = vld [vmem:[%s1 + $0x2aa8] sm:$0xff]
  %v3792 = vld [vmem:[%s1 + $0x2ab0] sm:$0xff]
  %v3793 = vld [vmem:[%s1 + $0x2ab8] sm:$0xff]
  %v3794 = vld [vmem:[%s1 + $0x2ac0] sm:$0xff]
  %v3795 = vld [vmem:[%s1 + $0x2ac8] sm:$0xff]
  %v3796 = vld [vmem:[%s1 + $0x2ad0] sm:$0xff]
  %v3797 = vld [vmem:[%s1 + $0x2ad8] sm:$0xff]
  %v3798 = vld [vmem:[%s1 + $0x2ae0] sm:$0xff]
  %v3799 = vld [vmem:[%s1 + $0x2ae8] sm:$0xff]
  %v3800 = vld [vmem:[%s1 + $0x2af0] sm:$0xff]
  %v3801 = vld [vmem:[%s1 + $0x2af8] sm:$0xff]
  %v3802 = vld [vmem:[%s1 + $0x2b00] sm:$0xff]
  %v3803 = vld [vmem:[%s1 + $0x2b08] sm:$0xff]
  %v3804 = vld [vmem:[%s1 + $0x2b10] sm:$0xff]
  %v3805 = vld [vmem:[%s1 + $0x2b18] sm:$0xff]
  %v3806 = vld [vmem:[%s1 + $0x2b20] sm:$0xff]
  %v3807 = vld [vmem:[%s1 + $0x2b28] sm:$0xff]
  %v3808 = vld [vmem:[%s1 + $0x2b30] sm:$0xff]
  %v3809 = vld [vmem:[%s1 + $0x2b38] sm:$0xff]
  %v3810 = vld [vmem:[%s1 + $0x2b40] sm:$0xff]
  %v3811 = vld [vmem:[%s1 + $0x2b48] sm:$0xff]
  %v3812 = vld [vmem:[%s1 + $0x2b50] sm:$0xff]
  %v3813 = vld [vmem:[%s1 + $0x2b58] sm:$0xff]
  %v3814 = vld [vmem:[%s1 + $0x2b60] sm:$0xff]
  %v3815 = vld [vmem:[%s1 + $0x2b68] sm:$0xff]
  %v3816 = vld [vmem:[%s1 + $0x2b70] sm:$0xff]
  %v3817 = vld [vmem:[%s1 + $0x2b78] sm:$0xff]
  %v3818 = vld [vmem:[%s1 + $0x2b80] sm:$0xff]
  %v3819 = vld [vmem:[%s1 + $0x2b88] sm:$0xff]
  %v3820 = vld [vmem:[%s1 + $0x2b90] sm:$0xff]
  %v3821 = vld [vmem:[%s1 + $0x2b98] sm:$0xff]
  %v3822 = vld [vmem:[%s1 + $0x2ba0] sm:$0xff]
  %v3823 = vld [vmem:[%s1 + $0x2ba8] sm:$0xff]
  %v3824 = vld [vmem:[%s1 + $0x2bb0] sm:$0xff]
  %v3825 = vld [vmem:[%s1 + $0x2bb8] sm:$0xff]
  %v3826 = vld [vmem:[%s1 + $0x2bc0] sm:$0xff]
  %v3827 = vld [vmem:[%s1 + $0x2bc8] sm:$0xff]
  %v3828 = vld [vmem:[%s1 + $0x2bd0] sm:$0xff]
  %v3829 = vld [vmem:[%s1 + $0x2bd8] sm:$0xff]
  %v3830 = vld [vmem:[%s1 + $0x2be0] sm:$0xff]
  %v3831 = vld [vmem:[%s1 + $0x2be8] sm:$0xff]
  %v3832 = vld [vmem:[%s1 + $0x2bf0] sm:$0xff]
  %v3833 = vld [vmem:[%s1 + $0x2bf8] sm:$0xff]
  %v3834 = vld [vmem:[%s1 + $0x2c00] sm:$0xff]
  %v3835 = vld [vmem:[%s1 + $0x2c08] sm:$0xff]
  %v3836 = vld [vmem:[%s1 + $0x2c10] sm:$0xff]
  %v3837 = vld [vmem:[%s1 + $0x2c18] sm:$0xff]
  %v3838 = vld [vmem:[%s1 + $0x2c20] sm:$0xff]
  %v3839 = vld [vmem:[%s1 + $0x2c28] sm:$0xff]
  %v3840 = vld [vmem:[%s1 + $0x2c30] sm:$0xff]
  %v3841 = vld [vmem:[%s1 + $0x2c38] sm:$0xff]
  %v3842 = vld [vmem:[%s1 + $0x2c40] sm:$0xff]
  %v3843 = vld [vmem:[%s1 + $0x2c48] sm:$0xff]
  %v3844 = vld [vmem:[%s1 + $0x2c50] sm:$0xff]
  %v3845 = vld [vmem:[%s1 + $0x2c58] sm:$0xff]
  %v3846 = vld [vmem:[%s1 + $0x2c60] sm:$0xff]
  %v3847 = vld [vmem:[%s1 + $0x2c68] sm:$0xff]
  %v3848 = vld [vmem:[%s1 + $0x2c70] sm:$0xff]
  %v3849 = vld [vmem:[%s1 + $0x2c78] sm:$0xff]
  %v3850 = vld [vmem:[%s1 + $0x2c80] sm:$0xff]
  %v3851 = vld [vmem:[%s1 + $0x2c88] sm:$0xff]
  %v3852 = vld [vmem:[%s1 + $0x2c90] sm:$0xff]
  %v3853 = vld [vmem:[%s1 + $0x2c98] sm:$0xff]
  %v3854 = vld [vmem:[%s1 + $0x2ca0] sm:$0xff]
  %v3855 = vld [vmem:[%s1 + $0x2ca8] sm:$0xff]
  %v3856 = vld [vmem:[%s1 + $0x2cb0] sm:$0xff]
  %v3857 = vld [vmem:[%s1 + $0x2cb8] sm:$0xff]
  %v3858 = vld [vmem:[%s1 + $0x2cc0] sm:$0xff]
  %v3859 = vld [vmem:[%s1 + $0x2cc8] sm:$0xff]
  %v3860 = vld [vmem:[%s1 + $0x2cd0] sm:$0xff]
  %v3861 = vld [vmem:[%s1 + $0x2cd8] sm:$0xff]
  %v3862 = vld [vmem:[%s1 + $0x2ce0] sm:$0xff]
  %v3863 = vld [vmem:[%s1 + $0x2ce8] sm:$0xff]
  %v3864 = vld [vmem:[%s1 + $0x2cf0] sm:$0xff]
  %v3865 = vld [vmem:[%s1 + $0x2cf8] sm:$0xff]
  %v3866 = vld [vmem:[%s1 + $0x2d00] sm:$0xff]
  %v3867 = vld [vmem:[%s1 + $0x2d08] sm:$0xff]
  %v3868 = vld [vmem:[%s1 + $0x2d10] sm:$0xff]
  %v3869 = vld [vmem:[%s1 + $0x2d18] sm:$0xff]
  %v3870 = vld [vmem:[%s1 + $0x2d20] sm:$0xff]
  %v3871 = vld [vmem:[%s1 + $0x2d28] sm:$0xff]
  %v3872 = vld [vmem:[%s1 + $0x2d30] sm:$0xff]
  %v3873 = vld [vmem:[%s1 + $0x2d38] sm:$0xff]
  %v3874 = vld [vmem:[%s1 + $0x2d40] sm:$0xff]
  %v3875 = vld [vmem:[%s1 + $0x2d48] sm:$0xff]
  %v3876 = vld [vmem:[%s1 + $0x2d50] sm:$0xff]
  %v3877 = vld [vmem:[%s1 + $0x2d58] sm:$0xff]
  %v3878 = vld [vmem:[%s1 + $0x2d60] sm:$0xff]
  %v3879 = vld [vmem:[%s1 + $0x2d68] sm:$0xff]
  %v3880 = vld [vmem:[%s1 + $0x2d70] sm:$0xff]
  %v3881 = vld [vmem:[%s1 + $0x2d78] sm:$0xff]
  %v3882 = vld [vmem:[%s1 + $0x2d80] sm:$0xff]
  %v3883 = vld [vmem:[%s1 + $0x2d88] sm:$0xff]
  %v3884 = vld [vmem:[%s1 + $0x2d90] sm:$0xff]
  %v3885 = vld [vmem:[%s1 + $0x2d98] sm:$0xff]
  %v3886 = vld [vmem:[%s1 + $0x2da0] sm:$0xff]
  %v3887 = vld [vmem:[%s1 + $0x2da8] sm:$0xff]
  %v3888 = vld [vmem:[%s1 + $0x2db0] sm:$0xff]
  %v3889 = vld [vmem:[%s1 + $0x2db8] sm:$0xff]
  %v3890 = vld [vmem:[%s1 + $0x2dc0] sm:$0xff]
  %v3891 = vld [vmem:[%s1 + $0x2dc8] sm:$0xff]
  %v3892 = vld [vmem:[%s1 + $0x2dd0] sm:$0xff]
  %v3893 = vld [vmem:[%s1 + $0x2dd8] sm:$0xff]
  %v3894 = vld [vmem:[%s1 + $0x2de0] sm:$0xff]
  %v3895 = vld [vmem:[%s1 + $0x2de8] sm:$0xff]
  %v3896 = vld [vmem:[%s1 + $0x2df0] sm:$0xff]
  %v3897 = vld [vmem:[%s1 + $0x2df8] sm:$0xff]
  %v3898 = vld [vmem:[%s1 + $0x2e00] sm:$0xff]
  %v3899 = vld [vmem:[%s1 + $0x2e08] sm:$0xff]
  %v3900 = vld [vmem:[%s1 + $0x2e10] sm:$0xff]
  %v3901 = vld [vmem:[%s1 + $0x2e18] sm:$0xff]
  %v3902 = vld [vmem:[%s1 + $0x2e20] sm:$0xff]
  %v3903 = vld [vmem:[%s1 + $0x2e28] sm:$0xff]
  %v3904 = vld [vmem:[%s1 + $0x2e30] sm:$0xff]
  %v3905 = vld [vmem:[%s1 + $0x2e38] sm:$0xff]
  %v3906 = vld [vmem:[%s1 + $0x2e40] sm:$0xff]
  %v3907 = vld [vmem:[%s1 + $0x2e48] sm:$0xff]
  %v3908 = vld [vmem:[%s1 + $0x2e50] sm:$0xff]
  %v3909 = vld [vmem:[%s1 + $0x2e58] sm:$0xff]
  %v3910 = vld [vmem:[%s1 + $0x2e60] sm:$0xff]
  %v3911 = vld [vmem:[%s1 + $0x2e68] sm:$0xff]
  %v3912 = vld [vmem:[%s1 + $0x2e70] sm:$0xff]
  %v3913 = vld [vmem:[%s1 + $0x2e78] sm:$0xff]
  %v3914 = vld [vmem:[%s1 + $0x2e80] sm:$0xff]
  %v3915 = vld [vmem:[%s1 + $0x2e88] sm:$0xff]
  %v3916 = vld [vmem:[%s1 + $0x2e90] sm:$0xff]
  %v3917 = vld [vmem:[%s1 + $0x2e98] sm:$0xff]
  %v3918 = vld [vmem:[%s1 + $0x2ea0] sm:$0xff]
  %v3919 = vld [vmem:[%s1 + $0x2ea8] sm:$0xff]
  %v3920 = vld [vmem:[%s1 + $0x2eb0] sm:$0xff]
  %v3921 = vld [vmem:[%s1 + $0x2eb8] sm:$0xff]
  %v3922 = vld [vmem:[%s1 + $0x2ec0] sm:$0xff]
  %v3923 = vld [vmem:[%s1 + $0x2ec8] sm:$0xff]
  %v3924 = vld [vmem:[%s1 + $0x2ed0] sm:$0xff]
  %v3925 = vld [vmem:[%s1 + $0x2ed8] sm:$0xff]
  %v3926 = vld [vmem:[%s1 + $0x2ee0] sm:$0xff]
  %v3927 = vld [vmem:[%s1 + $0x2ee8] sm:$0xff]
  %v3928 = vld [vmem:[%s1 + $0x2ef0] sm:$0xff]
  %v3929 = vld [vmem:[%s1 + $0x2ef8] sm:$0xff]
  %v3930 = vld [vmem:[%s1 + $0x2f00] sm:$0xff]
  %v3931 = vld [vmem:[%s1 + $0x2f08] sm:$0xff]
  %v3932 = vld [vmem:[%s1 + $0x2f10] sm:$0xff]
  %v3933 = vld [vmem:[%s1 + $0x2f18] sm:$0xff]
  %v3934 = vld [vmem:[%s1 + $0x2f20] sm:$0xff]
  %v3935 = vld [vmem:[%s1 + $0x2f28] sm:$0xff]
  %v3936 = vld [vmem:[%s1 + $0x2f30] sm:$0xff]
  %v3937 = vld [vmem:[%s1 + $0x2f38] sm:$0xff]
  %v3938 = vld [vmem:[%s1 + $0x2f40] sm:$0xff]
  %v3939 = vld [vmem:[%s1 + $0x2f48] sm:$0xff]
  %v3940 = vld [vmem:[%s1 + $0x2f50] sm:$0xff]
  %v3941 = vld [vmem:[%s1 + $0x2f58] sm:$0xff]
  %v3942 = vld [vmem:[%s1 + $0x2f60] sm:$0xff]
  %v3943 = vld [vmem:[%s1 + $0x2f68] sm:$0xff]
  %v3944 = vld [vmem:[%s1 + $0x2f70] sm:$0xff]
  %v3945 = vld [vmem:[%s1 + $0x2f78] sm:$0xff]
  %v3946 = vld [vmem:[%s1 + $0x2f80] sm:$0xff]
  %v3947 = vld [vmem:[%s1 + $0x2f88] sm:$0xff]
  %v3948 = vld [vmem:[%s1 + $0x2f90] sm:$0xff]
  %v3949 = vld [vmem:[%s1 + $0x2f98] sm:$0xff]
  %v3950 = vld [vmem:[%s1 + $0x2fa0] sm:$0xff]
  %v3951 = vld [vmem:[%s1 + $0x2fa8] sm:$0xff]
  %v3952 = vld [vmem:[%s1 + $0x2fb0] sm:$0xff]
  %v3953 = vld [vmem:[%s1 + $0x2fb8] sm:$0xff]
  %v3954 = vld [vmem:[%s1 + $0x2fc0] sm:$0xff]
  %v3955 = vld [vmem:[%s1 + $0x2fc8] sm:$0xff]
  %v3956 = vld [vmem:[%s1 + $0x2fd0] sm:$0xff]
  %v3957 = vld [vmem:[%s1 + $0x2fd8] sm:$0xff]
  %v3958 = vld [vmem:[%s1 + $0x2fe0] sm:$0xff]
  %v3959 = vld [vmem:[%s1 + $0x2fe8] sm:$0xff]
  %v3960 = vld [vmem:[%s1 + $0x2ff0] sm:$0xff]
  %v3961 = vld [vmem:[%s1 + $0x2ff8] sm:$0xff]
  %v3962 = vld [vmem:[%s2] sm:$0x3]
  %v3964 = vlaneseq
  %v3965 = vshrl.u32 %v3964, 7
  %v3966 = vsub.s32 0, %v3965
  %v3967 = vrot.slane %v3962, %v3966
  %v3968 = vlaneseq
  %v3969 = vshrl.u32 %v3968, 7
  %v3970 = vsub.s32 1, %v3969
  %v3971 = vrot.slane %v3962, %v3970
  %v5510 = vunpack.c.l.b16 %v2426
  %v5511 = vunpack.c.h.b16 %v2426
  %v5512 = vunpack.c.l.b16 %v2427
  %v5513 = vunpack.c.h.b16 %v2427
  %v5514 = vunpack.c.l.b16 %v2428
  %v5515 = vunpack.c.h.b16 %v2428
  %v5516 = vunpack.c.l.b16 %v2429
  %v5517 = vunpack.c.h.b16 %v2429
  %v5518 = vunpack.c.l.b16 %v2430
  %v5519 = vunpack.c.h.b16 %v2430
  %v5520 = vunpack.c.l.b16 %v2431
  %v5521 = vunpack.c.h.b16 %v2431
  %v5522 = vunpack.c.l.b16 %v2432
  %v5523 = vunpack.c.h.b16 %v2432
  %v5524 = vunpack.c.l.b16 %v2433
  %v5525 = vunpack.c.h.b16 %v2433
  %v5526 = vunpack.c.l.b16 %v2434
  %v5527 = vunpack.c.h.b16 %v2434
  %v5528 = vunpack.c.l.b16 %v2435
  %v5529 = vunpack.c.h.b16 %v2435
  %v5530 = vunpack.c.l.b16 %v2436
  %v5531 = vunpack.c.h.b16 %v2436
  %v5532 = vunpack.c.l.b16 %v2437
  %v5533 = vunpack.c.h.b16 %v2437
  %v5534 = vunpack.c.l.b16 %v2438
  %v5535 = vunpack.c.h.b16 %v2438
  %v5536 = vunpack.c.l.b16 %v2439
  %v5537 = vunpack.c.h.b16 %v2439
  %v5538 = vunpack.c.l.b16 %v2440
  %v5539 = vunpack.c.h.b16 %v2440
  %v5540 = vunpack.c.l.b16 %v2441
  %v5541 = vunpack.c.h.b16 %v2441
  %v5542 = vunpack.c.l.b16 %v2442
  %v5543 = vunpack.c.h.b16 %v2442
  %v5544 = vunpack.c.l.b16 %v2443
  %v5545 = vunpack.c.h.b16 %v2443
  %v5546 = vunpack.c.l.b16 %v2444
  %v5547 = vunpack.c.h.b16 %v2444
  %v5548 = vunpack.c.l.b16 %v2445
  %v5549 = vunpack.c.h.b16 %v2445
  %v5550 = vunpack.c.l.b16 %v2446
  %v5551 = vunpack.c.h.b16 %v2446
  %v5552 = vunpack.c.l.b16 %v2447
  %v5553 = vunpack.c.h.b16 %v2447
  %v5554 = vunpack.c.l.b16 %v2448
  %v5555 = vunpack.c.h.b16 %v2448
  %v5556 = vunpack.c.l.b16 %v2449
  %v5557 = vunpack.c.h.b16 %v2449
  %v5558 = vunpack.c.l.b16 %v2450
  %v5559 = vunpack.c.h.b16 %v2450
  %v5560 = vunpack.c.l.b16 %v2451
  %v5561 = vunpack.c.h.b16 %v2451
  %v5562 = vunpack.c.l.b16 %v2452
  %v5563 = vunpack.c.h.b16 %v2452
  %v5564 = vunpack.c.l.b16 %v2453
  %v5565 = vunpack.c.h.b16 %v2453
  %v5566 = vunpack.c.l.b16 %v2454
  %v5567 = vunpack.c.h.b16 %v2454
  %v5568 = vunpack.c.l.b16 %v2455
  %v5569 = vunpack.c.h.b16 %v2455
  %v5570 = vunpack.c.l.b16 %v2456
  %v5571 = vunpack.c.h.b16 %v2456
  %v5572 = vunpack.c.l.b16 %v2457
  %v5573 = vunpack.c.h.b16 %v2457
  %v5574 = vunpack.c.l.b16 %v2458
  %v5575 = vunpack.c.h.b16 %v2458
  %v5576 = vunpack.c.l.b16 %v2459
  %v5577 = vunpack.c.h.b16 %v2459
  %v5578 = vunpack.c.l.b16 %v2460
  %v5579 = vunpack.c.h.b16 %v2460
  %v5580 = vunpack.c.l.b16 %v2461
  %v5581 = vunpack.c.h.b16 %v2461
  %v5582 = vunpack.c.l.b16 %v2462
  %v5583 = vunpack.c.h.b16 %v2462
  %v5584 = vunpack.c.l.b16 %v2463
  %v5585 = vunpack.c.h.b16 %v2463
  %v5586 = vunpack.c.l.b16 %v2464
  %v5587 = vunpack.c.h.b16 %v2464
  %v5588 = vunpack.c.l.b16 %v2465
  %v5589 = vunpack.c.h.b16 %v2465
  %v5590 = vunpack.c.l.b16 %v2466
  %v5591 = vunpack.c.h.b16 %v2466
  %v5592 = vunpack.c.l.b16 %v2467
  %v5593 = vunpack.c.h.b16 %v2467
  %v5594 = vunpack.c.l.b16 %v2468
  %v5595 = vunpack.c.h.b16 %v2468
  %v5596 = vunpack.c.l.b16 %v2469
  %v5597 = vunpack.c.h.b16 %v2469
  %v5598 = vunpack.c.l.b16 %v2470
  %v5599 = vunpack.c.h.b16 %v2470
  %v5600 = vunpack.c.l.b16 %v2471
  %v5601 = vunpack.c.h.b16 %v2471
  %v5602 = vunpack.c.l.b16 %v2472
  %v5603 = vunpack.c.h.b16 %v2472
  %v5604 = vunpack.c.l.b16 %v2473
  %v5605 = vunpack.c.h.b16 %v2473
  %v5606 = vunpack.c.l.b16 %v2474
  %v5607 = vunpack.c.h.b16 %v2474
  %v5608 = vunpack.c.l.b16 %v2475
  %v5609 = vunpack.c.h.b16 %v2475
  %v5610 = vunpack.c.l.b16 %v2476
  %v5611 = vunpack.c.h.b16 %v2476
  %v5612 = vunpack.c.l.b16 %v2477
  %v5613 = vunpack.c.h.b16 %v2477
  %v5614 = vunpack.c.l.b16 %v2478
  %v5615 = vunpack.c.h.b16 %v2478
  %v5616 = vunpack.c.l.b16 %v2479
  %v5617 = vunpack.c.h.b16 %v2479
  %v5618 = vunpack.c.l.b16 %v2480
  %v5619 = vunpack.c.h.b16 %v2480
  %v5620 = vunpack.c.l.b16 %v2481
  %v5621 = vunpack.c.h.b16 %v2481
  %v5622 = vunpack.c.l.b16 %v2482
  %v5623 = vunpack.c.h.b16 %v2482
  %v5624 = vunpack.c.l.b16 %v2483
  %v5625 = vunpack.c.h.b16 %v2483
  %v5626 = vunpack.c.l.b16 %v2484
  %v5627 = vunpack.c.h.b16 %v2484
  %v5628 = vunpack.c.l.b16 %v2485
  %v5629 = vunpack.c.h.b16 %v2485
  %v5630 = vunpack.c.l.b16 %v2486
  %v5631 = vunpack.c.h.b16 %v2486
  %v5632 = vunpack.c.l.b16 %v2487
  %v5633 = vunpack.c.h.b16 %v2487
  %v5634 = vunpack.c.l.b16 %v2488
  %v5635 = vunpack.c.h.b16 %v2488
  %v5636 = vunpack.c.l.b16 %v2489
  %v5637 = vunpack.c.h.b16 %v2489
  %v5638 = vunpack.c.l.b16 %v2490
  %v5639 = vunpack.c.h.b16 %v2490
  %v5640 = vunpack.c.l.b16 %v2491
  %v5641 = vunpack.c.h.b16 %v2491
  %v5642 = vunpack.c.l.b16 %v2492
  %v5643 = vunpack.c.h.b16 %v2492
  %v5644 = vunpack.c.l.b16 %v2493
  %v5645 = vunpack.c.h.b16 %v2493
  %v5646 = vunpack.c.l.b16 %v2494
  %v5647 = vunpack.c.h.b16 %v2494
  %v5648 = vunpack.c.l.b16 %v2495
  %v5649 = vunpack.c.h.b16 %v2495
  %v5650 = vunpack.c.l.b16 %v2496
  %v5651 = vunpack.c.h.b16 %v2496
  %v5652 = vunpack.c.l.b16 %v2497
  %v5653 = vunpack.c.h.b16 %v2497
  %v5654 = vunpack.c.l.b16 %v2498
  %v5655 = vunpack.c.h.b16 %v2498
  %v5656 = vunpack.c.l.b16 %v2499
  %v5657 = vunpack.c.h.b16 %v2499
  %v5658 = vunpack.c.l.b16 %v2500
  %v5659 = vunpack.c.h.b16 %v2500
  %v5660 = vunpack.c.l.b16 %v2501
  %v5661 = vunpack.c.h.b16 %v2501
  %v5662 = vunpack.c.l.b16 %v2502
  %v5663 = vunpack.c.h.b16 %v2502
  %v5664 = vunpack.c.l.b16 %v2503
  %v5665 = vunpack.c.h.b16 %v2503
  %v5666 = vunpack.c.l.b16 %v2504
  %v5667 = vunpack.c.h.b16 %v2504
  %v5668 = vunpack.c.l.b16 %v2505
  %v5669 = vunpack.c.h.b16 %v2505
  %v5670 = vunpack.c.l.b16 %v2506
  %v5671 = vunpack.c.h.b16 %v2506
  %v5672 = vunpack.c.l.b16 %v2507
  %v5673 = vunpack.c.h.b16 %v2507
  %v5674 = vunpack.c.l.b16 %v2508
  %v5675 = vunpack.c.h.b16 %v2508
  %v5676 = vunpack.c.l.b16 %v2509
  %v5677 = vunpack.c.h.b16 %v2509
  %v5678 = vunpack.c.l.b16 %v2510
  %v5679 = vunpack.c.h.b16 %v2510
  %v5680 = vunpack.c.l.b16 %v2511
  %v5681 = vunpack.c.h.b16 %v2511
  %v5682 = vunpack.c.l.b16 %v2512
  %v5683 = vunpack.c.h.b16 %v2512
  %v5684 = vunpack.c.l.b16 %v2513
  %v5685 = vunpack.c.h.b16 %v2513
  %v5686 = vunpack.c.l.b16 %v2514
  %v5687 = vunpack.c.h.b16 %v2514
  %v5688 = vunpack.c.l.b16 %v2515
  %v5689 = vunpack.c.h.b16 %v2515
  %v5690 = vunpack.c.l.b16 %v2516
  %v5691 = vunpack.c.h.b16 %v2516
  %v5692 = vunpack.c.l.b16 %v2517
  %v5693 = vunpack.c.h.b16 %v2517
  %v5694 = vunpack.c.l.b16 %v2518
  %v5695 = vunpack.c.h.b16 %v2518
  %v5696 = vunpack.c.l.b16 %v2519
  %v5697 = vunpack.c.h.b16 %v2519
  %v5698 = vunpack.c.l.b16 %v2520
  %v5699 = vunpack.c.h.b16 %v2520
  %v5700 = vunpack.c.l.b16 %v2521
  %v5701 = vunpack.c.h.b16 %v2521
  %v5702 = vunpack.c.l.b16 %v2522
  %v5703 = vunpack.c.h.b16 %v2522
  %v5704 = vunpack.c.l.b16 %v2523
  %v5705 = vunpack.c.h.b16 %v2523
  %v5706 = vunpack.c.l.b16 %v2524
  %v5707 = vunpack.c.h.b16 %v2524
  %v5708 = vunpack.c.l.b16 %v2525
  %v5709 = vunpack.c.h.b16 %v2525
  %v5710 = vunpack.c.l.b16 %v2526
  %v5711 = vunpack.c.h.b16 %v2526
  %v5712 = vunpack.c.l.b16 %v2527
  %v5713 = vunpack.c.h.b16 %v2527
  %v5714 = vunpack.c.l.b16 %v2528
  %v5715 = vunpack.c.h.b16 %v2528
  %v5716 = vunpack.c.l.b16 %v2529
  %v5717 = vunpack.c.h.b16 %v2529
  %v5718 = vunpack.c.l.b16 %v2530
  %v5719 = vunpack.c.h.b16 %v2530
  %v5720 = vunpack.c.l.b16 %v2531
  %v5721 = vunpack.c.h.b16 %v2531
  %v5722 = vunpack.c.l.b16 %v2532
  %v5723 = vunpack.c.h.b16 %v2532
  %v5724 = vunpack.c.l.b16 %v2533
  %v5725 = vunpack.c.h.b16 %v2533
  %v5726 = vunpack.c.l.b16 %v2534
  %v5727 = vunpack.c.h.b16 %v2534
  %v5728 = vunpack.c.l.b16 %v2535
  %v5729 = vunpack.c.h.b16 %v2535
  %v5730 = vunpack.c.l.b16 %v2536
  %v5731 = vunpack.c.h.b16 %v2536
  %v5732 = vunpack.c.l.b16 %v2537
  %v5733 = vunpack.c.h.b16 %v2537
  %v5734 = vunpack.c.l.b16 %v2538
  %v5735 = vunpack.c.h.b16 %v2538
  %v5736 = vunpack.c.l.b16 %v2539
  %v5737 = vunpack.c.h.b16 %v2539
  %v5738 = vunpack.c.l.b16 %v2540
  %v5739 = vunpack.c.h.b16 %v2540
  %v5740 = vunpack.c.l.b16 %v2541
  %v5741 = vunpack.c.h.b16 %v2541
  %v5742 = vunpack.c.l.b16 %v2542
  %v5743 = vunpack.c.h.b16 %v2542
  %v5744 = vunpack.c.l.b16 %v2543
  %v5745 = vunpack.c.h.b16 %v2543
  %v5746 = vunpack.c.l.b16 %v2544
  %v5747 = vunpack.c.h.b16 %v2544
  %v5748 = vunpack.c.l.b16 %v2545
  %v5749 = vunpack.c.h.b16 %v2545
  %v5750 = vunpack.c.l.b16 %v2546
  %v5751 = vunpack.c.h.b16 %v2546
  %v5752 = vunpack.c.l.b16 %v2547
  %v5753 = vunpack.c.h.b16 %v2547
  %v5754 = vunpack.c.l.b16 %v2548
  %v5755 = vunpack.c.h.b16 %v2548
  %v5756 = vunpack.c.l.b16 %v2549
  %v5757 = vunpack.c.h.b16 %v2549
  %v5758 = vunpack.c.l.b16 %v2550
  %v5759 = vunpack.c.h.b16 %v2550
  %v5760 = vunpack.c.l.b16 %v2551
  %v5761 = vunpack.c.h.b16 %v2551
  %v5762 = vunpack.c.l.b16 %v2552
  %v5763 = vunpack.c.h.b16 %v2552
  %v5764 = vunpack.c.l.b16 %v2553
  %v5765 = vunpack.c.h.b16 %v2553
  %v5766 = vunpack.c.l.b16 %v2554
  %v5767 = vunpack.c.h.b16 %v2554
  %v5768 = vunpack.c.l.b16 %v2555
  %v5769 = vunpack.c.h.b16 %v2555
  %v5770 = vunpack.c.l.b16 %v2556
  %v5771 = vunpack.c.h.b16 %v2556
  %v5772 = vunpack.c.l.b16 %v2557
  %v5773 = vunpack.c.h.b16 %v2557
  %v5774 = vunpack.c.l.b16 %v2558
  %v5775 = vunpack.c.h.b16 %v2558
  %v5776 = vunpack.c.l.b16 %v2559
  %v5777 = vunpack.c.h.b16 %v2559
  %v5778 = vunpack.c.l.b16 %v2560
  %v5779 = vunpack.c.h.b16 %v2560
  %v5780 = vunpack.c.l.b16 %v2561
  %v5781 = vunpack.c.h.b16 %v2561
  %v5782 = vunpack.c.l.b16 %v2562
  %v5783 = vunpack.c.h.b16 %v2562
  %v5784 = vunpack.c.l.b16 %v2563
  %v5785 = vunpack.c.h.b16 %v2563
  %v5786 = vunpack.c.l.b16 %v2564
  %v5787 = vunpack.c.h.b16 %v2564
  %v5788 = vunpack.c.l.b16 %v2565
  %v5789 = vunpack.c.h.b16 %v2565
  %v5790 = vunpack.c.l.b16 %v2566
  %v5791 = vunpack.c.h.b16 %v2566
  %v5792 = vunpack.c.l.b16 %v2567
  %v5793 = vunpack.c.h.b16 %v2567
  %v5794 = vunpack.c.l.b16 %v2568
  %v5795 = vunpack.c.h.b16 %v2568
  %v5796 = vunpack.c.l.b16 %v2569
  %v5797 = vunpack.c.h.b16 %v2569
  %v5798 = vunpack.c.l.b16 %v2570
  %v5799 = vunpack.c.h.b16 %v2570
  %v5800 = vunpack.c.l.b16 %v2571
  %v5801 = vunpack.c.h.b16 %v2571
  %v5802 = vunpack.c.l.b16 %v2572
  %v5803 = vunpack.c.h.b16 %v2572
  %v5804 = vunpack.c.l.b16 %v2573
  %v5805 = vunpack.c.h.b16 %v2573
  %v5806 = vunpack.c.l.b16 %v2574
  %v5807 = vunpack.c.h.b16 %v2574
  %v5808 = vunpack.c.l.b16 %v2575
  %v5809 = vunpack.c.h.b16 %v2575
  %v5810 = vunpack.c.l.b16 %v2576
  %v5811 = vunpack.c.h.b16 %v2576
  %v5812 = vunpack.c.l.b16 %v2577
  %v5813 = vunpack.c.h.b16 %v2577
  %v5814 = vunpack.c.l.b16 %v2578
  %v5815 = vunpack.c.h.b16 %v2578
  %v5816 = vunpack.c.l.b16 %v2579
  %v5817 = vunpack.c.h.b16 %v2579
  %v5818 = vunpack.c.l.b16 %v2580
  %v5819 = vunpack.c.h.b16 %v2580
  %v5820 = vunpack.c.l.b16 %v2581
  %v5821 = vunpack.c.h.b16 %v2581
  %v5822 = vunpack.c.l.b16 %v2582
  %v5823 = vunpack.c.h.b16 %v2582
  %v5824 = vunpack.c.l.b16 %v2583
  %v5825 = vunpack.c.h.b16 %v2583
  %v5826 = vunpack.c.l.b16 %v2584
  %v5827 = vunpack.c.h.b16 %v2584
  %v5828 = vunpack.c.l.b16 %v2585
  %v5829 = vunpack.c.h.b16 %v2585
  %v5830 = vunpack.c.l.b16 %v2586
  %v5831 = vunpack.c.h.b16 %v2586
  %v5832 = vunpack.c.l.b16 %v2587
  %v5833 = vunpack.c.h.b16 %v2587
  %v5834 = vunpack.c.l.b16 %v2588
  %v5835 = vunpack.c.h.b16 %v2588
  %v5836 = vunpack.c.l.b16 %v2589
  %v5837 = vunpack.c.h.b16 %v2589
  %v5838 = vunpack.c.l.b16 %v2590
  %v5839 = vunpack.c.h.b16 %v2590
  %v5840 = vunpack.c.l.b16 %v2591
  %v5841 = vunpack.c.h.b16 %v2591
  %v5842 = vunpack.c.l.b16 %v2592
  %v5843 = vunpack.c.h.b16 %v2592
  %v5844 = vunpack.c.l.b16 %v2593
  %v5845 = vunpack.c.h.b16 %v2593
  %v5846 = vunpack.c.l.b16 %v2594
  %v5847 = vunpack.c.h.b16 %v2594
  %v5848 = vunpack.c.l.b16 %v2595
  %v5849 = vunpack.c.h.b16 %v2595
  %v5850 = vunpack.c.l.b16 %v2596
  %v5851 = vunpack.c.h.b16 %v2596
  %v5852 = vunpack.c.l.b16 %v2597
  %v5853 = vunpack.c.h.b16 %v2597
  %v5854 = vunpack.c.l.b16 %v2598
  %v5855 = vunpack.c.h.b16 %v2598
  %v5856 = vunpack.c.l.b16 %v2599
  %v5857 = vunpack.c.h.b16 %v2599
  %v5858 = vunpack.c.l.b16 %v2600
  %v5859 = vunpack.c.h.b16 %v2600
  %v5860 = vunpack.c.l.b16 %v2601
  %v5861 = vunpack.c.h.b16 %v2601
  %v5862 = vunpack.c.l.b16 %v2602
  %v5863 = vunpack.c.h.b16 %v2602
  %v5864 = vunpack.c.l.b16 %v2603
  %v5865 = vunpack.c.h.b16 %v2603
  %v5866 = vunpack.c.l.b16 %v2604
  %v5867 = vunpack.c.h.b16 %v2604
  %v5868 = vunpack.c.l.b16 %v2605
  %v5869 = vunpack.c.h.b16 %v2605
  %v5870 = vunpack.c.l.b16 %v2606
  %v5871 = vunpack.c.h.b16 %v2606
  %v5872 = vunpack.c.l.b16 %v2607
  %v5873 = vunpack.c.h.b16 %v2607
  %v5874 = vunpack.c.l.b16 %v2608
  %v5875 = vunpack.c.h.b16 %v2608
  %v5876 = vunpack.c.l.b16 %v2609
  %v5877 = vunpack.c.h.b16 %v2609
  %v5878 = vunpack.c.l.b16 %v2610
  %v5879 = vunpack.c.h.b16 %v2610
  %v5880 = vunpack.c.l.b16 %v2611
  %v5881 = vunpack.c.h.b16 %v2611
  %v5882 = vunpack.c.l.b16 %v2612
  %v5883 = vunpack.c.h.b16 %v2612
  %v5884 = vunpack.c.l.b16 %v2613
  %v5885 = vunpack.c.h.b16 %v2613
  %v5886 = vunpack.c.l.b16 %v2614
  %v5887 = vunpack.c.h.b16 %v2614
  %v5888 = vunpack.c.l.b16 %v2615
  %v5889 = vunpack.c.h.b16 %v2615
  %v5890 = vunpack.c.l.b16 %v2616
  %v5891 = vunpack.c.h.b16 %v2616
  %v5892 = vunpack.c.l.b16 %v2617
  %v5893 = vunpack.c.h.b16 %v2617
  %v5894 = vunpack.c.l.b16 %v2618
  %v5895 = vunpack.c.h.b16 %v2618
  %v5896 = vunpack.c.l.b16 %v2619
  %v5897 = vunpack.c.h.b16 %v2619
  %v5898 = vunpack.c.l.b16 %v2620
  %v5899 = vunpack.c.h.b16 %v2620
  %v5900 = vunpack.c.l.b16 %v2621
  %v5901 = vunpack.c.h.b16 %v2621
  %v5902 = vunpack.c.l.b16 %v2622
  %v5903 = vunpack.c.h.b16 %v2622
  %v5904 = vunpack.c.l.b16 %v2623
  %v5905 = vunpack.c.h.b16 %v2623
  %v5906 = vunpack.c.l.b16 %v2624
  %v5907 = vunpack.c.h.b16 %v2624
  %v5908 = vunpack.c.l.b16 %v2625
  %v5909 = vunpack.c.h.b16 %v2625
  %v5910 = vunpack.c.l.b16 %v2626
  %v5911 = vunpack.c.h.b16 %v2626
  %v5912 = vunpack.c.l.b16 %v2627
  %v5913 = vunpack.c.h.b16 %v2627
  %v5914 = vunpack.c.l.b16 %v2628
  %v5915 = vunpack.c.h.b16 %v2628
  %v5916 = vunpack.c.l.b16 %v2629
  %v5917 = vunpack.c.h.b16 %v2629
  %v5918 = vunpack.c.l.b16 %v2630
  %v5919 = vunpack.c.h.b16 %v2630
  %v5920 = vunpack.c.l.b16 %v2631
  %v5921 = vunpack.c.h.b16 %v2631
  %v5922 = vunpack.c.l.b16 %v2632
  %v5923 = vunpack.c.h.b16 %v2632
  %v5924 = vunpack.c.l.b16 %v2633
  %v5925 = vunpack.c.h.b16 %v2633
  %v5926 = vunpack.c.l.b16 %v2634
  %v5927 = vunpack.c.h.b16 %v2634
  %v5928 = vunpack.c.l.b16 %v2635
  %v5929 = vunpack.c.h.b16 %v2635
  %v5930 = vunpack.c.l.b16 %v2636
  %v5931 = vunpack.c.h.b16 %v2636
  %v5932 = vunpack.c.l.b16 %v2637
  %v5933 = vunpack.c.h.b16 %v2637
  %v5934 = vunpack.c.l.b16 %v2638
  %v5935 = vunpack.c.h.b16 %v2638
  %v5936 = vunpack.c.l.b16 %v2639
  %v5937 = vunpack.c.h.b16 %v2639
  %v5938 = vunpack.c.l.b16 %v2640
  %v5939 = vunpack.c.h.b16 %v2640
  %v5940 = vunpack.c.l.b16 %v2641
  %v5941 = vunpack.c.h.b16 %v2641
  %v5942 = vunpack.c.l.b16 %v2642
  %v5943 = vunpack.c.h.b16 %v2642
  %v5944 = vunpack.c.l.b16 %v2643
  %v5945 = vunpack.c.h.b16 %v2643
  %v5946 = vunpack.c.l.b16 %v2644
  %v5947 = vunpack.c.h.b16 %v2644
  %v5948 = vunpack.c.l.b16 %v2645
  %v5949 = vunpack.c.h.b16 %v2645
  %v5950 = vunpack.c.l.b16 %v2646
  %v5951 = vunpack.c.h.b16 %v2646
  %v5952 = vunpack.c.l.b16 %v2647
  %v5953 = vunpack.c.h.b16 %v2647
  %v5954 = vunpack.c.l.b16 %v2648
  %v5955 = vunpack.c.h.b16 %v2648
  %v5956 = vunpack.c.l.b16 %v2649
  %v5957 = vunpack.c.h.b16 %v2649
  %v5958 = vunpack.c.l.b16 %v2650
  %v5959 = vunpack.c.h.b16 %v2650
  %v5960 = vunpack.c.l.b16 %v2651
  %v5961 = vunpack.c.h.b16 %v2651
  %v5962 = vunpack.c.l.b16 %v2652
  %v5963 = vunpack.c.h.b16 %v2652
  %v5964 = vunpack.c.l.b16 %v2653
  %v5965 = vunpack.c.h.b16 %v2653
  %v5966 = vunpack.c.l.b16 %v2654
  %v5967 = vunpack.c.h.b16 %v2654
  %v5968 = vunpack.c.l.b16 %v2655
  %v5969 = vunpack.c.h.b16 %v2655
  %v5970 = vunpack.c.l.b16 %v2656
  %v5971 = vunpack.c.h.b16 %v2656
  %v5972 = vunpack.c.l.b16 %v2657
  %v5973 = vunpack.c.h.b16 %v2657
  %v5974 = vunpack.c.l.b16 %v2658
  %v5975 = vunpack.c.h.b16 %v2658
  %v5976 = vunpack.c.l.b16 %v2659
  %v5977 = vunpack.c.h.b16 %v2659
  %v5978 = vunpack.c.l.b16 %v2660
  %v5979 = vunpack.c.h.b16 %v2660
  %v5980 = vunpack.c.l.b16 %v2661
  %v5981 = vunpack.c.h.b16 %v2661
  %v5982 = vunpack.c.l.b16 %v2662
  %v5983 = vunpack.c.h.b16 %v2662
  %v5984 = vunpack.c.l.b16 %v2663
  %v5985 = vunpack.c.h.b16 %v2663
  %v5986 = vunpack.c.l.b16 %v2664
  %v5987 = vunpack.c.h.b16 %v2664
  %v5988 = vunpack.c.l.b16 %v2665
  %v5989 = vunpack.c.h.b16 %v2665
  %v5990 = vunpack.c.l.b16 %v2666
  %v5991 = vunpack.c.h.b16 %v2666
  %v5992 = vunpack.c.l.b16 %v2667
  %v5993 = vunpack.c.h.b16 %v2667
  %v5994 = vunpack.c.l.b16 %v2668
  %v5995 = vunpack.c.h.b16 %v2668
  %v5996 = vunpack.c.l.b16 %v2669
  %v5997 = vunpack.c.h.b16 %v2669
  %v5998 = vunpack.c.l.b16 %v2670
  %v5999 = vunpack.c.h.b16 %v2670
  %v6000 = vunpack.c.l.b16 %v2671
  %v6001 = vunpack.c.h.b16 %v2671
  %v6002 = vunpack.c.l.b16 %v2672
  %v6003 = vunpack.c.h.b16 %v2672
  %v6004 = vunpack.c.l.b16 %v2673
  %v6005 = vunpack.c.h.b16 %v2673
  %v6006 = vunpack.c.l.b16 %v2674
  %v6007 = vunpack.c.h.b16 %v2674
  %v6008 = vunpack.c.l.b16 %v2675
  %v6009 = vunpack.c.h.b16 %v2675
  %v6010 = vunpack.c.l.b16 %v2676
  %v6011 = vunpack.c.h.b16 %v2676
  %v6012 = vunpack.c.l.b16 %v2677
  %v6013 = vunpack.c.h.b16 %v2677
  %v6014 = vunpack.c.l.b16 %v2678
  %v6015 = vunpack.c.h.b16 %v2678
  %v6016 = vunpack.c.l.b16 %v2679
  %v6017 = vunpack.c.h.b16 %v2679
  %v6018 = vunpack.c.l.b16 %v2680
  %v6019 = vunpack.c.h.b16 %v2680
  %v6020 = vunpack.c.l.b16 %v2681
  %v6021 = vunpack.c.h.b16 %v2681
  %v6022 = vunpack.c.l.b16 %v2682
  %v6023 = vunpack.c.h.b16 %v2682
  %v6024 = vunpack.c.l.b16 %v2683
  %v6025 = vunpack.c.h.b16 %v2683
  %v6026 = vunpack.c.l.b16 %v2684
  %v6027 = vunpack.c.h.b16 %v2684
  %v6028 = vunpack.c.l.b16 %v2685
  %v6029 = vunpack.c.h.b16 %v2685
  %v6030 = vunpack.c.l.b16 %v2686
  %v6031 = vunpack.c.h.b16 %v2686
  %v6032 = vunpack.c.l.b16 %v2687
  %v6033 = vunpack.c.h.b16 %v2687
  %v6034 = vunpack.c.l.b16 %v2688
  %v6035 = vunpack.c.h.b16 %v2688
  %v6036 = vunpack.c.l.b16 %v2689
  %v6037 = vunpack.c.h.b16 %v2689
  %v6038 = vunpack.c.l.b16 %v2690
  %v6039 = vunpack.c.h.b16 %v2690
  %v6040 = vunpack.c.l.b16 %v2691
  %v6041 = vunpack.c.h.b16 %v2691
  %v6042 = vunpack.c.l.b16 %v2692
  %v6043 = vunpack.c.h.b16 %v2692
  %v6044 = vunpack.c.l.b16 %v2693
  %v6045 = vunpack.c.h.b16 %v2693
  %v6046 = vunpack.c.l.b16 %v2694
  %v6047 = vunpack.c.h.b16 %v2694
  %v6048 = vunpack.c.l.b16 %v2695
  %v6049 = vunpack.c.h.b16 %v2695
  %v6050 = vunpack.c.l.b16 %v2696
  %v6051 = vunpack.c.h.b16 %v2696
  %v6052 = vunpack.c.l.b16 %v2697
  %v6053 = vunpack.c.h.b16 %v2697
  %v6054 = vunpack.c.l.b16 %v2698
  %v6055 = vunpack.c.h.b16 %v2698
  %v6056 = vunpack.c.l.b16 %v2699
  %v6057 = vunpack.c.h.b16 %v2699
  %v6058 = vunpack.c.l.b16 %v2700
  %v6059 = vunpack.c.h.b16 %v2700
  %v6060 = vunpack.c.l.b16 %v2701
  %v6061 = vunpack.c.h.b16 %v2701
  %v6062 = vunpack.c.l.b16 %v2702
  %v6063 = vunpack.c.h.b16 %v2702
  %v6064 = vunpack.c.l.b16 %v2703
  %v6065 = vunpack.c.h.b16 %v2703
  %v6066 = vunpack.c.l.b16 %v2704
  %v6067 = vunpack.c.h.b16 %v2704
  %v6068 = vunpack.c.l.b16 %v2705
  %v6069 = vunpack.c.h.b16 %v2705
  %v6070 = vunpack.c.l.b16 %v2706
  %v6071 = vunpack.c.h.b16 %v2706
  %v6072 = vunpack.c.l.b16 %v2707
  %v6073 = vunpack.c.h.b16 %v2707
  %v6074 = vunpack.c.l.b16 %v2708
  %v6075 = vunpack.c.h.b16 %v2708
  %v6076 = vunpack.c.l.b16 %v2709
  %v6077 = vunpack.c.h.b16 %v2709
  %v6078 = vunpack.c.l.b16 %v2710
  %v6079 = vunpack.c.h.b16 %v2710
  %v6080 = vunpack.c.l.b16 %v2711
  %v6081 = vunpack.c.h.b16 %v2711
  %v6082 = vunpack.c.l.b16 %v2712
  %v6083 = vunpack.c.h.b16 %v2712
  %v6084 = vunpack.c.l.b16 %v2713
  %v6085 = vunpack.c.h.b16 %v2713
  %v6086 = vunpack.c.l.b16 %v2714
  %v6087 = vunpack.c.h.b16 %v2714
  %v6088 = vunpack.c.l.b16 %v2715
  %v6089 = vunpack.c.h.b16 %v2715
  %v6090 = vunpack.c.l.b16 %v2716
  %v6091 = vunpack.c.h.b16 %v2716
  %v6092 = vunpack.c.l.b16 %v2717
  %v6093 = vunpack.c.h.b16 %v2717
  %v6094 = vunpack.c.l.b16 %v2718
  %v6095 = vunpack.c.h.b16 %v2718
  %v6096 = vunpack.c.l.b16 %v2719
  %v6097 = vunpack.c.h.b16 %v2719
  %v6098 = vunpack.c.l.b16 %v2720
  %v6099 = vunpack.c.h.b16 %v2720
  %v6100 = vunpack.c.l.b16 %v2721
  %v6101 = vunpack.c.h.b16 %v2721
  %v6102 = vunpack.c.l.b16 %v2722
  %v6103 = vunpack.c.h.b16 %v2722
  %v6104 = vunpack.c.l.b16 %v2723
  %v6105 = vunpack.c.h.b16 %v2723
  %v6106 = vunpack.c.l.b16 %v2724
  %v6107 = vunpack.c.h.b16 %v2724
  %v6108 = vunpack.c.l.b16 %v2725
  %v6109 = vunpack.c.h.b16 %v2725
  %v6110 = vunpack.c.l.b16 %v2726
  %v6111 = vunpack.c.h.b16 %v2726
  %v6112 = vunpack.c.l.b16 %v2727
  %v6113 = vunpack.c.h.b16 %v2727
  %v6114 = vunpack.c.l.b16 %v2728
  %v6115 = vunpack.c.h.b16 %v2728
  %v6116 = vunpack.c.l.b16 %v2729
  %v6117 = vunpack.c.h.b16 %v2729
  %v6118 = vunpack.c.l.b16 %v2730
  %v6119 = vunpack.c.h.b16 %v2730
  %v6120 = vunpack.c.l.b16 %v2731
  %v6121 = vunpack.c.h.b16 %v2731
  %v6122 = vunpack.c.l.b16 %v2732
  %v6123 = vunpack.c.h.b16 %v2732
  %v6124 = vunpack.c.l.b16 %v2733
  %v6125 = vunpack.c.h.b16 %v2733
  %v6126 = vunpack.c.l.b16 %v2734
  %v6127 = vunpack.c.h.b16 %v2734
  %v6128 = vunpack.c.l.b16 %v2735
  %v6129 = vunpack.c.h.b16 %v2735
  %v6130 = vunpack.c.l.b16 %v2736
  %v6131 = vunpack.c.h.b16 %v2736
  %v6132 = vunpack.c.l.b16 %v2737
  %v6133 = vunpack.c.h.b16 %v2737
  %v6134 = vunpack.c.l.b16 %v2738
  %v6135 = vunpack.c.h.b16 %v2738
  %v6136 = vunpack.c.l.b16 %v2739
  %v6137 = vunpack.c.h.b16 %v2739
  %v6138 = vunpack.c.l.b16 %v2740
  %v6139 = vunpack.c.h.b16 %v2740
  %v6140 = vunpack.c.l.b16 %v2741
  %v6141 = vunpack.c.h.b16 %v2741
  %v6142 = vunpack.c.l.b16 %v2742
  %v6143 = vunpack.c.h.b16 %v2742
  %v6144 = vunpack.c.l.b16 %v2743
  %v6145 = vunpack.c.h.b16 %v2743
  %v6146 = vunpack.c.l.b16 %v2744
  %v6147 = vunpack.c.h.b16 %v2744
  %v6148 = vunpack.c.l.b16 %v2745
  %v6149 = vunpack.c.h.b16 %v2745
  %v6150 = vunpack.c.l.b16 %v2746
  %v6151 = vunpack.c.h.b16 %v2746
  %v6152 = vunpack.c.l.b16 %v2747
  %v6153 = vunpack.c.h.b16 %v2747
  %v6154 = vunpack.c.l.b16 %v2748
  %v6155 = vunpack.c.h.b16 %v2748
  %v6156 = vunpack.c.l.b16 %v2749
  %v6157 = vunpack.c.h.b16 %v2749
  %v6158 = vunpack.c.l.b16 %v2750
  %v6159 = vunpack.c.h.b16 %v2750
  %v6160 = vunpack.c.l.b16 %v2751
  %v6161 = vunpack.c.h.b16 %v2751
  %v6162 = vunpack.c.l.b16 %v2752
  %v6163 = vunpack.c.h.b16 %v2752
  %v6164 = vunpack.c.l.b16 %v2753
  %v6165 = vunpack.c.h.b16 %v2753
  %v6166 = vunpack.c.l.b16 %v2754
  %v6167 = vunpack.c.h.b16 %v2754
  %v6168 = vunpack.c.l.b16 %v2755
  %v6169 = vunpack.c.h.b16 %v2755
  %v6170 = vunpack.c.l.b16 %v2756
  %v6171 = vunpack.c.h.b16 %v2756
  %v6172 = vunpack.c.l.b16 %v2757
  %v6173 = vunpack.c.h.b16 %v2757
  %v6174 = vunpack.c.l.b16 %v2758
  %v6175 = vunpack.c.h.b16 %v2758
  %v6176 = vunpack.c.l.b16 %v2759
  %v6177 = vunpack.c.h.b16 %v2759
  %v6178 = vunpack.c.l.b16 %v2760
  %v6179 = vunpack.c.h.b16 %v2760
  %v6180 = vunpack.c.l.b16 %v2761
  %v6181 = vunpack.c.h.b16 %v2761
  %v6182 = vunpack.c.l.b16 %v2762
  %v6183 = vunpack.c.h.b16 %v2762
  %v6184 = vunpack.c.l.b16 %v2763
  %v6185 = vunpack.c.h.b16 %v2763
  %v6186 = vunpack.c.l.b16 %v2764
  %v6187 = vunpack.c.h.b16 %v2764
  %v6188 = vunpack.c.l.b16 %v2765
  %v6189 = vunpack.c.h.b16 %v2765
  %v6190 = vunpack.c.l.b16 %v2766
  %v6191 = vunpack.c.h.b16 %v2766
  %v6192 = vunpack.c.l.b16 %v2767
  %v6193 = vunpack.c.h.b16 %v2767
  %v6194 = vunpack.c.l.b16 %v2768
  %v6195 = vunpack.c.h.b16 %v2768
  %v6196 = vunpack.c.l.b16 %v2769
  %v6197 = vunpack.c.h.b16 %v2769
  %v6198 = vunpack.c.l.b16 %v2770
  %v6199 = vunpack.c.h.b16 %v2770
  %v6200 = vunpack.c.l.b16 %v2771
  %v6201 = vunpack.c.h.b16 %v2771
  %v6202 = vunpack.c.l.b16 %v2772
  %v6203 = vunpack.c.h.b16 %v2772
  %v6204 = vunpack.c.l.b16 %v2773
  %v6205 = vunpack.c.h.b16 %v2773
  %v6206 = vunpack.c.l.b16 %v2774
  %v6207 = vunpack.c.h.b16 %v2774
  %v6208 = vunpack.c.l.b16 %v2775
  %v6209 = vunpack.c.h.b16 %v2775
  %v6210 = vunpack.c.l.b16 %v2776
  %v6211 = vunpack.c.h.b16 %v2776
  %v6212 = vunpack.c.l.b16 %v2777
  %v6213 = vunpack.c.h.b16 %v2777
  %v6214 = vunpack.c.l.b16 %v2778
  %v6215 = vunpack.c.h.b16 %v2778
  %v6216 = vunpack.c.l.b16 %v2779
  %v6217 = vunpack.c.h.b16 %v2779
  %v6218 = vunpack.c.l.b16 %v2780
  %v6219 = vunpack.c.h.b16 %v2780
  %v6220 = vunpack.c.l.b16 %v2781
  %v6221 = vunpack.c.h.b16 %v2781
  %v6222 = vunpack.c.l.b16 %v2782
  %v6223 = vunpack.c.h.b16 %v2782
  %v6224 = vunpack.c.l.b16 %v2783
  %v6225 = vunpack.c.h.b16 %v2783
  %v6226 = vunpack.c.l.b16 %v2784
  %v6227 = vunpack.c.h.b16 %v2784
  %v6228 = vunpack.c.l.b16 %v2785
  %v6229 = vunpack.c.h.b16 %v2785
  %v6230 = vunpack.c.l.b16 %v2786
  %v6231 = vunpack.c.h.b16 %v2786
  %v6232 = vunpack.c.l.b16 %v2787
  %v6233 = vunpack.c.h.b16 %v2787
  %v6234 = vunpack.c.l.b16 %v2788
  %v6235 = vunpack.c.h.b16 %v2788
  %v6236 = vunpack.c.l.b16 %v2789
  %v6237 = vunpack.c.h.b16 %v2789
  %v6238 = vunpack.c.l.b16 %v2790
  %v6239 = vunpack.c.h.b16 %v2790
  %v6240 = vunpack.c.l.b16 %v2791
  %v6241 = vunpack.c.h.b16 %v2791
  %v6242 = vunpack.c.l.b16 %v2792
  %v6243 = vunpack.c.h.b16 %v2792
  %v6244 = vunpack.c.l.b16 %v2793
  %v6245 = vunpack.c.h.b16 %v2793
  %v6246 = vunpack.c.l.b16 %v2794
  %v6247 = vunpack.c.h.b16 %v2794
  %v6248 = vunpack.c.l.b16 %v2795
  %v6249 = vunpack.c.h.b16 %v2795
  %v6250 = vunpack.c.l.b16 %v2796
  %v6251 = vunpack.c.h.b16 %v2796
  %v6252 = vunpack.c.l.b16 %v2797
  %v6253 = vunpack.c.h.b16 %v2797
  %v6254 = vunpack.c.l.b16 %v2798
  %v6255 = vunpack.c.h.b16 %v2798
  %v6256 = vunpack.c.l.b16 %v2799
  %v6257 = vunpack.c.h.b16 %v2799
  %v6258 = vunpack.c.l.b16 %v2800
  %v6259 = vunpack.c.h.b16 %v2800
  %v6260 = vunpack.c.l.b16 %v2801
  %v6261 = vunpack.c.h.b16 %v2801
  %v6262 = vunpack.c.l.b16 %v2802
  %v6263 = vunpack.c.h.b16 %v2802
  %v6264 = vunpack.c.l.b16 %v2803
  %v6265 = vunpack.c.h.b16 %v2803
  %v6266 = vunpack.c.l.b16 %v2804
  %v6267 = vunpack.c.h.b16 %v2804
  %v6268 = vunpack.c.l.b16 %v2805
  %v6269 = vunpack.c.h.b16 %v2805
  %v6270 = vunpack.c.l.b16 %v2806
  %v6271 = vunpack.c.h.b16 %v2806
  %v6272 = vunpack.c.l.b16 %v2807
  %v6273 = vunpack.c.h.b16 %v2807
  %v6274 = vunpack.c.l.b16 %v2808
  %v6275 = vunpack.c.h.b16 %v2808
  %v6276 = vunpack.c.l.b16 %v2809
  %v6277 = vunpack.c.h.b16 %v2809
  %v6278 = vunpack.c.l.b16 %v2810
  %v6279 = vunpack.c.h.b16 %v2810
  %v6280 = vunpack.c.l.b16 %v2811
  %v6281 = vunpack.c.h.b16 %v2811
  %v6282 = vunpack.c.l.b16 %v2812
  %v6283 = vunpack.c.h.b16 %v2812
  %v6284 = vunpack.c.l.b16 %v2813
  %v6285 = vunpack.c.h.b16 %v2813
  %v6286 = vunpack.c.l.b16 %v2814
  %v6287 = vunpack.c.h.b16 %v2814
  %v6288 = vunpack.c.l.b16 %v2815
  %v6289 = vunpack.c.h.b16 %v2815
  %v6290 = vunpack.c.l.b16 %v2816
  %v6291 = vunpack.c.h.b16 %v2816
  %v6292 = vunpack.c.l.b16 %v2817
  %v6293 = vunpack.c.h.b16 %v2817
  %v6294 = vunpack.c.l.b16 %v2818
  %v6295 = vunpack.c.h.b16 %v2818
  %v6296 = vunpack.c.l.b16 %v2819
  %v6297 = vunpack.c.h.b16 %v2819
  %v6298 = vunpack.c.l.b16 %v2820
  %v6299 = vunpack.c.h.b16 %v2820
  %v6300 = vunpack.c.l.b16 %v2821
  %v6301 = vunpack.c.h.b16 %v2821
  %v6302 = vunpack.c.l.b16 %v2822
  %v6303 = vunpack.c.h.b16 %v2822
  %v6304 = vunpack.c.l.b16 %v2823
  %v6305 = vunpack.c.h.b16 %v2823
  %v6306 = vunpack.c.l.b16 %v2824
  %v6307 = vunpack.c.h.b16 %v2824
  %v6308 = vunpack.c.l.b16 %v2825
  %v6309 = vunpack.c.h.b16 %v2825
  %v6310 = vunpack.c.l.b16 %v2826
  %v6311 = vunpack.c.h.b16 %v2826
  %v6312 = vunpack.c.l.b16 %v2827
  %v6313 = vunpack.c.h.b16 %v2827
  %v6314 = vunpack.c.l.b16 %v2828
  %v6315 = vunpack.c.h.b16 %v2828
  %v6316 = vunpack.c.l.b16 %v2829
  %v6317 = vunpack.c.h.b16 %v2829
  %v6318 = vunpack.c.l.b16 %v2830
  %v6319 = vunpack.c.h.b16 %v2830
  %v6320 = vunpack.c.l.b16 %v2831
  %v6321 = vunpack.c.h.b16 %v2831
  %v6322 = vunpack.c.l.b16 %v2832
  %v6323 = vunpack.c.h.b16 %v2832
  %v6324 = vunpack.c.l.b16 %v2833
  %v6325 = vunpack.c.h.b16 %v2833
  %v6326 = vunpack.c.l.b16 %v2834
  %v6327 = vunpack.c.h.b16 %v2834
  %v6328 = vunpack.c.l.b16 %v2835
  %v6329 = vunpack.c.h.b16 %v2835
  %v6330 = vunpack.c.l.b16 %v2836
  %v6331 = vunpack.c.h.b16 %v2836
  %v6332 = vunpack.c.l.b16 %v2837
  %v6333 = vunpack.c.h.b16 %v2837
  %v6334 = vunpack.c.l.b16 %v2838
  %v6335 = vunpack.c.h.b16 %v2838
  %v6336 = vunpack.c.l.b16 %v2839
  %v6337 = vunpack.c.h.b16 %v2839
  %v6338 = vunpack.c.l.b16 %v2840
  %v6339 = vunpack.c.h.b16 %v2840
  %v6340 = vunpack.c.l.b16 %v2841
  %v6341 = vunpack.c.h.b16 %v2841
  %v6342 = vunpack.c.l.b16 %v2842
  %v6343 = vunpack.c.h.b16 %v2842
  %v6344 = vunpack.c.l.b16 %v2843
  %v6345 = vunpack.c.h.b16 %v2843
  %v6346 = vunpack.c.l.b16 %v2844
  %v6347 = vunpack.c.h.b16 %v2844
  %v6348 = vunpack.c.l.b16 %v2845
  %v6349 = vunpack.c.h.b16 %v2845
  %v6350 = vunpack.c.l.b16 %v2846
  %v6351 = vunpack.c.h.b16 %v2846
  %v6352 = vunpack.c.l.b16 %v2847
  %v6353 = vunpack.c.h.b16 %v2847
  %v6354 = vunpack.c.l.b16 %v2848
  %v6355 = vunpack.c.h.b16 %v2848
  %v6356 = vunpack.c.l.b16 %v2849
  %v6357 = vunpack.c.h.b16 %v2849
  %v6358 = vunpack.c.l.b16 %v2850
  %v6359 = vunpack.c.h.b16 %v2850
  %v6360 = vunpack.c.l.b16 %v2851
  %v6361 = vunpack.c.h.b16 %v2851
  %v6362 = vunpack.c.l.b16 %v2852
  %v6363 = vunpack.c.h.b16 %v2852
  %v6364 = vunpack.c.l.b16 %v2853
  %v6365 = vunpack.c.h.b16 %v2853
  %v6366 = vunpack.c.l.b16 %v2854
  %v6367 = vunpack.c.h.b16 %v2854
  %v6368 = vunpack.c.l.b16 %v2855
  %v6369 = vunpack.c.h.b16 %v2855
  %v6370 = vunpack.c.l.b16 %v2856
  %v6371 = vunpack.c.h.b16 %v2856
  %v6372 = vunpack.c.l.b16 %v2857
  %v6373 = vunpack.c.h.b16 %v2857
  %v6374 = vunpack.c.l.b16 %v2858
  %v6375 = vunpack.c.h.b16 %v2858
  %v6376 = vunpack.c.l.b16 %v2859
  %v6377 = vunpack.c.h.b16 %v2859
  %v6378 = vunpack.c.l.b16 %v2860
  %v6379 = vunpack.c.h.b16 %v2860
  %v6380 = vunpack.c.l.b16 %v2861
  %v6381 = vunpack.c.h.b16 %v2861
  %v6382 = vunpack.c.l.b16 %v2862
  %v6383 = vunpack.c.h.b16 %v2862
  %v6384 = vunpack.c.l.b16 %v2863
  %v6385 = vunpack.c.h.b16 %v2863
  %v6386 = vunpack.c.l.b16 %v2864
  %v6387 = vunpack.c.h.b16 %v2864
  %v6388 = vunpack.c.l.b16 %v2865
  %v6389 = vunpack.c.h.b16 %v2865
  %v6390 = vunpack.c.l.b16 %v2866
  %v6391 = vunpack.c.h.b16 %v2866
  %v6392 = vunpack.c.l.b16 %v2867
  %v6393 = vunpack.c.h.b16 %v2867
  %v6394 = vunpack.c.l.b16 %v2868
  %v6395 = vunpack.c.h.b16 %v2868
  %v6396 = vunpack.c.l.b16 %v2869
  %v6397 = vunpack.c.h.b16 %v2869
  %v6398 = vunpack.c.l.b16 %v2870
  %v6399 = vunpack.c.h.b16 %v2870
  %v6400 = vunpack.c.l.b16 %v2871
  %v6401 = vunpack.c.h.b16 %v2871
  %v6402 = vunpack.c.l.b16 %v2872
  %v6403 = vunpack.c.h.b16 %v2872
  %v6404 = vunpack.c.l.b16 %v2873
  %v6405 = vunpack.c.h.b16 %v2873
  %v6406 = vunpack.c.l.b16 %v2874
  %v6407 = vunpack.c.h.b16 %v2874
  %v6408 = vunpack.c.l.b16 %v2875
  %v6409 = vunpack.c.h.b16 %v2875
  %v6410 = vunpack.c.l.b16 %v2876
  %v6411 = vunpack.c.h.b16 %v2876
  %v6412 = vunpack.c.l.b16 %v2877
  %v6413 = vunpack.c.h.b16 %v2877
  %v6414 = vunpack.c.l.b16 %v2878
  %v6415 = vunpack.c.h.b16 %v2878
  %v6416 = vunpack.c.l.b16 %v2879
  %v6417 = vunpack.c.h.b16 %v2879
  %v6418 = vunpack.c.l.b16 %v2880
  %v6419 = vunpack.c.h.b16 %v2880
  %v6420 = vunpack.c.l.b16 %v2881
  %v6421 = vunpack.c.h.b16 %v2881
  %v6422 = vunpack.c.l.b16 %v2882
  %v6423 = vunpack.c.h.b16 %v2882
  %v6424 = vunpack.c.l.b16 %v2883
  %v6425 = vunpack.c.h.b16 %v2883
  %v6426 = vunpack.c.l.b16 %v2884
  %v6427 = vunpack.c.h.b16 %v2884
  %v6428 = vunpack.c.l.b16 %v2885
  %v6429 = vunpack.c.h.b16 %v2885
  %v6430 = vunpack.c.l.b16 %v2886
  %v6431 = vunpack.c.h.b16 %v2886
  %v6432 = vunpack.c.l.b16 %v2887
  %v6433 = vunpack.c.h.b16 %v2887
  %v6434 = vunpack.c.l.b16 %v2888
  %v6435 = vunpack.c.h.b16 %v2888
  %v6436 = vunpack.c.l.b16 %v2889
  %v6437 = vunpack.c.h.b16 %v2889
  %v6438 = vunpack.c.l.b16 %v2890
  %v6439 = vunpack.c.h.b16 %v2890
  %v6440 = vunpack.c.l.b16 %v2891
  %v6441 = vunpack.c.h.b16 %v2891
  %v6442 = vunpack.c.l.b16 %v2892
  %v6443 = vunpack.c.h.b16 %v2892
  %v6444 = vunpack.c.l.b16 %v2893
  %v6445 = vunpack.c.h.b16 %v2893
  %v6446 = vunpack.c.l.b16 %v2894
  %v6447 = vunpack.c.h.b16 %v2894
  %v6448 = vunpack.c.l.b16 %v2895
  %v6449 = vunpack.c.h.b16 %v2895
  %v6450 = vunpack.c.l.b16 %v2896
  %v6451 = vunpack.c.h.b16 %v2896
  %v6452 = vunpack.c.l.b16 %v2897
  %v6453 = vunpack.c.h.b16 %v2897
  %v6454 = vunpack.c.l.b16 %v2898
  %v6455 = vunpack.c.h.b16 %v2898
  %v6456 = vunpack.c.l.b16 %v2899
  %v6457 = vunpack.c.h.b16 %v2899
  %v6458 = vunpack.c.l.b16 %v2900
  %v6459 = vunpack.c.h.b16 %v2900
  %v6460 = vunpack.c.l.b16 %v2901
  %v6461 = vunpack.c.h.b16 %v2901
  %v6462 = vunpack.c.l.b16 %v2902
  %v6463 = vunpack.c.h.b16 %v2902
  %v6464 = vunpack.c.l.b16 %v2903
  %v6465 = vunpack.c.h.b16 %v2903
  %v6466 = vunpack.c.l.b16 %v2904
  %v6467 = vunpack.c.h.b16 %v2904
  %v6468 = vunpack.c.l.b16 %v2905
  %v6469 = vunpack.c.h.b16 %v2905
  %v6470 = vunpack.c.l.b16 %v2906
  %v6471 = vunpack.c.h.b16 %v2906
  %v6472 = vunpack.c.l.b16 %v2907
  %v6473 = vunpack.c.h.b16 %v2907
  %v6474 = vunpack.c.l.b16 %v2908
  %v6475 = vunpack.c.h.b16 %v2908
  %v6476 = vunpack.c.l.b16 %v2909
  %v6477 = vunpack.c.h.b16 %v2909
  %v6478 = vunpack.c.l.b16 %v2910
  %v6479 = vunpack.c.h.b16 %v2910
  %v6480 = vunpack.c.l.b16 %v2911
  %v6481 = vunpack.c.h.b16 %v2911
  %v6482 = vunpack.c.l.b16 %v2912
  %v6483 = vunpack.c.h.b16 %v2912
  %v6484 = vunpack.c.l.b16 %v2913
  %v6485 = vunpack.c.h.b16 %v2913
  %v6486 = vunpack.c.l.b16 %v2914
  %v6487 = vunpack.c.h.b16 %v2914
  %v6488 = vunpack.c.l.b16 %v2915
  %v6489 = vunpack.c.h.b16 %v2915
  %v6490 = vunpack.c.l.b16 %v2916
  %v6491 = vunpack.c.h.b16 %v2916
  %v6492 = vunpack.c.l.b16 %v2917
  %v6493 = vunpack.c.h.b16 %v2917
  %v6494 = vunpack.c.l.b16 %v2918
  %v6495 = vunpack.c.h.b16 %v2918
  %v6496 = vunpack.c.l.b16 %v2919
  %v6497 = vunpack.c.h.b16 %v2919
  %v6498 = vunpack.c.l.b16 %v2920
  %v6499 = vunpack.c.h.b16 %v2920
  %v6500 = vunpack.c.l.b16 %v2921
  %v6501 = vunpack.c.h.b16 %v2921
  %v6502 = vunpack.c.l.b16 %v2922
  %v6503 = vunpack.c.h.b16 %v2922
  %v6504 = vunpack.c.l.b16 %v2923
  %v6505 = vunpack.c.h.b16 %v2923
  %v6506 = vunpack.c.l.b16 %v2924
  %v6507 = vunpack.c.h.b16 %v2924
  %v6508 = vunpack.c.l.b16 %v2925
  %v6509 = vunpack.c.h.b16 %v2925
  %v6510 = vunpack.c.l.b16 %v2926
  %v6511 = vunpack.c.h.b16 %v2926
  %v6512 = vunpack.c.l.b16 %v2927
  %v6513 = vunpack.c.h.b16 %v2927
  %v6514 = vunpack.c.l.b16 %v2928
  %v6515 = vunpack.c.h.b16 %v2928
  %v6516 = vunpack.c.l.b16 %v2929
  %v6517 = vunpack.c.h.b16 %v2929
  %v6518 = vunpack.c.l.b16 %v2930
  %v6519 = vunpack.c.h.b16 %v2930
  %v6520 = vunpack.c.l.b16 %v2931
  %v6521 = vunpack.c.h.b16 %v2931
  %v6522 = vunpack.c.l.b16 %v2932
  %v6523 = vunpack.c.h.b16 %v2932
  %v6524 = vunpack.c.l.b16 %v2933
  %v6525 = vunpack.c.h.b16 %v2933
  %v6526 = vunpack.c.l.b16 %v2934
  %v6527 = vunpack.c.h.b16 %v2934
  %v6528 = vunpack.c.l.b16 %v2935
  %v6529 = vunpack.c.h.b16 %v2935
  %v6530 = vunpack.c.l.b16 %v2936
  %v6531 = vunpack.c.h.b16 %v2936
  %v6532 = vunpack.c.l.b16 %v2937
  %v6533 = vunpack.c.h.b16 %v2937
  %v6534 = vunpack.c.l.b16 %v2938
  %v6535 = vunpack.c.h.b16 %v2938
  %v6536 = vunpack.c.l.b16 %v2939
  %v6537 = vunpack.c.h.b16 %v2939
  %v6538 = vunpack.c.l.b16 %v2940
  %v6539 = vunpack.c.h.b16 %v2940
  %v6540 = vunpack.c.l.b16 %v2941
  %v6541 = vunpack.c.h.b16 %v2941
  %v6542 = vunpack.c.l.b16 %v2942
  %v6543 = vunpack.c.h.b16 %v2942
  %v6544 = vunpack.c.l.b16 %v2943
  %v6545 = vunpack.c.h.b16 %v2943
  %v6546 = vunpack.c.l.b16 %v2944
  %v6547 = vunpack.c.h.b16 %v2944
  %v6548 = vunpack.c.l.b16 %v2945
  %v6549 = vunpack.c.h.b16 %v2945
  %v6550 = vunpack.c.l.b16 %v2946
  %v6551 = vunpack.c.h.b16 %v2946
  %v6552 = vunpack.c.l.b16 %v2947
  %v6553 = vunpack.c.h.b16 %v2947
  %v6554 = vunpack.c.l.b16 %v2948
  %v6555 = vunpack.c.h.b16 %v2948
  %v6556 = vunpack.c.l.b16 %v2949
  %v6557 = vunpack.c.h.b16 %v2949
  %v6558 = vunpack.c.l.b16 %v2950
  %v6559 = vunpack.c.h.b16 %v2950
  %v6560 = vunpack.c.l.b16 %v2951
  %v6561 = vunpack.c.h.b16 %v2951
  %v6562 = vunpack.c.l.b16 %v2952
  %v6563 = vunpack.c.h.b16 %v2952
  %v6564 = vunpack.c.l.b16 %v2953
  %v6565 = vunpack.c.h.b16 %v2953
  %v6566 = vunpack.c.l.b16 %v2954
  %v6567 = vunpack.c.h.b16 %v2954
  %v6568 = vunpack.c.l.b16 %v2955
  %v6569 = vunpack.c.h.b16 %v2955
  %v6570 = vunpack.c.l.b16 %v2956
  %v6571 = vunpack.c.h.b16 %v2956
  %v6572 = vunpack.c.l.b16 %v2957
  %v6573 = vunpack.c.h.b16 %v2957
  %v6574 = vunpack.c.l.b16 %v2958
  %v6575 = vunpack.c.h.b16 %v2958
  %v6576 = vunpack.c.l.b16 %v2959
  %v6577 = vunpack.c.h.b16 %v2959
  %v6578 = vunpack.c.l.b16 %v2960
  %v6579 = vunpack.c.h.b16 %v2960
  %v6580 = vunpack.c.l.b16 %v2961
  %v6581 = vunpack.c.h.b16 %v2961
  %v6582 = vunpack.c.l.b16 %v2962
  %v6583 = vunpack.c.h.b16 %v2962
  %v6584 = vunpack.c.l.b16 %v2963
  %v6585 = vunpack.c.h.b16 %v2963
  %v6586 = vunpack.c.l.b16 %v2964
  %v6587 = vunpack.c.h.b16 %v2964
  %v6588 = vunpack.c.l.b16 %v2965
  %v6589 = vunpack.c.h.b16 %v2965
  %v6590 = vunpack.c.l.b16 %v2966
  %v6591 = vunpack.c.h.b16 %v2966
  %v6592 = vunpack.c.l.b16 %v2967
  %v6593 = vunpack.c.h.b16 %v2967
  %v6594 = vunpack.c.l.b16 %v2968
  %v6595 = vunpack.c.h.b16 %v2968
  %v6596 = vunpack.c.l.b16 %v2969
  %v6597 = vunpack.c.h.b16 %v2969
  %v6598 = vunpack.c.l.b16 %v2970
  %v6599 = vunpack.c.h.b16 %v2970
  %v6600 = vunpack.c.l.b16 %v2971
  %v6601 = vunpack.c.h.b16 %v2971
  %v6602 = vunpack.c.l.b16 %v2972
  %v6603 = vunpack.c.h.b16 %v2972
  %v6604 = vunpack.c.l.b16 %v2973
  %v6605 = vunpack.c.h.b16 %v2973
  %v6606 = vunpack.c.l.b16 %v2974
  %v6607 = vunpack.c.h.b16 %v2974
  %v6608 = vunpack.c.l.b16 %v2975
  %v6609 = vunpack.c.h.b16 %v2975
  %v6610 = vunpack.c.l.b16 %v2976
  %v6611 = vunpack.c.h.b16 %v2976
  %v6612 = vunpack.c.l.b16 %v2977
  %v6613 = vunpack.c.h.b16 %v2977
  %v6614 = vunpack.c.l.b16 %v2978
  %v6615 = vunpack.c.h.b16 %v2978
  %v6616 = vunpack.c.l.b16 %v2979
  %v6617 = vunpack.c.h.b16 %v2979
  %v6618 = vunpack.c.l.b16 %v2980
  %v6619 = vunpack.c.h.b16 %v2980
  %v6620 = vunpack.c.l.b16 %v2981
  %v6621 = vunpack.c.h.b16 %v2981
  %v6622 = vunpack.c.l.b16 %v2982
  %v6623 = vunpack.c.h.b16 %v2982
  %v6624 = vunpack.c.l.b16 %v2983
  %v6625 = vunpack.c.h.b16 %v2983
  %v6626 = vunpack.c.l.b16 %v2984
  %v6627 = vunpack.c.h.b16 %v2984
  %v6628 = vunpack.c.l.b16 %v2985
  %v6629 = vunpack.c.h.b16 %v2985
  %v6630 = vunpack.c.l.b16 %v2986
  %v6631 = vunpack.c.h.b16 %v2986
  %v6632 = vunpack.c.l.b16 %v2987
  %v6633 = vunpack.c.h.b16 %v2987
  %v6634 = vunpack.c.l.b16 %v2988
  %v6635 = vunpack.c.h.b16 %v2988
  %v6636 = vunpack.c.l.b16 %v2989
  %v6637 = vunpack.c.h.b16 %v2989
  %v6638 = vunpack.c.l.b16 %v2990
  %v6639 = vunpack.c.h.b16 %v2990
  %v6640 = vunpack.c.l.b16 %v2991
  %v6641 = vunpack.c.h.b16 %v2991
  %v6642 = vunpack.c.l.b16 %v2992
  %v6643 = vunpack.c.h.b16 %v2992
  %v6644 = vunpack.c.l.b16 %v2993
  %v6645 = vunpack.c.h.b16 %v2993
  %v6646 = vunpack.c.l.b16 %v2994
  %v6647 = vunpack.c.h.b16 %v2994
  %v6648 = vunpack.c.l.b16 %v2995
  %v6649 = vunpack.c.h.b16 %v2995
  %v6650 = vunpack.c.l.b16 %v2996
  %v6651 = vunpack.c.h.b16 %v2996
  %v6652 = vunpack.c.l.b16 %v2997
  %v6653 = vunpack.c.h.b16 %v2997
  %v6654 = vunpack.c.l.b16 %v2998
  %v6655 = vunpack.c.h.b16 %v2998
  %v6656 = vunpack.c.l.b16 %v2999
  %v6657 = vunpack.c.h.b16 %v2999
  %v6658 = vunpack.c.l.b16 %v3000
  %v6659 = vunpack.c.h.b16 %v3000
  %v6660 = vunpack.c.l.b16 %v3001
  %v6661 = vunpack.c.h.b16 %v3001
  %v6662 = vunpack.c.l.b16 %v3002
  %v6663 = vunpack.c.h.b16 %v3002
  %v6664 = vunpack.c.l.b16 %v3003
  %v6665 = vunpack.c.h.b16 %v3003
  %v6666 = vunpack.c.l.b16 %v3004
  %v6667 = vunpack.c.h.b16 %v3004
  %v6668 = vunpack.c.l.b16 %v3005
  %v6669 = vunpack.c.h.b16 %v3005
  %v6670 = vunpack.c.l.b16 %v3006
  %v6671 = vunpack.c.h.b16 %v3006
  %v6672 = vunpack.c.l.b16 %v3007
  %v6673 = vunpack.c.h.b16 %v3007
  %v6674 = vunpack.c.l.b16 %v3008
  %v6675 = vunpack.c.h.b16 %v3008
  %v6676 = vunpack.c.l.b16 %v3009
  %v6677 = vunpack.c.h.b16 %v3009
  %v6678 = vunpack.c.l.b16 %v3010
  %v6679 = vunpack.c.h.b16 %v3010
  %v6680 = vunpack.c.l.b16 %v3011
  %v6681 = vunpack.c.h.b16 %v3011
  %v6682 = vunpack.c.l.b16 %v3012
  %v6683 = vunpack.c.h.b16 %v3012
  %v6684 = vunpack.c.l.b16 %v3013
  %v6685 = vunpack.c.h.b16 %v3013
  %v6686 = vunpack.c.l.b16 %v3014
  %v6687 = vunpack.c.h.b16 %v3014
  %v6688 = vunpack.c.l.b16 %v3015
  %v6689 = vunpack.c.h.b16 %v3015
  %v6690 = vunpack.c.l.b16 %v3016
  %v6691 = vunpack.c.h.b16 %v3016
  %v6692 = vunpack.c.l.b16 %v3017
  %v6693 = vunpack.c.h.b16 %v3017
  %v6694 = vunpack.c.l.b16 %v3018
  %v6695 = vunpack.c.h.b16 %v3018
  %v6696 = vunpack.c.l.b16 %v3019
  %v6697 = vunpack.c.h.b16 %v3019
  %v6698 = vunpack.c.l.b16 %v3020
  %v6699 = vunpack.c.h.b16 %v3020
  %v6700 = vunpack.c.l.b16 %v3021
  %v6701 = vunpack.c.h.b16 %v3021
  %v6702 = vunpack.c.l.b16 %v3022
  %v6703 = vunpack.c.h.b16 %v3022
  %v6704 = vunpack.c.l.b16 %v3023
  %v6705 = vunpack.c.h.b16 %v3023
  %v6706 = vunpack.c.l.b16 %v3024
  %v6707 = vunpack.c.h.b16 %v3024
  %v6708 = vunpack.c.l.b16 %v3025
  %v6709 = vunpack.c.h.b16 %v3025
  %v6710 = vunpack.c.l.b16 %v3026
  %v6711 = vunpack.c.h.b16 %v3026
  %v6712 = vunpack.c.l.b16 %v3027
  %v6713 = vunpack.c.h.b16 %v3027
  %v6714 = vunpack.c.l.b16 %v3028
  %v6715 = vunpack.c.h.b16 %v3028
  %v6716 = vunpack.c.l.b16 %v3029
  %v6717 = vunpack.c.h.b16 %v3029
  %v6718 = vunpack.c.l.b16 %v3030
  %v6719 = vunpack.c.h.b16 %v3030
  %v6720 = vunpack.c.l.b16 %v3031
  %v6721 = vunpack.c.h.b16 %v3031
  %v6722 = vunpack.c.l.b16 %v3032
  %v6723 = vunpack.c.h.b16 %v3032
  %v6724 = vunpack.c.l.b16 %v3033
  %v6725 = vunpack.c.h.b16 %v3033
  %v6726 = vunpack.c.l.b16 %v3034
  %v6727 = vunpack.c.h.b16 %v3034
  %v6728 = vunpack.c.l.b16 %v3035
  %v6729 = vunpack.c.h.b16 %v3035
  %v6730 = vunpack.c.l.b16 %v3036
  %v6731 = vunpack.c.h.b16 %v3036
  %v6732 = vunpack.c.l.b16 %v3037
  %v6733 = vunpack.c.h.b16 %v3037
  %v6734 = vunpack.c.l.b16 %v3038
  %v6735 = vunpack.c.h.b16 %v3038
  %v6736 = vunpack.c.l.b16 %v3039
  %v6737 = vunpack.c.h.b16 %v3039
  %v6738 = vunpack.c.l.b16 %v3040
  %v6739 = vunpack.c.h.b16 %v3040
  %v6740 = vunpack.c.l.b16 %v3041
  %v6741 = vunpack.c.h.b16 %v3041
  %v6742 = vunpack.c.l.b16 %v3042
  %v6743 = vunpack.c.h.b16 %v3042
  %v6744 = vunpack.c.l.b16 %v3043
  %v6745 = vunpack.c.h.b16 %v3043
  %v6746 = vunpack.c.l.b16 %v3044
  %v6747 = vunpack.c.h.b16 %v3044
  %v6748 = vunpack.c.l.b16 %v3045
  %v6749 = vunpack.c.h.b16 %v3045
  %v6750 = vunpack.c.l.b16 %v3046
  %v6751 = vunpack.c.h.b16 %v3046
  %v6752 = vunpack.c.l.b16 %v3047
  %v6753 = vunpack.c.h.b16 %v3047
  %v6754 = vunpack.c.l.b16 %v3048
  %v6755 = vunpack.c.h.b16 %v3048
  %v6756 = vunpack.c.l.b16 %v3049
  %v6757 = vunpack.c.h.b16 %v3049
  %v6758 = vunpack.c.l.b16 %v3050
  %v6759 = vunpack.c.h.b16 %v3050
  %v6760 = vunpack.c.l.b16 %v3051
  %v6761 = vunpack.c.h.b16 %v3051
  %v6762 = vunpack.c.l.b16 %v3052
  %v6763 = vunpack.c.h.b16 %v3052
  %v6764 = vunpack.c.l.b16 %v3053
  %v6765 = vunpack.c.h.b16 %v3053
  %v6766 = vunpack.c.l.b16 %v3054
  %v6767 = vunpack.c.h.b16 %v3054
  %v6768 = vunpack.c.l.b16 %v3055
  %v6769 = vunpack.c.h.b16 %v3055
  %v6770 = vunpack.c.l.b16 %v3056
  %v6771 = vunpack.c.h.b16 %v3056
  %v6772 = vunpack.c.l.b16 %v3057
  %v6773 = vunpack.c.h.b16 %v3057
  %v6774 = vunpack.c.l.b16 %v3058
  %v6775 = vunpack.c.h.b16 %v3058
  %v6776 = vunpack.c.l.b16 %v3059
  %v6777 = vunpack.c.h.b16 %v3059
  %v6778 = vunpack.c.l.b16 %v3060
  %v6779 = vunpack.c.h.b16 %v3060
  %v6780 = vunpack.c.l.b16 %v3061
  %v6781 = vunpack.c.h.b16 %v3061
  %v6782 = vunpack.c.l.b16 %v3062
  %v6783 = vunpack.c.h.b16 %v3062
  %v6784 = vunpack.c.l.b16 %v3063
  %v6785 = vunpack.c.h.b16 %v3063
  %v6786 = vunpack.c.l.b16 %v3064
  %v6787 = vunpack.c.h.b16 %v3064
  %v6788 = vunpack.c.l.b16 %v3065
  %v6789 = vunpack.c.h.b16 %v3065
  %v6790 = vunpack.c.l.b16 %v3066
  %v6791 = vunpack.c.h.b16 %v3066
  %v6792 = vunpack.c.l.b16 %v3067
  %v6793 = vunpack.c.h.b16 %v3067
  %v6794 = vunpack.c.l.b16 %v3068
  %v6795 = vunpack.c.h.b16 %v3068
  %v6796 = vunpack.c.l.b16 %v3069
  %v6797 = vunpack.c.h.b16 %v3069
  %v6798 = vunpack.c.l.b16 %v3070
  %v6799 = vunpack.c.h.b16 %v3070
  %v6800 = vunpack.c.l.b16 %v3071
  %v6801 = vunpack.c.h.b16 %v3071
  %v6802 = vunpack.c.l.b16 %v3072
  %v6803 = vunpack.c.h.b16 %v3072
  %v6804 = vunpack.c.l.b16 %v3073
  %v6805 = vunpack.c.h.b16 %v3073
  %v6806 = vunpack.c.l.b16 %v3074
  %v6807 = vunpack.c.h.b16 %v3074
  %v6808 = vunpack.c.l.b16 %v3075
  %v6809 = vunpack.c.h.b16 %v3075
  %v6810 = vunpack.c.l.b16 %v3076
  %v6811 = vunpack.c.h.b16 %v3076
  %v6812 = vunpack.c.l.b16 %v3077
  %v6813 = vunpack.c.h.b16 %v3077
  %v6814 = vunpack.c.l.b16 %v3078
  %v6815 = vunpack.c.h.b16 %v3078
  %v6816 = vunpack.c.l.b16 %v3079
  %v6817 = vunpack.c.h.b16 %v3079
  %v6818 = vunpack.c.l.b16 %v3080
  %v6819 = vunpack.c.h.b16 %v3080
  %v6820 = vunpack.c.l.b16 %v3081
  %v6821 = vunpack.c.h.b16 %v3081
  %v6822 = vunpack.c.l.b16 %v3082
  %v6823 = vunpack.c.h.b16 %v3082
  %v6824 = vunpack.c.l.b16 %v3083
  %v6825 = vunpack.c.h.b16 %v3083
  %v6826 = vunpack.c.l.b16 %v3084
  %v6827 = vunpack.c.h.b16 %v3084
  %v6828 = vunpack.c.l.b16 %v3085
  %v6829 = vunpack.c.h.b16 %v3085
  %v6830 = vunpack.c.l.b16 %v3086
  %v6831 = vunpack.c.h.b16 %v3086
  %v6832 = vunpack.c.l.b16 %v3087
  %v6833 = vunpack.c.h.b16 %v3087
  %v6834 = vunpack.c.l.b16 %v3088
  %v6835 = vunpack.c.h.b16 %v3088
  %v6836 = vunpack.c.l.b16 %v3089
  %v6837 = vunpack.c.h.b16 %v3089
  %v6838 = vunpack.c.l.b16 %v3090
  %v6839 = vunpack.c.h.b16 %v3090
  %v6840 = vunpack.c.l.b16 %v3091
  %v6841 = vunpack.c.h.b16 %v3091
  %v6842 = vunpack.c.l.b16 %v3092
  %v6843 = vunpack.c.h.b16 %v3092
  %v6844 = vunpack.c.l.b16 %v3093
  %v6845 = vunpack.c.h.b16 %v3093
  %v6846 = vunpack.c.l.b16 %v3094
  %v6847 = vunpack.c.h.b16 %v3094
  %v6848 = vunpack.c.l.b16 %v3095
  %v6849 = vunpack.c.h.b16 %v3095
  %v6850 = vunpack.c.l.b16 %v3096
  %v6851 = vunpack.c.h.b16 %v3096
  %v6852 = vunpack.c.l.b16 %v3097
  %v6853 = vunpack.c.h.b16 %v3097
  %v6854 = vunpack.c.l.b16 %v3098
  %v6855 = vunpack.c.h.b16 %v3098
  %v6856 = vunpack.c.l.b16 %v3099
  %v6857 = vunpack.c.h.b16 %v3099
  %v6858 = vunpack.c.l.b16 %v3100
  %v6859 = vunpack.c.h.b16 %v3100
  %v6860 = vunpack.c.l.b16 %v3101
  %v6861 = vunpack.c.h.b16 %v3101
  %v6862 = vunpack.c.l.b16 %v3102
  %v6863 = vunpack.c.h.b16 %v3102
  %v6864 = vunpack.c.l.b16 %v3103
  %v6865 = vunpack.c.h.b16 %v3103
  %v6866 = vunpack.c.l.b16 %v3104
  %v6867 = vunpack.c.h.b16 %v3104
  %v6868 = vunpack.c.l.b16 %v3105
  %v6869 = vunpack.c.h.b16 %v3105
  %v6870 = vunpack.c.l.b16 %v3106
  %v6871 = vunpack.c.h.b16 %v3106
  %v6872 = vunpack.c.l.b16 %v3107
  %v6873 = vunpack.c.h.b16 %v3107
  %v6874 = vunpack.c.l.b16 %v3108
  %v6875 = vunpack.c.h.b16 %v3108
  %v6876 = vunpack.c.l.b16 %v3109
  %v6877 = vunpack.c.h.b16 %v3109
  %v6878 = vunpack.c.l.b16 %v3110
  %v6879 = vunpack.c.h.b16 %v3110
  %v6880 = vunpack.c.l.b16 %v3111
  %v6881 = vunpack.c.h.b16 %v3111
  %v6882 = vunpack.c.l.b16 %v3112
  %v6883 = vunpack.c.h.b16 %v3112
  %v6884 = vunpack.c.l.b16 %v3113
  %v6885 = vunpack.c.h.b16 %v3113
  %v6886 = vunpack.c.l.b16 %v3114
  %v6887 = vunpack.c.h.b16 %v3114
  %v6888 = vunpack.c.l.b16 %v3115
  %v6889 = vunpack.c.h.b16 %v3115
  %v6890 = vunpack.c.l.b16 %v3116
  %v6891 = vunpack.c.h.b16 %v3116
  %v6892 = vunpack.c.l.b16 %v3117
  %v6893 = vunpack.c.h.b16 %v3117
  %v6894 = vunpack.c.l.b16 %v3118
  %v6895 = vunpack.c.h.b16 %v3118
  %v6896 = vunpack.c.l.b16 %v3119
  %v6897 = vunpack.c.h.b16 %v3119
  %v6898 = vunpack.c.l.b16 %v3120
  %v6899 = vunpack.c.h.b16 %v3120
  %v6900 = vunpack.c.l.b16 %v3121
  %v6901 = vunpack.c.h.b16 %v3121
  %v6902 = vunpack.c.l.b16 %v3122
  %v6903 = vunpack.c.h.b16 %v3122
  %v6904 = vunpack.c.l.b16 %v3123
  %v6905 = vunpack.c.h.b16 %v3123
  %v6906 = vunpack.c.l.b16 %v3124
  %v6907 = vunpack.c.h.b16 %v3124
  %v6908 = vunpack.c.l.b16 %v3125
  %v6909 = vunpack.c.h.b16 %v3125
  %v6910 = vunpack.c.l.b16 %v3126
  %v6911 = vunpack.c.h.b16 %v3126
  %v6912 = vunpack.c.l.b16 %v3127
  %v6913 = vunpack.c.h.b16 %v3127
  %v6914 = vunpack.c.l.b16 %v3128
  %v6915 = vunpack.c.h.b16 %v3128
  %v6916 = vunpack.c.l.b16 %v3129
  %v6917 = vunpack.c.h.b16 %v3129
  %v6918 = vunpack.c.l.b16 %v3130
  %v6919 = vunpack.c.h.b16 %v3130
  %v6920 = vunpack.c.l.b16 %v3131
  %v6921 = vunpack.c.h.b16 %v3131
  %v6922 = vunpack.c.l.b16 %v3132
  %v6923 = vunpack.c.h.b16 %v3132
  %v6924 = vunpack.c.l.b16 %v3133
  %v6925 = vunpack.c.h.b16 %v3133
  %v6926 = vunpack.c.l.b16 %v3134
  %v6927 = vunpack.c.h.b16 %v3134
  %v6928 = vunpack.c.l.b16 %v3135
  %v6929 = vunpack.c.h.b16 %v3135
  %v6930 = vunpack.c.l.b16 %v3136
  %v6931 = vunpack.c.h.b16 %v3136
  %v6932 = vunpack.c.l.b16 %v3137
  %v6933 = vunpack.c.h.b16 %v3137
  %v6934 = vunpack.c.l.b16 %v3138
  %v6935 = vunpack.c.h.b16 %v3138
  %v6936 = vunpack.c.l.b16 %v3139
  %v6937 = vunpack.c.h.b16 %v3139
  %v6938 = vunpack.c.l.b16 %v3140
  %v6939 = vunpack.c.h.b16 %v3140
  %v6940 = vunpack.c.l.b16 %v3141
  %v6941 = vunpack.c.h.b16 %v3141
  %v6942 = vunpack.c.l.b16 %v3142
  %v6943 = vunpack.c.h.b16 %v3142
  %v6944 = vunpack.c.l.b16 %v3143
  %v6945 = vunpack.c.h.b16 %v3143
  %v6946 = vunpack.c.l.b16 %v3144
  %v6947 = vunpack.c.h.b16 %v3144
  %v6948 = vunpack.c.l.b16 %v3145
  %v6949 = vunpack.c.h.b16 %v3145
  %v6950 = vunpack.c.l.b16 %v3146
  %v6951 = vunpack.c.h.b16 %v3146
  %v6952 = vunpack.c.l.b16 %v3147
  %v6953 = vunpack.c.h.b16 %v3147
  %v6954 = vunpack.c.l.b16 %v3148
  %v6955 = vunpack.c.h.b16 %v3148
  %v6956 = vunpack.c.l.b16 %v3149
  %v6957 = vunpack.c.h.b16 %v3149
  %v6958 = vunpack.c.l.b16 %v3150
  %v6959 = vunpack.c.h.b16 %v3150
  %v6960 = vunpack.c.l.b16 %v3151
  %v6961 = vunpack.c.h.b16 %v3151
  %v6962 = vunpack.c.l.b16 %v3152
  %v6963 = vunpack.c.h.b16 %v3152
  %v6964 = vunpack.c.l.b16 %v3153
  %v6965 = vunpack.c.h.b16 %v3153
  %v6966 = vunpack.c.l.b16 %v3154
  %v6967 = vunpack.c.h.b16 %v3154
  %v6968 = vunpack.c.l.b16 %v3155
  %v6969 = vunpack.c.h.b16 %v3155
  %v6970 = vunpack.c.l.b16 %v3156
  %v6971 = vunpack.c.h.b16 %v3156
  %v6972 = vunpack.c.l.b16 %v3157
  %v6973 = vunpack.c.h.b16 %v3157
  %v6974 = vunpack.c.l.b16 %v3158
  %v6975 = vunpack.c.h.b16 %v3158
  %v6976 = vunpack.c.l.b16 %v3159
  %v6977 = vunpack.c.h.b16 %v3159
  %v6978 = vunpack.c.l.b16 %v3160
  %v6979 = vunpack.c.h.b16 %v3160
  %v6980 = vunpack.c.l.b16 %v3161
  %v6981 = vunpack.c.h.b16 %v3161
  %v6982 = vunpack.c.l.b16 %v3162
  %v6983 = vunpack.c.h.b16 %v3162
  %v6984 = vunpack.c.l.b16 %v3163
  %v6985 = vunpack.c.h.b16 %v3163
  %v6986 = vunpack.c.l.b16 %v3164
  %v6987 = vunpack.c.h.b16 %v3164
  %v6988 = vunpack.c.l.b16 %v3165
  %v6989 = vunpack.c.h.b16 %v3165
  %v6990 = vunpack.c.l.b16 %v3166
  %v6991 = vunpack.c.h.b16 %v3166
  %v6992 = vunpack.c.l.b16 %v3167
  %v6993 = vunpack.c.h.b16 %v3167
  %v6994 = vunpack.c.l.b16 %v3168
  %v6995 = vunpack.c.h.b16 %v3168
  %v6996 = vunpack.c.l.b16 %v3169
  %v6997 = vunpack.c.h.b16 %v3169
  %v6998 = vunpack.c.l.b16 %v3170
  %v6999 = vunpack.c.h.b16 %v3170
  %v7000 = vunpack.c.l.b16 %v3171
  %v7001 = vunpack.c.h.b16 %v3171
  %v7002 = vunpack.c.l.b16 %v3172
  %v7003 = vunpack.c.h.b16 %v3172
  %v7004 = vunpack.c.l.b16 %v3173
  %v7005 = vunpack.c.h.b16 %v3173
  %v7006 = vunpack.c.l.b16 %v3174
  %v7007 = vunpack.c.h.b16 %v3174
  %v7008 = vunpack.c.l.b16 %v3175
  %v7009 = vunpack.c.h.b16 %v3175
  %v7010 = vunpack.c.l.b16 %v3176
  %v7011 = vunpack.c.h.b16 %v3176
  %v7012 = vunpack.c.l.b16 %v3177
  %v7013 = vunpack.c.h.b16 %v3177
  %v7014 = vunpack.c.l.b16 %v3178
  %v7015 = vunpack.c.h.b16 %v3178
  %v7016 = vunpack.c.l.b16 %v3179
  %v7017 = vunpack.c.h.b16 %v3179
  %v7018 = vunpack.c.l.b16 %v3180
  %v7019 = vunpack.c.h.b16 %v3180
  %v7020 = vunpack.c.l.b16 %v3181
  %v7021 = vunpack.c.h.b16 %v3181
  %v7022 = vunpack.c.l.b16 %v3182
  %v7023 = vunpack.c.h.b16 %v3182
  %v7024 = vunpack.c.l.b16 %v3183
  %v7025 = vunpack.c.h.b16 %v3183
  %v7026 = vunpack.c.l.b16 %v3184
  %v7027 = vunpack.c.h.b16 %v3184
  %v7028 = vunpack.c.l.b16 %v3185
  %v7029 = vunpack.c.h.b16 %v3185
  %v7030 = vunpack.c.l.b16 %v3186
  %v7031 = vunpack.c.h.b16 %v3186
  %v7032 = vunpack.c.l.b16 %v3187
  %v7033 = vunpack.c.h.b16 %v3187
  %v7034 = vunpack.c.l.b16 %v3188
  %v7035 = vunpack.c.h.b16 %v3188
  %v7036 = vunpack.c.l.b16 %v3189
  %v7037 = vunpack.c.h.b16 %v3189
  %v7038 = vunpack.c.l.b16 %v3190
  %v7039 = vunpack.c.h.b16 %v3190
  %v7040 = vunpack.c.l.b16 %v3191
  %v7041 = vunpack.c.h.b16 %v3191
  %v7042 = vunpack.c.l.b16 %v3192
  %v7043 = vunpack.c.h.b16 %v3192
  %v7044 = vunpack.c.l.b16 %v3193
  %v7045 = vunpack.c.h.b16 %v3193
  %v7046 = vunpack.c.l.b16 %v3194
  %v7047 = vunpack.c.h.b16 %v3194
  %v7048 = vunpack.c.l.b16 %v3195
  %v7049 = vunpack.c.h.b16 %v3195
  %v7050 = vunpack.c.l.b16 %v3196
  %v7051 = vunpack.c.h.b16 %v3196
  %v7052 = vunpack.c.l.b16 %v3197
  %v7053 = vunpack.c.h.b16 %v3197
  %v7054 = vunpack.c.l.b16 %v3198
  %v7055 = vunpack.c.h.b16 %v3198
  %v7056 = vunpack.c.l.b16 %v3199
  %v7057 = vunpack.c.h.b16 %v3199
  %v7058 = vunpack.c.l.b16 %v3200
  %v7059 = vunpack.c.h.b16 %v3200
  %v7060 = vunpack.c.l.b16 %v3201
  %v7061 = vunpack.c.h.b16 %v3201
  %v7062 = vunpack.c.l.b16 %v3202
  %v7063 = vunpack.c.h.b16 %v3202
  %v7064 = vunpack.c.l.b16 %v3203
  %v7065 = vunpack.c.h.b16 %v3203
  %v7066 = vunpack.c.l.b16 %v3204
  %v7067 = vunpack.c.h.b16 %v3204
  %v7068 = vunpack.c.l.b16 %v3205
  %v7069 = vunpack.c.h.b16 %v3205
  %v7070 = vunpack.c.l.b16 %v3206
  %v7071 = vunpack.c.h.b16 %v3206
  %v7072 = vunpack.c.l.b16 %v3207
  %v7073 = vunpack.c.h.b16 %v3207
  %v7074 = vunpack.c.l.b16 %v3208
  %v7075 = vunpack.c.h.b16 %v3208
  %v7076 = vunpack.c.l.b16 %v3209
  %v7077 = vunpack.c.h.b16 %v3209
  %v7078 = vunpack.c.l.b16 %v3210
  %v7079 = vunpack.c.h.b16 %v3210
  %v7080 = vunpack.c.l.b16 %v3211
  %v7081 = vunpack.c.h.b16 %v3211
  %v7082 = vunpack.c.l.b16 %v3212
  %v7083 = vunpack.c.h.b16 %v3212
  %v7084 = vunpack.c.l.b16 %v3213
  %v7085 = vunpack.c.h.b16 %v3213
  %v7086 = vunpack.c.l.b16 %v3214
  %v7087 = vunpack.c.h.b16 %v3214
  %v7088 = vunpack.c.l.b16 %v3215
  %v7089 = vunpack.c.h.b16 %v3215
  %v7090 = vunpack.c.l.b16 %v3216
  %v7091 = vunpack.c.h.b16 %v3216
  %v7092 = vunpack.c.l.b16 %v3217
  %v7093 = vunpack.c.h.b16 %v3217
  %v7094 = vunpack.c.l.b16 %v3218
  %v7095 = vunpack.c.h.b16 %v3218
  %v7096 = vunpack.c.l.b16 %v3219
  %v7097 = vunpack.c.h.b16 %v3219
  %v7098 = vunpack.c.l.b16 %v3220
  %v7099 = vunpack.c.h.b16 %v3220
  %v7100 = vunpack.c.l.b16 %v3221
  %v7101 = vunpack.c.h.b16 %v3221
  %v7102 = vunpack.c.l.b16 %v3222
  %v7103 = vunpack.c.h.b16 %v3222
  %v7104 = vunpack.c.l.b16 %v3223
  %v7105 = vunpack.c.h.b16 %v3223
  %v7106 = vunpack.c.l.b16 %v3224
  %v7107 = vunpack.c.h.b16 %v3224
  %v7108 = vunpack.c.l.b16 %v3225
  %v7109 = vunpack.c.h.b16 %v3225
  %v7110 = vunpack.c.l.b16 %v3226
  %v7111 = vunpack.c.h.b16 %v3226
  %v7112 = vunpack.c.l.b16 %v3227
  %v7113 = vunpack.c.h.b16 %v3227
  %v7114 = vunpack.c.l.b16 %v3228
  %v7115 = vunpack.c.h.b16 %v3228
  %v7116 = vunpack.c.l.b16 %v3229
  %v7117 = vunpack.c.h.b16 %v3229
  %v7118 = vunpack.c.l.b16 %v3230
  %v7119 = vunpack.c.h.b16 %v3230
  %v7120 = vunpack.c.l.b16 %v3231
  %v7121 = vunpack.c.h.b16 %v3231
  %v7122 = vunpack.c.l.b16 %v3232
  %v7123 = vunpack.c.h.b16 %v3232
  %v7124 = vunpack.c.l.b16 %v3233
  %v7125 = vunpack.c.h.b16 %v3233
  %v7126 = vunpack.c.l.b16 %v3234
  %v7127 = vunpack.c.h.b16 %v3234
  %v7128 = vunpack.c.l.b16 %v3235
  %v7129 = vunpack.c.h.b16 %v3235
  %v7130 = vunpack.c.l.b16 %v3236
  %v7131 = vunpack.c.h.b16 %v3236
  %v7132 = vunpack.c.l.b16 %v3237
  %v7133 = vunpack.c.h.b16 %v3237
  %v7134 = vunpack.c.l.b16 %v3238
  %v7135 = vunpack.c.h.b16 %v3238
  %v7136 = vunpack.c.l.b16 %v3239
  %v7137 = vunpack.c.h.b16 %v3239
  %v7138 = vunpack.c.l.b16 %v3240
  %v7139 = vunpack.c.h.b16 %v3240
  %v7140 = vunpack.c.l.b16 %v3241
  %v7141 = vunpack.c.h.b16 %v3241
  %v7142 = vunpack.c.l.b16 %v3242
  %v7143 = vunpack.c.h.b16 %v3242
  %v7144 = vunpack.c.l.b16 %v3243
  %v7145 = vunpack.c.h.b16 %v3243
  %v7146 = vunpack.c.l.b16 %v3244
  %v7147 = vunpack.c.h.b16 %v3244
  %v7148 = vunpack.c.l.b16 %v3245
  %v7149 = vunpack.c.h.b16 %v3245
  %v7150 = vunpack.c.l.b16 %v3246
  %v7151 = vunpack.c.h.b16 %v3246
  %v7152 = vunpack.c.l.b16 %v3247
  %v7153 = vunpack.c.h.b16 %v3247
  %v7154 = vunpack.c.l.b16 %v3248
  %v7155 = vunpack.c.h.b16 %v3248
  %v7156 = vunpack.c.l.b16 %v3249
  %v7157 = vunpack.c.h.b16 %v3249
  %v7158 = vunpack.c.l.b16 %v3250
  %v7159 = vunpack.c.h.b16 %v3250
  %v7160 = vunpack.c.l.b16 %v3251
  %v7161 = vunpack.c.h.b16 %v3251
  %v7162 = vunpack.c.l.b16 %v3252
  %v7163 = vunpack.c.h.b16 %v3252
  %v7164 = vunpack.c.l.b16 %v3253
  %v7165 = vunpack.c.h.b16 %v3253
  %v7166 = vunpack.c.l.b16 %v3254
  %v7167 = vunpack.c.h.b16 %v3254
  %v7168 = vunpack.c.l.b16 %v3255
  %v7169 = vunpack.c.h.b16 %v3255
  %v7170 = vunpack.c.l.b16 %v3256
  %v7171 = vunpack.c.h.b16 %v3256
  %v7172 = vunpack.c.l.b16 %v3257
  %v7173 = vunpack.c.h.b16 %v3257
  %v7174 = vunpack.c.l.b16 %v3258
  %v7175 = vunpack.c.h.b16 %v3258
  %v7176 = vunpack.c.l.b16 %v3259
  %v7177 = vunpack.c.h.b16 %v3259
  %v7178 = vunpack.c.l.b16 %v3260
  %v7179 = vunpack.c.h.b16 %v3260
  %v7180 = vunpack.c.l.b16 %v3261
  %v7181 = vunpack.c.h.b16 %v3261
  %v7182 = vunpack.c.l.b16 %v3262
  %v7183 = vunpack.c.h.b16 %v3262
  %v7184 = vunpack.c.l.b16 %v3263
  %v7185 = vunpack.c.h.b16 %v3263
  %v7186 = vunpack.c.l.b16 %v3264
  %v7187 = vunpack.c.h.b16 %v3264
  %v7188 = vunpack.c.l.b16 %v3265
  %v7189 = vunpack.c.h.b16 %v3265
  %v7190 = vunpack.c.l.b16 %v3266
  %v7191 = vunpack.c.h.b16 %v3266
  %v7192 = vunpack.c.l.b16 %v3267
  %v7193 = vunpack.c.h.b16 %v3267
  %v7194 = vunpack.c.l.b16 %v3268
  %v7195 = vunpack.c.h.b16 %v3268
  %v7196 = vunpack.c.l.b16 %v3269
  %v7197 = vunpack.c.h.b16 %v3269
  %v7198 = vunpack.c.l.b16 %v3270
  %v7199 = vunpack.c.h.b16 %v3270
  %v7200 = vunpack.c.l.b16 %v3271
  %v7201 = vunpack.c.h.b16 %v3271
  %v7202 = vunpack.c.l.b16 %v3272
  %v7203 = vunpack.c.h.b16 %v3272
  %v7204 = vunpack.c.l.b16 %v3273
  %v7205 = vunpack.c.h.b16 %v3273
  %v7206 = vunpack.c.l.b16 %v3274
  %v7207 = vunpack.c.h.b16 %v3274
  %v7208 = vunpack.c.l.b16 %v3275
  %v7209 = vunpack.c.h.b16 %v3275
  %v7210 = vunpack.c.l.b16 %v3276
  %v7211 = vunpack.c.h.b16 %v3276
  %v7212 = vunpack.c.l.b16 %v3277
  %v7213 = vunpack.c.h.b16 %v3277
  %v7214 = vunpack.c.l.b16 %v3278
  %v7215 = vunpack.c.h.b16 %v3278
  %v7216 = vunpack.c.l.b16 %v3279
  %v7217 = vunpack.c.h.b16 %v3279
  %v7218 = vunpack.c.l.b16 %v3280
  %v7219 = vunpack.c.h.b16 %v3280
  %v7220 = vunpack.c.l.b16 %v3281
  %v7221 = vunpack.c.h.b16 %v3281
  %v7222 = vunpack.c.l.b16 %v3282
  %v7223 = vunpack.c.h.b16 %v3282
  %v7224 = vunpack.c.l.b16 %v3283
  %v7225 = vunpack.c.h.b16 %v3283
  %v7226 = vunpack.c.l.b16 %v3284
  %v7227 = vunpack.c.h.b16 %v3284
  %v7228 = vunpack.c.l.b16 %v3285
  %v7229 = vunpack.c.h.b16 %v3285
  %v7230 = vunpack.c.l.b16 %v3286
  %v7231 = vunpack.c.h.b16 %v3286
  %v7232 = vunpack.c.l.b16 %v3287
  %v7233 = vunpack.c.h.b16 %v3287
  %v7234 = vunpack.c.l.b16 %v3288
  %v7235 = vunpack.c.h.b16 %v3288
  %v7236 = vunpack.c.l.b16 %v3289
  %v7237 = vunpack.c.h.b16 %v3289
  %v7238 = vunpack.c.l.b16 %v3290
  %v7239 = vunpack.c.h.b16 %v3290
  %v7240 = vunpack.c.l.b16 %v3291
  %v7241 = vunpack.c.h.b16 %v3291
  %v7242 = vunpack.c.l.b16 %v3292
  %v7243 = vunpack.c.h.b16 %v3292
  %v7244 = vunpack.c.l.b16 %v3293
  %v7245 = vunpack.c.h.b16 %v3293
  %v7246 = vunpack.c.l.b16 %v3294
  %v7247 = vunpack.c.h.b16 %v3294
  %v7248 = vunpack.c.l.b16 %v3295
  %v7249 = vunpack.c.h.b16 %v3295
  %v7250 = vunpack.c.l.b16 %v3296
  %v7251 = vunpack.c.h.b16 %v3296
  %v7252 = vunpack.c.l.b16 %v3297
  %v7253 = vunpack.c.h.b16 %v3297
  %v7254 = vunpack.c.l.b16 %v3298
  %v7255 = vunpack.c.h.b16 %v3298
  %v7256 = vunpack.c.l.b16 %v3299
  %v7257 = vunpack.c.h.b16 %v3299
  %v7258 = vunpack.c.l.b16 %v3300
  %v7259 = vunpack.c.h.b16 %v3300
  %v7260 = vunpack.c.l.b16 %v3301
  %v7261 = vunpack.c.h.b16 %v3301
  %v7262 = vunpack.c.l.b16 %v3302
  %v7263 = vunpack.c.h.b16 %v3302
  %v7264 = vunpack.c.l.b16 %v3303
  %v7265 = vunpack.c.h.b16 %v3303
  %v7266 = vunpack.c.l.b16 %v3304
  %v7267 = vunpack.c.h.b16 %v3304
  %v7268 = vunpack.c.l.b16 %v3305
  %v7269 = vunpack.c.h.b16 %v3305
  %v7270 = vunpack.c.l.b16 %v3306
  %v7271 = vunpack.c.h.b16 %v3306
  %v7272 = vunpack.c.l.b16 %v3307
  %v7273 = vunpack.c.h.b16 %v3307
  %v7274 = vunpack.c.l.b16 %v3308
  %v7275 = vunpack.c.h.b16 %v3308
  %v7276 = vunpack.c.l.b16 %v3309
  %v7277 = vunpack.c.h.b16 %v3309
  %v7278 = vunpack.c.l.b16 %v3310
  %v7279 = vunpack.c.h.b16 %v3310
  %v7280 = vunpack.c.l.b16 %v3311
  %v7281 = vunpack.c.h.b16 %v3311
  %v7282 = vunpack.c.l.b16 %v3312
  %v7283 = vunpack.c.h.b16 %v3312
  %v7284 = vunpack.c.l.b16 %v3313
  %v7285 = vunpack.c.h.b16 %v3313
  %v7286 = vunpack.c.l.b16 %v3314
  %v7287 = vunpack.c.h.b16 %v3314
  %v7288 = vunpack.c.l.b16 %v3315
  %v7289 = vunpack.c.h.b16 %v3315
  %v7290 = vunpack.c.l.b16 %v3316
  %v7291 = vunpack.c.h.b16 %v3316
  %v7292 = vunpack.c.l.b16 %v3317
  %v7293 = vunpack.c.h.b16 %v3317
  %v7294 = vunpack.c.l.b16 %v3318
  %v7295 = vunpack.c.h.b16 %v3318
  %v7296 = vunpack.c.l.b16 %v3319
  %v7297 = vunpack.c.h.b16 %v3319
  %v7298 = vunpack.c.l.b16 %v3320
  %v7299 = vunpack.c.h.b16 %v3320
  %v7300 = vunpack.c.l.b16 %v3321
  %v7301 = vunpack.c.h.b16 %v3321
  %v7302 = vunpack.c.l.b16 %v3322
  %v7303 = vunpack.c.h.b16 %v3322
  %v7304 = vunpack.c.l.b16 %v3323
  %v7305 = vunpack.c.h.b16 %v3323
  %v7306 = vunpack.c.l.b16 %v3324
  %v7307 = vunpack.c.h.b16 %v3324
  %v7308 = vunpack.c.l.b16 %v3325
  %v7309 = vunpack.c.h.b16 %v3325
  %v7310 = vunpack.c.l.b16 %v3326
  %v7311 = vunpack.c.h.b16 %v3326
  %v7312 = vunpack.c.l.b16 %v3327
  %v7313 = vunpack.c.h.b16 %v3327
  %v7314 = vunpack.c.l.b16 %v3328
  %v7315 = vunpack.c.h.b16 %v3328
  %v7316 = vunpack.c.l.b16 %v3329
  %v7317 = vunpack.c.h.b16 %v3329
  %v7318 = vunpack.c.l.b16 %v3330
  %v7319 = vunpack.c.h.b16 %v3330
  %v7320 = vunpack.c.l.b16 %v3331
  %v7321 = vunpack.c.h.b16 %v3331
  %v7322 = vunpack.c.l.b16 %v3332
  %v7323 = vunpack.c.h.b16 %v3332
  %v7324 = vunpack.c.l.b16 %v3333
  %v7325 = vunpack.c.h.b16 %v3333
  %v7326 = vunpack.c.l.b16 %v3334
  %v7327 = vunpack.c.h.b16 %v3334
  %v7328 = vunpack.c.l.b16 %v3335
  %v7329 = vunpack.c.h.b16 %v3335
  %v7330 = vunpack.c.l.b16 %v3336
  %v7331 = vunpack.c.h.b16 %v3336
  %v7332 = vunpack.c.l.b16 %v3337
  %v7333 = vunpack.c.h.b16 %v3337
  %v7334 = vunpack.c.l.b16 %v3338
  %v7335 = vunpack.c.h.b16 %v3338
  %v7336 = vunpack.c.l.b16 %v3339
  %v7337 = vunpack.c.h.b16 %v3339
  %v7338 = vunpack.c.l.b16 %v3340
  %v7339 = vunpack.c.h.b16 %v3340
  %v7340 = vunpack.c.l.b16 %v3341
  %v7341 = vunpack.c.h.b16 %v3341
  %v7342 = vunpack.c.l.b16 %v3342
  %v7343 = vunpack.c.h.b16 %v3342
  %v7344 = vunpack.c.l.b16 %v3343
  %v7345 = vunpack.c.h.b16 %v3343
  %v7346 = vunpack.c.l.b16 %v3344
  %v7347 = vunpack.c.h.b16 %v3344
  %v7348 = vunpack.c.l.b16 %v3345
  %v7349 = vunpack.c.h.b16 %v3345
  %v7350 = vunpack.c.l.b16 %v3346
  %v7351 = vunpack.c.h.b16 %v3346
  %v7352 = vunpack.c.l.b16 %v3347
  %v7353 = vunpack.c.h.b16 %v3347
  %v7354 = vunpack.c.l.b16 %v3348
  %v7355 = vunpack.c.h.b16 %v3348
  %v7356 = vunpack.c.l.b16 %v3349
  %v7357 = vunpack.c.h.b16 %v3349
  %v7358 = vunpack.c.l.b16 %v3350
  %v7359 = vunpack.c.h.b16 %v3350
  %v7360 = vunpack.c.l.b16 %v3351
  %v7361 = vunpack.c.h.b16 %v3351
  %v7362 = vunpack.c.l.b16 %v3352
  %v7363 = vunpack.c.h.b16 %v3352
  %v7364 = vunpack.c.l.b16 %v3353
  %v7365 = vunpack.c.h.b16 %v3353
  %v7366 = vunpack.c.l.b16 %v3354
  %v7367 = vunpack.c.h.b16 %v3354
  %v7368 = vunpack.c.l.b16 %v3355
  %v7369 = vunpack.c.h.b16 %v3355
  %v7370 = vunpack.c.l.b16 %v3356
  %v7371 = vunpack.c.h.b16 %v3356
  %v7372 = vunpack.c.l.b16 %v3357
  %v7373 = vunpack.c.h.b16 %v3357
  %v7374 = vunpack.c.l.b16 %v3358
  %v7375 = vunpack.c.h.b16 %v3358
  %v7376 = vunpack.c.l.b16 %v3359
  %v7377 = vunpack.c.h.b16 %v3359
  %v7378 = vunpack.c.l.b16 %v3360
  %v7379 = vunpack.c.h.b16 %v3360
  %v7380 = vunpack.c.l.b16 %v3361
  %v7381 = vunpack.c.h.b16 %v3361
  %v7382 = vunpack.c.l.b16 %v3362
  %v7383 = vunpack.c.h.b16 %v3362
  %v7384 = vunpack.c.l.b16 %v3363
  %v7385 = vunpack.c.h.b16 %v3363
  %v7386 = vunpack.c.l.b16 %v3364
  %v7387 = vunpack.c.h.b16 %v3364
  %v7388 = vunpack.c.l.b16 %v3365
  %v7389 = vunpack.c.h.b16 %v3365
  %v7390 = vunpack.c.l.b16 %v3366
  %v7391 = vunpack.c.h.b16 %v3366
  %v7392 = vunpack.c.l.b16 %v3367
  %v7393 = vunpack.c.h.b16 %v3367
  %v7394 = vunpack.c.l.b16 %v3368
  %v7395 = vunpack.c.h.b16 %v3368
  %v7396 = vunpack.c.l.b16 %v3369
  %v7397 = vunpack.c.h.b16 %v3369
  %v7398 = vunpack.c.l.b16 %v3370
  %v7399 = vunpack.c.h.b16 %v3370
  %v7400 = vunpack.c.l.b16 %v3371
  %v7401 = vunpack.c.h.b16 %v3371
  %v7402 = vunpack.c.l.b16 %v3372
  %v7403 = vunpack.c.h.b16 %v3372
  %v7404 = vunpack.c.l.b16 %v3373
  %v7405 = vunpack.c.h.b16 %v3373
  %v7406 = vunpack.c.l.b16 %v3374
  %v7407 = vunpack.c.h.b16 %v3374
  %v7408 = vunpack.c.l.b16 %v3375
  %v7409 = vunpack.c.h.b16 %v3375
  %v7410 = vunpack.c.l.b16 %v3376
  %v7411 = vunpack.c.h.b16 %v3376
  %v7412 = vunpack.c.l.b16 %v3377
  %v7413 = vunpack.c.h.b16 %v3377
  %v7414 = vunpack.c.l.b16 %v3378
  %v7415 = vunpack.c.h.b16 %v3378
  %v7416 = vunpack.c.l.b16 %v3379
  %v7417 = vunpack.c.h.b16 %v3379
  %v7418 = vunpack.c.l.b16 %v3380
  %v7419 = vunpack.c.h.b16 %v3380
  %v7420 = vunpack.c.l.b16 %v3381
  %v7421 = vunpack.c.h.b16 %v3381
  %v7422 = vunpack.c.l.b16 %v3382
  %v7423 = vunpack.c.h.b16 %v3382
  %v7424 = vunpack.c.l.b16 %v3383
  %v7425 = vunpack.c.h.b16 %v3383
  %v7426 = vunpack.c.l.b16 %v3384
  %v7427 = vunpack.c.h.b16 %v3384
  %v7428 = vunpack.c.l.b16 %v3385
  %v7429 = vunpack.c.h.b16 %v3385
  %v7430 = vunpack.c.l.b16 %v3386
  %v7431 = vunpack.c.h.b16 %v3386
  %v7432 = vunpack.c.l.b16 %v3387
  %v7433 = vunpack.c.h.b16 %v3387
  %v7434 = vunpack.c.l.b16 %v3388
  %v7435 = vunpack.c.h.b16 %v3388
  %v7436 = vunpack.c.l.b16 %v3389
  %v7437 = vunpack.c.h.b16 %v3389
  %v7438 = vunpack.c.l.b16 %v3390
  %v7439 = vunpack.c.h.b16 %v3390
  %v7440 = vunpack.c.l.b16 %v3391
  %v7441 = vunpack.c.h.b16 %v3391
  %v7442 = vunpack.c.l.b16 %v3392
  %v7443 = vunpack.c.h.b16 %v3392
  %v7444 = vunpack.c.l.b16 %v3393
  %v7445 = vunpack.c.h.b16 %v3393
  %v7446 = vunpack.c.l.b16 %v3394
  %v7447 = vunpack.c.h.b16 %v3394
  %v7448 = vunpack.c.l.b16 %v3395
  %v7449 = vunpack.c.h.b16 %v3395
  %v7450 = vunpack.c.l.b16 %v3396
  %v7451 = vunpack.c.h.b16 %v3396
  %v7452 = vunpack.c.l.b16 %v3397
  %v7453 = vunpack.c.h.b16 %v3397
  %v7454 = vunpack.c.l.b16 %v3398
  %v7455 = vunpack.c.h.b16 %v3398
  %v7456 = vunpack.c.l.b16 %v3399
  %v7457 = vunpack.c.h.b16 %v3399
  %v7458 = vunpack.c.l.b16 %v3400
  %v7459 = vunpack.c.h.b16 %v3400
  %v7460 = vunpack.c.l.b16 %v3401
  %v7461 = vunpack.c.h.b16 %v3401
  %v7462 = vunpack.c.l.b16 %v3402
  %v7463 = vunpack.c.h.b16 %v3402
  %v7464 = vunpack.c.l.b16 %v3403
  %v7465 = vunpack.c.h.b16 %v3403
  %v7466 = vunpack.c.l.b16 %v3404
  %v7467 = vunpack.c.h.b16 %v3404
  %v7468 = vunpack.c.l.b16 %v3405
  %v7469 = vunpack.c.h.b16 %v3405
  %v7470 = vunpack.c.l.b16 %v3406
  %v7471 = vunpack.c.h.b16 %v3406
  %v7472 = vunpack.c.l.b16 %v3407
  %v7473 = vunpack.c.h.b16 %v3407
  %v7474 = vunpack.c.l.b16 %v3408
  %v7475 = vunpack.c.h.b16 %v3408
  %v7476 = vunpack.c.l.b16 %v3409
  %v7477 = vunpack.c.h.b16 %v3409
  %v7478 = vunpack.c.l.b16 %v3410
  %v7479 = vunpack.c.h.b16 %v3410
  %v7480 = vunpack.c.l.b16 %v3411
  %v7481 = vunpack.c.h.b16 %v3411
  %v7482 = vunpack.c.l.b16 %v3412
  %v7483 = vunpack.c.h.b16 %v3412
  %v7484 = vunpack.c.l.b16 %v3413
  %v7485 = vunpack.c.h.b16 %v3413
  %v7486 = vunpack.c.l.b16 %v3414
  %v7487 = vunpack.c.h.b16 %v3414
  %v7488 = vunpack.c.l.b16 %v3415
  %v7489 = vunpack.c.h.b16 %v3415
  %v7490 = vunpack.c.l.b16 %v3416
  %v7491 = vunpack.c.h.b16 %v3416
  %v7492 = vunpack.c.l.b16 %v3417
  %v7493 = vunpack.c.h.b16 %v3417
  %v7494 = vunpack.c.l.b16 %v3418
  %v7495 = vunpack.c.h.b16 %v3418
  %v7496 = vunpack.c.l.b16 %v3419
  %v7497 = vunpack.c.h.b16 %v3419
  %v7498 = vunpack.c.l.b16 %v3420
  %v7499 = vunpack.c.h.b16 %v3420
  %v7500 = vunpack.c.l.b16 %v3421
  %v7501 = vunpack.c.h.b16 %v3421
  %v7502 = vunpack.c.l.b16 %v3422
  %v7503 = vunpack.c.h.b16 %v3422
  %v7504 = vunpack.c.l.b16 %v3423
  %v7505 = vunpack.c.h.b16 %v3423
  %v7506 = vunpack.c.l.b16 %v3424
  %v7507 = vunpack.c.h.b16 %v3424
  %v7508 = vunpack.c.l.b16 %v3425
  %v7509 = vunpack.c.h.b16 %v3425
  %v7510 = vunpack.c.l.b16 %v3426
  %v7511 = vunpack.c.h.b16 %v3426
  %v7512 = vunpack.c.l.b16 %v3427
  %v7513 = vunpack.c.h.b16 %v3427
  %v7514 = vunpack.c.l.b16 %v3428
  %v7515 = vunpack.c.h.b16 %v3428
  %v7516 = vunpack.c.l.b16 %v3429
  %v7517 = vunpack.c.h.b16 %v3429
  %v7518 = vunpack.c.l.b16 %v3430
  %v7519 = vunpack.c.h.b16 %v3430
  %v7520 = vunpack.c.l.b16 %v3431
  %v7521 = vunpack.c.h.b16 %v3431
  %v7522 = vunpack.c.l.b16 %v3432
  %v7523 = vunpack.c.h.b16 %v3432
  %v7524 = vunpack.c.l.b16 %v3433
  %v7525 = vunpack.c.h.b16 %v3433
  %v7526 = vunpack.c.l.b16 %v3434
  %v7527 = vunpack.c.h.b16 %v3434
  %v7528 = vunpack.c.l.b16 %v3435
  %v7529 = vunpack.c.h.b16 %v3435
  %v7530 = vunpack.c.l.b16 %v3436
  %v7531 = vunpack.c.h.b16 %v3436
  %v7532 = vunpack.c.l.b16 %v3437
  %v7533 = vunpack.c.h.b16 %v3437
  %v7534 = vunpack.c.l.b16 %v3438
  %v7535 = vunpack.c.h.b16 %v3438
  %v7536 = vunpack.c.l.b16 %v3439
  %v7537 = vunpack.c.h.b16 %v3439
  %v7538 = vunpack.c.l.b16 %v3440
  %v7539 = vunpack.c.h.b16 %v3440
  %v7540 = vunpack.c.l.b16 %v3441
  %v7541 = vunpack.c.h.b16 %v3441
  %v7542 = vunpack.c.l.b16 %v3442
  %v7543 = vunpack.c.h.b16 %v3442
  %v7544 = vunpack.c.l.b16 %v3443
  %v7545 = vunpack.c.h.b16 %v3443
  %v7546 = vunpack.c.l.b16 %v3444
  %v7547 = vunpack.c.h.b16 %v3444
  %v7548 = vunpack.c.l.b16 %v3445
  %v7549 = vunpack.c.h.b16 %v3445
  %v7550 = vunpack.c.l.b16 %v3446
  %v7551 = vunpack.c.h.b16 %v3446
  %v7552 = vunpack.c.l.b16 %v3447
  %v7553 = vunpack.c.h.b16 %v3447
  %v7554 = vunpack.c.l.b16 %v3448
  %v7555 = vunpack.c.h.b16 %v3448
  %v7556 = vunpack.c.l.b16 %v3449
  %v7557 = vunpack.c.h.b16 %v3449
  %v7558 = vunpack.c.l.b16 %v3450
  %v7559 = vunpack.c.h.b16 %v3450
  %v7560 = vunpack.c.l.b16 %v3451
  %v7561 = vunpack.c.h.b16 %v3451
  %v7562 = vunpack.c.l.b16 %v3452
  %v7563 = vunpack.c.h.b16 %v3452
  %v7564 = vunpack.c.l.b16 %v3453
  %v7565 = vunpack.c.h.b16 %v3453
  %v7566 = vunpack.c.l.b16 %v3454
  %v7567 = vunpack.c.h.b16 %v3454
  %v7568 = vunpack.c.l.b16 %v3455
  %v7569 = vunpack.c.h.b16 %v3455
  %v7570 = vunpack.c.l.b16 %v3456
  %v7571 = vunpack.c.h.b16 %v3456
  %v7572 = vunpack.c.l.b16 %v3457
  %v7573 = vunpack.c.h.b16 %v3457
  %v7574 = vunpack.c.l.b16 %v3458
  %v7575 = vunpack.c.h.b16 %v3458
  %v7576 = vunpack.c.l.b16 %v3459
  %v7577 = vunpack.c.h.b16 %v3459
  %v7578 = vunpack.c.l.b16 %v3460
  %v7579 = vunpack.c.h.b16 %v3460
  %v7580 = vunpack.c.l.b16 %v3461
  %v7581 = vunpack.c.h.b16 %v3461
  %v7582 = vunpack.c.l.b16 %v3462
  %v7583 = vunpack.c.h.b16 %v3462
  %v7584 = vunpack.c.l.b16 %v3463
  %v7585 = vunpack.c.h.b16 %v3463
  %v7586 = vunpack.c.l.b16 %v3464
  %v7587 = vunpack.c.h.b16 %v3464
  %v7588 = vunpack.c.l.b16 %v3465
  %v7589 = vunpack.c.h.b16 %v3465
  %v7590 = vunpack.c.l.b16 %v3466
  %v7591 = vunpack.c.h.b16 %v3466
  %v7592 = vunpack.c.l.b16 %v3467
  %v7593 = vunpack.c.h.b16 %v3467
  %v7594 = vunpack.c.l.b16 %v3468
  %v7595 = vunpack.c.h.b16 %v3468
  %v7596 = vunpack.c.l.b16 %v3469
  %v7597 = vunpack.c.h.b16 %v3469
  %v7598 = vunpack.c.l.b16 %v3470
  %v7599 = vunpack.c.h.b16 %v3470
  %v7600 = vunpack.c.l.b16 %v3471
  %v7601 = vunpack.c.h.b16 %v3471
  %v7602 = vunpack.c.l.b16 %v3472
  %v7603 = vunpack.c.h.b16 %v3472
  %v7604 = vunpack.c.l.b16 %v3473
  %v7605 = vunpack.c.h.b16 %v3473
  %v7606 = vunpack.c.l.b16 %v3474
  %v7607 = vunpack.c.h.b16 %v3474
  %v7608 = vunpack.c.l.b16 %v3475
  %v7609 = vunpack.c.h.b16 %v3475
  %v7610 = vunpack.c.l.b16 %v3476
  %v7611 = vunpack.c.h.b16 %v3476
  %v7612 = vunpack.c.l.b16 %v3477
  %v7613 = vunpack.c.h.b16 %v3477
  %v7614 = vunpack.c.l.b16 %v3478
  %v7615 = vunpack.c.h.b16 %v3478
  %v7616 = vunpack.c.l.b16 %v3479
  %v7617 = vunpack.c.h.b16 %v3479
  %v7618 = vunpack.c.l.b16 %v3480
  %v7619 = vunpack.c.h.b16 %v3480
  %v7620 = vunpack.c.l.b16 %v3481
  %v7621 = vunpack.c.h.b16 %v3481
  %v7622 = vunpack.c.l.b16 %v3482
  %v7623 = vunpack.c.h.b16 %v3482
  %v7624 = vunpack.c.l.b16 %v3483
  %v7625 = vunpack.c.h.b16 %v3483
  %v7626 = vunpack.c.l.b16 %v3484
  %v7627 = vunpack.c.h.b16 %v3484
  %v7628 = vunpack.c.l.b16 %v3485
  %v7629 = vunpack.c.h.b16 %v3485
  %v7630 = vunpack.c.l.b16 %v3486
  %v7631 = vunpack.c.h.b16 %v3486
  %v7632 = vunpack.c.l.b16 %v3487
  %v7633 = vunpack.c.h.b16 %v3487
  %v7634 = vunpack.c.l.b16 %v3488
  %v7635 = vunpack.c.h.b16 %v3488
  %v7636 = vunpack.c.l.b16 %v3489
  %v7637 = vunpack.c.h.b16 %v3489
  %v7638 = vunpack.c.l.b16 %v3490
  %v7639 = vunpack.c.h.b16 %v3490
  %v7640 = vunpack.c.l.b16 %v3491
  %v7641 = vunpack.c.h.b16 %v3491
  %v7642 = vunpack.c.l.b16 %v3492
  %v7643 = vunpack.c.h.b16 %v3492
  %v7644 = vunpack.c.l.b16 %v3493
  %v7645 = vunpack.c.h.b16 %v3493
  %v7646 = vunpack.c.l.b16 %v3494
  %v7647 = vunpack.c.h.b16 %v3494
  %v7648 = vunpack.c.l.b16 %v3495
  %v7649 = vunpack.c.h.b16 %v3495
  %v7650 = vunpack.c.l.b16 %v3496
  %v7651 = vunpack.c.h.b16 %v3496
  %v7652 = vunpack.c.l.b16 %v3497
  %v7653 = vunpack.c.h.b16 %v3497
  %v7654 = vunpack.c.l.b16 %v3498
  %v7655 = vunpack.c.h.b16 %v3498
  %v7656 = vunpack.c.l.b16 %v3499
  %v7657 = vunpack.c.h.b16 %v3499
  %v7658 = vunpack.c.l.b16 %v3500
  %v7659 = vunpack.c.h.b16 %v3500
  %v7660 = vunpack.c.l.b16 %v3501
  %v7661 = vunpack.c.h.b16 %v3501
  %v7662 = vunpack.c.l.b16 %v3502
  %v7663 = vunpack.c.h.b16 %v3502
  %v7664 = vunpack.c.l.b16 %v3503
  %v7665 = vunpack.c.h.b16 %v3503
  %v7666 = vunpack.c.l.b16 %v3504
  %v7667 = vunpack.c.h.b16 %v3504
  %v7668 = vunpack.c.l.b16 %v3505
  %v7669 = vunpack.c.h.b16 %v3505
  %v7670 = vunpack.c.l.b16 %v3506
  %v7671 = vunpack.c.h.b16 %v3506
  %v7672 = vunpack.c.l.b16 %v3507
  %v7673 = vunpack.c.h.b16 %v3507
  %v7674 = vunpack.c.l.b16 %v3508
  %v7675 = vunpack.c.h.b16 %v3508
  %v7676 = vunpack.c.l.b16 %v3509
  %v7677 = vunpack.c.h.b16 %v3509
  %v7678 = vunpack.c.l.b16 %v3510
  %v7679 = vunpack.c.h.b16 %v3510
  %v7680 = vunpack.c.l.b16 %v3511
  %v7681 = vunpack.c.h.b16 %v3511
  %v7682 = vunpack.c.l.b16 %v3512
  %v7683 = vunpack.c.h.b16 %v3512
  %v7684 = vunpack.c.l.b16 %v3513
  %v7685 = vunpack.c.h.b16 %v3513
  %v7686 = vunpack.c.l.b16 %v3514
  %v7687 = vunpack.c.h.b16 %v3514
  %v7688 = vunpack.c.l.b16 %v3515
  %v7689 = vunpack.c.h.b16 %v3515
  %v7690 = vunpack.c.l.b16 %v3516
  %v7691 = vunpack.c.h.b16 %v3516
  %v7692 = vunpack.c.l.b16 %v3517
  %v7693 = vunpack.c.h.b16 %v3517
  %v7694 = vunpack.c.l.b16 %v3518
  %v7695 = vunpack.c.h.b16 %v3518
  %v7696 = vunpack.c.l.b16 %v3519
  %v7697 = vunpack.c.h.b16 %v3519
  %v7698 = vunpack.c.l.b16 %v3520
  %v7699 = vunpack.c.h.b16 %v3520
  %v7700 = vunpack.c.l.b16 %v3521
  %v7701 = vunpack.c.h.b16 %v3521
  %v7702 = vunpack.c.l.b16 %v3522
  %v7703 = vunpack.c.h.b16 %v3522
  %v7704 = vunpack.c.l.b16 %v3523
  %v7705 = vunpack.c.h.b16 %v3523
  %v7706 = vunpack.c.l.b16 %v3524
  %v7707 = vunpack.c.h.b16 %v3524
  %v7708 = vunpack.c.l.b16 %v3525
  %v7709 = vunpack.c.h.b16 %v3525
  %v7710 = vunpack.c.l.b16 %v3526
  %v7711 = vunpack.c.h.b16 %v3526
  %v7712 = vunpack.c.l.b16 %v3527
  %v7713 = vunpack.c.h.b16 %v3527
  %v7714 = vunpack.c.l.b16 %v3528
  %v7715 = vunpack.c.h.b16 %v3528
  %v7716 = vunpack.c.l.b16 %v3529
  %v7717 = vunpack.c.h.b16 %v3529
  %v7718 = vunpack.c.l.b16 %v3530
  %v7719 = vunpack.c.h.b16 %v3530
  %v7720 = vunpack.c.l.b16 %v3531
  %v7721 = vunpack.c.h.b16 %v3531
  %v7722 = vunpack.c.l.b16 %v3532
  %v7723 = vunpack.c.h.b16 %v3532
  %v7724 = vunpack.c.l.b16 %v3533
  %v7725 = vunpack.c.h.b16 %v3533
  %v7726 = vunpack.c.l.b16 %v3534
  %v7727 = vunpack.c.h.b16 %v3534
  %v7728 = vunpack.c.l.b16 %v3535
  %v7729 = vunpack.c.h.b16 %v3535
  %v7730 = vunpack.c.l.b16 %v3536
  %v7731 = vunpack.c.h.b16 %v3536
  %v7732 = vunpack.c.l.b16 %v3537
  %v7733 = vunpack.c.h.b16 %v3537
  %v7734 = vunpack.c.l.b16 %v3538
  %v7735 = vunpack.c.h.b16 %v3538
  %v7736 = vunpack.c.l.b16 %v3539
  %v7737 = vunpack.c.h.b16 %v3539
  %v7738 = vunpack.c.l.b16 %v3540
  %v7739 = vunpack.c.h.b16 %v3540
  %v7740 = vunpack.c.l.b16 %v3541
  %v7741 = vunpack.c.h.b16 %v3541
  %v7742 = vunpack.c.l.b16 %v3542
  %v7743 = vunpack.c.h.b16 %v3542
  %v7744 = vunpack.c.l.b16 %v3543
  %v7745 = vunpack.c.h.b16 %v3543
  %v7746 = vunpack.c.l.b16 %v3544
  %v7747 = vunpack.c.h.b16 %v3544
  %v7748 = vunpack.c.l.b16 %v3545
  %v7749 = vunpack.c.h.b16 %v3545
  %v7750 = vunpack.c.l.b16 %v3546
  %v7751 = vunpack.c.h.b16 %v3546
  %v7752 = vunpack.c.l.b16 %v3547
  %v7753 = vunpack.c.h.b16 %v3547
  %v7754 = vunpack.c.l.b16 %v3548
  %v7755 = vunpack.c.h.b16 %v3548
  %v7756 = vunpack.c.l.b16 %v3549
  %v7757 = vunpack.c.h.b16 %v3549
  %v7758 = vunpack.c.l.b16 %v3550
  %v7759 = vunpack.c.h.b16 %v3550
  %v7760 = vunpack.c.l.b16 %v3551
  %v7761 = vunpack.c.h.b16 %v3551
  %v7762 = vunpack.c.l.b16 %v3552
  %v7763 = vunpack.c.h.b16 %v3552
  %v7764 = vunpack.c.l.b16 %v3553
  %v7765 = vunpack.c.h.b16 %v3553
  %v7766 = vunpack.c.l.b16 %v3554
  %v7767 = vunpack.c.h.b16 %v3554
  %v7768 = vunpack.c.l.b16 %v3555
  %v7769 = vunpack.c.h.b16 %v3555
  %v7770 = vunpack.c.l.b16 %v3556
  %v7771 = vunpack.c.h.b16 %v3556
  %v7772 = vunpack.c.l.b16 %v3557
  %v7773 = vunpack.c.h.b16 %v3557
  %v7774 = vunpack.c.l.b16 %v3558
  %v7775 = vunpack.c.h.b16 %v3558
  %v7776 = vunpack.c.l.b16 %v3559
  %v7777 = vunpack.c.h.b16 %v3559
  %v7778 = vunpack.c.l.b16 %v3560
  %v7779 = vunpack.c.h.b16 %v3560
  %v7780 = vunpack.c.l.b16 %v3561
  %v7781 = vunpack.c.h.b16 %v3561
  %v7782 = vunpack.c.l.b16 %v3562
  %v7783 = vunpack.c.h.b16 %v3562
  %v7784 = vunpack.c.l.b16 %v3563
  %v7785 = vunpack.c.h.b16 %v3563
  %v7786 = vunpack.c.l.b16 %v3564
  %v7787 = vunpack.c.h.b16 %v3564
  %v7788 = vunpack.c.l.b16 %v3565
  %v7789 = vunpack.c.h.b16 %v3565
  %v7790 = vunpack.c.l.b16 %v3566
  %v7791 = vunpack.c.h.b16 %v3566
  %v7792 = vunpack.c.l.b16 %v3567
  %v7793 = vunpack.c.h.b16 %v3567
  %v7794 = vunpack.c.l.b16 %v3568
  %v7795 = vunpack.c.h.b16 %v3568
  %v7796 = vunpack.c.l.b16 %v3569
  %v7797 = vunpack.c.h.b16 %v3569
  %v7798 = vunpack.c.l.b16 %v3570
  %v7799 = vunpack.c.h.b16 %v3570
  %v7800 = vunpack.c.l.b16 %v3571
  %v7801 = vunpack.c.h.b16 %v3571
  %v7802 = vunpack.c.l.b16 %v3572
  %v7803 = vunpack.c.h.b16 %v3572
  %v7804 = vunpack.c.l.b16 %v3573
  %v7805 = vunpack.c.h.b16 %v3573
  %v7806 = vunpack.c.l.b16 %v3574
  %v7807 = vunpack.c.h.b16 %v3574
  %v7808 = vunpack.c.l.b16 %v3575
  %v7809 = vunpack.c.h.b16 %v3575
  %v7810 = vunpack.c.l.b16 %v3576
  %v7811 = vunpack.c.h.b16 %v3576
  %v7812 = vunpack.c.l.b16 %v3577
  %v7813 = vunpack.c.h.b16 %v3577
  %v7814 = vunpack.c.l.b16 %v3578
  %v7815 = vunpack.c.h.b16 %v3578
  %v7816 = vunpack.c.l.b16 %v3579
  %v7817 = vunpack.c.h.b16 %v3579
  %v7818 = vunpack.c.l.b16 %v3580
  %v7819 = vunpack.c.h.b16 %v3580
  %v7820 = vunpack.c.l.b16 %v3581
  %v7821 = vunpack.c.h.b16 %v3581
  %v7822 = vunpack.c.l.b16 %v3582
  %v7823 = vunpack.c.h.b16 %v3582
  %v7824 = vunpack.c.l.b16 %v3583
  %v7825 = vunpack.c.h.b16 %v3583
  %v7826 = vunpack.c.l.b16 %v3584
  %v7827 = vunpack.c.h.b16 %v3584
  %v7828 = vunpack.c.l.b16 %v3585
  %v7829 = vunpack.c.h.b16 %v3585
  %v7830 = vunpack.c.l.b16 %v3586
  %v7831 = vunpack.c.h.b16 %v3586
  %v7832 = vunpack.c.l.b16 %v3587
  %v7833 = vunpack.c.h.b16 %v3587
  %v7834 = vunpack.c.l.b16 %v3588
  %v7835 = vunpack.c.h.b16 %v3588
  %v7836 = vunpack.c.l.b16 %v3589
  %v7837 = vunpack.c.h.b16 %v3589
  %v7838 = vunpack.c.l.b16 %v3590
  %v7839 = vunpack.c.h.b16 %v3590
  %v7840 = vunpack.c.l.b16 %v3591
  %v7841 = vunpack.c.h.b16 %v3591
  %v7842 = vunpack.c.l.b16 %v3592
  %v7843 = vunpack.c.h.b16 %v3592
  %v7844 = vunpack.c.l.b16 %v3593
  %v7845 = vunpack.c.h.b16 %v3593
  %v7846 = vunpack.c.l.b16 %v3594
  %v7847 = vunpack.c.h.b16 %v3594
  %v7848 = vunpack.c.l.b16 %v3595
  %v7849 = vunpack.c.h.b16 %v3595
  %v7850 = vunpack.c.l.b16 %v3596
  %v7851 = vunpack.c.h.b16 %v3596
  %v7852 = vunpack.c.l.b16 %v3597
  %v7853 = vunpack.c.h.b16 %v3597
  %v7854 = vunpack.c.l.b16 %v3598
  %v7855 = vunpack.c.h.b16 %v3598
  %v7856 = vunpack.c.l.b16 %v3599
  %v7857 = vunpack.c.h.b16 %v3599
  %v7858 = vunpack.c.l.b16 %v3600
  %v7859 = vunpack.c.h.b16 %v3600
  %v7860 = vunpack.c.l.b16 %v3601
  %v7861 = vunpack.c.h.b16 %v3601
  %v7862 = vunpack.c.l.b16 %v3602
  %v7863 = vunpack.c.h.b16 %v3602
  %v7864 = vunpack.c.l.b16 %v3603
  %v7865 = vunpack.c.h.b16 %v3603
  %v7866 = vunpack.c.l.b16 %v3604
  %v7867 = vunpack.c.h.b16 %v3604
  %v7868 = vunpack.c.l.b16 %v3605
  %v7869 = vunpack.c.h.b16 %v3605
  %v7870 = vunpack.c.l.b16 %v3606
  %v7871 = vunpack.c.h.b16 %v3606
  %v7872 = vunpack.c.l.b16 %v3607
  %v7873 = vunpack.c.h.b16 %v3607
  %v7874 = vunpack.c.l.b16 %v3608
  %v7875 = vunpack.c.h.b16 %v3608
  %v7876 = vunpack.c.l.b16 %v3609
  %v7877 = vunpack.c.h.b16 %v3609
  %v7878 = vunpack.c.l.b16 %v3610
  %v7879 = vunpack.c.h.b16 %v3610
  %v7880 = vunpack.c.l.b16 %v3611
  %v7881 = vunpack.c.h.b16 %v3611
  %v7882 = vunpack.c.l.b16 %v3612
  %v7883 = vunpack.c.h.b16 %v3612
  %v7884 = vunpack.c.l.b16 %v3613
  %v7885 = vunpack.c.h.b16 %v3613
  %v7886 = vunpack.c.l.b16 %v3614
  %v7887 = vunpack.c.h.b16 %v3614
  %v7888 = vunpack.c.l.b16 %v3615
  %v7889 = vunpack.c.h.b16 %v3615
  %v7890 = vunpack.c.l.b16 %v3616
  %v7891 = vunpack.c.h.b16 %v3616
  %v7892 = vunpack.c.l.b16 %v3617
  %v7893 = vunpack.c.h.b16 %v3617
  %v7894 = vunpack.c.l.b16 %v3618
  %v7895 = vunpack.c.h.b16 %v3618
  %v7896 = vunpack.c.l.b16 %v3619
  %v7897 = vunpack.c.h.b16 %v3619
  %v7898 = vunpack.c.l.b16 %v3620
  %v7899 = vunpack.c.h.b16 %v3620
  %v7900 = vunpack.c.l.b16 %v3621
  %v7901 = vunpack.c.h.b16 %v3621
  %v7902 = vunpack.c.l.b16 %v3622
  %v7903 = vunpack.c.h.b16 %v3622
  %v7904 = vunpack.c.l.b16 %v3623
  %v7905 = vunpack.c.h.b16 %v3623
  %v7906 = vunpack.c.l.b16 %v3624
  %v7907 = vunpack.c.h.b16 %v3624
  %v7908 = vunpack.c.l.b16 %v3625
  %v7909 = vunpack.c.h.b16 %v3625
  %v7910 = vunpack.c.l.b16 %v3626
  %v7911 = vunpack.c.h.b16 %v3626
  %v7912 = vunpack.c.l.b16 %v3627
  %v7913 = vunpack.c.h.b16 %v3627
  %v7914 = vunpack.c.l.b16 %v3628
  %v7915 = vunpack.c.h.b16 %v3628
  %v7916 = vunpack.c.l.b16 %v3629
  %v7917 = vunpack.c.h.b16 %v3629
  %v7918 = vunpack.c.l.b16 %v3630
  %v7919 = vunpack.c.h.b16 %v3630
  %v7920 = vunpack.c.l.b16 %v3631
  %v7921 = vunpack.c.h.b16 %v3631
  %v7922 = vunpack.c.l.b16 %v3632
  %v7923 = vunpack.c.h.b16 %v3632
  %v7924 = vunpack.c.l.b16 %v3633
  %v7925 = vunpack.c.h.b16 %v3633
  %v7926 = vunpack.c.l.b16 %v3634
  %v7927 = vunpack.c.h.b16 %v3634
  %v7928 = vunpack.c.l.b16 %v3635
  %v7929 = vunpack.c.h.b16 %v3635
  %v7930 = vunpack.c.l.b16 %v3636
  %v7931 = vunpack.c.h.b16 %v3636
  %v7932 = vunpack.c.l.b16 %v3637
  %v7933 = vunpack.c.h.b16 %v3637
  %v7934 = vunpack.c.l.b16 %v3638
  %v7935 = vunpack.c.h.b16 %v3638
  %v7936 = vunpack.c.l.b16 %v3639
  %v7937 = vunpack.c.h.b16 %v3639
  %v7938 = vunpack.c.l.b16 %v3640
  %v7939 = vunpack.c.h.b16 %v3640
  %v7940 = vunpack.c.l.b16 %v3641
  %v7941 = vunpack.c.h.b16 %v3641
  %v7942 = vunpack.c.l.b16 %v3642
  %v7943 = vunpack.c.h.b16 %v3642
  %v7944 = vunpack.c.l.b16 %v3643
  %v7945 = vunpack.c.h.b16 %v3643
  %v7946 = vunpack.c.l.b16 %v3644
  %v7947 = vunpack.c.h.b16 %v3644
  %v7948 = vunpack.c.l.b16 %v3645
  %v7949 = vunpack.c.h.b16 %v3645
  %v7950 = vunpack.c.l.b16 %v3646
  %v7951 = vunpack.c.h.b16 %v3646
  %v7952 = vunpack.c.l.b16 %v3647
  %v7953 = vunpack.c.h.b16 %v3647
  %v7954 = vunpack.c.l.b16 %v3648
  %v7955 = vunpack.c.h.b16 %v3648
  %v7956 = vunpack.c.l.b16 %v3649
  %v7957 = vunpack.c.h.b16 %v3649
  %v7958 = vunpack.c.l.b16 %v3650
  %v7959 = vunpack.c.h.b16 %v3650
  %v7960 = vunpack.c.l.b16 %v3651
  %v7961 = vunpack.c.h.b16 %v3651
  %v7962 = vunpack.c.l.b16 %v3652
  %v7963 = vunpack.c.h.b16 %v3652
  %v7964 = vunpack.c.l.b16 %v3653
  %v7965 = vunpack.c.h.b16 %v3653
  %v7966 = vunpack.c.l.b16 %v3654
  %v7967 = vunpack.c.h.b16 %v3654
  %v7968 = vunpack.c.l.b16 %v3655
  %v7969 = vunpack.c.h.b16 %v3655
  %v7970 = vunpack.c.l.b16 %v3656
  %v7971 = vunpack.c.h.b16 %v3656
  %v7972 = vunpack.c.l.b16 %v3657
  %v7973 = vunpack.c.h.b16 %v3657
  %v7974 = vunpack.c.l.b16 %v3658
  %v7975 = vunpack.c.h.b16 %v3658
  %v7976 = vunpack.c.l.b16 %v3659
  %v7977 = vunpack.c.h.b16 %v3659
  %v7978 = vunpack.c.l.b16 %v3660
  %v7979 = vunpack.c.h.b16 %v3660
  %v7980 = vunpack.c.l.b16 %v3661
  %v7981 = vunpack.c.h.b16 %v3661
  %v7982 = vunpack.c.l.b16 %v3662
  %v7983 = vunpack.c.h.b16 %v3662
  %v7984 = vunpack.c.l.b16 %v3663
  %v7985 = vunpack.c.h.b16 %v3663
  %v7986 = vunpack.c.l.b16 %v3664
  %v7987 = vunpack.c.h.b16 %v3664
  %v7988 = vunpack.c.l.b16 %v3665
  %v7989 = vunpack.c.h.b16 %v3665
  %v7990 = vunpack.c.l.b16 %v3666
  %v7991 = vunpack.c.h.b16 %v3666
  %v7992 = vunpack.c.l.b16 %v3667
  %v7993 = vunpack.c.h.b16 %v3667
  %v7994 = vunpack.c.l.b16 %v3668
  %v7995 = vunpack.c.h.b16 %v3668
  %v7996 = vunpack.c.l.b16 %v3669
  %v7997 = vunpack.c.h.b16 %v3669
  %v7998 = vunpack.c.l.b16 %v3670
  %v7999 = vunpack.c.h.b16 %v3670
  %v8000 = vunpack.c.l.b16 %v3671
  %v8001 = vunpack.c.h.b16 %v3671
  %v8002 = vunpack.c.l.b16 %v3672
  %v8003 = vunpack.c.h.b16 %v3672
  %v8004 = vunpack.c.l.b16 %v3673
  %v8005 = vunpack.c.h.b16 %v3673
  %v8006 = vunpack.c.l.b16 %v3674
  %v8007 = vunpack.c.h.b16 %v3674
  %v8008 = vunpack.c.l.b16 %v3675
  %v8009 = vunpack.c.h.b16 %v3675
  %v8010 = vunpack.c.l.b16 %v3676
  %v8011 = vunpack.c.h.b16 %v3676
  %v8012 = vunpack.c.l.b16 %v3677
  %v8013 = vunpack.c.h.b16 %v3677
  %v8014 = vunpack.c.l.b16 %v3678
  %v8015 = vunpack.c.h.b16 %v3678
  %v8016 = vunpack.c.l.b16 %v3679
  %v8017 = vunpack.c.h.b16 %v3679
  %v8018 = vunpack.c.l.b16 %v3680
  %v8019 = vunpack.c.h.b16 %v3680
  %v8020 = vunpack.c.l.b16 %v3681
  %v8021 = vunpack.c.h.b16 %v3681
  %v8022 = vunpack.c.l.b16 %v3682
  %v8023 = vunpack.c.h.b16 %v3682
  %v8024 = vunpack.c.l.b16 %v3683
  %v8025 = vunpack.c.h.b16 %v3683
  %v8026 = vunpack.c.l.b16 %v3684
  %v8027 = vunpack.c.h.b16 %v3684
  %v8028 = vunpack.c.l.b16 %v3685
  %v8029 = vunpack.c.h.b16 %v3685
  %v8030 = vunpack.c.l.b16 %v3686
  %v8031 = vunpack.c.h.b16 %v3686
  %v8032 = vunpack.c.l.b16 %v3687
  %v8033 = vunpack.c.h.b16 %v3687
  %v8034 = vunpack.c.l.b16 %v3688
  %v8035 = vunpack.c.h.b16 %v3688
  %v8036 = vunpack.c.l.b16 %v3689
  %v8037 = vunpack.c.h.b16 %v3689
  %v8038 = vunpack.c.l.b16 %v3690
  %v8039 = vunpack.c.h.b16 %v3690
  %v8040 = vunpack.c.l.b16 %v3691
  %v8041 = vunpack.c.h.b16 %v3691
  %v8042 = vunpack.c.l.b16 %v3692
  %v8043 = vunpack.c.h.b16 %v3692
  %v8044 = vunpack.c.l.b16 %v3693
  %v8045 = vunpack.c.h.b16 %v3693
  %v8046 = vunpack.c.l.b16 %v3694
  %v8047 = vunpack.c.h.b16 %v3694
  %v8048 = vunpack.c.l.b16 %v3695
  %v8049 = vunpack.c.h.b16 %v3695
  %v8050 = vunpack.c.l.b16 %v3696
  %v8051 = vunpack.c.h.b16 %v3696
  %v8052 = vunpack.c.l.b16 %v3697
  %v8053 = vunpack.c.h.b16 %v3697
  %v8054 = vunpack.c.l.b16 %v3698
  %v8055 = vunpack.c.h.b16 %v3698
  %v8056 = vunpack.c.l.b16 %v3699
  %v8057 = vunpack.c.h.b16 %v3699
  %v8058 = vunpack.c.l.b16 %v3700
  %v8059 = vunpack.c.h.b16 %v3700
  %v8060 = vunpack.c.l.b16 %v3701
  %v8061 = vunpack.c.h.b16 %v3701
  %v8062 = vunpack.c.l.b16 %v3702
  %v8063 = vunpack.c.h.b16 %v3702
  %v8064 = vunpack.c.l.b16 %v3703
  %v8065 = vunpack.c.h.b16 %v3703
  %v8066 = vunpack.c.l.b16 %v3704
  %v8067 = vunpack.c.h.b16 %v3704
  %v8068 = vunpack.c.l.b16 %v3705
  %v8069 = vunpack.c.h.b16 %v3705
  %v8070 = vunpack.c.l.b16 %v3706
  %v8071 = vunpack.c.h.b16 %v3706
  %v8072 = vunpack.c.l.b16 %v3707
  %v8073 = vunpack.c.h.b16 %v3707
  %v8074 = vunpack.c.l.b16 %v3708
  %v8075 = vunpack.c.h.b16 %v3708
  %v8076 = vunpack.c.l.b16 %v3709
  %v8077 = vunpack.c.h.b16 %v3709
  %v8078 = vunpack.c.l.b16 %v3710
  %v8079 = vunpack.c.h.b16 %v3710
  %v8080 = vunpack.c.l.b16 %v3711
  %v8081 = vunpack.c.h.b16 %v3711
  %v8082 = vunpack.c.l.b16 %v3712
  %v8083 = vunpack.c.h.b16 %v3712
  %v8084 = vunpack.c.l.b16 %v3713
  %v8085 = vunpack.c.h.b16 %v3713
  %v8086 = vunpack.c.l.b16 %v3714
  %v8087 = vunpack.c.h.b16 %v3714
  %v8088 = vunpack.c.l.b16 %v3715
  %v8089 = vunpack.c.h.b16 %v3715
  %v8090 = vunpack.c.l.b16 %v3716
  %v8091 = vunpack.c.h.b16 %v3716
  %v8092 = vunpack.c.l.b16 %v3717
  %v8093 = vunpack.c.h.b16 %v3717
  %v8094 = vunpack.c.l.b16 %v3718
  %v8095 = vunpack.c.h.b16 %v3718
  %v8096 = vunpack.c.l.b16 %v3719
  %v8097 = vunpack.c.h.b16 %v3719
  %v8098 = vunpack.c.l.b16 %v3720
  %v8099 = vunpack.c.h.b16 %v3720
  %v8100 = vunpack.c.l.b16 %v3721
  %v8101 = vunpack.c.h.b16 %v3721
  %v8102 = vunpack.c.l.b16 %v3722
  %v8103 = vunpack.c.h.b16 %v3722
  %v8104 = vunpack.c.l.b16 %v3723
  %v8105 = vunpack.c.h.b16 %v3723
  %v8106 = vunpack.c.l.b16 %v3724
  %v8107 = vunpack.c.h.b16 %v3724
  %v8108 = vunpack.c.l.b16 %v3725
  %v8109 = vunpack.c.h.b16 %v3725
  %v8110 = vunpack.c.l.b16 %v3726
  %v8111 = vunpack.c.h.b16 %v3726
  %v8112 = vunpack.c.l.b16 %v3727
  %v8113 = vunpack.c.h.b16 %v3727
  %v8114 = vunpack.c.l.b16 %v3728
  %v8115 = vunpack.c.h.b16 %v3728
  %v8116 = vunpack.c.l.b16 %v3729
  %v8117 = vunpack.c.h.b16 %v3729
  %v8118 = vunpack.c.l.b16 %v3730
  %v8119 = vunpack.c.h.b16 %v3730
  %v8120 = vunpack.c.l.b16 %v3731
  %v8121 = vunpack.c.h.b16 %v3731
  %v8122 = vunpack.c.l.b16 %v3732
  %v8123 = vunpack.c.h.b16 %v3732
  %v8124 = vunpack.c.l.b16 %v3733
  %v8125 = vunpack.c.h.b16 %v3733
  %v8126 = vunpack.c.l.b16 %v3734
  %v8127 = vunpack.c.h.b16 %v3734
  %v8128 = vunpack.c.l.b16 %v3735
  %v8129 = vunpack.c.h.b16 %v3735
  %v8130 = vunpack.c.l.b16 %v3736
  %v8131 = vunpack.c.h.b16 %v3736
  %v8132 = vunpack.c.l.b16 %v3737
  %v8133 = vunpack.c.h.b16 %v3737
  %v8134 = vunpack.c.l.b16 %v3738
  %v8135 = vunpack.c.h.b16 %v3738
  %v8136 = vunpack.c.l.b16 %v3739
  %v8137 = vunpack.c.h.b16 %v3739
  %v8138 = vunpack.c.l.b16 %v3740
  %v8139 = vunpack.c.h.b16 %v3740
  %v8140 = vunpack.c.l.b16 %v3741
  %v8141 = vunpack.c.h.b16 %v3741
  %v8142 = vunpack.c.l.b16 %v3742
  %v8143 = vunpack.c.h.b16 %v3742
  %v8144 = vunpack.c.l.b16 %v3743
  %v8145 = vunpack.c.h.b16 %v3743
  %v8146 = vunpack.c.l.b16 %v3744
  %v8147 = vunpack.c.h.b16 %v3744
  %v8148 = vunpack.c.l.b16 %v3745
  %v8149 = vunpack.c.h.b16 %v3745
  %v8150 = vunpack.c.l.b16 %v3746
  %v8151 = vunpack.c.h.b16 %v3746
  %v8152 = vunpack.c.l.b16 %v3747
  %v8153 = vunpack.c.h.b16 %v3747
  %v8154 = vunpack.c.l.b16 %v3748
  %v8155 = vunpack.c.h.b16 %v3748
  %v8156 = vunpack.c.l.b16 %v3749
  %v8157 = vunpack.c.h.b16 %v3749
  %v8158 = vunpack.c.l.b16 %v3750
  %v8159 = vunpack.c.h.b16 %v3750
  %v8160 = vunpack.c.l.b16 %v3751
  %v8161 = vunpack.c.h.b16 %v3751
  %v8162 = vunpack.c.l.b16 %v3752
  %v8163 = vunpack.c.h.b16 %v3752
  %v8164 = vunpack.c.l.b16 %v3753
  %v8165 = vunpack.c.h.b16 %v3753
  %v8166 = vunpack.c.l.b16 %v3754
  %v8167 = vunpack.c.h.b16 %v3754
  %v8168 = vunpack.c.l.b16 %v3755
  %v8169 = vunpack.c.h.b16 %v3755
  %v8170 = vunpack.c.l.b16 %v3756
  %v8171 = vunpack.c.h.b16 %v3756
  %v8172 = vunpack.c.l.b16 %v3757
  %v8173 = vunpack.c.h.b16 %v3757
  %v8174 = vunpack.c.l.b16 %v3758
  %v8175 = vunpack.c.h.b16 %v3758
  %v8176 = vunpack.c.l.b16 %v3759
  %v8177 = vunpack.c.h.b16 %v3759
  %v8178 = vunpack.c.l.b16 %v3760
  %v8179 = vunpack.c.h.b16 %v3760
  %v8180 = vunpack.c.l.b16 %v3761
  %v8181 = vunpack.c.h.b16 %v3761
  %v8182 = vunpack.c.l.b16 %v3762
  %v8183 = vunpack.c.h.b16 %v3762
  %v8184 = vunpack.c.l.b16 %v3763
  %v8185 = vunpack.c.h.b16 %v3763
  %v8186 = vunpack.c.l.b16 %v3764
  %v8187 = vunpack.c.h.b16 %v3764
  %v8188 = vunpack.c.l.b16 %v3765
  %v8189 = vunpack.c.h.b16 %v3765
  %v8190 = vunpack.c.l.b16 %v3766
  %v8191 = vunpack.c.h.b16 %v3766
  %v8192 = vunpack.c.l.b16 %v3767
  %v8193 = vunpack.c.h.b16 %v3767
  %v8194 = vunpack.c.l.b16 %v3768
  %v8195 = vunpack.c.h.b16 %v3768
  %v8196 = vunpack.c.l.b16 %v3769
  %v8197 = vunpack.c.h.b16 %v3769
  %v8198 = vunpack.c.l.b16 %v3770
  %v8199 = vunpack.c.h.b16 %v3770
  %v8200 = vunpack.c.l.b16 %v3771
  %v8201 = vunpack.c.h.b16 %v3771
  %v8202 = vunpack.c.l.b16 %v3772
  %v8203 = vunpack.c.h.b16 %v3772
  %v8204 = vunpack.c.l.b16 %v3773
  %v8205 = vunpack.c.h.b16 %v3773
  %v8206 = vunpack.c.l.b16 %v3774
  %v8207 = vunpack.c.h.b16 %v3774
  %v8208 = vunpack.c.l.b16 %v3775
  %v8209 = vunpack.c.h.b16 %v3775
  %v8210 = vunpack.c.l.b16 %v3776
  %v8211 = vunpack.c.h.b16 %v3776
  %v8212 = vunpack.c.l.b16 %v3777
  %v8213 = vunpack.c.h.b16 %v3777
  %v8214 = vunpack.c.l.b16 %v3778
  %v8215 = vunpack.c.h.b16 %v3778
  %v8216 = vunpack.c.l.b16 %v3779
  %v8217 = vunpack.c.h.b16 %v3779
  %v8218 = vunpack.c.l.b16 %v3780
  %v8219 = vunpack.c.h.b16 %v3780
  %v8220 = vunpack.c.l.b16 %v3781
  %v8221 = vunpack.c.h.b16 %v3781
  %v8222 = vunpack.c.l.b16 %v3782
  %v8223 = vunpack.c.h.b16 %v3782
  %v8224 = vunpack.c.l.b16 %v3783
  %v8225 = vunpack.c.h.b16 %v3783
  %v8226 = vunpack.c.l.b16 %v3784
  %v8227 = vunpack.c.h.b16 %v3784
  %v8228 = vunpack.c.l.b16 %v3785
  %v8229 = vunpack.c.h.b16 %v3785
  %v8230 = vunpack.c.l.b16 %v3786
  %v8231 = vunpack.c.h.b16 %v3786
  %v8232 = vunpack.c.l.b16 %v3787
  %v8233 = vunpack.c.h.b16 %v3787
  %v8234 = vunpack.c.l.b16 %v3788
  %v8235 = vunpack.c.h.b16 %v3788
  %v8236 = vunpack.c.l.b16 %v3789
  %v8237 = vunpack.c.h.b16 %v3789
  %v8238 = vunpack.c.l.b16 %v3790
  %v8239 = vunpack.c.h.b16 %v3790
  %v8240 = vunpack.c.l.b16 %v3791
  %v8241 = vunpack.c.h.b16 %v3791
  %v8242 = vunpack.c.l.b16 %v3792
  %v8243 = vunpack.c.h.b16 %v3792
  %v8244 = vunpack.c.l.b16 %v3793
  %v8245 = vunpack.c.h.b16 %v3793
  %v8246 = vunpack.c.l.b16 %v3794
  %v8247 = vunpack.c.h.b16 %v3794
  %v8248 = vunpack.c.l.b16 %v3795
  %v8249 = vunpack.c.h.b16 %v3795
  %v8250 = vunpack.c.l.b16 %v3796
  %v8251 = vunpack.c.h.b16 %v3796
  %v8252 = vunpack.c.l.b16 %v3797
  %v8253 = vunpack.c.h.b16 %v3797
  %v8254 = vunpack.c.l.b16 %v3798
  %v8255 = vunpack.c.h.b16 %v3798
  %v8256 = vunpack.c.l.b16 %v3799
  %v8257 = vunpack.c.h.b16 %v3799
  %v8258 = vunpack.c.l.b16 %v3800
  %v8259 = vunpack.c.h.b16 %v3800
  %v8260 = vunpack.c.l.b16 %v3801
  %v8261 = vunpack.c.h.b16 %v3801
  %v8262 = vunpack.c.l.b16 %v3802
  %v8263 = vunpack.c.h.b16 %v3802
  %v8264 = vunpack.c.l.b16 %v3803
  %v8265 = vunpack.c.h.b16 %v3803
  %v8266 = vunpack.c.l.b16 %v3804
  %v8267 = vunpack.c.h.b16 %v3804
  %v8268 = vunpack.c.l.b16 %v3805
  %v8269 = vunpack.c.h.b16 %v3805
  %v8270 = vunpack.c.l.b16 %v3806
  %v8271 = vunpack.c.h.b16 %v3806
  %v8272 = vunpack.c.l.b16 %v3807
  %v8273 = vunpack.c.h.b16 %v3807
  %v8274 = vunpack.c.l.b16 %v3808
  %v8275 = vunpack.c.h.b16 %v3808
  %v8276 = vunpack.c.l.b16 %v3809
  %v8277 = vunpack.c.h.b16 %v3809
  %v8278 = vunpack.c.l.b16 %v3810
  %v8279 = vunpack.c.h.b16 %v3810
  %v8280 = vunpack.c.l.b16 %v3811
  %v8281 = vunpack.c.h.b16 %v3811
  %v8282 = vunpack.c.l.b16 %v3812
  %v8283 = vunpack.c.h.b16 %v3812
  %v8284 = vunpack.c.l.b16 %v3813
  %v8285 = vunpack.c.h.b16 %v3813
  %v8286 = vunpack.c.l.b16 %v3814
  %v8287 = vunpack.c.h.b16 %v3814
  %v8288 = vunpack.c.l.b16 %v3815
  %v8289 = vunpack.c.h.b16 %v3815
  %v8290 = vunpack.c.l.b16 %v3816
  %v8291 = vunpack.c.h.b16 %v3816
  %v8292 = vunpack.c.l.b16 %v3817
  %v8293 = vunpack.c.h.b16 %v3817
  %v8294 = vunpack.c.l.b16 %v3818
  %v8295 = vunpack.c.h.b16 %v3818
  %v8296 = vunpack.c.l.b16 %v3819
  %v8297 = vunpack.c.h.b16 %v3819
  %v8298 = vunpack.c.l.b16 %v3820
  %v8299 = vunpack.c.h.b16 %v3820
  %v8300 = vunpack.c.l.b16 %v3821
  %v8301 = vunpack.c.h.b16 %v3821
  %v8302 = vunpack.c.l.b16 %v3822
  %v8303 = vunpack.c.h.b16 %v3822
  %v8304 = vunpack.c.l.b16 %v3823
  %v8305 = vunpack.c.h.b16 %v3823
  %v8306 = vunpack.c.l.b16 %v3824
  %v8307 = vunpack.c.h.b16 %v3824
  %v8308 = vunpack.c.l.b16 %v3825
  %v8309 = vunpack.c.h.b16 %v3825
  %v8310 = vunpack.c.l.b16 %v3826
  %v8311 = vunpack.c.h.b16 %v3826
  %v8312 = vunpack.c.l.b16 %v3827
  %v8313 = vunpack.c.h.b16 %v3827
  %v8314 = vunpack.c.l.b16 %v3828
  %v8315 = vunpack.c.h.b16 %v3828
  %v8316 = vunpack.c.l.b16 %v3829
  %v8317 = vunpack.c.h.b16 %v3829
  %v8318 = vunpack.c.l.b16 %v3830
  %v8319 = vunpack.c.h.b16 %v3830
  %v8320 = vunpack.c.l.b16 %v3831
  %v8321 = vunpack.c.h.b16 %v3831
  %v8322 = vunpack.c.l.b16 %v3832
  %v8323 = vunpack.c.h.b16 %v3832
  %v8324 = vunpack.c.l.b16 %v3833
  %v8325 = vunpack.c.h.b16 %v3833
  %v8326 = vunpack.c.l.b16 %v3834
  %v8327 = vunpack.c.h.b16 %v3834
  %v8328 = vunpack.c.l.b16 %v3835
  %v8329 = vunpack.c.h.b16 %v3835
  %v8330 = vunpack.c.l.b16 %v3836
  %v8331 = vunpack.c.h.b16 %v3836
  %v8332 = vunpack.c.l.b16 %v3837
  %v8333 = vunpack.c.h.b16 %v3837
  %v8334 = vunpack.c.l.b16 %v3838
  %v8335 = vunpack.c.h.b16 %v3838
  %v8336 = vunpack.c.l.b16 %v3839
  %v8337 = vunpack.c.h.b16 %v3839
  %v8338 = vunpack.c.l.b16 %v3840
  %v8339 = vunpack.c.h.b16 %v3840
  %v8340 = vunpack.c.l.b16 %v3841
  %v8341 = vunpack.c.h.b16 %v3841
  %v8342 = vunpack.c.l.b16 %v3842
  %v8343 = vunpack.c.h.b16 %v3842
  %v8344 = vunpack.c.l.b16 %v3843
  %v8345 = vunpack.c.h.b16 %v3843
  %v8346 = vunpack.c.l.b16 %v3844
  %v8347 = vunpack.c.h.b16 %v3844
  %v8348 = vunpack.c.l.b16 %v3845
  %v8349 = vunpack.c.h.b16 %v3845
  %v8350 = vunpack.c.l.b16 %v3846
  %v8351 = vunpack.c.h.b16 %v3846
  %v8352 = vunpack.c.l.b16 %v3847
  %v8353 = vunpack.c.h.b16 %v3847
  %v8354 = vunpack.c.l.b16 %v3848
  %v8355 = vunpack.c.h.b16 %v3848
  %v8356 = vunpack.c.l.b16 %v3849
  %v8357 = vunpack.c.h.b16 %v3849
  %v8358 = vunpack.c.l.b16 %v3850
  %v8359 = vunpack.c.h.b16 %v3850
  %v8360 = vunpack.c.l.b16 %v3851
  %v8361 = vunpack.c.h.b16 %v3851
  %v8362 = vunpack.c.l.b16 %v3852
  %v8363 = vunpack.c.h.b16 %v3852
  %v8364 = vunpack.c.l.b16 %v3853
  %v8365 = vunpack.c.h.b16 %v3853
  %v8366 = vunpack.c.l.b16 %v3854
  %v8367 = vunpack.c.h.b16 %v3854
  %v8368 = vunpack.c.l.b16 %v3855
  %v8369 = vunpack.c.h.b16 %v3855
  %v8370 = vunpack.c.l.b16 %v3856
  %v8371 = vunpack.c.h.b16 %v3856
  %v8372 = vunpack.c.l.b16 %v3857
  %v8373 = vunpack.c.h.b16 %v3857
  %v8374 = vunpack.c.l.b16 %v3858
  %v8375 = vunpack.c.h.b16 %v3858
  %v8376 = vunpack.c.l.b16 %v3859
  %v8377 = vunpack.c.h.b16 %v3859
  %v8378 = vunpack.c.l.b16 %v3860
  %v8379 = vunpack.c.h.b16 %v3860
  %v8380 = vunpack.c.l.b16 %v3861
  %v8381 = vunpack.c.h.b16 %v3861
  %v8382 = vunpack.c.l.b16 %v3862
  %v8383 = vunpack.c.h.b16 %v3862
  %v8384 = vunpack.c.l.b16 %v3863
  %v8385 = vunpack.c.h.b16 %v3863
  %v8386 = vunpack.c.l.b16 %v3864
  %v8387 = vunpack.c.h.b16 %v3864
  %v8388 = vunpack.c.l.b16 %v3865
  %v8389 = vunpack.c.h.b16 %v3865
  %v8390 = vunpack.c.l.b16 %v3866
  %v8391 = vunpack.c.h.b16 %v3866
  %v8392 = vunpack.c.l.b16 %v3867
  %v8393 = vunpack.c.h.b16 %v3867
  %v8394 = vunpack.c.l.b16 %v3868
  %v8395 = vunpack.c.h.b16 %v3868
  %v8396 = vunpack.c.l.b16 %v3869
  %v8397 = vunpack.c.h.b16 %v3869
  %v8398 = vunpack.c.l.b16 %v3870
  %v8399 = vunpack.c.h.b16 %v3870
  %v8400 = vunpack.c.l.b16 %v3871
  %v8401 = vunpack.c.h.b16 %v3871
  %v8402 = vunpack.c.l.b16 %v3872
  %v8403 = vunpack.c.h.b16 %v3872
  %v8404 = vunpack.c.l.b16 %v3873
  %v8405 = vunpack.c.h.b16 %v3873
  %v8406 = vunpack.c.l.b16 %v3874
  %v8407 = vunpack.c.h.b16 %v3874
  %v8408 = vunpack.c.l.b16 %v3875
  %v8409 = vunpack.c.h.b16 %v3875
  %v8410 = vunpack.c.l.b16 %v3876
  %v8411 = vunpack.c.h.b16 %v3876
  %v8412 = vunpack.c.l.b16 %v3877
  %v8413 = vunpack.c.h.b16 %v3877
  %v8414 = vunpack.c.l.b16 %v3878
  %v8415 = vunpack.c.h.b16 %v3878
  %v8416 = vunpack.c.l.b16 %v3879
  %v8417 = vunpack.c.h.b16 %v3879
  %v8418 = vunpack.c.l.b16 %v3880
  %v8419 = vunpack.c.h.b16 %v3880
  %v8420 = vunpack.c.l.b16 %v3881
  %v8421 = vunpack.c.h.b16 %v3881
  %v8422 = vunpack.c.l.b16 %v3882
  %v8423 = vunpack.c.h.b16 %v3882
  %v8424 = vunpack.c.l.b16 %v3883
  %v8425 = vunpack.c.h.b16 %v3883
  %v8426 = vunpack.c.l.b16 %v3884
  %v8427 = vunpack.c.h.b16 %v3884
  %v8428 = vunpack.c.l.b16 %v3885
  %v8429 = vunpack.c.h.b16 %v3885
  %v8430 = vunpack.c.l.b16 %v3886
  %v8431 = vunpack.c.h.b16 %v3886
  %v8432 = vunpack.c.l.b16 %v3887
  %v8433 = vunpack.c.h.b16 %v3887
  %v8434 = vunpack.c.l.b16 %v3888
  %v8435 = vunpack.c.h.b16 %v3888
  %v8436 = vunpack.c.l.b16 %v3889
  %v8437 = vunpack.c.h.b16 %v3889
  %v8438 = vunpack.c.l.b16 %v3890
  %v8439 = vunpack.c.h.b16 %v3890
  %v8440 = vunpack.c.l.b16 %v3891
  %v8441 = vunpack.c.h.b16 %v3891
  %v8442 = vunpack.c.l.b16 %v3892
  %v8443 = vunpack.c.h.b16 %v3892
  %v8444 = vunpack.c.l.b16 %v3893
  %v8445 = vunpack.c.h.b16 %v3893
  %v8446 = vunpack.c.l.b16 %v3894
  %v8447 = vunpack.c.h.b16 %v3894
  %v8448 = vunpack.c.l.b16 %v3895
  %v8449 = vunpack.c.h.b16 %v3895
  %v8450 = vunpack.c.l.b16 %v3896
  %v8451 = vunpack.c.h.b16 %v3896
  %v8452 = vunpack.c.l.b16 %v3897
  %v8453 = vunpack.c.h.b16 %v3897
  %v8454 = vunpack.c.l.b16 %v3898
  %v8455 = vunpack.c.h.b16 %v3898
  %v8456 = vunpack.c.l.b16 %v3899
  %v8457 = vunpack.c.h.b16 %v3899
  %v8458 = vunpack.c.l.b16 %v3900
  %v8459 = vunpack.c.h.b16 %v3900
  %v8460 = vunpack.c.l.b16 %v3901
  %v8461 = vunpack.c.h.b16 %v3901
  %v8462 = vunpack.c.l.b16 %v3902
  %v8463 = vunpack.c.h.b16 %v3902
  %v8464 = vunpack.c.l.b16 %v3903
  %v8465 = vunpack.c.h.b16 %v3903
  %v8466 = vunpack.c.l.b16 %v3904
  %v8467 = vunpack.c.h.b16 %v3904
  %v8468 = vunpack.c.l.b16 %v3905
  %v8469 = vunpack.c.h.b16 %v3905
  %v8470 = vunpack.c.l.b16 %v3906
  %v8471 = vunpack.c.h.b16 %v3906
  %v8472 = vunpack.c.l.b16 %v3907
  %v8473 = vunpack.c.h.b16 %v3907
  %v8474 = vunpack.c.l.b16 %v3908
  %v8475 = vunpack.c.h.b16 %v3908
  %v8476 = vunpack.c.l.b16 %v3909
  %v8477 = vunpack.c.h.b16 %v3909
  %v8478 = vunpack.c.l.b16 %v3910
  %v8479 = vunpack.c.h.b16 %v3910
  %v8480 = vunpack.c.l.b16 %v3911
  %v8481 = vunpack.c.h.b16 %v3911
  %v8482 = vunpack.c.l.b16 %v3912
  %v8483 = vunpack.c.h.b16 %v3912
  %v8484 = vunpack.c.l.b16 %v3913
  %v8485 = vunpack.c.h.b16 %v3913
  %v8486 = vunpack.c.l.b16 %v3914
  %v8487 = vunpack.c.h.b16 %v3914
  %v8488 = vunpack.c.l.b16 %v3915
  %v8489 = vunpack.c.h.b16 %v3915
  %v8490 = vunpack.c.l.b16 %v3916
  %v8491 = vunpack.c.h.b16 %v3916
  %v8492 = vunpack.c.l.b16 %v3917
  %v8493 = vunpack.c.h.b16 %v3917
  %v8494 = vunpack.c.l.b16 %v3918
  %v8495 = vunpack.c.h.b16 %v3918
  %v8496 = vunpack.c.l.b16 %v3919
  %v8497 = vunpack.c.h.b16 %v3919
  %v8498 = vunpack.c.l.b16 %v3920
  %v8499 = vunpack.c.h.b16 %v3920
  %v8500 = vunpack.c.l.b16 %v3921
  %v8501 = vunpack.c.h.b16 %v3921
  %v8502 = vunpack.c.l.b16 %v3922
  %v8503 = vunpack.c.h.b16 %v3922
  %v8504 = vunpack.c.l.b16 %v3923
  %v8505 = vunpack.c.h.b16 %v3923
  %v8506 = vunpack.c.l.b16 %v3924
  %v8507 = vunpack.c.h.b16 %v3924
  %v8508 = vunpack.c.l.b16 %v3925
  %v8509 = vunpack.c.h.b16 %v3925
  %v8510 = vunpack.c.l.b16 %v3926
  %v8511 = vunpack.c.h.b16 %v3926
  %v8512 = vunpack.c.l.b16 %v3927
  %v8513 = vunpack.c.h.b16 %v3927
  %v8514 = vunpack.c.l.b16 %v3928
  %v8515 = vunpack.c.h.b16 %v3928
  %v8516 = vunpack.c.l.b16 %v3929
  %v8517 = vunpack.c.h.b16 %v3929
  %v8518 = vunpack.c.l.b16 %v3930
  %v8519 = vunpack.c.h.b16 %v3930
  %v8520 = vunpack.c.l.b16 %v3931
  %v8521 = vunpack.c.h.b16 %v3931
  %v8522 = vunpack.c.l.b16 %v3932
  %v8523 = vunpack.c.h.b16 %v3932
  %v8524 = vunpack.c.l.b16 %v3933
  %v8525 = vunpack.c.h.b16 %v3933
  %v8526 = vunpack.c.l.b16 %v3934
  %v8527 = vunpack.c.h.b16 %v3934
  %v8528 = vunpack.c.l.b16 %v3935
  %v8529 = vunpack.c.h.b16 %v3935
  %v8530 = vunpack.c.l.b16 %v3936
  %v8531 = vunpack.c.h.b16 %v3936
  %v8532 = vunpack.c.l.b16 %v3937
  %v8533 = vunpack.c.h.b16 %v3937
  %v8534 = vunpack.c.l.b16 %v3938
  %v8535 = vunpack.c.h.b16 %v3938
  %v8536 = vunpack.c.l.b16 %v3939
  %v8537 = vunpack.c.h.b16 %v3939
  %v8538 = vunpack.c.l.b16 %v3940
  %v8539 = vunpack.c.h.b16 %v3940
  %v8540 = vunpack.c.l.b16 %v3941
  %v8541 = vunpack.c.h.b16 %v3941
  %v8542 = vunpack.c.l.b16 %v3942
  %v8543 = vunpack.c.h.b16 %v3942
  %v8544 = vunpack.c.l.b16 %v3943
  %v8545 = vunpack.c.h.b16 %v3943
  %v8546 = vunpack.c.l.b16 %v3944
  %v8547 = vunpack.c.h.b16 %v3944
  %v8548 = vunpack.c.l.b16 %v3945
  %v8549 = vunpack.c.h.b16 %v3945
  %v8550 = vunpack.c.l.b16 %v3946
  %v8551 = vunpack.c.h.b16 %v3946
  %v8552 = vunpack.c.l.b16 %v3947
  %v8553 = vunpack.c.h.b16 %v3947
  %v8554 = vunpack.c.l.b16 %v3948
  %v8555 = vunpack.c.h.b16 %v3948
  %v8556 = vunpack.c.l.b16 %v3949
  %v8557 = vunpack.c.h.b16 %v3949
  %v8558 = vunpack.c.l.b16 %v3950
  %v8559 = vunpack.c.h.b16 %v3950
  %v8560 = vunpack.c.l.b16 %v3951
  %v8561 = vunpack.c.h.b16 %v3951
  %v8562 = vunpack.c.l.b16 %v3952
  %v8563 = vunpack.c.h.b16 %v3952
  %v8564 = vunpack.c.l.b16 %v3953
  %v8565 = vunpack.c.h.b16 %v3953
  %v8566 = vunpack.c.l.b16 %v3954
  %v8567 = vunpack.c.h.b16 %v3954
  %v8568 = vunpack.c.l.b16 %v3955
  %v8569 = vunpack.c.h.b16 %v3955
  %v8570 = vunpack.c.l.b16 %v3956
  %v8571 = vunpack.c.h.b16 %v3956
  %v8572 = vunpack.c.l.b16 %v3957
  %v8573 = vunpack.c.h.b16 %v3957
  %v8574 = vunpack.c.l.b16 %v3958
  %v8575 = vunpack.c.h.b16 %v3958
  %v8576 = vunpack.c.l.b16 %v3959
  %v8577 = vunpack.c.h.b16 %v3959
  %v8578 = vunpack.c.l.b16 %v3960
  %v8579 = vunpack.c.h.b16 %v3960
  %v8580 = vunpack.c.l.b16 %v3961
  %v8581 = vunpack.c.h.b16 %v3961
  %v8582 = vpack.c.b16 %v5512, %v5510
  %v8583 = vpack.c.b16 %v5513, %v5511
  %v8584 = vpack.c.b16 %v5516, %v5514
  %v8585 = vpack.c.b16 %v5517, %v5515
  %v8586 = vpack.c.b16 %v5520, %v5518
  %v8587 = vpack.c.b16 %v5521, %v5519
  %v8588 = vpack.c.b16 %v5524, %v5522
  %v8589 = vpack.c.b16 %v5525, %v5523
  %v8590 = vpack.c.b16 %v5528, %v5526
  %v8591 = vpack.c.b16 %v5529, %v5527
  %v8592 = vpack.c.b16 %v5532, %v5530
  %v8593 = vpack.c.b16 %v5533, %v5531
  %v8594 = vpack.c.b16 %v5536, %v5534
  %v8595 = vpack.c.b16 %v5537, %v5535
  %v8596 = vpack.c.b16 %v5540, %v5538
  %v8597 = vpack.c.b16 %v5541, %v5539
  %v8598 = vpack.c.b16 %v5544, %v5542
  %v8599 = vpack.c.b16 %v5545, %v5543
  %v8600 = vpack.c.b16 %v5548, %v5546
  %v8601 = vpack.c.b16 %v5549, %v5547
  %v8602 = vpack.c.b16 %v5552, %v5550
  %v8603 = vpack.c.b16 %v5553, %v5551
  %v8604 = vpack.c.b16 %v5556, %v5554
  %v8605 = vpack.c.b16 %v5557, %v5555
  %v8606 = vpack.c.b16 %v5560, %v5558
  %v8607 = vpack.c.b16 %v5561, %v5559
  %v8608 = vpack.c.b16 %v5564, %v5562
  %v8609 = vpack.c.b16 %v5565, %v5563
  %v8610 = vpack.c.b16 %v5568, %v5566
  %v8611 = vpack.c.b16 %v5569, %v5567
  %v8612 = vpack.c.b16 %v5572, %v5570
  %v8613 = vpack.c.b16 %v5573, %v5571
  %v8614 = vpack.c.b16 %v5576, %v5574
  %v8615 = vpack.c.b16 %v5577, %v5575
  %v8616 = vpack.c.b16 %v5580, %v5578
  %v8617 = vpack.c.b16 %v5581, %v5579
  %v8618 = vpack.c.b16 %v5584, %v5582
  %v8619 = vpack.c.b16 %v5585, %v5583
  %v8620 = vpack.c.b16 %v5588, %v5586
  %v8621 = vpack.c.b16 %v5589, %v5587
  %v8622 = vpack.c.b16 %v5592, %v5590
  %v8623 = vpack.c.b16 %v5593, %v5591
  %v8624 = vpack.c.b16 %v5596, %v5594
  %v8625 = vpack.c.b16 %v5597, %v5595
  %v8626 = vpack.c.b16 %v5600, %v5598
  %v8627 = vpack.c.b16 %v5601, %v5599
  %v8628 = vpack.c.b16 %v5604, %v5602
  %v8629 = vpack.c.b16 %v5605, %v5603
  %v8630 = vpack.c.b16 %v5608, %v5606
  %v8631 = vpack.c.b16 %v5609, %v5607
  %v8632 = vpack.c.b16 %v5612, %v5610
  %v8633 = vpack.c.b16 %v5613, %v5611
  %v8634 = vpack.c.b16 %v5616, %v5614
  %v8635 = vpack.c.b16 %v5617, %v5615
  %v8636 = vpack.c.b16 %v5620, %v5618
  %v8637 = vpack.c.b16 %v5621, %v5619
  %v8638 = vpack.c.b16 %v5624, %v5622
  %v8639 = vpack.c.b16 %v5625, %v5623
  %v8640 = vpack.c.b16 %v5628, %v5626
  %v8641 = vpack.c.b16 %v5629, %v5627
  %v8642 = vpack.c.b16 %v5632, %v5630
  %v8643 = vpack.c.b16 %v5633, %v5631
  %v8644 = vpack.c.b16 %v5636, %v5634
  %v8645 = vpack.c.b16 %v5637, %v5635
  %v8646 = vpack.c.b16 %v5640, %v5638
  %v8647 = vpack.c.b16 %v5641, %v5639
  %v8648 = vpack.c.b16 %v5644, %v5642
  %v8649 = vpack.c.b16 %v5645, %v5643
  %v8650 = vpack.c.b16 %v5648, %v5646
  %v8651 = vpack.c.b16 %v5649, %v5647
  %v8652 = vpack.c.b16 %v5652, %v5650
  %v8653 = vpack.c.b16 %v5653, %v5651
  %v8654 = vpack.c.b16 %v5656, %v5654
  %v8655 = vpack.c.b16 %v5657, %v5655
  %v8656 = vpack.c.b16 %v5660, %v5658
  %v8657 = vpack.c.b16 %v5661, %v5659
  %v8658 = vpack.c.b16 %v5664, %v5662
  %v8659 = vpack.c.b16 %v5665, %v5663
  %v8660 = vpack.c.b16 %v5668, %v5666
  %v8661 = vpack.c.b16 %v5669, %v5667
  %v8662 = vpack.c.b16 %v5672, %v5670
  %v8663 = vpack.c.b16 %v5673, %v5671
  %v8664 = vpack.c.b16 %v5676, %v5674
  %v8665 = vpack.c.b16 %v5677, %v5675
  %v8666 = vpack.c.b16 %v5680, %v5678
  %v8667 = vpack.c.b16 %v5681, %v5679
  %v8668 = vpack.c.b16 %v5684, %v5682
  %v8669 = vpack.c.b16 %v5685, %v5683
  %v8670 = vpack.c.b16 %v5688, %v5686
  %v8671 = vpack.c.b16 %v5689, %v5687
  %v8672 = vpack.c.b16 %v5692, %v5690
  %v8673 = vpack.c.b16 %v5693, %v5691
  %v8674 = vpack.c.b16 %v5696, %v5694
  %v8675 = vpack.c.b16 %v5697, %v5695
  %v8676 = vpack.c.b16 %v5700, %v5698
  %v8677 = vpack.c.b16 %v5701, %v5699
  %v8678 = vpack.c.b16 %v5704, %v5702
  %v8679 = vpack.c.b16 %v5705, %v5703
  %v8680 = vpack.c.b16 %v5708, %v5706
  %v8681 = vpack.c.b16 %v5709, %v5707
  %v8682 = vpack.c.b16 %v5712, %v5710
  %v8683 = vpack.c.b16 %v5713, %v5711
  %v8684 = vpack.c.b16 %v5716, %v5714
  %v8685 = vpack.c.b16 %v5717, %v5715
  %v8686 = vpack.c.b16 %v5720, %v5718
  %v8687 = vpack.c.b16 %v5721, %v5719
  %v8688 = vpack.c.b16 %v5724, %v5722
  %v8689 = vpack.c.b16 %v5725, %v5723
  %v8690 = vpack.c.b16 %v5728, %v5726
  %v8691 = vpack.c.b16 %v5729, %v5727
  %v8692 = vpack.c.b16 %v5732, %v5730
  %v8693 = vpack.c.b16 %v5733, %v5731
  %v8694 = vpack.c.b16 %v5736, %v5734
  %v8695 = vpack.c.b16 %v5737, %v5735
  %v8696 = vpack.c.b16 %v5740, %v5738
  %v8697 = vpack.c.b16 %v5741, %v5739
  %v8698 = vpack.c.b16 %v5744, %v5742
  %v8699 = vpack.c.b16 %v5745, %v5743
  %v8700 = vpack.c.b16 %v5748, %v5746
  %v8701 = vpack.c.b16 %v5749, %v5747
  %v8702 = vpack.c.b16 %v5752, %v5750
  %v8703 = vpack.c.b16 %v5753, %v5751
  %v8704 = vpack.c.b16 %v5756, %v5754
  %v8705 = vpack.c.b16 %v5757, %v5755
  %v8706 = vpack.c.b16 %v5760, %v5758
  %v8707 = vpack.c.b16 %v5761, %v5759
  %v8708 = vpack.c.b16 %v5764, %v5762
  %v8709 = vpack.c.b16 %v5765, %v5763
  %v8710 = vpack.c.b16 %v5768, %v5766
  %v8711 = vpack.c.b16 %v5769, %v5767
  %v8712 = vpack.c.b16 %v5772, %v5770
  %v8713 = vpack.c.b16 %v5773, %v5771
  %v8714 = vpack.c.b16 %v5776, %v5774
  %v8715 = vpack.c.b16 %v5777, %v5775
  %v8716 = vpack.c.b16 %v5780, %v5778
  %v8717 = vpack.c.b16 %v5781, %v5779
  %v8718 = vpack.c.b16 %v5784, %v5782
  %v8719 = vpack.c.b16 %v5785, %v5783
  %v8720 = vpack.c.b16 %v5788, %v5786
  %v8721 = vpack.c.b16 %v5789, %v5787
  %v8722 = vpack.c.b16 %v5792, %v5790
  %v8723 = vpack.c.b16 %v5793, %v5791
  %v8724 = vpack.c.b16 %v5796, %v5794
  %v8725 = vpack.c.b16 %v5797, %v5795
  %v8726 = vpack.c.b16 %v5800, %v5798
  %v8727 = vpack.c.b16 %v5801, %v5799
  %v8728 = vpack.c.b16 %v5804, %v5802
  %v8729 = vpack.c.b16 %v5805, %v5803
  %v8730 = vpack.c.b16 %v5808, %v5806
  %v8731 = vpack.c.b16 %v5809, %v5807
  %v8732 = vpack.c.b16 %v5812, %v5810
  %v8733 = vpack.c.b16 %v5813, %v5811
  %v8734 = vpack.c.b16 %v5816, %v5814
  %v8735 = vpack.c.b16 %v5817, %v5815
  %v8736 = vpack.c.b16 %v5820, %v5818
  %v8737 = vpack.c.b16 %v5821, %v5819
  %v8738 = vpack.c.b16 %v5824, %v5822
  %v8739 = vpack.c.b16 %v5825, %v5823
  %v8740 = vpack.c.b16 %v5828, %v5826
  %v8741 = vpack.c.b16 %v5829, %v5827
  %v8742 = vpack.c.b16 %v5832, %v5830
  %v8743 = vpack.c.b16 %v5833, %v5831
  %v8744 = vpack.c.b16 %v5836, %v5834
  %v8745 = vpack.c.b16 %v5837, %v5835
  %v8746 = vpack.c.b16 %v5840, %v5838
  %v8747 = vpack.c.b16 %v5841, %v5839
  %v8748 = vpack.c.b16 %v5844, %v5842
  %v8749 = vpack.c.b16 %v5845, %v5843
  %v8750 = vpack.c.b16 %v5848, %v5846
  %v8751 = vpack.c.b16 %v5849, %v5847
  %v8752 = vpack.c.b16 %v5852, %v5850
  %v8753 = vpack.c.b16 %v5853, %v5851
  %v8754 = vpack.c.b16 %v5856, %v5854
  %v8755 = vpack.c.b16 %v5857, %v5855
  %v8756 = vpack.c.b16 %v5860, %v5858
  %v8757 = vpack.c.b16 %v5861, %v5859
  %v8758 = vpack.c.b16 %v5864, %v5862
  %v8759 = vpack.c.b16 %v5865, %v5863
  %v8760 = vpack.c.b16 %v5868, %v5866
  %v8761 = vpack.c.b16 %v5869, %v5867
  %v8762 = vpack.c.b16 %v5872, %v5870
  %v8763 = vpack.c.b16 %v5873, %v5871
  %v8764 = vpack.c.b16 %v5876, %v5874
  %v8765 = vpack.c.b16 %v5877, %v5875
  %v8766 = vpack.c.b16 %v5880, %v5878
  %v8767 = vpack.c.b16 %v5881, %v5879
  %v8768 = vpack.c.b16 %v5884, %v5882
  %v8769 = vpack.c.b16 %v5885, %v5883
  %v8770 = vpack.c.b16 %v5888, %v5886
  %v8771 = vpack.c.b16 %v5889, %v5887
  %v8772 = vpack.c.b16 %v5892, %v5890
  %v8773 = vpack.c.b16 %v5893, %v5891
  %v8774 = vpack.c.b16 %v5896, %v5894
  %v8775 = vpack.c.b16 %v5897, %v5895
  %v8776 = vpack.c.b16 %v5900, %v5898
  %v8777 = vpack.c.b16 %v5901, %v5899
  %v8778 = vpack.c.b16 %v5904, %v5902
  %v8779 = vpack.c.b16 %v5905, %v5903
  %v8780 = vpack.c.b16 %v5908, %v5906
  %v8781 = vpack.c.b16 %v5909, %v5907
  %v8782 = vpack.c.b16 %v5912, %v5910
  %v8783 = vpack.c.b16 %v5913, %v5911
  %v8784 = vpack.c.b16 %v5916, %v5914
  %v8785 = vpack.c.b16 %v5917, %v5915
  %v8786 = vpack.c.b16 %v5920, %v5918
  %v8787 = vpack.c.b16 %v5921, %v5919
  %v8788 = vpack.c.b16 %v5924, %v5922
  %v8789 = vpack.c.b16 %v5925, %v5923
  %v8790 = vpack.c.b16 %v5928, %v5926
  %v8791 = vpack.c.b16 %v5929, %v5927
  %v8792 = vpack.c.b16 %v5932, %v5930
  %v8793 = vpack.c.b16 %v5933, %v5931
  %v8794 = vpack.c.b16 %v5936, %v5934
  %v8795 = vpack.c.b16 %v5937, %v5935
  %v8796 = vpack.c.b16 %v5940, %v5938
  %v8797 = vpack.c.b16 %v5941, %v5939
  %v8798 = vpack.c.b16 %v5944, %v5942
  %v8799 = vpack.c.b16 %v5945, %v5943
  %v8800 = vpack.c.b16 %v5948, %v5946
  %v8801 = vpack.c.b16 %v5949, %v5947
  %v8802 = vpack.c.b16 %v5952, %v5950
  %v8803 = vpack.c.b16 %v5953, %v5951
  %v8804 = vpack.c.b16 %v5956, %v5954
  %v8805 = vpack.c.b16 %v5957, %v5955
  %v8806 = vpack.c.b16 %v5960, %v5958
  %v8807 = vpack.c.b16 %v5961, %v5959
  %v8808 = vpack.c.b16 %v5964, %v5962
  %v8809 = vpack.c.b16 %v5965, %v5963
  %v8810 = vpack.c.b16 %v5968, %v5966
  %v8811 = vpack.c.b16 %v5969, %v5967
  %v8812 = vpack.c.b16 %v5972, %v5970
  %v8813 = vpack.c.b16 %v5973, %v5971
  %v8814 = vpack.c.b16 %v5976, %v5974
  %v8815 = vpack.c.b16 %v5977, %v5975
  %v8816 = vpack.c.b16 %v5980, %v5978
  %v8817 = vpack.c.b16 %v5981, %v5979
  %v8818 = vpack.c.b16 %v5984, %v5982
  %v8819 = vpack.c.b16 %v5985, %v5983
  %v8820 = vpack.c.b16 %v5988, %v5986
  %v8821 = vpack.c.b16 %v5989, %v5987
  %v8822 = vpack.c.b16 %v5992, %v5990
  %v8823 = vpack.c.b16 %v5993, %v5991
  %v8824 = vpack.c.b16 %v5996, %v5994
  %v8825 = vpack.c.b16 %v5997, %v5995
  %v8826 = vpack.c.b16 %v6000, %v5998
  %v8827 = vpack.c.b16 %v6001, %v5999
  %v8828 = vpack.c.b16 %v6004, %v6002
  %v8829 = vpack.c.b16 %v6005, %v6003
  %v8830 = vpack.c.b16 %v6008, %v6006
  %v8831 = vpack.c.b16 %v6009, %v6007
  %v8832 = vpack.c.b16 %v6012, %v6010
  %v8833 = vpack.c.b16 %v6013, %v6011
  %v8834 = vpack.c.b16 %v6016, %v6014
  %v8835 = vpack.c.b16 %v6017, %v6015
  %v8836 = vpack.c.b16 %v6020, %v6018
  %v8837 = vpack.c.b16 %v6021, %v6019
  %v8838 = vpack.c.b16 %v6024, %v6022
  %v8839 = vpack.c.b16 %v6025, %v6023
  %v8840 = vpack.c.b16 %v6028, %v6026
  %v8841 = vpack.c.b16 %v6029, %v6027
  %v8842 = vpack.c.b16 %v6032, %v6030
  %v8843 = vpack.c.b16 %v6033, %v6031
  %v8844 = vpack.c.b16 %v6036, %v6034
  %v8845 = vpack.c.b16 %v6037, %v6035
  %v8846 = vpack.c.b16 %v6040, %v6038
  %v8847 = vpack.c.b16 %v6041, %v6039
  %v8848 = vpack.c.b16 %v6044, %v6042
  %v8849 = vpack.c.b16 %v6045, %v6043
  %v8850 = vpack.c.b16 %v6048, %v6046
  %v8851 = vpack.c.b16 %v6049, %v6047
  %v8852 = vpack.c.b16 %v6052, %v6050
  %v8853 = vpack.c.b16 %v6053, %v6051
  %v8854 = vpack.c.b16 %v6056, %v6054
  %v8855 = vpack.c.b16 %v6057, %v6055
  %v8856 = vpack.c.b16 %v6060, %v6058
  %v8857 = vpack.c.b16 %v6061, %v6059
  %v8858 = vpack.c.b16 %v6064, %v6062
  %v8859 = vpack.c.b16 %v6065, %v6063
  %v8860 = vpack.c.b16 %v6068, %v6066
  %v8861 = vpack.c.b16 %v6069, %v6067
  %v8862 = vpack.c.b16 %v6072, %v6070
  %v8863 = vpack.c.b16 %v6073, %v6071
  %v8864 = vpack.c.b16 %v6076, %v6074
  %v8865 = vpack.c.b16 %v6077, %v6075
  %v8866 = vpack.c.b16 %v6080, %v6078
  %v8867 = vpack.c.b16 %v6081, %v6079
  %v8868 = vpack.c.b16 %v6084, %v6082
  %v8869 = vpack.c.b16 %v6085, %v6083
  %v8870 = vpack.c.b16 %v6088, %v6086
  %v8871 = vpack.c.b16 %v6089, %v6087
  %v8872 = vpack.c.b16 %v6092, %v6090
  %v8873 = vpack.c.b16 %v6093, %v6091
  %v8874 = vpack.c.b16 %v6096, %v6094
  %v8875 = vpack.c.b16 %v6097, %v6095
  %v8876 = vpack.c.b16 %v6100, %v6098
  %v8877 = vpack.c.b16 %v6101, %v6099
  %v8878 = vpack.c.b16 %v6104, %v6102
  %v8879 = vpack.c.b16 %v6105, %v6103
  %v8880 = vpack.c.b16 %v6108, %v6106
  %v8881 = vpack.c.b16 %v6109, %v6107
  %v8882 = vpack.c.b16 %v6112, %v6110
  %v8883 = vpack.c.b16 %v6113, %v6111
  %v8884 = vpack.c.b16 %v6116, %v6114
  %v8885 = vpack.c.b16 %v6117, %v6115
  %v8886 = vpack.c.b16 %v6120, %v6118
  %v8887 = vpack.c.b16 %v6121, %v6119
  %v8888 = vpack.c.b16 %v6124, %v6122
  %v8889 = vpack.c.b16 %v6125, %v6123
  %v8890 = vpack.c.b16 %v6128, %v6126
  %v8891 = vpack.c.b16 %v6129, %v6127
  %v8892 = vpack.c.b16 %v6132, %v6130
  %v8893 = vpack.c.b16 %v6133, %v6131
  %v8894 = vpack.c.b16 %v6136, %v6134
  %v8895 = vpack.c.b16 %v6137, %v6135
  %v8896 = vpack.c.b16 %v6140, %v6138
  %v8897 = vpack.c.b16 %v6141, %v6139
  %v8898 = vpack.c.b16 %v6144, %v6142
  %v8899 = vpack.c.b16 %v6145, %v6143
  %v8900 = vpack.c.b16 %v6148, %v6146
  %v8901 = vpack.c.b16 %v6149, %v6147
  %v8902 = vpack.c.b16 %v6152, %v6150
  %v8903 = vpack.c.b16 %v6153, %v6151
  %v8904 = vpack.c.b16 %v6156, %v6154
  %v8905 = vpack.c.b16 %v6157, %v6155
  %v8906 = vpack.c.b16 %v6160, %v6158
  %v8907 = vpack.c.b16 %v6161, %v6159
  %v8908 = vpack.c.b16 %v6164, %v6162
  %v8909 = vpack.c.b16 %v6165, %v6163
  %v8910 = vpack.c.b16 %v6168, %v6166
  %v8911 = vpack.c.b16 %v6169, %v6167
  %v8912 = vpack.c.b16 %v6172, %v6170
  %v8913 = vpack.c.b16 %v6173, %v6171
  %v8914 = vpack.c.b16 %v6176, %v6174
  %v8915 = vpack.c.b16 %v6177, %v6175
  %v8916 = vpack.c.b16 %v6180, %v6178
  %v8917 = vpack.c.b16 %v6181, %v6179
  %v8918 = vpack.c.b16 %v6184, %v6182
  %v8919 = vpack.c.b16 %v6185, %v6183
  %v8920 = vpack.c.b16 %v6188, %v6186
  %v8921 = vpack.c.b16 %v6189, %v6187
  %v8922 = vpack.c.b16 %v6192, %v6190
  %v8923 = vpack.c.b16 %v6193, %v6191
  %v8924 = vpack.c.b16 %v6196, %v6194
  %v8925 = vpack.c.b16 %v6197, %v6195
  %v8926 = vpack.c.b16 %v6200, %v6198
  %v8927 = vpack.c.b16 %v6201, %v6199
  %v8928 = vpack.c.b16 %v6204, %v6202
  %v8929 = vpack.c.b16 %v6205, %v6203
  %v8930 = vpack.c.b16 %v6208, %v6206
  %v8931 = vpack.c.b16 %v6209, %v6207
  %v8932 = vpack.c.b16 %v6212, %v6210
  %v8933 = vpack.c.b16 %v6213, %v6211
  %v8934 = vpack.c.b16 %v6216, %v6214
  %v8935 = vpack.c.b16 %v6217, %v6215
  %v8936 = vpack.c.b16 %v6220, %v6218
  %v8937 = vpack.c.b16 %v6221, %v6219
  %v8938 = vpack.c.b16 %v6224, %v6222
  %v8939 = vpack.c.b16 %v6225, %v6223
  %v8940 = vpack.c.b16 %v6228, %v6226
  %v8941 = vpack.c.b16 %v6229, %v6227
  %v8942 = vpack.c.b16 %v6232, %v6230
  %v8943 = vpack.c.b16 %v6233, %v6231
  %v8944 = vpack.c.b16 %v6236, %v6234
  %v8945 = vpack.c.b16 %v6237, %v6235
  %v8946 = vpack.c.b16 %v6240, %v6238
  %v8947 = vpack.c.b16 %v6241, %v6239
  %v8948 = vpack.c.b16 %v6244, %v6242
  %v8949 = vpack.c.b16 %v6245, %v6243
  %v8950 = vpack.c.b16 %v6248, %v6246
  %v8951 = vpack.c.b16 %v6249, %v6247
  %v8952 = vpack.c.b16 %v6252, %v6250
  %v8953 = vpack.c.b16 %v6253, %v6251
  %v8954 = vpack.c.b16 %v6256, %v6254
  %v8955 = vpack.c.b16 %v6257, %v6255
  %v8956 = vpack.c.b16 %v6260, %v6258
  %v8957 = vpack.c.b16 %v6261, %v6259
  %v8958 = vpack.c.b16 %v6264, %v6262
  %v8959 = vpack.c.b16 %v6265, %v6263
  %v8960 = vpack.c.b16 %v6268, %v6266
  %v8961 = vpack.c.b16 %v6269, %v6267
  %v8962 = vpack.c.b16 %v6272, %v6270
  %v8963 = vpack.c.b16 %v6273, %v6271
  %v8964 = vpack.c.b16 %v6276, %v6274
  %v8965 = vpack.c.b16 %v6277, %v6275
  %v8966 = vpack.c.b16 %v6280, %v6278
  %v8967 = vpack.c.b16 %v6281, %v6279
  %v8968 = vpack.c.b16 %v6284, %v6282
  %v8969 = vpack.c.b16 %v6285, %v6283
  %v8970 = vpack.c.b16 %v6288, %v6286
  %v8971 = vpack.c.b16 %v6289, %v6287
  %v8972 = vpack.c.b16 %v6292, %v6290
  %v8973 = vpack.c.b16 %v6293, %v6291
  %v8974 = vpack.c.b16 %v6296, %v6294
  %v8975 = vpack.c.b16 %v6297, %v6295
  %v8976 = vpack.c.b16 %v6300, %v6298
  %v8977 = vpack.c.b16 %v6301, %v6299
  %v8978 = vpack.c.b16 %v6304, %v6302
  %v8979 = vpack.c.b16 %v6305, %v6303
  %v8980 = vpack.c.b16 %v6308, %v6306
  %v8981 = vpack.c.b16 %v6309, %v6307
  %v8982 = vpack.c.b16 %v6312, %v6310
  %v8983 = vpack.c.b16 %v6313, %v6311
  %v8984 = vpack.c.b16 %v6316, %v6314
  %v8985 = vpack.c.b16 %v6317, %v6315
  %v8986 = vpack.c.b16 %v6320, %v6318
  %v8987 = vpack.c.b16 %v6321, %v6319
  %v8988 = vpack.c.b16 %v6324, %v6322
  %v8989 = vpack.c.b16 %v6325, %v6323
  %v8990 = vpack.c.b16 %v6328, %v6326
  %v8991 = vpack.c.b16 %v6329, %v6327
  %v8992 = vpack.c.b16 %v6332, %v6330
  %v8993 = vpack.c.b16 %v6333, %v6331
  %v8994 = vpack.c.b16 %v6336, %v6334
  %v8995 = vpack.c.b16 %v6337, %v6335
  %v8996 = vpack.c.b16 %v6340, %v6338
  %v8997 = vpack.c.b16 %v6341, %v6339
  %v8998 = vpack.c.b16 %v6344, %v6342
  %v8999 = vpack.c.b16 %v6345, %v6343
  %v9000 = vpack.c.b16 %v6348, %v6346
  %v9001 = vpack.c.b16 %v6349, %v6347
  %v9002 = vpack.c.b16 %v6352, %v6350
  %v9003 = vpack.c.b16 %v6353, %v6351
  %v9004 = vpack.c.b16 %v6356, %v6354
  %v9005 = vpack.c.b16 %v6357, %v6355
  %v9006 = vpack.c.b16 %v6360, %v6358
  %v9007 = vpack.c.b16 %v6361, %v6359
  %v9008 = vpack.c.b16 %v6364, %v6362
  %v9009 = vpack.c.b16 %v6365, %v6363
  %v9010 = vpack.c.b16 %v6368, %v6366
  %v9011 = vpack.c.b16 %v6369, %v6367
  %v9012 = vpack.c.b16 %v6372, %v6370
  %v9013 = vpack.c.b16 %v6373, %v6371
  %v9014 = vpack.c.b16 %v6376, %v6374
  %v9015 = vpack.c.b16 %v6377, %v6375
  %v9016 = vpack.c.b16 %v6380, %v6378
  %v9017 = vpack.c.b16 %v6381, %v6379
  %v9018 = vpack.c.b16 %v6384, %v6382
  %v9019 = vpack.c.b16 %v6385, %v6383
  %v9020 = vpack.c.b16 %v6388, %v6386
  %v9021 = vpack.c.b16 %v6389, %v6387
  %v9022 = vpack.c.b16 %v6392, %v6390
  %v9023 = vpack.c.b16 %v6393, %v6391
  %v9024 = vpack.c.b16 %v6396, %v6394
  %v9025 = vpack.c.b16 %v6397, %v6395
  %v9026 = vpack.c.b16 %v6400, %v6398
  %v9027 = vpack.c.b16 %v6401, %v6399
  %v9028 = vpack.c.b16 %v6404, %v6402
  %v9029 = vpack.c.b16 %v6405, %v6403
  %v9030 = vpack.c.b16 %v6408, %v6406
  %v9031 = vpack.c.b16 %v6409, %v6407
  %v9032 = vpack.c.b16 %v6412, %v6410
  %v9033 = vpack.c.b16 %v6413, %v6411
  %v9034 = vpack.c.b16 %v6416, %v6414
  %v9035 = vpack.c.b16 %v6417, %v6415
  %v9036 = vpack.c.b16 %v6420, %v6418
  %v9037 = vpack.c.b16 %v6421, %v6419
  %v9038 = vpack.c.b16 %v6424, %v6422
  %v9039 = vpack.c.b16 %v6425, %v6423
  %v9040 = vpack.c.b16 %v6428, %v6426
  %v9041 = vpack.c.b16 %v6429, %v6427
  %v9042 = vpack.c.b16 %v6432, %v6430
  %v9043 = vpack.c.b16 %v6433, %v6431
  %v9044 = vpack.c.b16 %v6436, %v6434
  %v9045 = vpack.c.b16 %v6437, %v6435
  %v9046 = vpack.c.b16 %v6440, %v6438
  %v9047 = vpack.c.b16 %v6441, %v6439
  %v9048 = vpack.c.b16 %v6444, %v6442
  %v9049 = vpack.c.b16 %v6445, %v6443
  %v9050 = vpack.c.b16 %v6448, %v6446
  %v9051 = vpack.c.b16 %v6449, %v6447
  %v9052 = vpack.c.b16 %v6452, %v6450
  %v9053 = vpack.c.b16 %v6453, %v6451
  %v9054 = vpack.c.b16 %v6456, %v6454
  %v9055 = vpack.c.b16 %v6457, %v6455
  %v9056 = vpack.c.b16 %v6460, %v6458
  %v9057 = vpack.c.b16 %v6461, %v6459
  %v9058 = vpack.c.b16 %v6464, %v6462
  %v9059 = vpack.c.b16 %v6465, %v6463
  %v9060 = vpack.c.b16 %v6468, %v6466
  %v9061 = vpack.c.b16 %v6469, %v6467
  %v9062 = vpack.c.b16 %v6472, %v6470
  %v9063 = vpack.c.b16 %v6473, %v6471
  %v9064 = vpack.c.b16 %v6476, %v6474
  %v9065 = vpack.c.b16 %v6477, %v6475
  %v9066 = vpack.c.b16 %v6480, %v6478
  %v9067 = vpack.c.b16 %v6481, %v6479
  %v9068 = vpack.c.b16 %v6484, %v6482
  %v9069 = vpack.c.b16 %v6485, %v6483
  %v9070 = vpack.c.b16 %v6488, %v6486
  %v9071 = vpack.c.b16 %v6489, %v6487
  %v9072 = vpack.c.b16 %v6492, %v6490
  %v9073 = vpack.c.b16 %v6493, %v6491
  %v9074 = vpack.c.b16 %v6496, %v6494
  %v9075 = vpack.c.b16 %v6497, %v6495
  %v9076 = vpack.c.b16 %v6500, %v6498
  %v9077 = vpack.c.b16 %v6501, %v6499
  %v9078 = vpack.c.b16 %v6504, %v6502
  %v9079 = vpack.c.b16 %v6505, %v6503
  %v9080 = vpack.c.b16 %v6508, %v6506
  %v9081 = vpack.c.b16 %v6509, %v6507
  %v9082 = vpack.c.b16 %v6512, %v6510
  %v9083 = vpack.c.b16 %v6513, %v6511
  %v9084 = vpack.c.b16 %v6516, %v6514
  %v9085 = vpack.c.b16 %v6517, %v6515
  %v9086 = vpack.c.b16 %v6520, %v6518
  %v9087 = vpack.c.b16 %v6521, %v6519
  %v9088 = vpack.c.b16 %v6524, %v6522
  %v9089 = vpack.c.b16 %v6525, %v6523
  %v9090 = vpack.c.b16 %v6528, %v6526
  %v9091 = vpack.c.b16 %v6529, %v6527
  %v9092 = vpack.c.b16 %v6532, %v6530
  %v9093 = vpack.c.b16 %v6533, %v6531
  %v9094 = vpack.c.b16 %v6536, %v6534
  %v9095 = vpack.c.b16 %v6537, %v6535
  %v9096 = vpack.c.b16 %v6540, %v6538
  %v9097 = vpack.c.b16 %v6541, %v6539
  %v9098 = vpack.c.b16 %v6544, %v6542
  %v9099 = vpack.c.b16 %v6545, %v6543
  %v9100 = vpack.c.b16 %v6548, %v6546
  %v9101 = vpack.c.b16 %v6549, %v6547
  %v9102 = vpack.c.b16 %v6552, %v6550
  %v9103 = vpack.c.b16 %v6553, %v6551
  %v9104 = vpack.c.b16 %v6556, %v6554
  %v9105 = vpack.c.b16 %v6557, %v6555
  %v9106 = vpack.c.b16 %v6560, %v6558
  %v9107 = vpack.c.b16 %v6561, %v6559
  %v9108 = vpack.c.b16 %v6564, %v6562
  %v9109 = vpack.c.b16 %v6565, %v6563
  %v9110 = vpack.c.b16 %v6568, %v6566
  %v9111 = vpack.c.b16 %v6569, %v6567
  %v9112 = vpack.c.b16 %v6572, %v6570
  %v9113 = vpack.c.b16 %v6573, %v6571
  %v9114 = vpack.c.b16 %v6576, %v6574
  %v9115 = vpack.c.b16 %v6577, %v6575
  %v9116 = vpack.c.b16 %v6580, %v6578
  %v9117 = vpack.c.b16 %v6581, %v6579
  %v9118 = vpack.c.b16 %v6584, %v6582
  %v9119 = vpack.c.b16 %v6585, %v6583
  %v9120 = vpack.c.b16 %v6588, %v6586
  %v9121 = vpack.c.b16 %v6589, %v6587
  %v9122 = vpack.c.b16 %v6592, %v6590
  %v9123 = vpack.c.b16 %v6593, %v6591
  %v9124 = vpack.c.b16 %v6596, %v6594
  %v9125 = vpack.c.b16 %v6597, %v6595
  %v9126 = vpack.c.b16 %v6600, %v6598
  %v9127 = vpack.c.b16 %v6601, %v6599
  %v9128 = vpack.c.b16 %v6604, %v6602
  %v9129 = vpack.c.b16 %v6605, %v6603
  %v9130 = vpack.c.b16 %v6608, %v6606
  %v9131 = vpack.c.b16 %v6609, %v6607
  %v9132 = vpack.c.b16 %v6612, %v6610
  %v9133 = vpack.c.b16 %v6613, %v6611
  %v9134 = vpack.c.b16 %v6616, %v6614
  %v9135 = vpack.c.b16 %v6617, %v6615
  %v9136 = vpack.c.b16 %v6620, %v6618
  %v9137 = vpack.c.b16 %v6621, %v6619
  %v9138 = vpack.c.b16 %v6624, %v6622
  %v9139 = vpack.c.b16 %v6625, %v6623
  %v9140 = vpack.c.b16 %v6628, %v6626
  %v9141 = vpack.c.b16 %v6629, %v6627
  %v9142 = vpack.c.b16 %v6632, %v6630
  %v9143 = vpack.c.b16 %v6633, %v6631
  %v9144 = vpack.c.b16 %v6636, %v6634
  %v9145 = vpack.c.b16 %v6637, %v6635
  %v9146 = vpack.c.b16 %v6640, %v6638
  %v9147 = vpack.c.b16 %v6641, %v6639
  %v9148 = vpack.c.b16 %v6644, %v6642
  %v9149 = vpack.c.b16 %v6645, %v6643
  %v9150 = vpack.c.b16 %v6648, %v6646
  %v9151 = vpack.c.b16 %v6649, %v6647
  %v9152 = vpack.c.b16 %v6652, %v6650
  %v9153 = vpack.c.b16 %v6653, %v6651
  %v9154 = vpack.c.b16 %v6656, %v6654
  %v9155 = vpack.c.b16 %v6657, %v6655
  %v9156 = vpack.c.b16 %v6660, %v6658
  %v9157 = vpack.c.b16 %v6661, %v6659
  %v9158 = vpack.c.b16 %v6664, %v6662
  %v9159 = vpack.c.b16 %v6665, %v6663
  %v9160 = vpack.c.b16 %v6668, %v6666
  %v9161 = vpack.c.b16 %v6669, %v6667
  %v9162 = vpack.c.b16 %v6672, %v6670
  %v9163 = vpack.c.b16 %v6673, %v6671
  %v9164 = vpack.c.b16 %v6676, %v6674
  %v9165 = vpack.c.b16 %v6677, %v6675
  %v9166 = vpack.c.b16 %v6680, %v6678
  %v9167 = vpack.c.b16 %v6681, %v6679
  %v9168 = vpack.c.b16 %v6684, %v6682
  %v9169 = vpack.c.b16 %v6685, %v6683
  %v9170 = vpack.c.b16 %v6688, %v6686
  %v9171 = vpack.c.b16 %v6689, %v6687
  %v9172 = vpack.c.b16 %v6692, %v6690
  %v9173 = vpack.c.b16 %v6693, %v6691
  %v9174 = vpack.c.b16 %v6696, %v6694
  %v9175 = vpack.c.b16 %v6697, %v6695
  %v9176 = vpack.c.b16 %v6700, %v6698
  %v9177 = vpack.c.b16 %v6701, %v6699
  %v9178 = vpack.c.b16 %v6704, %v6702
  %v9179 = vpack.c.b16 %v6705, %v6703
  %v9180 = vpack.c.b16 %v6708, %v6706
  %v9181 = vpack.c.b16 %v6709, %v6707
  %v9182 = vpack.c.b16 %v6712, %v6710
  %v9183 = vpack.c.b16 %v6713, %v6711
  %v9184 = vpack.c.b16 %v6716, %v6714
  %v9185 = vpack.c.b16 %v6717, %v6715
  %v9186 = vpack.c.b16 %v6720, %v6718
  %v9187 = vpack.c.b16 %v6721, %v6719
  %v9188 = vpack.c.b16 %v6724, %v6722
  %v9189 = vpack.c.b16 %v6725, %v6723
  %v9190 = vpack.c.b16 %v6728, %v6726
  %v9191 = vpack.c.b16 %v6729, %v6727
  %v9192 = vpack.c.b16 %v6732, %v6730
  %v9193 = vpack.c.b16 %v6733, %v6731
  %v9194 = vpack.c.b16 %v6736, %v6734
  %v9195 = vpack.c.b16 %v6737, %v6735
  %v9196 = vpack.c.b16 %v6740, %v6738
  %v9197 = vpack.c.b16 %v6741, %v6739
  %v9198 = vpack.c.b16 %v6744, %v6742
  %v9199 = vpack.c.b16 %v6745, %v6743
  %v9200 = vpack.c.b16 %v6748, %v6746
  %v9201 = vpack.c.b16 %v6749, %v6747
  %v9202 = vpack.c.b16 %v6752, %v6750
  %v9203 = vpack.c.b16 %v6753, %v6751
  %v9204 = vpack.c.b16 %v6756, %v6754
  %v9205 = vpack.c.b16 %v6757, %v6755
  %v9206 = vpack.c.b16 %v6760, %v6758
  %v9207 = vpack.c.b16 %v6761, %v6759
  %v9208 = vpack.c.b16 %v6764, %v6762
  %v9209 = vpack.c.b16 %v6765, %v6763
  %v9210 = vpack.c.b16 %v6768, %v6766
  %v9211 = vpack.c.b16 %v6769, %v6767
  %v9212 = vpack.c.b16 %v6772, %v6770
  %v9213 = vpack.c.b16 %v6773, %v6771
  %v9214 = vpack.c.b16 %v6776, %v6774
  %v9215 = vpack.c.b16 %v6777, %v6775
  %v9216 = vpack.c.b16 %v6780, %v6778
  %v9217 = vpack.c.b16 %v6781, %v6779
  %v9218 = vpack.c.b16 %v6784, %v6782
  %v9219 = vpack.c.b16 %v6785, %v6783
  %v9220 = vpack.c.b16 %v6788, %v6786
  %v9221 = vpack.c.b16 %v6789, %v6787
  %v9222 = vpack.c.b16 %v6792, %v6790
  %v9223 = vpack.c.b16 %v6793, %v6791
  %v9224 = vpack.c.b16 %v6796, %v6794
  %v9225 = vpack.c.b16 %v6797, %v6795
  %v9226 = vpack.c.b16 %v6800, %v6798
  %v9227 = vpack.c.b16 %v6801, %v6799
  %v9228 = vpack.c.b16 %v6804, %v6802
  %v9229 = vpack.c.b16 %v6805, %v6803
  %v9230 = vpack.c.b16 %v6808, %v6806
  %v9231 = vpack.c.b16 %v6809, %v6807
  %v9232 = vpack.c.b16 %v6812, %v6810
  %v9233 = vpack.c.b16 %v6813, %v6811
  %v9234 = vpack.c.b16 %v6816, %v6814
  %v9235 = vpack.c.b16 %v6817, %v6815
  %v9236 = vpack.c.b16 %v6820, %v6818
  %v9237 = vpack.c.b16 %v6821, %v6819
  %v9238 = vpack.c.b16 %v6824, %v6822
  %v9239 = vpack.c.b16 %v6825, %v6823
  %v9240 = vpack.c.b16 %v6828, %v6826
  %v9241 = vpack.c.b16 %v6829, %v6827
  %v9242 = vpack.c.b16 %v6832, %v6830
  %v9243 = vpack.c.b16 %v6833, %v6831
  %v9244 = vpack.c.b16 %v6836, %v6834
  %v9245 = vpack.c.b16 %v6837, %v6835
  %v9246 = vpack.c.b16 %v6840, %v6838
  %v9247 = vpack.c.b16 %v6841, %v6839
  %v9248 = vpack.c.b16 %v6844, %v6842
  %v9249 = vpack.c.b16 %v6845, %v6843
  %v9250 = vpack.c.b16 %v6848, %v6846
  %v9251 = vpack.c.b16 %v6849, %v6847
  %v9252 = vpack.c.b16 %v6852, %v6850
  %v9253 = vpack.c.b16 %v6853, %v6851
  %v9254 = vpack.c.b16 %v6856, %v6854
  %v9255 = vpack.c.b16 %v6857, %v6855
  %v9256 = vpack.c.b16 %v6860, %v6858
  %v9257 = vpack.c.b16 %v6861, %v6859
  %v9258 = vpack.c.b16 %v6864, %v6862
  %v9259 = vpack.c.b16 %v6865, %v6863
  %v9260 = vpack.c.b16 %v6868, %v6866
  %v9261 = vpack.c.b16 %v6869, %v6867
  %v9262 = vpack.c.b16 %v6872, %v6870
  %v9263 = vpack.c.b16 %v6873, %v6871
  %v9264 = vpack.c.b16 %v6876, %v6874
  %v9265 = vpack.c.b16 %v6877, %v6875
  %v9266 = vpack.c.b16 %v6880, %v6878
  %v9267 = vpack.c.b16 %v6881, %v6879
  %v9268 = vpack.c.b16 %v6884, %v6882
  %v9269 = vpack.c.b16 %v6885, %v6883
  %v9270 = vpack.c.b16 %v6888, %v6886
  %v9271 = vpack.c.b16 %v6889, %v6887
  %v9272 = vpack.c.b16 %v6892, %v6890
  %v9273 = vpack.c.b16 %v6893, %v6891
  %v9274 = vpack.c.b16 %v6896, %v6894
  %v9275 = vpack.c.b16 %v6897, %v6895
  %v9276 = vpack.c.b16 %v6900, %v6898
  %v9277 = vpack.c.b16 %v6901, %v6899
  %v9278 = vpack.c.b16 %v6904, %v6902
  %v9279 = vpack.c.b16 %v6905, %v6903
  %v9280 = vpack.c.b16 %v6908, %v6906
  %v9281 = vpack.c.b16 %v6909, %v6907
  %v9282 = vpack.c.b16 %v6912, %v6910
  %v9283 = vpack.c.b16 %v6913, %v6911
  %v9284 = vpack.c.b16 %v6916, %v6914
  %v9285 = vpack.c.b16 %v6917, %v6915
  %v9286 = vpack.c.b16 %v6920, %v6918
  %v9287 = vpack.c.b16 %v6921, %v6919
  %v9288 = vpack.c.b16 %v6924, %v6922
  %v9289 = vpack.c.b16 %v6925, %v6923
  %v9290 = vpack.c.b16 %v6928, %v6926
  %v9291 = vpack.c.b16 %v6929, %v6927
  %v9292 = vpack.c.b16 %v6932, %v6930
  %v9293 = vpack.c.b16 %v6933, %v6931
  %v9294 = vpack.c.b16 %v6936, %v6934
  %v9295 = vpack.c.b16 %v6937, %v6935
  %v9296 = vpack.c.b16 %v6940, %v6938
  %v9297 = vpack.c.b16 %v6941, %v6939
  %v9298 = vpack.c.b16 %v6944, %v6942
  %v9299 = vpack.c.b16 %v6945, %v6943
  %v9300 = vpack.c.b16 %v6948, %v6946
  %v9301 = vpack.c.b16 %v6949, %v6947
  %v9302 = vpack.c.b16 %v6952, %v6950
  %v9303 = vpack.c.b16 %v6953, %v6951
  %v9304 = vpack.c.b16 %v6956, %v6954
  %v9305 = vpack.c.b16 %v6957, %v6955
  %v9306 = vpack.c.b16 %v6960, %v6958
  %v9307 = vpack.c.b16 %v6961, %v6959
  %v9308 = vpack.c.b16 %v6964, %v6962
  %v9309 = vpack.c.b16 %v6965, %v6963
  %v9310 = vpack.c.b16 %v6968, %v6966
  %v9311 = vpack.c.b16 %v6969, %v6967
  %v9312 = vpack.c.b16 %v6972, %v6970
  %v9313 = vpack.c.b16 %v6973, %v6971
  %v9314 = vpack.c.b16 %v6976, %v6974
  %v9315 = vpack.c.b16 %v6977, %v6975
  %v9316 = vpack.c.b16 %v6980, %v6978
  %v9317 = vpack.c.b16 %v6981, %v6979
  %v9318 = vpack.c.b16 %v6984, %v6982
  %v9319 = vpack.c.b16 %v6985, %v6983
  %v9320 = vpack.c.b16 %v6988, %v6986
  %v9321 = vpack.c.b16 %v6989, %v6987
  %v9322 = vpack.c.b16 %v6992, %v6990
  %v9323 = vpack.c.b16 %v6993, %v6991
  %v9324 = vpack.c.b16 %v6996, %v6994
  %v9325 = vpack.c.b16 %v6997, %v6995
  %v9326 = vpack.c.b16 %v7000, %v6998
  %v9327 = vpack.c.b16 %v7001, %v6999
  %v9328 = vpack.c.b16 %v7004, %v7002
  %v9329 = vpack.c.b16 %v7005, %v7003
  %v9330 = vpack.c.b16 %v7008, %v7006
  %v9331 = vpack.c.b16 %v7009, %v7007
  %v9332 = vpack.c.b16 %v7012, %v7010
  %v9333 = vpack.c.b16 %v7013, %v7011
  %v9334 = vpack.c.b16 %v7016, %v7014
  %v9335 = vpack.c.b16 %v7017, %v7015
  %v9336 = vpack.c.b16 %v7020, %v7018
  %v9337 = vpack.c.b16 %v7021, %v7019
  %v9338 = vpack.c.b16 %v7024, %v7022
  %v9339 = vpack.c.b16 %v7025, %v7023
  %v9340 = vpack.c.b16 %v7028, %v7026
  %v9341 = vpack.c.b16 %v7029, %v7027
  %v9342 = vpack.c.b16 %v7032, %v7030
  %v9343 = vpack.c.b16 %v7033, %v7031
  %v9344 = vpack.c.b16 %v7036, %v7034
  %v9345 = vpack.c.b16 %v7037, %v7035
  %v9346 = vpack.c.b16 %v7040, %v7038
  %v9347 = vpack.c.b16 %v7041, %v7039
  %v9348 = vpack.c.b16 %v7044, %v7042
  %v9349 = vpack.c.b16 %v7045, %v7043
  %v9350 = vpack.c.b16 %v7048, %v7046
  %v9351 = vpack.c.b16 %v7049, %v7047
  %v9352 = vpack.c.b16 %v7052, %v7050
  %v9353 = vpack.c.b16 %v7053, %v7051
  %v9354 = vpack.c.b16 %v7056, %v7054
  %v9355 = vpack.c.b16 %v7057, %v7055
  %v9356 = vpack.c.b16 %v7060, %v7058
  %v9357 = vpack.c.b16 %v7061, %v7059
  %v9358 = vpack.c.b16 %v7064, %v7062
  %v9359 = vpack.c.b16 %v7065, %v7063
  %v9360 = vpack.c.b16 %v7068, %v7066
  %v9361 = vpack.c.b16 %v7069, %v7067
  %v9362 = vpack.c.b16 %v7072, %v7070
  %v9363 = vpack.c.b16 %v7073, %v7071
  %v9364 = vpack.c.b16 %v7076, %v7074
  %v9365 = vpack.c.b16 %v7077, %v7075
  %v9366 = vpack.c.b16 %v7080, %v7078
  %v9367 = vpack.c.b16 %v7081, %v7079
  %v9368 = vpack.c.b16 %v7084, %v7082
  %v9369 = vpack.c.b16 %v7085, %v7083
  %v9370 = vpack.c.b16 %v7088, %v7086
  %v9371 = vpack.c.b16 %v7089, %v7087
  %v9372 = vpack.c.b16 %v7092, %v7090
  %v9373 = vpack.c.b16 %v7093, %v7091
  %v9374 = vpack.c.b16 %v7096, %v7094
  %v9375 = vpack.c.b16 %v7097, %v7095
  %v9376 = vpack.c.b16 %v7100, %v7098
  %v9377 = vpack.c.b16 %v7101, %v7099
  %v9378 = vpack.c.b16 %v7104, %v7102
  %v9379 = vpack.c.b16 %v7105, %v7103
  %v9380 = vpack.c.b16 %v7108, %v7106
  %v9381 = vpack.c.b16 %v7109, %v7107
  %v9382 = vpack.c.b16 %v7112, %v7110
  %v9383 = vpack.c.b16 %v7113, %v7111
  %v9384 = vpack.c.b16 %v7116, %v7114
  %v9385 = vpack.c.b16 %v7117, %v7115
  %v9386 = vpack.c.b16 %v7120, %v7118
  %v9387 = vpack.c.b16 %v7121, %v7119
  %v9388 = vpack.c.b16 %v7124, %v7122
  %v9389 = vpack.c.b16 %v7125, %v7123
  %v9390 = vpack.c.b16 %v7128, %v7126
  %v9391 = vpack.c.b16 %v7129, %v7127
  %v9392 = vpack.c.b16 %v7132, %v7130
  %v9393 = vpack.c.b16 %v7133, %v7131
  %v9394 = vpack.c.b16 %v7136, %v7134
  %v9395 = vpack.c.b16 %v7137, %v7135
  %v9396 = vpack.c.b16 %v7140, %v7138
  %v9397 = vpack.c.b16 %v7141, %v7139
  %v9398 = vpack.c.b16 %v7144, %v7142
  %v9399 = vpack.c.b16 %v7145, %v7143
  %v9400 = vpack.c.b16 %v7148, %v7146
  %v9401 = vpack.c.b16 %v7149, %v7147
  %v9402 = vpack.c.b16 %v7152, %v7150
  %v9403 = vpack.c.b16 %v7153, %v7151
  %v9404 = vpack.c.b16 %v7156, %v7154
  %v9405 = vpack.c.b16 %v7157, %v7155
  %v9406 = vpack.c.b16 %v7160, %v7158
  %v9407 = vpack.c.b16 %v7161, %v7159
  %v9408 = vpack.c.b16 %v7164, %v7162
  %v9409 = vpack.c.b16 %v7165, %v7163
  %v9410 = vpack.c.b16 %v7168, %v7166
  %v9411 = vpack.c.b16 %v7169, %v7167
  %v9412 = vpack.c.b16 %v7172, %v7170
  %v9413 = vpack.c.b16 %v7173, %v7171
  %v9414 = vpack.c.b16 %v7176, %v7174
  %v9415 = vpack.c.b16 %v7177, %v7175
  %v9416 = vpack.c.b16 %v7180, %v7178
  %v9417 = vpack.c.b16 %v7181, %v7179
  %v9418 = vpack.c.b16 %v7184, %v7182
  %v9419 = vpack.c.b16 %v7185, %v7183
  %v9420 = vpack.c.b16 %v7188, %v7186
  %v9421 = vpack.c.b16 %v7189, %v7187
  %v9422 = vpack.c.b16 %v7192, %v7190
  %v9423 = vpack.c.b16 %v7193, %v7191
  %v9424 = vpack.c.b16 %v7196, %v7194
  %v9425 = vpack.c.b16 %v7197, %v7195
  %v9426 = vpack.c.b16 %v7200, %v7198
  %v9427 = vpack.c.b16 %v7201, %v7199
  %v9428 = vpack.c.b16 %v7204, %v7202
  %v9429 = vpack.c.b16 %v7205, %v7203
  %v9430 = vpack.c.b16 %v7208, %v7206
  %v9431 = vpack.c.b16 %v7209, %v7207
  %v9432 = vpack.c.b16 %v7212, %v7210
  %v9433 = vpack.c.b16 %v7213, %v7211
  %v9434 = vpack.c.b16 %v7216, %v7214
  %v9435 = vpack.c.b16 %v7217, %v7215
  %v9436 = vpack.c.b16 %v7220, %v7218
  %v9437 = vpack.c.b16 %v7221, %v7219
  %v9438 = vpack.c.b16 %v7224, %v7222
  %v9439 = vpack.c.b16 %v7225, %v7223
  %v9440 = vpack.c.b16 %v7228, %v7226
  %v9441 = vpack.c.b16 %v7229, %v7227
  %v9442 = vpack.c.b16 %v7232, %v7230
  %v9443 = vpack.c.b16 %v7233, %v7231
  %v9444 = vpack.c.b16 %v7236, %v7234
  %v9445 = vpack.c.b16 %v7237, %v7235
  %v9446 = vpack.c.b16 %v7240, %v7238
  %v9447 = vpack.c.b16 %v7241, %v7239
  %v9448 = vpack.c.b16 %v7244, %v7242
  %v9449 = vpack.c.b16 %v7245, %v7243
  %v9450 = vpack.c.b16 %v7248, %v7246
  %v9451 = vpack.c.b16 %v7249, %v7247
  %v9452 = vpack.c.b16 %v7252, %v7250
  %v9453 = vpack.c.b16 %v7253, %v7251
  %v9454 = vpack.c.b16 %v7256, %v7254
  %v9455 = vpack.c.b16 %v7257, %v7255
  %v9456 = vpack.c.b16 %v7260, %v7258
  %v9457 = vpack.c.b16 %v7261, %v7259
  %v9458 = vpack.c.b16 %v7264, %v7262
  %v9459 = vpack.c.b16 %v7265, %v7263
  %v9460 = vpack.c.b16 %v7268, %v7266
  %v9461 = vpack.c.b16 %v7269, %v7267
  %v9462 = vpack.c.b16 %v7272, %v7270
  %v9463 = vpack.c.b16 %v7273, %v7271
  %v9464 = vpack.c.b16 %v7276, %v7274
  %v9465 = vpack.c.b16 %v7277, %v7275
  %v9466 = vpack.c.b16 %v7280, %v7278
  %v9467 = vpack.c.b16 %v7281, %v7279
  %v9468 = vpack.c.b16 %v7284, %v7282
  %v9469 = vpack.c.b16 %v7285, %v7283
  %v9470 = vpack.c.b16 %v7288, %v7286
  %v9471 = vpack.c.b16 %v7289, %v7287
  %v9472 = vpack.c.b16 %v7292, %v7290
  %v9473 = vpack.c.b16 %v7293, %v7291
  %v9474 = vpack.c.b16 %v7296, %v7294
  %v9475 = vpack.c.b16 %v7297, %v7295
  %v9476 = vpack.c.b16 %v7300, %v7298
  %v9477 = vpack.c.b16 %v7301, %v7299
  %v9478 = vpack.c.b16 %v7304, %v7302
  %v9479 = vpack.c.b16 %v7305, %v7303
  %v9480 = vpack.c.b16 %v7308, %v7306
  %v9481 = vpack.c.b16 %v7309, %v7307
  %v9482 = vpack.c.b16 %v7312, %v7310
  %v9483 = vpack.c.b16 %v7313, %v7311
  %v9484 = vpack.c.b16 %v7316, %v7314
  %v9485 = vpack.c.b16 %v7317, %v7315
  %v9486 = vpack.c.b16 %v7320, %v7318
  %v9487 = vpack.c.b16 %v7321, %v7319
  %v9488 = vpack.c.b16 %v7324, %v7322
  %v9489 = vpack.c.b16 %v7325, %v7323
  %v9490 = vpack.c.b16 %v7328, %v7326
  %v9491 = vpack.c.b16 %v7329, %v7327
  %v9492 = vpack.c.b16 %v7332, %v7330
  %v9493 = vpack.c.b16 %v7333, %v7331
  %v9494 = vpack.c.b16 %v7336, %v7334
  %v9495 = vpack.c.b16 %v7337, %v7335
  %v9496 = vpack.c.b16 %v7340, %v7338
  %v9497 = vpack.c.b16 %v7341, %v7339
  %v9498 = vpack.c.b16 %v7344, %v7342
  %v9499 = vpack.c.b16 %v7345, %v7343
  %v9500 = vpack.c.b16 %v7348, %v7346
  %v9501 = vpack.c.b16 %v7349, %v7347
  %v9502 = vpack.c.b16 %v7352, %v7350
  %v9503 = vpack.c.b16 %v7353, %v7351
  %v9504 = vpack.c.b16 %v7356, %v7354
  %v9505 = vpack.c.b16 %v7357, %v7355
  %v9506 = vpack.c.b16 %v7360, %v7358
  %v9507 = vpack.c.b16 %v7361, %v7359
  %v9508 = vpack.c.b16 %v7364, %v7362
  %v9509 = vpack.c.b16 %v7365, %v7363
  %v9510 = vpack.c.b16 %v7368, %v7366
  %v9511 = vpack.c.b16 %v7369, %v7367
  %v9512 = vpack.c.b16 %v7372, %v7370
  %v9513 = vpack.c.b16 %v7373, %v7371
  %v9514 = vpack.c.b16 %v7376, %v7374
  %v9515 = vpack.c.b16 %v7377, %v7375
  %v9516 = vpack.c.b16 %v7380, %v7378
  %v9517 = vpack.c.b16 %v7381, %v7379
  %v9518 = vpack.c.b16 %v7384, %v7382
  %v9519 = vpack.c.b16 %v7385, %v7383
  %v9520 = vpack.c.b16 %v7388, %v7386
  %v9521 = vpack.c.b16 %v7389, %v7387
  %v9522 = vpack.c.b16 %v7392, %v7390
  %v9523 = vpack.c.b16 %v7393, %v7391
  %v9524 = vpack.c.b16 %v7396, %v7394
  %v9525 = vpack.c.b16 %v7397, %v7395
  %v9526 = vpack.c.b16 %v7400, %v7398
  %v9527 = vpack.c.b16 %v7401, %v7399
  %v9528 = vpack.c.b16 %v7404, %v7402
  %v9529 = vpack.c.b16 %v7405, %v7403
  %v9530 = vpack.c.b16 %v7408, %v7406
  %v9531 = vpack.c.b16 %v7409, %v7407
  %v9532 = vpack.c.b16 %v7412, %v7410
  %v9533 = vpack.c.b16 %v7413, %v7411
  %v9534 = vpack.c.b16 %v7416, %v7414
  %v9535 = vpack.c.b16 %v7417, %v7415
  %v9536 = vpack.c.b16 %v7420, %v7418
  %v9537 = vpack.c.b16 %v7421, %v7419
  %v9538 = vpack.c.b16 %v7424, %v7422
  %v9539 = vpack.c.b16 %v7425, %v7423
  %v9540 = vpack.c.b16 %v7428, %v7426
  %v9541 = vpack.c.b16 %v7429, %v7427
  %v9542 = vpack.c.b16 %v7432, %v7430
  %v9543 = vpack.c.b16 %v7433, %v7431
  %v9544 = vpack.c.b16 %v7436, %v7434
  %v9545 = vpack.c.b16 %v7437, %v7435
  %v9546 = vpack.c.b16 %v7440, %v7438
  %v9547 = vpack.c.b16 %v7441, %v7439
  %v9548 = vpack.c.b16 %v7444, %v7442
  %v9549 = vpack.c.b16 %v7445, %v7443
  %v9550 = vpack.c.b16 %v7448, %v7446
  %v9551 = vpack.c.b16 %v7449, %v7447
  %v9552 = vpack.c.b16 %v7452, %v7450
  %v9553 = vpack.c.b16 %v7453, %v7451
  %v9554 = vpack.c.b16 %v7456, %v7454
  %v9555 = vpack.c.b16 %v7457, %v7455
  %v9556 = vpack.c.b16 %v7460, %v7458
  %v9557 = vpack.c.b16 %v7461, %v7459
  %v9558 = vpack.c.b16 %v7464, %v7462
  %v9559 = vpack.c.b16 %v7465, %v7463
  %v9560 = vpack.c.b16 %v7468, %v7466
  %v9561 = vpack.c.b16 %v7469, %v7467
  %v9562 = vpack.c.b16 %v7472, %v7470
  %v9563 = vpack.c.b16 %v7473, %v7471
  %v9564 = vpack.c.b16 %v7476, %v7474
  %v9565 = vpack.c.b16 %v7477, %v7475
  %v9566 = vpack.c.b16 %v7480, %v7478
  %v9567 = vpack.c.b16 %v7481, %v7479
  %v9568 = vpack.c.b16 %v7484, %v7482
  %v9569 = vpack.c.b16 %v7485, %v7483
  %v9570 = vpack.c.b16 %v7488, %v7486
  %v9571 = vpack.c.b16 %v7489, %v7487
  %v9572 = vpack.c.b16 %v7492, %v7490
  %v9573 = vpack.c.b16 %v7493, %v7491
  %v9574 = vpack.c.b16 %v7496, %v7494
  %v9575 = vpack.c.b16 %v7497, %v7495
  %v9576 = vpack.c.b16 %v7500, %v7498
  %v9577 = vpack.c.b16 %v7501, %v7499
  %v9578 = vpack.c.b16 %v7504, %v7502
  %v9579 = vpack.c.b16 %v7505, %v7503
  %v9580 = vpack.c.b16 %v7508, %v7506
  %v9581 = vpack.c.b16 %v7509, %v7507
  %v9582 = vpack.c.b16 %v7512, %v7510
  %v9583 = vpack.c.b16 %v7513, %v7511
  %v9584 = vpack.c.b16 %v7516, %v7514
  %v9585 = vpack.c.b16 %v7517, %v7515
  %v9586 = vpack.c.b16 %v7520, %v7518
  %v9587 = vpack.c.b16 %v7521, %v7519
  %v9588 = vpack.c.b16 %v7524, %v7522
  %v9589 = vpack.c.b16 %v7525, %v7523
  %v9590 = vpack.c.b16 %v7528, %v7526
  %v9591 = vpack.c.b16 %v7529, %v7527
  %v9592 = vpack.c.b16 %v7532, %v7530
  %v9593 = vpack.c.b16 %v7533, %v7531
  %v9594 = vpack.c.b16 %v7536, %v7534
  %v9595 = vpack.c.b16 %v7537, %v7535
  %v9596 = vpack.c.b16 %v7540, %v7538
  %v9597 = vpack.c.b16 %v7541, %v7539
  %v9598 = vpack.c.b16 %v7544, %v7542
  %v9599 = vpack.c.b16 %v7545, %v7543
  %v9600 = vpack.c.b16 %v7548, %v7546
  %v9601 = vpack.c.b16 %v7549, %v7547
  %v9602 = vpack.c.b16 %v7552, %v7550
  %v9603 = vpack.c.b16 %v7553, %v7551
  %v9604 = vpack.c.b16 %v7556, %v7554
  %v9605 = vpack.c.b16 %v7557, %v7555
  %v9606 = vpack.c.b16 %v7560, %v7558
  %v9607 = vpack.c.b16 %v7561, %v7559
  %v9608 = vpack.c.b16 %v7564, %v7562
  %v9609 = vpack.c.b16 %v7565, %v7563
  %v9610 = vpack.c.b16 %v7568, %v7566
  %v9611 = vpack.c.b16 %v7569, %v7567
  %v9612 = vpack.c.b16 %v7572, %v7570
  %v9613 = vpack.c.b16 %v7573, %v7571
  %v9614 = vpack.c.b16 %v7576, %v7574
  %v9615 = vpack.c.b16 %v7577, %v7575
  %v9616 = vpack.c.b16 %v7580, %v7578
  %v9617 = vpack.c.b16 %v7581, %v7579
  %v9618 = vpack.c.b16 %v7584, %v7582
  %v9619 = vpack.c.b16 %v7585, %v7583
  %v9620 = vpack.c.b16 %v7588, %v7586
  %v9621 = vpack.c.b16 %v7589, %v7587
  %v9622 = vpack.c.b16 %v7592, %v7590
  %v9623 = vpack.c.b16 %v7593, %v7591
  %v9624 = vpack.c.b16 %v7596, %v7594
  %v9625 = vpack.c.b16 %v7597, %v7595
  %v9626 = vpack.c.b16 %v7600, %v7598
  %v9627 = vpack.c.b16 %v7601, %v7599
  %v9628 = vpack.c.b16 %v7604, %v7602
  %v9629 = vpack.c.b16 %v7605, %v7603
  %v9630 = vpack.c.b16 %v7608, %v7606
  %v9631 = vpack.c.b16 %v7609, %v7607
  %v9632 = vpack.c.b16 %v7612, %v7610
  %v9633 = vpack.c.b16 %v7613, %v7611
  %v9634 = vpack.c.b16 %v7616, %v7614
  %v9635 = vpack.c.b16 %v7617, %v7615
  %v9636 = vpack.c.b16 %v7620, %v7618
  %v9637 = vpack.c.b16 %v7621, %v7619
  %v9638 = vpack.c.b16 %v7624, %v7622
  %v9639 = vpack.c.b16 %v7625, %v7623
  %v9640 = vpack.c.b16 %v7628, %v7626
  %v9641 = vpack.c.b16 %v7629, %v7627
  %v9642 = vpack.c.b16 %v7632, %v7630
  %v9643 = vpack.c.b16 %v7633, %v7631
  %v9644 = vpack.c.b16 %v7636, %v7634
  %v9645 = vpack.c.b16 %v7637, %v7635
  %v9646 = vpack.c.b16 %v7640, %v7638
  %v9647 = vpack.c.b16 %v7641, %v7639
  %v9648 = vpack.c.b16 %v7644, %v7642
  %v9649 = vpack.c.b16 %v7645, %v7643
  %v9650 = vpack.c.b16 %v7648, %v7646
  %v9651 = vpack.c.b16 %v7649, %v7647
  %v9652 = vpack.c.b16 %v7652, %v7650
  %v9653 = vpack.c.b16 %v7653, %v7651
  %v9654 = vpack.c.b16 %v7656, %v7654
  %v9655 = vpack.c.b16 %v7657, %v7655
  %v9656 = vpack.c.b16 %v7660, %v7658
  %v9657 = vpack.c.b16 %v7661, %v7659
  %v9658 = vpack.c.b16 %v7664, %v7662
  %v9659 = vpack.c.b16 %v7665, %v7663
  %v9660 = vpack.c.b16 %v7668, %v7666
  %v9661 = vpack.c.b16 %v7669, %v7667
  %v9662 = vpack.c.b16 %v7672, %v7670
  %v9663 = vpack.c.b16 %v7673, %v7671
  %v9664 = vpack.c.b16 %v7676, %v7674
  %v9665 = vpack.c.b16 %v7677, %v7675
  %v9666 = vpack.c.b16 %v7680, %v7678
  %v9667 = vpack.c.b16 %v7681, %v7679
  %v9668 = vpack.c.b16 %v7684, %v7682
  %v9669 = vpack.c.b16 %v7685, %v7683
  %v9670 = vpack.c.b16 %v7688, %v7686
  %v9671 = vpack.c.b16 %v7689, %v7687
  %v9672 = vpack.c.b16 %v7692, %v7690
  %v9673 = vpack.c.b16 %v7693, %v7691
  %v9674 = vpack.c.b16 %v7696, %v7694
  %v9675 = vpack.c.b16 %v7697, %v7695
  %v9676 = vpack.c.b16 %v7700, %v7698
  %v9677 = vpack.c.b16 %v7701, %v7699
  %v9678 = vpack.c.b16 %v7704, %v7702
  %v9679 = vpack.c.b16 %v7705, %v7703
  %v9680 = vpack.c.b16 %v7708, %v7706
  %v9681 = vpack.c.b16 %v7709, %v7707
  %v9682 = vpack.c.b16 %v7712, %v7710
  %v9683 = vpack.c.b16 %v7713, %v7711
  %v9684 = vpack.c.b16 %v7716, %v7714
  %v9685 = vpack.c.b16 %v7717, %v7715
  %v9686 = vpack.c.b16 %v7720, %v7718
  %v9687 = vpack.c.b16 %v7721, %v7719
  %v9688 = vpack.c.b16 %v7724, %v7722
  %v9689 = vpack.c.b16 %v7725, %v7723
  %v9690 = vpack.c.b16 %v7728, %v7726
  %v9691 = vpack.c.b16 %v7729, %v7727
  %v9692 = vpack.c.b16 %v7732, %v7730
  %v9693 = vpack.c.b16 %v7733, %v7731
  %v9694 = vpack.c.b16 %v7736, %v7734
  %v9695 = vpack.c.b16 %v7737, %v7735
  %v9696 = vpack.c.b16 %v7740, %v7738
  %v9697 = vpack.c.b16 %v7741, %v7739
  %v9698 = vpack.c.b16 %v7744, %v7742
  %v9699 = vpack.c.b16 %v7745, %v7743
  %v9700 = vpack.c.b16 %v7748, %v7746
  %v9701 = vpack.c.b16 %v7749, %v7747
  %v9702 = vpack.c.b16 %v7752, %v7750
  %v9703 = vpack.c.b16 %v7753, %v7751
  %v9704 = vpack.c.b16 %v7756, %v7754
  %v9705 = vpack.c.b16 %v7757, %v7755
  %v9706 = vpack.c.b16 %v7760, %v7758
  %v9707 = vpack.c.b16 %v7761, %v7759
  %v9708 = vpack.c.b16 %v7764, %v7762
  %v9709 = vpack.c.b16 %v7765, %v7763
  %v9710 = vpack.c.b16 %v7768, %v7766
  %v9711 = vpack.c.b16 %v7769, %v7767
  %v9712 = vpack.c.b16 %v7772, %v7770
  %v9713 = vpack.c.b16 %v7773, %v7771
  %v9714 = vpack.c.b16 %v7776, %v7774
  %v9715 = vpack.c.b16 %v7777, %v7775
  %v9716 = vpack.c.b16 %v7780, %v7778
  %v9717 = vpack.c.b16 %v7781, %v7779
  %v9718 = vpack.c.b16 %v7784, %v7782
  %v9719 = vpack.c.b16 %v7785, %v7783
  %v9720 = vpack.c.b16 %v7788, %v7786
  %v9721 = vpack.c.b16 %v7789, %v7787
  %v9722 = vpack.c.b16 %v7792, %v7790
  %v9723 = vpack.c.b16 %v7793, %v7791
  %v9724 = vpack.c.b16 %v7796, %v7794
  %v9725 = vpack.c.b16 %v7797, %v7795
  %v9726 = vpack.c.b16 %v7800, %v7798
  %v9727 = vpack.c.b16 %v7801, %v7799
  %v9728 = vpack.c.b16 %v7804, %v7802
  %v9729 = vpack.c.b16 %v7805, %v7803
  %v9730 = vpack.c.b16 %v7808, %v7806
  %v9731 = vpack.c.b16 %v7809, %v7807
  %v9732 = vpack.c.b16 %v7812, %v7810
  %v9733 = vpack.c.b16 %v7813, %v7811
  %v9734 = vpack.c.b16 %v7816, %v7814
  %v9735 = vpack.c.b16 %v7817, %v7815
  %v9736 = vpack.c.b16 %v7820, %v7818
  %v9737 = vpack.c.b16 %v7821, %v7819
  %v9738 = vpack.c.b16 %v7824, %v7822
  %v9739 = vpack.c.b16 %v7825, %v7823
  %v9740 = vpack.c.b16 %v7828, %v7826
  %v9741 = vpack.c.b16 %v7829, %v7827
  %v9742 = vpack.c.b16 %v7832, %v7830
  %v9743 = vpack.c.b16 %v7833, %v7831
  %v9744 = vpack.c.b16 %v7836, %v7834
  %v9745 = vpack.c.b16 %v7837, %v7835
  %v9746 = vpack.c.b16 %v7840, %v7838
  %v9747 = vpack.c.b16 %v7841, %v7839
  %v9748 = vpack.c.b16 %v7844, %v7842
  %v9749 = vpack.c.b16 %v7845, %v7843
  %v9750 = vpack.c.b16 %v7848, %v7846
  %v9751 = vpack.c.b16 %v7849, %v7847
  %v9752 = vpack.c.b16 %v7852, %v7850
  %v9753 = vpack.c.b16 %v7853, %v7851
  %v9754 = vpack.c.b16 %v7856, %v7854
  %v9755 = vpack.c.b16 %v7857, %v7855
  %v9756 = vpack.c.b16 %v7860, %v7858
  %v9757 = vpack.c.b16 %v7861, %v7859
  %v9758 = vpack.c.b16 %v7864, %v7862
  %v9759 = vpack.c.b16 %v7865, %v7863
  %v9760 = vpack.c.b16 %v7868, %v7866
  %v9761 = vpack.c.b16 %v7869, %v7867
  %v9762 = vpack.c.b16 %v7872, %v7870
  %v9763 = vpack.c.b16 %v7873, %v7871
  %v9764 = vpack.c.b16 %v7876, %v7874
  %v9765 = vpack.c.b16 %v7877, %v7875
  %v9766 = vpack.c.b16 %v7880, %v7878
  %v9767 = vpack.c.b16 %v7881, %v7879
  %v9768 = vpack.c.b16 %v7884, %v7882
  %v9769 = vpack.c.b16 %v7885, %v7883
  %v9770 = vpack.c.b16 %v7888, %v7886
  %v9771 = vpack.c.b16 %v7889, %v7887
  %v9772 = vpack.c.b16 %v7892, %v7890
  %v9773 = vpack.c.b16 %v7893, %v7891
  %v9774 = vpack.c.b16 %v7896, %v7894
  %v9775 = vpack.c.b16 %v7897, %v7895
  %v9776 = vpack.c.b16 %v7900, %v7898
  %v9777 = vpack.c.b16 %v7901, %v7899
  %v9778 = vpack.c.b16 %v7904, %v7902
  %v9779 = vpack.c.b16 %v7905, %v7903
  %v9780 = vpack.c.b16 %v7908, %v7906
  %v9781 = vpack.c.b16 %v7909, %v7907
  %v9782 = vpack.c.b16 %v7912, %v7910
  %v9783 = vpack.c.b16 %v7913, %v7911
  %v9784 = vpack.c.b16 %v7916, %v7914
  %v9785 = vpack.c.b16 %v7917, %v7915
  %v9786 = vpack.c.b16 %v7920, %v7918
  %v9787 = vpack.c.b16 %v7921, %v7919
  %v9788 = vpack.c.b16 %v7924, %v7922
  %v9789 = vpack.c.b16 %v7925, %v7923
  %v9790 = vpack.c.b16 %v7928, %v7926
  %v9791 = vpack.c.b16 %v7929, %v7927
  %v9792 = vpack.c.b16 %v7932, %v7930
  %v9793 = vpack.c.b16 %v7933, %v7931
  %v9794 = vpack.c.b16 %v7936, %v7934
  %v9795 = vpack.c.b16 %v7937, %v7935
  %v9796 = vpack.c.b16 %v7940, %v7938
  %v9797 = vpack.c.b16 %v7941, %v7939
  %v9798 = vpack.c.b16 %v7944, %v7942
  %v9799 = vpack.c.b16 %v7945, %v7943
  %v9800 = vpack.c.b16 %v7948, %v7946
  %v9801 = vpack.c.b16 %v7949, %v7947
  %v9802 = vpack.c.b16 %v7952, %v7950
  %v9803 = vpack.c.b16 %v7953, %v7951
  %v9804 = vpack.c.b16 %v7956, %v7954
  %v9805 = vpack.c.b16 %v7957, %v7955
  %v9806 = vpack.c.b16 %v7960, %v7958
  %v9807 = vpack.c.b16 %v7961, %v7959
  %v9808 = vpack.c.b16 %v7964, %v7962
  %v9809 = vpack.c.b16 %v7965, %v7963
  %v9810 = vpack.c.b16 %v7968, %v7966
  %v9811 = vpack.c.b16 %v7969, %v7967
  %v9812 = vpack.c.b16 %v7972, %v7970
  %v9813 = vpack.c.b16 %v7973, %v7971
  %v9814 = vpack.c.b16 %v7976, %v7974
  %v9815 = vpack.c.b16 %v7977, %v7975
  %v9816 = vpack.c.b16 %v7980, %v7978
  %v9817 = vpack.c.b16 %v7981, %v7979
  %v9818 = vpack.c.b16 %v7984, %v7982
  %v9819 = vpack.c.b16 %v7985, %v7983
  %v9820 = vpack.c.b16 %v7988, %v7986
  %v9821 = vpack.c.b16 %v7989, %v7987
  %v9822 = vpack.c.b16 %v7992, %v7990
  %v9823 = vpack.c.b16 %v7993, %v7991
  %v9824 = vpack.c.b16 %v7996, %v7994
  %v9825 = vpack.c.b16 %v7997, %v7995
  %v9826 = vpack.c.b16 %v8000, %v7998
  %v9827 = vpack.c.b16 %v8001, %v7999
  %v9828 = vpack.c.b16 %v8004, %v8002
  %v9829 = vpack.c.b16 %v8005, %v8003
  %v9830 = vpack.c.b16 %v8008, %v8006
  %v9831 = vpack.c.b16 %v8009, %v8007
  %v9832 = vpack.c.b16 %v8012, %v8010
  %v9833 = vpack.c.b16 %v8013, %v8011
  %v9834 = vpack.c.b16 %v8016, %v8014
  %v9835 = vpack.c.b16 %v8017, %v8015
  %v9836 = vpack.c.b16 %v8020, %v8018
  %v9837 = vpack.c.b16 %v8021, %v8019
  %v9838 = vpack.c.b16 %v8024, %v8022
  %v9839 = vpack.c.b16 %v8025, %v8023
  %v9840 = vpack.c.b16 %v8028, %v8026
  %v9841 = vpack.c.b16 %v8029, %v8027
  %v9842 = vpack.c.b16 %v8032, %v8030
  %v9843 = vpack.c.b16 %v8033, %v8031
  %v9844 = vpack.c.b16 %v8036, %v8034
  %v9845 = vpack.c.b16 %v8037, %v8035
  %v9846 = vpack.c.b16 %v8040, %v8038
  %v9847 = vpack.c.b16 %v8041, %v8039
  %v9848 = vpack.c.b16 %v8044, %v8042
  %v9849 = vpack.c.b16 %v8045, %v8043
  %v9850 = vpack.c.b16 %v8048, %v8046
  %v9851 = vpack.c.b16 %v8049, %v8047
  %v9852 = vpack.c.b16 %v8052, %v8050
  %v9853 = vpack.c.b16 %v8053, %v8051
  %v9854 = vpack.c.b16 %v8056, %v8054
  %v9855 = vpack.c.b16 %v8057, %v8055
  %v9856 = vpack.c.b16 %v8060, %v8058
  %v9857 = vpack.c.b16 %v8061, %v8059
  %v9858 = vpack.c.b16 %v8064, %v8062
  %v9859 = vpack.c.b16 %v8065, %v8063
  %v9860 = vpack.c.b16 %v8068, %v8066
  %v9861 = vpack.c.b16 %v8069, %v8067
  %v9862 = vpack.c.b16 %v8072, %v8070
  %v9863 = vpack.c.b16 %v8073, %v8071
  %v9864 = vpack.c.b16 %v8076, %v8074
  %v9865 = vpack.c.b16 %v8077, %v8075
  %v9866 = vpack.c.b16 %v8080, %v8078
  %v9867 = vpack.c.b16 %v8081, %v8079
  %v9868 = vpack.c.b16 %v8084, %v8082
  %v9869 = vpack.c.b16 %v8085, %v8083
  %v9870 = vpack.c.b16 %v8088, %v8086
  %v9871 = vpack.c.b16 %v8089, %v8087
  %v9872 = vpack.c.b16 %v8092, %v8090
  %v9873 = vpack.c.b16 %v8093, %v8091
  %v9874 = vpack.c.b16 %v8096, %v8094
  %v9875 = vpack.c.b16 %v8097, %v8095
  %v9876 = vpack.c.b16 %v8100, %v8098
  %v9877 = vpack.c.b16 %v8101, %v8099
  %v9878 = vpack.c.b16 %v8104, %v8102
  %v9879 = vpack.c.b16 %v8105, %v8103
  %v9880 = vpack.c.b16 %v8108, %v8106
  %v9881 = vpack.c.b16 %v8109, %v8107
  %v9882 = vpack.c.b16 %v8112, %v8110
  %v9883 = vpack.c.b16 %v8113, %v8111
  %v9884 = vpack.c.b16 %v8116, %v8114
  %v9885 = vpack.c.b16 %v8117, %v8115
  %v9886 = vpack.c.b16 %v8120, %v8118
  %v9887 = vpack.c.b16 %v8121, %v8119
  %v9888 = vpack.c.b16 %v8124, %v8122
  %v9889 = vpack.c.b16 %v8125, %v8123
  %v9890 = vpack.c.b16 %v8128, %v8126
  %v9891 = vpack.c.b16 %v8129, %v8127
  %v9892 = vpack.c.b16 %v8132, %v8130
  %v9893 = vpack.c.b16 %v8133, %v8131
  %v9894 = vpack.c.b16 %v8136, %v8134
  %v9895 = vpack.c.b16 %v8137, %v8135
  %v9896 = vpack.c.b16 %v8140, %v8138
  %v9897 = vpack.c.b16 %v8141, %v8139
  %v9898 = vpack.c.b16 %v8144, %v8142
  %v9899 = vpack.c.b16 %v8145, %v8143
  %v9900 = vpack.c.b16 %v8148, %v8146
  %v9901 = vpack.c.b16 %v8149, %v8147
  %v9902 = vpack.c.b16 %v8152, %v8150
  %v9903 = vpack.c.b16 %v8153, %v8151
  %v9904 = vpack.c.b16 %v8156, %v8154
  %v9905 = vpack.c.b16 %v8157, %v8155
  %v9906 = vpack.c.b16 %v8160, %v8158
  %v9907 = vpack.c.b16 %v8161, %v8159
  %v9908 = vpack.c.b16 %v8164, %v8162
  %v9909 = vpack.c.b16 %v8165, %v8163
  %v9910 = vpack.c.b16 %v8168, %v8166
  %v9911 = vpack.c.b16 %v8169, %v8167
  %v9912 = vpack.c.b16 %v8172, %v8170
  %v9913 = vpack.c.b16 %v8173, %v8171
  %v9914 = vpack.c.b16 %v8176, %v8174
  %v9915 = vpack.c.b16 %v8177, %v8175
  %v9916 = vpack.c.b16 %v8180, %v8178
  %v9917 = vpack.c.b16 %v8181, %v8179
  %v9918 = vpack.c.b16 %v8184, %v8182
  %v9919 = vpack.c.b16 %v8185, %v8183
  %v9920 = vpack.c.b16 %v8188, %v8186
  %v9921 = vpack.c.b16 %v8189, %v8187
  %v9922 = vpack.c.b16 %v8192, %v8190
  %v9923 = vpack.c.b16 %v8193, %v8191
  %v9924 = vpack.c.b16 %v8196, %v8194
  %v9925 = vpack.c.b16 %v8197, %v8195
  %v9926 = vpack.c.b16 %v8200, %v8198
  %v9927 = vpack.c.b16 %v8201, %v8199
  %v9928 = vpack.c.b16 %v8204, %v8202
  %v9929 = vpack.c.b16 %v8205, %v8203
  %v9930 = vpack.c.b16 %v8208, %v8206
  %v9931 = vpack.c.b16 %v8209, %v8207
  %v9932 = vpack.c.b16 %v8212, %v8210
  %v9933 = vpack.c.b16 %v8213, %v8211
  %v9934 = vpack.c.b16 %v8216, %v8214
  %v9935 = vpack.c.b16 %v8217, %v8215
  %v9936 = vpack.c.b16 %v8220, %v8218
  %v9937 = vpack.c.b16 %v8221, %v8219
  %v9938 = vpack.c.b16 %v8224, %v8222
  %v9939 = vpack.c.b16 %v8225, %v8223
  %v9940 = vpack.c.b16 %v8228, %v8226
  %v9941 = vpack.c.b16 %v8229, %v8227
  %v9942 = vpack.c.b16 %v8232, %v8230
  %v9943 = vpack.c.b16 %v8233, %v8231
  %v9944 = vpack.c.b16 %v8236, %v8234
  %v9945 = vpack.c.b16 %v8237, %v8235
  %v9946 = vpack.c.b16 %v8240, %v8238
  %v9947 = vpack.c.b16 %v8241, %v8239
  %v9948 = vpack.c.b16 %v8244, %v8242
  %v9949 = vpack.c.b16 %v8245, %v8243
  %v9950 = vpack.c.b16 %v8248, %v8246
  %v9951 = vpack.c.b16 %v8249, %v8247
  %v9952 = vpack.c.b16 %v8252, %v8250
  %v9953 = vpack.c.b16 %v8253, %v8251
  %v9954 = vpack.c.b16 %v8256, %v8254
  %v9955 = vpack.c.b16 %v8257, %v8255
  %v9956 = vpack.c.b16 %v8260, %v8258
  %v9957 = vpack.c.b16 %v8261, %v8259
  %v9958 = vpack.c.b16 %v8264, %v8262
  %v9959 = vpack.c.b16 %v8265, %v8263
  %v9960 = vpack.c.b16 %v8268, %v8266
  %v9961 = vpack.c.b16 %v8269, %v8267
  %v9962 = vpack.c.b16 %v8272, %v8270
  %v9963 = vpack.c.b16 %v8273, %v8271
  %v9964 = vpack.c.b16 %v8276, %v8274
  %v9965 = vpack.c.b16 %v8277, %v8275
  %v9966 = vpack.c.b16 %v8280, %v8278
  %v9967 = vpack.c.b16 %v8281, %v8279
  %v9968 = vpack.c.b16 %v8284, %v8282
  %v9969 = vpack.c.b16 %v8285, %v8283
  %v9970 = vpack.c.b16 %v8288, %v8286
  %v9971 = vpack.c.b16 %v8289, %v8287
  %v9972 = vpack.c.b16 %v8292, %v8290
  %v9973 = vpack.c.b16 %v8293, %v8291
  %v9974 = vpack.c.b16 %v8296, %v8294
  %v9975 = vpack.c.b16 %v8297, %v8295
  %v9976 = vpack.c.b16 %v8300, %v8298
  %v9977 = vpack.c.b16 %v8301, %v8299
  %v9978 = vpack.c.b16 %v8304, %v8302
  %v9979 = vpack.c.b16 %v8305, %v8303
  %v9980 = vpack.c.b16 %v8308, %v8306
  %v9981 = vpack.c.b16 %v8309, %v8307
  %v9982 = vpack.c.b16 %v8312, %v8310
  %v9983 = vpack.c.b16 %v8313, %v8311
  %v9984 = vpack.c.b16 %v8316, %v8314
  %v9985 = vpack.c.b16 %v8317, %v8315
  %v9986 = vpack.c.b16 %v8320, %v8318
  %v9987 = vpack.c.b16 %v8321, %v8319
  %v9988 = vpack.c.b16 %v8324, %v8322
  %v9989 = vpack.c.b16 %v8325, %v8323
  %v9990 = vpack.c.b16 %v8328, %v8326
  %v9991 = vpack.c.b16 %v8329, %v8327
  %v9992 = vpack.c.b16 %v8332, %v8330
  %v9993 = vpack.c.b16 %v8333, %v8331
  %v9994 = vpack.c.b16 %v8336, %v8334
  %v9995 = vpack.c.b16 %v8337, %v8335
  %v9996 = vpack.c.b16 %v8340, %v8338
  %v9997 = vpack.c.b16 %v8341, %v8339
  %v9998 = vpack.c.b16 %v8344, %v8342
  %v9999 = vpack.c.b16 %v8345, %v8343
  %v10000 = vpack.c.b16 %v8348, %v8346
  %v10001 = vpack.c.b16 %v8349, %v8347
  %v10002 = vpack.c.b16 %v8352, %v8350
  %v10003 = vpack.c.b16 %v8353, %v8351
  %v10004 = vpack.c.b16 %v8356, %v8354
  %v10005 = vpack.c.b16 %v8357, %v8355
  %v10006 = vpack.c.b16 %v8360, %v8358
  %v10007 = vpack.c.b16 %v8361, %v8359
  %v10008 = vpack.c.b16 %v8364, %v8362
  %v10009 = vpack.c.b16 %v8365, %v8363
  %v10010 = vpack.c.b16 %v8368, %v8366
  %v10011 = vpack.c.b16 %v8369, %v8367
  %v10012 = vpack.c.b16 %v8372, %v8370
  %v10013 = vpack.c.b16 %v8373, %v8371
  %v10014 = vpack.c.b16 %v8376, %v8374
  %v10015 = vpack.c.b16 %v8377, %v8375
  %v10016 = vpack.c.b16 %v8380, %v8378
  %v10017 = vpack.c.b16 %v8381, %v8379
  %v10018 = vpack.c.b16 %v8384, %v8382
  %v10019 = vpack.c.b16 %v8385, %v8383
  %v10020 = vpack.c.b16 %v8388, %v8386
  %v10021 = vpack.c.b16 %v8389, %v8387
  %v10022 = vpack.c.b16 %v8392, %v8390
  %v10023 = vpack.c.b16 %v8393, %v8391
  %v10024 = vpack.c.b16 %v8396, %v8394
  %v10025 = vpack.c.b16 %v8397, %v8395
  %v10026 = vpack.c.b16 %v8400, %v8398
  %v10027 = vpack.c.b16 %v8401, %v8399
  %v10028 = vpack.c.b16 %v8404, %v8402
  %v10029 = vpack.c.b16 %v8405, %v8403
  %v10030 = vpack.c.b16 %v8408, %v8406
  %v10031 = vpack.c.b16 %v8409, %v8407
  %v10032 = vpack.c.b16 %v8412, %v8410
  %v10033 = vpack.c.b16 %v8413, %v8411
  %v10034 = vpack.c.b16 %v8416, %v8414
  %v10035 = vpack.c.b16 %v8417, %v8415
  %v10036 = vpack.c.b16 %v8420, %v8418
  %v10037 = vpack.c.b16 %v8421, %v8419
  %v10038 = vpack.c.b16 %v8424, %v8422
  %v10039 = vpack.c.b16 %v8425, %v8423
  %v10040 = vpack.c.b16 %v8428, %v8426
  %v10041 = vpack.c.b16 %v8429, %v8427
  %v10042 = vpack.c.b16 %v8432, %v8430
  %v10043 = vpack.c.b16 %v8433, %v8431
  %v10044 = vpack.c.b16 %v8436, %v8434
  %v10045 = vpack.c.b16 %v8437, %v8435
  %v10046 = vpack.c.b16 %v8440, %v8438
  %v10047 = vpack.c.b16 %v8441, %v8439
  %v10048 = vpack.c.b16 %v8444, %v8442
  %v10049 = vpack.c.b16 %v8445, %v8443
  %v10050 = vpack.c.b16 %v8448, %v8446
  %v10051 = vpack.c.b16 %v8449, %v8447
  %v10052 = vpack.c.b16 %v8452, %v8450
  %v10053 = vpack.c.b16 %v8453, %v8451
  %v10054 = vpack.c.b16 %v8456, %v8454
  %v10055 = vpack.c.b16 %v8457, %v8455
  %v10056 = vpack.c.b16 %v8460, %v8458
  %v10057 = vpack.c.b16 %v8461, %v8459
  %v10058 = vpack.c.b16 %v8464, %v8462
  %v10059 = vpack.c.b16 %v8465, %v8463
  %v10060 = vpack.c.b16 %v8468, %v8466
  %v10061 = vpack.c.b16 %v8469, %v8467
  %v10062 = vpack.c.b16 %v8472, %v8470
  %v10063 = vpack.c.b16 %v8473, %v8471
  %v10064 = vpack.c.b16 %v8476, %v8474
  %v10065 = vpack.c.b16 %v8477, %v8475
  %v10066 = vpack.c.b16 %v8480, %v8478
  %v10067 = vpack.c.b16 %v8481, %v8479
  %v10068 = vpack.c.b16 %v8484, %v8482
  %v10069 = vpack.c.b16 %v8485, %v8483
  %v10070 = vpack.c.b16 %v8488, %v8486
  %v10071 = vpack.c.b16 %v8489, %v8487
  %v10072 = vpack.c.b16 %v8492, %v8490
  %v10073 = vpack.c.b16 %v8493, %v8491
  %v10074 = vpack.c.b16 %v8496, %v8494
  %v10075 = vpack.c.b16 %v8497, %v8495
  %v10076 = vpack.c.b16 %v8500, %v8498
  %v10077 = vpack.c.b16 %v8501, %v8499
  %v10078 = vpack.c.b16 %v8504, %v8502
  %v10079 = vpack.c.b16 %v8505, %v8503
  %v10080 = vpack.c.b16 %v8508, %v8506
  %v10081 = vpack.c.b16 %v8509, %v8507
  %v10082 = vpack.c.b16 %v8512, %v8510
  %v10083 = vpack.c.b16 %v8513, %v8511
  %v10084 = vpack.c.b16 %v8516, %v8514
  %v10085 = vpack.c.b16 %v8517, %v8515
  %v10086 = vpack.c.b16 %v8520, %v8518
  %v10087 = vpack.c.b16 %v8521, %v8519
  %v10088 = vpack.c.b16 %v8524, %v8522
  %v10089 = vpack.c.b16 %v8525, %v8523
  %v10090 = vpack.c.b16 %v8528, %v8526
  %v10091 = vpack.c.b16 %v8529, %v8527
  %v10092 = vpack.c.b16 %v8532, %v8530
  %v10093 = vpack.c.b16 %v8533, %v8531
  %v10094 = vpack.c.b16 %v8536, %v8534
  %v10095 = vpack.c.b16 %v8537, %v8535
  %v10096 = vpack.c.b16 %v8540, %v8538
  %v10097 = vpack.c.b16 %v8541, %v8539
  %v10098 = vpack.c.b16 %v8544, %v8542
  %v10099 = vpack.c.b16 %v8545, %v8543
  %v10100 = vpack.c.b16 %v8548, %v8546
  %v10101 = vpack.c.b16 %v8549, %v8547
  %v10102 = vpack.c.b16 %v8552, %v8550
  %v10103 = vpack.c.b16 %v8553, %v8551
  %v10104 = vpack.c.b16 %v8556, %v8554
  %v10105 = vpack.c.b16 %v8557, %v8555
  %v10106 = vpack.c.b16 %v8560, %v8558
  %v10107 = vpack.c.b16 %v8561, %v8559
  %v10108 = vpack.c.b16 %v8564, %v8562
  %v10109 = vpack.c.b16 %v8565, %v8563
  %v10110 = vpack.c.b16 %v8568, %v8566
  %v10111 = vpack.c.b16 %v8569, %v8567
  %v10112 = vpack.c.b16 %v8572, %v8570
  %v10113 = vpack.c.b16 %v8573, %v8571
  %v10114 = vpack.c.b16 %v8576, %v8574
  %v10115 = vpack.c.b16 %v8577, %v8575
  %v10116 = vpack.c.b16 %v8580, %v8578
  %v10117 = vpack.c.b16 %v8581, %v8579
  %11654 = vmatprep.subr.bf16.mxu0 %v8583
  %11655 = vmatpush1.bf16.msra.mxu0 %v8582
  %11656 = vmatprep.subr.bf16.mxu0 %v8585
  %11657 = vmatpush1.bf16.msra.mxu0 %v8584
  %11658 = vmatprep.subr.bf16.mxu0 %v8587
  %11659 = vmatpush1.bf16.msra.mxu0 %v8586
  %11660 = vmatprep.subr.bf16.mxu0 %v8589
  %11661 = vmatpush1.bf16.msra.mxu0 %v8588
  %11662 = vmatprep.subr.bf16.mxu0 %v8591
  %11663 = vmatpush1.bf16.msra.mxu0 %v8590
  %11664 = vmatprep.subr.bf16.mxu0 %v8593
  %11665 = vmatpush1.bf16.msra.mxu0 %v8592
  %11666 = vmatprep.subr.bf16.mxu0 %v8595
  %11667 = vmatpush1.bf16.msra.mxu0 %v8594
  %11668 = vmatprep.subr.bf16.mxu0 %v8597
  %11669 = vmatpush1.bf16.msra.mxu0 %v8596
  %11670 = vmatprep.subr.bf16.mxu0 %v8599
  %11671 = vmatpush1.bf16.msra.mxu0 %v8598
  %11672 = vmatprep.subr.bf16.mxu0 %v8601
  %11673 = vmatpush1.bf16.msra.mxu0 %v8600
  %11674 = vmatprep.subr.bf16.mxu0 %v8603
  %11675 = vmatpush1.bf16.msra.mxu0 %v8602
  %11676 = vmatprep.subr.bf16.mxu0 %v8605
  %11677 = vmatpush1.bf16.msra.mxu0 %v8604
  %11678 = vmatprep.subr.bf16.mxu0 %v8607
  %11679 = vmatpush1.bf16.msra.mxu0 %v8606
  %11680 = vmatprep.subr.bf16.mxu0 %v8609
  %11681 = vmatpush1.bf16.msra.mxu0 %v8608
  %11682 = vmatprep.subr.bf16.mxu0 %v8611
  %11683 = vmatpush1.bf16.msra.mxu0 %v8610
  %11684 = vmatprep.subr.bf16.mxu0 %v8613
  %11685 = vmatpush1.bf16.msra.mxu0 %v8612
  %11686 = vmatprep.mubr.bf16.mxu0 %v2331
  %11687 = vmatmul.mubr.bf16.gmra.mrb[0].mxu0 %v2330
  %v11688 = vpop.f32.mrb[0].mxu0
  %v11689 = vadd.f32 %v3967, %v11688
  %v11690 = vpop.f32.mrb[0].mxu0
  %v11691 = vadd.f32 %v3971, %v11690
  %v11692 = vpop.f32.mrb[0].mxu0
  %v11693 = vadd.f32 %v3967, %v11692
  %v11694 = vpop.f32.mrb[0].mxu0
  %v11695 = vadd.f32 %v3971, %v11694
  %11696 = vdwg.mxu0
  %11697 = vmatprep.subr.bf16.mxu0 %v8615
  %11698 = vmatpush1.bf16.msra.mxu0 %v8614
  %11699 = vmatprep.subr.bf16.mxu0 %v8617
  %11700 = vmatpush1.bf16.msra.mxu0 %v8616
  %11701 = vmatprep.subr.bf16.mxu0 %v8619
  %11702 = vmatpush1.bf16.msra.mxu0 %v8618
  %11703 = vmatprep.subr.bf16.mxu0 %v8621
  %11704 = vmatpush1.bf16.msra.mxu0 %v8620
  %11705 = vmatprep.subr.bf16.mxu0 %v8623
  %11706 = vmatpush1.bf16.msra.mxu0 %v8622
  %11707 = vmatprep.subr.bf16.mxu0 %v8625
  %11708 = vmatpush1.bf16.msra.mxu0 %v8624
  %11709 = vmatprep.subr.bf16.mxu0 %v8627
  %11710 = vmatpush1.bf16.msra.mxu0 %v8626
  %11711 = vmatprep.subr.bf16.mxu0 %v8629
  %11712 = vmatpush1.bf16.msra.mxu0 %v8628
  %11713 = vmatprep.subr.bf16.mxu0 %v8631
  %11714 = vmatpush1.bf16.msra.mxu0 %v8630
  %11715 = vmatprep.subr.bf16.mxu0 %v8633
  %11716 = vmatpush1.bf16.msra.mxu0 %v8632
  %11717 = vmatprep.subr.bf16.mxu0 %v8635
  %11718 = vmatpush1.bf16.msra.mxu0 %v8634
  %11719 = vmatprep.subr.bf16.mxu0 %v8637
  %11720 = vmatpush1.bf16.msra.mxu0 %v8636
  %11721 = vmatprep.subr.bf16.mxu0 %v8639
  %11722 = vmatpush1.bf16.msra.mxu0 %v8638
  %11723 = vmatprep.subr.bf16.mxu0 %v8641
  %11724 = vmatpush1.bf16.msra.mxu0 %v8640
  %11725 = vmatprep.subr.bf16.mxu0 %v8643
  %11726 = vmatpush1.bf16.msra.mxu0 %v8642
  %11727 = vmatprep.subr.bf16.mxu0 %v8645
  %11728 = vmatpush1.bf16.msra.mxu0 %v8644
  %11729 = vmatprep.mubr.bf16.mxu0 %v2333
  %11730 = vmatmul.mubr.bf16.gmra.mrb[0].mxu0 %v2332
  %v11731 = vpop.f32.mrb[0].mxu0
  %v11732 = vadd.f32 %v11689, %v11731
  %v11733 = vpop.f32.mrb[0].mxu0
  %v11734 = vadd.f32 %v11691, %v11733
  %v11735 = vpop.f32.mrb[0].mxu0
  %v11736 = vadd.f32 %v11693, %v11735
  %v11737 = vpop.f32.mrb[0].mxu0
  %v11738 = vadd.f32 %v11695, %v11737
  %11739 = vdwg.mxu0
  %11740 = vmatprep.subr.bf16.mxu0 %v8647
  %11741 = vmatpush1.bf16.msra.mxu0 %v8646
  %11742 = vmatprep.subr.bf16.mxu0 %v8649
  %11743 = vmatpush1.bf16.msra.mxu0 %v8648
  %11744 = vmatprep.subr.bf16.mxu0 %v8651
  %11745 = vmatpush1.bf16.msra.mxu0 %v8650
  %11746 = vmatprep.subr.bf16.mxu0 %v8653
  %11747 = vmatpush1.bf16.msra.mxu0 %v8652
  %11748 = vmatprep.subr.bf16.mxu0 %v8655
  %11749 = vmatpush1.bf16.msra.mxu0 %v8654
  %11750 = vmatprep.subr.bf16.mxu0 %v8657
  %11751 = vmatpush1.bf16.msra.mxu0 %v8656
  %11752 = vmatprep.subr.bf16.mxu0 %v8659
  %11753 = vmatpush1.bf16.msra.mxu0 %v8658
  %11754 = vmatprep.subr.bf16.mxu0 %v8661
  %11755 = vmatpush1.bf16.msra.mxu0 %v8660
  %11756 = vmatprep.subr.bf16.mxu0 %v8663
  %11757 = vmatpush1.bf16.msra.mxu0 %v8662
  %11758 = vmatprep.subr.bf16.mxu0 %v8665
  %11759 = vmatpush1.bf16.msra.mxu0 %v8664
  %11760 = vmatprep.subr.bf16.mxu0 %v8667
  %11761 = vmatpush1.bf16.msra.mxu0 %v8666
  %11762 = vmatprep.subr.bf16.mxu0 %v8669
  %11763 = vmatpush1.bf16.msra.mxu0 %v8668
  %11764 = vmatprep.subr.bf16.mxu0 %v8671
  %11765 = vmatpush1.bf16.msra.mxu0 %v8670
  %11766 = vmatprep.subr.bf16.mxu0 %v8673
  %11767 = vmatpush1.bf16.msra.mxu0 %v8672
  %11768 = vmatprep.subr.bf16.mxu0 %v8675
  %11769 = vmatpush1.bf16.msra.mxu0 %v8674
  %11770 = vmatprep.subr.bf16.mxu0 %v8677
  %11771 = vmatpush1.bf16.msra.mxu0 %v8676
  %11772 = vmatprep.mubr.bf16.mxu0 %v2335
  %11773 = vmatmul.mubr.bf16.gmra.mrb[0].mxu0 %v2334
  %v11774 = vpop.f32.mrb[0].mxu0
  %v11775 = vadd.f32 %v11732, %v11774
  %v11776 = vpop.f32.mrb[0].mxu0
  %v11777 = vadd.f32 %v11734, %v11776
  %v11778 = vpop.f32.mrb[0].mxu0
  %v11779 = vadd.f32 %v11736, %v11778
  %v11780 = vpop.f32.mrb[0].mxu0
  %v11781 = vadd.f32 %v11738, %v11780
  %11782 = vdwg.mxu0
  %11783 = vmatprep.subr.bf16.mxu0 %v8679
  %11784 = vmatpush1.bf16.msra.mxu0 %v8678
  %11785 = vmatprep.subr.bf16.mxu0 %v8681
  %11786 = vmatpush1.bf16.msra.mxu0 %v8680
  %11787 = vmatprep.subr.bf16.mxu0 %v8683
  %11788 = vmatpush1.bf16.msra.mxu0 %v8682
  %11789 = vmatprep.subr.bf16.mxu0 %v8685
  %11790 = vmatpush1.bf16.msra.mxu0 %v8684
  %11791 = vmatprep.subr.bf16.mxu0 %v8687
  %11792 = vmatpush1.bf16.msra.mxu0 %v8686
  %11793 = vmatprep.subr.bf16.mxu0 %v8689
  %11794 = vmatpush1.bf16.msra.mxu0 %v8688
  %11795 = vmatprep.subr.bf16.mxu0 %v8691
  %11796 = vmatpush1.bf16.msra.mxu0 %v8690
  %11797 = vmatprep.subr.bf16.mxu0 %v8693
  %11798 = vmatpush1.bf16.msra.mxu0 %v8692
  %11799 = vmatprep.subr.bf16.mxu0 %v8695
  %11800 = vmatpush1.bf16.msra.mxu0 %v8694
  %11801 = vmatprep.subr.bf16.mxu0 %v8697
  %11802 = vmatpush1.bf16.msra.mxu0 %v8696
  %11803 = vmatprep.subr.bf16.mxu0 %v8699
  %11804 = vmatpush1.bf16.msra.mxu0 %v8698
  %11805 = vmatprep.subr.bf16.mxu0 %v8701
  %11806 = vmatpush1.bf16.msra.mxu0 %v8700
  %11807 = vmatprep.subr.bf16.mxu0 %v8703
  %11808 = vmatpush1.bf16.msra.mxu0 %v8702
  %11809 = vmatprep.subr.bf16.mxu0 %v8705
  %11810 = vmatpush1.bf16.msra.mxu0 %v8704
  %11811 = vmatprep.subr.bf16.mxu0 %v8707
  %11812 = vmatpush1.bf16.msra.mxu0 %v8706
  %11813 = vmatprep.subr.bf16.mxu0 %v8709
  %11814 = vmatpush1.bf16.msra.mxu0 %v8708
  %11815 = vmatprep.mubr.bf16.mxu0 %v2337
  %11816 = vmatmul.mubr.bf16.gmra.mrb[0].mxu0 %v2336
  %v11817 = vpop.f32.mrb[0].mxu0
  %v11818 = vadd.f32 %v11775, %v11817
  %v11819 = vpop.f32.mrb[0].mxu0
  %v11820 = vadd.f32 %v11777, %v11819
  %v11821 = vpop.f32.mrb[0].mxu0
  %v11822 = vadd.f32 %v11779, %v11821
  %v11823 = vpop.f32.mrb[0].mxu0
  %v11824 = vadd.f32 %v11781, %v11823
  %11825 = vdwg.mxu0
  %11826 = vmatprep.subr.bf16.mxu0 %v8711
  %11827 = vmatpush1.bf16.msra.mxu0 %v8710
  %11828 = vmatprep.subr.bf16.mxu0 %v8713
  %11829 = vmatpush1.bf16.msra.mxu0 %v8712
  %11830 = vmatprep.subr.bf16.mxu0 %v8715
  %11831 = vmatpush1.bf16.msra.mxu0 %v8714
  %11832 = vmatprep.subr.bf16.mxu0 %v8717
  %11833 = vmatpush1.bf16.msra.mxu0 %v8716
  %11834 = vmatprep.subr.bf16.mxu0 %v8719
  %11835 = vmatpush1.bf16.msra.mxu0 %v8718
  %11836 = vmatprep.subr.bf16.mxu0 %v8721
  %11837 = vmatpush1.bf16.msra.mxu0 %v8720
  %11838 = vmatprep.subr.bf16.mxu0 %v8723
  %11839 = vmatpush1.bf16.msra.mxu0 %v8722
  %11840 = vmatprep.subr.bf16.mxu0 %v8725
  %11841 = vmatpush1.bf16.msra.mxu0 %v8724
  %11842 = vmatprep.subr.bf16.mxu0 %v8727
  %11843 = vmatpush1.bf16.msra.mxu0 %v8726
  %11844 = vmatprep.subr.bf16.mxu0 %v8729
  %11845 = vmatpush1.bf16.msra.mxu0 %v8728
  %11846 = vmatprep.subr.bf16.mxu0 %v8731
  %11847 = vmatpush1.bf16.msra.mxu0 %v8730
  %11848 = vmatprep.subr.bf16.mxu0 %v8733
  %11849 = vmatpush1.bf16.msra.mxu0 %v8732
  %11850 = vmatprep.subr.bf16.mxu0 %v8735
  %11851 = vmatpush1.bf16.msra.mxu0 %v8734
  %11852 = vmatprep.subr.bf16.mxu0 %v8737
  %11853 = vmatpush1.bf16.msra.mxu0 %v8736
  %11854 = vmatprep.subr.bf16.mxu0 %v8739
  %11855 = vmatpush1.bf16.msra.mxu0 %v8738
  %11856 = vmatprep.subr.bf16.mxu0 %v8741
  %11857 = vmatpush1.bf16.msra.mxu0 %v8740
  %11858 = vmatprep.mubr.bf16.mxu0 %v2339
  %11859 = vmatmul.mubr.bf16.gmra.mrb[0].mxu0 %v2338
  %v11860 = vpop.f32.mrb[0].mxu0
  %v11861 = vadd.f32 %v11818, %v11860
  %v11862 = vpop.f32.mrb[0].mxu0
  %v11863 = vadd.f32 %v11820, %v11862
  %v11864 = vpop.f32.mrb[0].mxu0
  %v11865 = vadd.f32 %v11822, %v11864
  %v11866 = vpop.f32.mrb[0].mxu0
  %v11867 = vadd.f32 %v11824, %v11866
  %11868 = vdwg.mxu0
  %11869 = vmatprep.subr.bf16.mxu0 %v8743
  %11870 = vmatpush1.bf16.msra.mxu0 %v8742
  %11871 = vmatprep.subr.bf16.mxu0 %v8745
  %11872 = vmatpush1.bf16.msra.mxu0 %v8744
  %11873 = vmatprep.subr.bf16.mxu0 %v8747
  %11874 = vmatpush1.bf16.msra.mxu0 %v8746
  %11875 = vmatprep.subr.bf16.mxu0 %v8749
  %11876 = vmatpush1.bf16.msra.mxu0 %v8748
  %11877 = vmatprep.subr.bf16.mxu0 %v8751
  %11878 = vmatpush1.bf16.msra.mxu0 %v8750
  %11879 = vmatprep.subr.bf16.mxu0 %v8753
  %11880 = vmatpush1.bf16.msra.mxu0 %v8752
  %11881 = vmatprep.subr.bf16.mxu0 %v8755
  %11882 = vmatpush1.bf16.msra.mxu0 %v8754
  %11883 = vmatprep.subr.bf16.mxu0 %v8757
  %11884 = vmatpush1.bf16.msra.mxu0 %v8756
  %11885 = vmatprep.subr.bf16.mxu0 %v8759
  %11886 = vmatpush1.bf16.msra.mxu0 %v8758
  %11887 = vmatprep.subr.bf16.mxu0 %v8761
  %11888 = vmatpush1.bf16.msra.mxu0 %v8760
  %11889 = vmatprep.subr.bf16.mxu0 %v8763
  %11890 = vmatpush1.bf16.msra.mxu0 %v8762
  %11891 = vmatprep.subr.bf16.mxu0 %v8765
  %11892 = vmatpush1.bf16.msra.mxu0 %v8764
  %11893 = vmatprep.subr.bf16.mxu0 %v8767
  %11894 = vmatpush1.bf16.msra.mxu0 %v8766
  %11895 = vmatprep.subr.bf16.mxu0 %v8769
  %11896 = vmatpush1.bf16.msra.mxu0 %v8768
  %11897 = vmatprep.subr.bf16.mxu0 %v8771
  %11898 = vmatpush1.bf16.msra.mxu0 %v8770
  %11899 = vmatprep.subr.bf16.mxu0 %v8773
  %11900 = vmatpush1.bf16.msra.mxu0 %v8772
  %11901 = vmatprep.mubr.bf16.mxu0 %v2341
  %11902 = vmatmul.mubr.bf16.gmra.mrb[0].mxu0 %v2340
  %v11903 = vpop.f32.mrb[0].mxu0
  %v11904 = vadd.f32 %v11861, %v11903
  %v11905 = vpop.f32.mrb[0].mxu0
  %v11906 = vadd.f32 %v11863, %v11905
  %v11907 = vpop.f32.mrb[0].mxu0
  %v11908 = vadd.f32 %v11865, %v11907
  %v11909 = vpop.f32.mrb[0].mxu0
  %v11910 = vadd.f32 %v11867, %v11909
  %11911 = vdwg.mxu0
  %11912 = vmatprep.subr.bf16.mxu0 %v8775
  %11913 = vmatpush1.bf16.msra.mxu0 %v8774
  %11914 = vmatprep.subr.bf16.mxu0 %v8777
  %11915 = vmatpush1.bf16.msra.mxu0 %v8776
  %11916 = vmatprep.subr.bf16.mxu0 %v8779
  %11917 = vmatpush1.bf16.msra.mxu0 %v8778
  %11918 = vmatprep.subr.bf16.mxu0 %v8781
  %11919 = vmatpush1.bf16.msra.mxu0 %v8780
  %11920 = vmatprep.subr.bf16.mxu0 %v8783
  %11921 = vmatpush1.bf16.msra.mxu0 %v8782
  %11922 = vmatprep.subr.bf16.mxu0 %v8785
  %11923 = vmatpush1.bf16.msra.mxu0 %v8784
  %11924 = vmatprep.subr.bf16.mxu0 %v8787
  %11925 = vmatpush1.bf16.msra.mxu0 %v8786
  %11926 = vmatprep.subr.bf16.mxu0 %v8789
  %11927 = vmatpush1.bf16.msra.mxu0 %v8788
  %11928 = vmatprep.subr.bf16.mxu0 %v8791
  %11929 = vmatpush1.bf16.msra.mxu0 %v8790
  %11930 = vmatprep.subr.bf16.mxu0 %v8793
  %11931 = vmatpush1.bf16.msra.mxu0 %v8792
  %11932 = vmatprep.subr.bf16.mxu0 %v8795
  %11933 = vmatpush1.bf16.msra.mxu0 %v8794
  %11934 = vmatprep.subr.bf16.mxu0 %v8797
  %11935 = vmatpush1.bf16.msra.mxu0 %v8796
  %11936 = vmatprep.subr.bf16.mxu0 %v8799
  %11937 = vmatpush1.bf16.msra.mxu0 %v8798
  %11938 = vmatprep.subr.bf16.mxu0 %v8801
  %11939 = vmatpush1.bf16.msra.mxu0 %v8800
  %11940 = vmatprep.subr.bf16.mxu0 %v8803
  %11941 = vmatpush1.bf16.msra.mxu0 %v8802
  %11942 = vmatprep.subr.bf16.mxu0 %v8805
  %11943 = vmatpush1.bf16.msra.mxu0 %v8804
  %11944 = vmatprep.mubr.bf16.mxu0 %v2343
  %11945 = vmatmul.mubr.bf16.gmra.mrb[0].mxu0 %v2342
  %v11946 = vpop.f32.mrb[0].mxu0
  %v11947 = vadd.f32 %v11904, %v11946
  %v11948 = vpop.f32.mrb[0].mxu0
  %v11949 = vadd.f32 %v11906, %v11948
  %v11950 = vpop.f32.mrb[0].mxu0
  %v11951 = vadd.f32 %v11908, %v11950
  %v11952 = vpop.f32.mrb[0].mxu0
  %v11953 = vadd.f32 %v11910, %v11952
  %11954 = vdwg.mxu0
  %11955 = vmatprep.subr.bf16.mxu0 %v8807
  %11956 = vmatpush1.bf16.msra.mxu0 %v8806
  %11957 = vmatprep.subr.bf16.mxu0 %v8809
  %11958 = vmatpush1.bf16.msra.mxu0 %v8808
  %11959 = vmatprep.subr.bf16.mxu0 %v8811
  %11960 = vmatpush1.bf16.msra.mxu0 %v8810
  %11961 = vmatprep.subr.bf16.mxu0 %v8813
  %11962 = vmatpush1.bf16.msra.mxu0 %v8812
  %11963 = vmatprep.subr.bf16.mxu0 %v8815
  %11964 = vmatpush1.bf16.msra.mxu0 %v8814
  %11965 = vmatprep.subr.bf16.mxu0 %v8817
  %11966 = vmatpush1.bf16.msra.mxu0 %v8816
  %11967 = vmatprep.subr.bf16.mxu0 %v8819
  %11968 = vmatpush1.bf16.msra.mxu0 %v8818
  %11969 = vmatprep.subr.bf16.mxu0 %v8821
  %11970 = vmatpush1.bf16.msra.mxu0 %v8820
  %11971 = vmatprep.subr.bf16.mxu0 %v8823
  %11972 = vmatpush1.bf16.msra.mxu0 %v8822
  %11973 = vmatprep.subr.bf16.mxu0 %v8825
  %11974 = vmatpush1.bf16.msra.mxu0 %v8824
  %11975 = vmatprep.subr.bf16.mxu0 %v8827
  %11976 = vmatpush1.bf16.msra.mxu0 %v8826
  %11977 = vmatprep.subr.bf16.mxu0 %v8829
  %11978 = vmatpush1.bf16.msra.mxu0 %v8828
  %11979 = vmatprep.subr.bf16.mxu0 %v8831
  %11980 = vmatpush1.bf16.msra.mxu0 %v8830
  %11981 = vmatprep.subr.bf16.mxu0 %v8833
  %11982 = vmatpush1.bf16.msra.mxu0 %v8832
  %11983 = vmatprep.subr.bf16.mxu0 %v8835
  %11984 = vmatpush1.bf16.msra.mxu0 %v8834
  %11985 = vmatprep.subr.bf16.mxu0 %v8837
  %11986 = vmatpush1.bf16.msra.mxu0 %v8836
  %11987 = vmatprep.mubr.bf16.mxu0 %v2345
  %11988 = vmatmul.mubr.bf16.gmra.mrb[0].mxu0 %v2344
  %v11989 = vpop.f32.mrb[0].mxu0
  %v11990 = vadd.f32 %v11947, %v11989
  %v11991 = vpop.f32.mrb[0].mxu0
  %v11992 = vadd.f32 %v11949, %v11991
  %v11993 = vpop.f32.mrb[0].mxu0
  %v11994 = vadd.f32 %v11951, %v11993
  %v11995 = vpop.f32.mrb[0].mxu0
  %v11996 = vadd.f32 %v11953, %v11995
  %11997 = vdwg.mxu0
  %11998 = vmatprep.subr.bf16.mxu0 %v8839
  %11999 = vmatpush1.bf16.msra.mxu0 %v8838
  %12000 = vmatprep.subr.bf16.mxu0 %v8841
  %12001 = vmatpush1.bf16.msra.mxu0 %v8840
  %12002 = vmatprep.subr.bf16.mxu0 %v8843
  %12003 = vmatpush1.bf16.msra.mxu0 %v8842
  %12004 = vmatprep.subr.bf16.mxu0 %v8845
  %12005 = vmatpush1.bf16.msra.mxu0 %v8844
  %12006 = vmatprep.subr.bf16.mxu0 %v8847
  %12007 = vmatpush1.bf16.msra.mxu0 %v8846
  %12008 = vmatprep.subr.bf16.mxu0 %v8849
  %12009 = vmatpush1.bf16.msra.mxu0 %v8848
  %12010 = vmatprep.subr.bf16.mxu0 %v8851
  %12011 = vmatpush1.bf16.msra.mxu0 %v8850
  %12012 = vmatprep.subr.bf16.mxu0 %v8853
  %12013 = vmatpush1.bf16.msra.mxu0 %v8852
  %12014 = vmatprep.subr.bf16.mxu0 %v8855
  %12015 = vmatpush1.bf16.msra.mxu0 %v8854
  %12016 = vmatprep.subr.bf16.mxu0 %v8857
  %12017 = vmatpush1.bf16.msra.mxu0 %v8856
  %12018 = vmatprep.subr.bf16.mxu0 %v8859
  %12019 = vmatpush1.bf16.msra.mxu0 %v8858
  %12020 = vmatprep.subr.bf16.mxu0 %v8861
  %12021 = vmatpush1.bf16.msra.mxu0 %v8860
  %12022 = vmatprep.subr.bf16.mxu0 %v8863
  %12023 = vmatpush1.bf16.msra.mxu0 %v8862
  %12024 = vmatprep.subr.bf16.mxu0 %v8865
  %12025 = vmatpush1.bf16.msra.mxu0 %v8864
  %12026 = vmatprep.subr.bf16.mxu0 %v8867
  %12027 = vmatpush1.bf16.msra.mxu0 %v8866
  %12028 = vmatprep.subr.bf16.mxu0 %v8869
  %12029 = vmatpush1.bf16.msra.mxu0 %v8868
  %12030 = vmatprep.mubr.bf16.mxu0 %v2347
  %12031 = vmatmul.mubr.bf16.gmra.mrb[0].mxu0 %v2346
  %v12032 = vpop.f32.mrb[0].mxu0
  %v12033 = vadd.f32 %v11990, %v12032
  %v12034 = vpop.f32.mrb[0].mxu0
  %v12035 = vadd.f32 %v11992, %v12034
  %v12036 = vpop.f32.mrb[0].mxu0
  %v12037 = vadd.f32 %v11994, %v12036
  %v12038 = vpop.f32.mrb[0].mxu0
  %v12039 = vadd.f32 %v11996, %v12038
  %12040 = vdwg.mxu0
  %12041 = vmatprep.subr.bf16.mxu0 %v8871
  %12042 = vmatpush1.bf16.msra.mxu0 %v8870
  %12043 = vmatprep.subr.bf16.mxu0 %v8873
  %12044 = vmatpush1.bf16.msra.mxu0 %v8872
  %12045 = vmatprep.subr.bf16.mxu0 %v8875
  %12046 = vmatpush1.bf16.msra.mxu0 %v8874
  %12047 = vmatprep.subr.bf16.mxu0 %v8877
  %12048 = vmatpush1.bf16.msra.mxu0 %v8876
  %12049 = vmatprep.subr.bf16.mxu0 %v8879
  %12050 = vmatpush1.bf16.msra.mxu0 %v8878
  %12051 = vmatprep.subr.bf16.mxu0 %v8881
  %12052 = vmatpush1.bf16.msra.mxu0 %v8880
  %12053 = vmatprep.subr.bf16.mxu0 %v8883
  %12054 = vmatpush1.bf16.msra.mxu0 %v8882
  %12055 = vmatprep.subr.bf16.mxu0 %v8885
  %12056 = vmatpush1.bf16.msra.mxu0 %v8884
  %12057 = vmatprep.subr.bf16.mxu0 %v8887
  %12058 = vmatpush1.bf16.msra.mxu0 %v8886
  %12059 = vmatprep.subr.bf16.mxu0 %v8889
  %12060 = vmatpush1.bf16.msra.mxu0 %v8888
  %12061 = vmatprep.subr.bf16.mxu0 %v8891
  %12062 = vmatpush1.bf16.msra.mxu0 %v8890
  %12063 = vmatprep.subr.bf16.mxu0 %v8893
  %12064 = vmatpush1.bf16.msra.mxu0 %v8892
  %12065 = vmatprep.subr.bf16.mxu0 %v8895
  %12066 = vmatpush1.bf16.msra.mxu0 %v8894
  %12067 = vmatprep.subr.bf16.mxu0 %v8897
  %12068 = vmatpush1.bf16.msra.mxu0 %v8896
  %12069 = vmatprep.subr.bf16.mxu0 %v8899
  %12070 = vmatpush1.bf16.msra.mxu0 %v8898
  %12071 = vmatprep.subr.bf16.mxu0 %v8901
  %12072 = vmatpush1.bf16.msra.mxu0 %v8900
  %12073 = vmatprep.mubr.bf16.mxu0 %v2349
  %12074 = vmatmul.mubr.bf16.gmra.mrb[0].mxu0 %v2348
  %v12075 = vpop.f32.mrb[0].mxu0
  %v12076 = vadd.f32 %v12033, %v12075
  %v12077 = vpop.f32.mrb[0].mxu0
  %v12078 = vadd.f32 %v12035, %v12077
  %v12079 = vpop.f32.mrb[0].mxu0
  %v12080 = vadd.f32 %v12037, %v12079
  %v12081 = vpop.f32.mrb[0].mxu0
  %v12082 = vadd.f32 %v12039, %v12081
  %12083 = vdwg.mxu0
  %12084 = vmatprep.subr.bf16.mxu0 %v8903
  %12085 = vmatpush1.bf16.msra.mxu0 %v8902
  %12086 = vmatprep.subr.bf16.mxu0 %v8905
  %12087 = vmatpush1.bf16.msra.mxu0 %v8904
  %12088 = vmatprep.subr.bf16.mxu0 %v8907
  %12089 = vmatpush1.bf16.msra.mxu0 %v8906
  %12090 = vmatprep.subr.bf16.mxu0 %v8909
  %12091 = vmatpush1.bf16.msra.mxu0 %v8908
  %12092 = vmatprep.subr.bf16.mxu0 %v8911
  %12093 = vmatpush1.bf16.msra.mxu0 %v8910
  %12094 = vmatprep.subr.bf16.mxu0 %v8913
  %12095 = vmatpush1.bf16.msra.mxu0 %v8912
  %12096 = vmatprep.subr.bf16.mxu0 %v8915
  %12097 = vmatpush1.bf16.msra.mxu0 %v8914
  %12098 = vmatprep.subr.bf16.mxu0 %v8917
  %12099 = vmatpush1.bf16.msra.mxu0 %v8916
  %12100 = vmatprep.subr.bf16.mxu0 %v8919
  %12101 = vmatpush1.bf16.msra.mxu0 %v8918
  %12102 = vmatprep.subr.bf16.mxu0 %v8921
  %12103 = vmatpush1.bf16.msra.mxu0 %v8920
  %12104 = vmatprep.subr.bf16.mxu0 %v8923
  %12105 = vmatpush1.bf16.msra.mxu0 %v8922
  %12106 = vmatprep.subr.bf16.mxu0 %v8925
  %12107 = vmatpush1.bf16.msra.mxu0 %v8924
  %12108 = vmatprep.subr.bf16.mxu0 %v8927
  %12109 = vmatpush1.bf16.msra.mxu0 %v8926
  %12110 = vmatprep.subr.bf16.mxu0 %v8929
  %12111 = vmatpush1.bf16.msra.mxu0 %v8928
  %12112 = vmatprep.subr.bf16.mxu0 %v8931
  %12113 = vmatpush1.bf16.msra.mxu0 %v8930
  %12114 = vmatprep.subr.bf16.mxu0 %v8933
  %12115 = vmatpush1.bf16.msra.mxu0 %v8932
  %12116 = vmatprep.mubr.bf16.mxu0 %v2351
  %12117 = vmatmul.mubr.bf16.gmra.mrb[0].mxu0 %v2350
  %v12118 = vpop.f32.mrb[0].mxu0
  %v12119 = vadd.f32 %v12076, %v12118
  %v12120 = vpop.f32.mrb[0].mxu0
  %v12121 = vadd.f32 %v12078, %v12120
  %v12122 = vpop.f32.mrb[0].mxu0
  %v12123 = vadd.f32 %v12080, %v12122
  %v12124 = vpop.f32.mrb[0].mxu0
  %v12125 = vadd.f32 %v12082, %v12124
  %12126 = vdwg.mxu0
  %12127 = vmatprep.subr.bf16.mxu0 %v8935
  %12128 = vmatpush1.bf16.msra.mxu0 %v8934
  %12129 = vmatprep.subr.bf16.mxu0 %v8937
  %12130 = vmatpush1.bf16.msra.mxu0 %v8936
  %12131 = vmatprep.subr.bf16.mxu0 %v8939
  %12132 = vmatpush1.bf16.msra.mxu0 %v8938
  %12133 = vmatprep.subr.bf16.mxu0 %v8941
  %12134 = vmatpush1.bf16.msra.mxu0 %v8940
  %12135 = vmatprep.subr.bf16.mxu0 %v8943
  %12136 = vmatpush1.bf16.msra.mxu0 %v8942
  %12137 = vmatprep.subr.bf16.mxu0 %v8945
  %12138 = vmatpush1.bf16.msra.mxu0 %v8944
  %12139 = vmatprep.subr.bf16.mxu0 %v8947
  %12140 = vmatpush1.bf16.msra.mxu0 %v8946
  %12141 = vmatprep.subr.bf16.mxu0 %v8949
  %12142 = vmatpush1.bf16.msra.mxu0 %v8948
  %12143 = vmatprep.subr.bf16.mxu0 %v8951
  %12144 = vmatpush1.bf16.msra.mxu0 %v8950
  %12145 = vmatprep.subr.bf16.mxu0 %v8953
  %12146 = vmatpush1.bf16.msra.mxu0 %v8952
  %12147 = vmatprep.subr.bf16.mxu0 %v8955
  %12148 = vmatpush1.bf16.msra.mxu0 %v8954
  %12149 = vmatprep.subr.bf16.mxu0 %v8957
  %12150 = vmatpush1.bf16.msra.mxu0 %v8956
  %12151 = vmatprep.subr.bf16.mxu0 %v8959
  %12152 = vmatpush1.bf16.msra.mxu0 %v8958
  %12153 = vmatprep.subr.bf16.mxu0 %v8961
  %12154 = vmatpush1.bf16.msra.mxu0 %v8960
  %12155 = vmatprep.subr.bf16.mxu0 %v8963
  %12156 = vmatpush1.bf16.msra.mxu0 %v8962
  %12157 = vmatprep.subr.bf16.mxu0 %v8965
  %12158 = vmatpush1.bf16.msra.mxu0 %v8964
  %12159 = vmatprep.mubr.bf16.mxu0 %v2353
  %12160 = vmatmul.mubr.bf16.gmra.mrb[0].mxu0 %v2352
  %v12161 = vpop.f32.mrb[0].mxu0
  %v12162 = vadd.f32 %v12119, %v12161
  %v12163 = vpop.f32.mrb[0].mxu0
  %v12164 = vadd.f32 %v12121, %v12163
  %v12165 = vpop.f32.mrb[0].mxu0
  %v12166 = vadd.f32 %v12123, %v12165
  %v12167 = vpop.f32.mrb[0].mxu0
  %v12168 = vadd.f32 %v12125, %v12167
  %12169 = vdwg.mxu0
  %12170 = vmatprep.subr.bf16.mxu0 %v8967
  %12171 = vmatpush1.bf16.msra.mxu0 %v8966
  %12172 = vmatprep.subr.bf16.mxu0 %v8969
  %12173 = vmatpush1.bf16.msra.mxu0 %v8968
  %12174 = vmatprep.subr.bf16.mxu0 %v8971
  %12175 = vmatpush1.bf16.msra.mxu0 %v8970
  %12176 = vmatprep.subr.bf16.mxu0 %v8973
  %12177 = vmatpush1.bf16.msra.mxu0 %v8972
  %12178 = vmatprep.subr.bf16.mxu0 %v8975
  %12179 = vmatpush1.bf16.msra.mxu0 %v8974
  %12180 = vmatprep.subr.bf16.mxu0 %v8977
  %12181 = vmatpush1.bf16.msra.mxu0 %v8976
  %12182 = vmatprep.subr.bf16.mxu0 %v8979
  %12183 = vmatpush1.bf16.msra.mxu0 %v8978
  %12184 = vmatprep.subr.bf16.mxu0 %v8981
  %12185 = vmatpush1.bf16.msra.mxu0 %v8980
  %12186 = vmatprep.subr.bf16.mxu0 %v8983
  %12187 = vmatpush1.bf16.msra.mxu0 %v8982
  %12188 = vmatprep.subr.bf16.mxu0 %v8985
  %12189 = vmatpush1.bf16.msra.mxu0 %v8984
  %12190 = vmatprep.subr.bf16.mxu0 %v8987
  %12191 = vmatpush1.bf16.msra.mxu0 %v8986
  %12192 = vmatprep.subr.bf16.mxu0 %v8989
  %12193 = vmatpush1.bf16.msra.mxu0 %v8988
  %12194 = vmatprep.subr.bf16.mxu0 %v8991
  %12195 = vmatpush1.bf16.msra.mxu0 %v8990
  %12196 = vmatprep.subr.bf16.mxu0 %v8993
  %12197 = vmatpush1.bf16.msra.mxu0 %v8992
  %12198 = vmatprep.subr.bf16.mxu0 %v8995
  %12199 = vmatpush1.bf16.msra.mxu0 %v8994
  %12200 = vmatprep.subr.bf16.mxu0 %v8997
  %12201 = vmatpush1.bf16.msra.mxu0 %v8996
  %12202 = vmatprep.mubr.bf16.mxu0 %v2355
  %12203 = vmatmul.mubr.bf16.gmra.mrb[0].mxu0 %v2354
  %v12204 = vpop.f32.mrb[0].mxu0
  %v12205 = vadd.f32 %v12162, %v12204
  %v12206 = vpop.f32.mrb[0].mxu0
  %v12207 = vadd.f32 %v12164, %v12206
  %v12208 = vpop.f32.mrb[0].mxu0
  %v12209 = vadd.f32 %v12166, %v12208
  %v12210 = vpop.f32.mrb[0].mxu0
  %v12211 = vadd.f32 %v12168, %v12210
  %12212 = vdwg.mxu0
  %12213 = vmatprep.subr.bf16.mxu0 %v8999
  %12214 = vmatpush1.bf16.msra.mxu0 %v8998
  %12215 = vmatprep.subr.bf16.mxu0 %v9001
  %12216 = vmatpush1.bf16.msra.mxu0 %v9000
  %12217 = vmatprep.subr.bf16.mxu0 %v9003
  %12218 = vmatpush1.bf16.msra.mxu0 %v9002
  %12219 = vmatprep.subr.bf16.mxu0 %v9005
  %12220 = vmatpush1.bf16.msra.mxu0 %v9004
  %12221 = vmatprep.subr.bf16.mxu0 %v9007
  %12222 = vmatpush1.bf16.msra.mxu0 %v9006
  %12223 = vmatprep.subr.bf16.mxu0 %v9009
  %12224 = vmatpush1.bf16.msra.mxu0 %v9008
  %12225 = vmatprep.subr.bf16.mxu0 %v9011
  %12226 = vmatpush1.bf16.msra.mxu0 %v9010
  %12227 = vmatprep.subr.bf16.mxu0 %v9013
  %12228 = vmatpush1.bf16.msra.mxu0 %v9012
  %12229 = vmatprep.subr.bf16.mxu0 %v9015
  %12230 = vmatpush1.bf16.msra.mxu0 %v9014
  %12231 = vmatprep.subr.bf16.mxu0 %v9017
  %12232 = vmatpush1.bf16.msra.mxu0 %v9016
  %12233 = vmatprep.subr.bf16.mxu0 %v9019
  %12234 = vmatpush1.bf16.msra.mxu0 %v9018
  %12235 = vmatprep.subr.bf16.mxu0 %v9021
  %12236 = vmatpush1.bf16.msra.mxu0 %v9020
  %12237 = vmatprep.subr.bf16.mxu0 %v9023
  %12238 = vmatpush1.bf16.msra.mxu0 %v9022
  %12239 = vmatprep.subr.bf16.mxu0 %v9025
  %12240 = vmatpush1.bf16.msra.mxu0 %v9024
  %12241 = vmatprep.subr.bf16.mxu0 %v9027
  %12242 = vmatpush1.bf16.msra.mxu0 %v9026
  %12243 = vmatprep.subr.bf16.mxu0 %v9029
  %12244 = vmatpush1.bf16.msra.mxu0 %v9028
  %12245 = vmatprep.mubr.bf16.mxu0 %v2357
  %12246 = vmatmul.mubr.bf16.gmra.mrb[0].mxu0 %v2356
  %v12247 = vpop.f32.mrb[0].mxu0
  %v12248 = vadd.f32 %v12205, %v12247
  %v12249 = vpop.f32.mrb[0].mxu0
  %v12250 = vadd.f32 %v12207, %v12249
  %v12251 = vpop.f32.mrb[0].mxu0
  %v12252 = vadd.f32 %v12209, %v12251
  %v12253 = vpop.f32.mrb[0].mxu0
  %v12254 = vadd.f32 %v12211, %v12253
  %12255 = vdwg.mxu0
  %12256 = vmatprep.subr.bf16.mxu0 %v9031
  %12257 = vmatpush1.bf16.msra.mxu0 %v9030
  %12258 = vmatprep.subr.bf16.mxu0 %v9033
  %12259 = vmatpush1.bf16.msra.mxu0 %v9032
  %12260 = vmatprep.subr.bf16.mxu0 %v9035
  %12261 = vmatpush1.bf16.msra.mxu0 %v9034
  %12262 = vmatprep.subr.bf16.mxu0 %v9037
  %12263 = vmatpush1.bf16.msra.mxu0 %v9036
  %12264 = vmatprep.subr.bf16.mxu0 %v9039
  %12265 = vmatpush1.bf16.msra.mxu0 %v9038
  %12266 = vmatprep.subr.bf16.mxu0 %v9041
  %12267 = vmatpush1.bf16.msra.mxu0 %v9040
  %12268 = vmatprep.subr.bf16.mxu0 %v9043
  %12269 = vmatpush1.bf16.msra.mxu0 %v9042
  %12270 = vmatprep.subr.bf16.mxu0 %v9045
  %12271 = vmatpush1.bf16.msra.mxu0 %v9044
  %12272 = vmatprep.subr.bf16.mxu0 %v9047
  %12273 = vmatpush1.bf16.msra.mxu0 %v9046
  %12274 = vmatprep.subr.bf16.mxu0 %v9049
  %12275 = vmatpush1.bf16.msra.mxu0 %v9048
  %12276 = vmatprep.subr.bf16.mxu0 %v9051
  %12277 = vmatpush1.bf16.msra.mxu0 %v9050
  %12278 = vmatprep.subr.bf16.mxu0 %v9053
  %12279 = vmatpush1.bf16.msra.mxu0 %v9052
  %12280 = vmatprep.subr.bf16.mxu0 %v9055
  %12281 = vmatpush1.bf16.msra.mxu0 %v9054
  %12282 = vmatprep.subr.bf16.mxu0 %v9057
  %12283 = vmatpush1.bf16.msra.mxu0 %v9056
  %12284 = vmatprep.subr.bf16.mxu0 %v9059
  %12285 = vmatpush1.bf16.msra.mxu0 %v9058
  %12286 = vmatprep.subr.bf16.mxu0 %v9061
  %12287 = vmatpush1.bf16.msra.mxu0 %v9060
  %12288 = vmatprep.mubr.bf16.mxu0 %v2359
  %12289 = vmatmul.mubr.bf16.gmra.mrb[0].mxu0 %v2358
  %v12290 = vpop.f32.mrb[0].mxu0
  %v12291 = vadd.f32 %v12248, %v12290
  %v12292 = vpop.f32.mrb[0].mxu0
  %v12293 = vadd.f32 %v12250, %v12292
  %v12294 = vpop.f32.mrb[0].mxu0
  %v12295 = vadd.f32 %v12252, %v12294
  %v12296 = vpop.f32.mrb[0].mxu0
  %v12297 = vadd.f32 %v12254, %v12296
  %12298 = vdwg.mxu0
  %12299 = vmatprep.subr.bf16.mxu0 %v9063
  %12300 = vmatpush1.bf16.msra.mxu0 %v9062
  %12301 = vmatprep.subr.bf16.mxu0 %v9065
  %12302 = vmatpush1.bf16.msra.mxu0 %v9064
  %12303 = vmatprep.subr.bf16.mxu0 %v9067
  %12304 = vmatpush1.bf16.msra.mxu0 %v9066
  %12305 = vmatprep.subr.bf16.mxu0 %v9069
  %12306 = vmatpush1.bf16.msra.mxu0 %v9068
  %12307 = vmatprep.subr.bf16.mxu0 %v9071
  %12308 = vmatpush1.bf16.msra.mxu0 %v9070
  %12309 = vmatprep.subr.bf16.mxu0 %v9073
  %12310 = vmatpush1.bf16.msra.mxu0 %v9072
  %12311 = vmatprep.subr.bf16.mxu0 %v9075
  %12312 = vmatpush1.bf16.msra.mxu0 %v9074
  %12313 = vmatprep.subr.bf16.mxu0 %v9077
  %12314 = vmatpush1.bf16.msra.mxu0 %v9076
  %12315 = vmatprep.subr.bf16.mxu0 %v9079
  %12316 = vmatpush1.bf16.msra.mxu0 %v9078
  %12317 = vmatprep.subr.bf16.mxu0 %v9081
  %12318 = vmatpush1.bf16.msra.mxu0 %v9080
  %12319 = vmatprep.subr.bf16.mxu0 %v9083
  %12320 = vmatpush1.bf16.msra.mxu0 %v9082
  %12321 = vmatprep.subr.bf16.mxu0 %v9085
  %12322 = vmatpush1.bf16.msra.mxu0 %v9084
  %12323 = vmatprep.subr.bf16.mxu0 %v9087
  %12324 = vmatpush1.bf16.msra.mxu0 %v9086
  %12325 = vmatprep.subr.bf16.mxu0 %v9089
  %12326 = vmatpush1.bf16.msra.mxu0 %v9088
  %12327 = vmatprep.subr.bf16.mxu0 %v9091
  %12328 = vmatpush1.bf16.msra.mxu0 %v9090
  %12329 = vmatprep.subr.bf16.mxu0 %v9093
  %12330 = vmatpush1.bf16.msra.mxu0 %v9092
  %12331 = vmatprep.mubr.bf16.mxu0 %v2361
  %12332 = vmatmul.mubr.bf16.gmra.mrb[0].mxu0 %v2360
  %v12333 = vpop.f32.mrb[0].mxu0
  %v12334 = vadd.f32 %v12291, %v12333
  %v12335 = vpop.f32.mrb[0].mxu0
  %v12336 = vadd.f32 %v12293, %v12335
  %v12337 = vpop.f32.mrb[0].mxu0
  %v12338 = vadd.f32 %v12295, %v12337
  %v12339 = vpop.f32.mrb[0].mxu0
  %v12340 = vadd.f32 %v12297, %v12339
  %12341 = vdwg.mxu0
  %12342 = vmatprep.subr.bf16.mxu0 %v9095
  %12343 = vmatpush1.bf16.msra.mxu0 %v9094
  %12344 = vmatprep.subr.bf16.mxu0 %v9097
  %12345 = vmatpush1.bf16.msra.mxu0 %v9096
  %12346 = vmatprep.subr.bf16.mxu0 %v9099
  %12347 = vmatpush1.bf16.msra.mxu0 %v9098
  %12348 = vmatprep.subr.bf16.mxu0 %v9101
  %12349 = vmatpush1.bf16.msra.mxu0 %v9100
  %12350 = vmatprep.subr.bf16.mxu0 %v9103
  %12351 = vmatpush1.bf16.msra.mxu0 %v9102
  %12352 = vmatprep.subr.bf16.mxu0 %v9105
  %12353 = vmatpush1.bf16.msra.mxu0 %v9104
  %12354 = vmatprep.subr.bf16.mxu0 %v9107
  %12355 = vmatpush1.bf16.msra.mxu0 %v9106
  %12356 = vmatprep.subr.bf16.mxu0 %v9109
  %12357 = vmatpush1.bf16.msra.mxu0 %v9108
  %12358 = vmatprep.subr.bf16.mxu0 %v9111
  %12359 = vmatpush1.bf16.msra.mxu0 %v9110
  %12360 = vmatprep.subr.bf16.mxu0 %v9113
  %12361 = vmatpush1.bf16.msra.mxu0 %v9112
  %12362 = vmatprep.subr.bf16.mxu0 %v9115
  %12363 = vmatpush1.bf16.msra.mxu0 %v9114
  %12364 = vmatprep.subr.bf16.mxu0 %v9117
  %12365 = vmatpush1.bf16.msra.mxu0 %v9116
  %12366 = vmatprep.subr.bf16.mxu0 %v9119
  %12367 = vmatpush1.bf16.msra.mxu0 %v9118
  %12368 = vmatprep.subr.bf16.mxu0 %v9121
  %12369 = vmatpush1.bf16.msra.mxu0 %v9120
  %12370 = vmatprep.subr.bf16.mxu0 %v9123
  %12371 = vmatpush1.bf16.msra.mxu0 %v9122
  %12372 = vmatprep.subr.bf16.mxu0 %v9125
  %12373 = vmatpush1.bf16.msra.mxu0 %v9124
  %12374 = vmatprep.mubr.bf16.mxu0 %v2363
  %12375 = vmatmul.mubr.bf16.gmra.mrb[0].mxu0 %v2362
  %v12376 = vpop.f32.mrb[0].mxu0
  %v12377 = vadd.f32 %v12334, %v12376
  %v12378 = vpop.f32.mrb[0].mxu0
  %v12379 = vadd.f32 %v12336, %v12378
  %v12380 = vpop.f32.mrb[0].mxu0
  %v12381 = vadd.f32 %v12338, %v12380
  %v12382 = vpop.f32.mrb[0].mxu0
  %v12383 = vadd.f32 %v12340, %v12382
  %12384 = vdwg.mxu0
  %12385 = vmatprep.subr.bf16.mxu0 %v9127
  %12386 = vmatpush1.bf16.msra.mxu0 %v9126
  %12387 = vmatprep.subr.bf16.mxu0 %v9129
  %12388 = vmatpush1.bf16.msra.mxu0 %v9128
  %12389 = vmatprep.subr.bf16.mxu0 %v9131
  %12390 = vmatpush1.bf16.msra.mxu0 %v9130
  %12391 = vmatprep.subr.bf16.mxu0 %v9133
  %12392 = vmatpush1.bf16.msra.mxu0 %v9132
  %12393 = vmatprep.subr.bf16.mxu0 %v9135
  %12394 = vmatpush1.bf16.msra.mxu0 %v9134
  %12395 = vmatprep.subr.bf16.mxu0 %v9137
  %12396 = vmatpush1.bf16.msra.mxu0 %v9136
  %12397 = vmatprep.subr.bf16.mxu0 %v9139
  %12398 = vmatpush1.bf16.msra.mxu0 %v9138
  %12399 = vmatprep.subr.bf16.mxu0 %v9141
  %12400 = vmatpush1.bf16.msra.mxu0 %v9140
  %12401 = vmatprep.subr.bf16.mxu0 %v9143
  %12402 = vmatpush1.bf16.msra.mxu0 %v9142
  %12403 = vmatprep.subr.bf16.mxu0 %v9145
  %12404 = vmatpush1.bf16.msra.mxu0 %v9144
  %12405 = vmatprep.subr.bf16.mxu0 %v9147
  %12406 = vmatpush1.bf16.msra.mxu0 %v9146
  %12407 = vmatprep.subr.bf16.mxu0 %v9149
  %12408 = vmatpush1.bf16.msra.mxu0 %v9148
  %12409 = vmatprep.subr.bf16.mxu0 %v9151
  %12410 = vmatpush1.bf16.msra.mxu0 %v9150
  %12411 = vmatprep.subr.bf16.mxu0 %v9153
  %12412 = vmatpush1.bf16.msra.mxu0 %v9152
  %12413 = vmatprep.subr.bf16.mxu0 %v9155
  %12414 = vmatpush1.bf16.msra.mxu0 %v9154
  %12415 = vmatprep.subr.bf16.mxu0 %v9157
  %12416 = vmatpush1.bf16.msra.mxu0 %v9156
  %12417 = vmatprep.mubr.bf16.mxu0 %v2365
  %12418 = vmatmul.mubr.bf16.gmra.mrb[0].mxu0 %v2364
  %v12419 = vpop.f32.mrb[0].mxu0
  %v12420 = vadd.f32 %v12377, %v12419
  %v12421 = vpop.f32.mrb[0].mxu0
  %v12422 = vadd.f32 %v12379, %v12421
  %v12423 = vpop.f32.mrb[0].mxu0
  %v12424 = vadd.f32 %v12381, %v12423
  %v12425 = vpop.f32.mrb[0].mxu0
  %v12426 = vadd.f32 %v12383, %v12425
  %12427 = vdwg.mxu0
  %12428 = vmatprep.subr.bf16.mxu0 %v9159
  %12429 = vmatpush1.bf16.msra.mxu0 %v9158
  %12430 = vmatprep.subr.bf16.mxu0 %v9161
  %12431 = vmatpush1.bf16.msra.mxu0 %v9160
  %12432 = vmatprep.subr.bf16.mxu0 %v9163
  %12433 = vmatpush1.bf16.msra.mxu0 %v9162
  %12434 = vmatprep.subr.bf16.mxu0 %v9165
  %12435 = vmatpush1.bf16.msra.mxu0 %v9164
  %12436 = vmatprep.subr.bf16.mxu0 %v9167
  %12437 = vmatpush1.bf16.msra.mxu0 %v9166
  %12438 = vmatprep.subr.bf16.mxu0 %v9169
  %12439 = vmatpush1.bf16.msra.mxu0 %v9168
  %12440 = vmatprep.subr.bf16.mxu0 %v9171
  %12441 = vmatpush1.bf16.msra.mxu0 %v9170
  %12442 = vmatprep.subr.bf16.mxu0 %v9173
  %12443 = vmatpush1.bf16.msra.mxu0 %v9172
  %12444 = vmatprep.subr.bf16.mxu0 %v9175
  %12445 = vmatpush1.bf16.msra.mxu0 %v9174
  %12446 = vmatprep.subr.bf16.mxu0 %v9177
  %12447 = vmatpush1.bf16.msra.mxu0 %v9176
  %12448 = vmatprep.subr.bf16.mxu0 %v9179
  %12449 = vmatpush1.bf16.msra.mxu0 %v9178
  %12450 = vmatprep.subr.bf16.mxu0 %v9181
  %12451 = vmatpush1.bf16.msra.mxu0 %v9180
  %12452 = vmatprep.subr.bf16.mxu0 %v9183
  %12453 = vmatpush1.bf16.msra.mxu0 %v9182
  %12454 = vmatprep.subr.bf16.mxu0 %v9185
  %12455 = vmatpush1.bf16.msra.mxu0 %v9184
  %12456 = vmatprep.subr.bf16.mxu0 %v9187
  %12457 = vmatpush1.bf16.msra.mxu0 %v9186
  %12458 = vmatprep.subr.bf16.mxu0 %v9189
  %12459 = vmatpush1.bf16.msra.mxu0 %v9188
  %12460 = vmatprep.mubr.bf16.mxu0 %v2367
  %12461 = vmatmul.mubr.bf16.gmra.mrb[0].mxu0 %v2366
  %v12462 = vpop.f32.mrb[0].mxu0
  %v12463 = vadd.f32 %v12420, %v12462
  %v12464 = vpop.f32.mrb[0].mxu0
  %v12465 = vadd.f32 %v12422, %v12464
  %v12466 = vpop.f32.mrb[0].mxu0
  %v12467 = vadd.f32 %v12424, %v12466
  %v12468 = vpop.f32.mrb[0].mxu0
  %v12469 = vadd.f32 %v12426, %v12468
  %12470 = vdwg.mxu0
  %12471 = vmatprep.subr.bf16.mxu0 %v9191
  %12472 = vmatpush1.bf16.msra.mxu0 %v9190
  %12473 = vmatprep.subr.bf16.mxu0 %v9193
  %12474 = vmatpush1.bf16.msra.mxu0 %v9192
  %12475 = vmatprep.subr.bf16.mxu0 %v9195
  %12476 = vmatpush1.bf16.msra.mxu0 %v9194
  %12477 = vmatprep.subr.bf16.mxu0 %v9197
  %12478 = vmatpush1.bf16.msra.mxu0 %v9196
  %12479 = vmatprep.subr.bf16.mxu0 %v9199
  %12480 = vmatpush1.bf16.msra.mxu0 %v9198
  %12481 = vmatprep.subr.bf16.mxu0 %v9201
  %12482 = vmatpush1.bf16.msra.mxu0 %v9200
  %12483 = vmatprep.subr.bf16.mxu0 %v9203
  %12484 = vmatpush1.bf16.msra.mxu0 %v9202
  %12485 = vmatprep.subr.bf16.mxu0 %v9205
  %12486 = vmatpush1.bf16.msra.mxu0 %v9204
  %12487 = vmatprep.subr.bf16.mxu0 %v9207
  %12488 = vmatpush1.bf16.msra.mxu0 %v9206
  %12489 = vmatprep.subr.bf16.mxu0 %v9209
  %12490 = vmatpush1.bf16.msra.mxu0 %v9208
  %12491 = vmatprep.subr.bf16.mxu0 %v9211
  %12492 = vmatpush1.bf16.msra.mxu0 %v9210
  %12493 = vmatprep.subr.bf16.mxu0 %v9213
  %12494 = vmatpush1.bf16.msra.mxu0 %v9212
  %12495 = vmatprep.subr.bf16.mxu0 %v9215
  %12496 = vmatpush1.bf16.msra.mxu0 %v9214
  %12497 = vmatprep.subr.bf16.mxu0 %v9217
  %12498 = vmatpush1.bf16.msra.mxu0 %v9216
  %12499 = vmatprep.subr.bf16.mxu0 %v9219
  %12500 = vmatpush1.bf16.msra.mxu0 %v9218
  %12501 = vmatprep.subr.bf16.mxu0 %v9221
  %12502 = vmatpush1.bf16.msra.mxu0 %v9220
  %12503 = vmatprep.mubr.bf16.mxu0 %v2369
  %12504 = vmatmul.mubr.bf16.gmra.mrb[0].mxu0 %v2368
  %v12505 = vpop.f32.mrb[0].mxu0
  %v12506 = vadd.f32 %v12463, %v12505
  %v12507 = vpop.f32.mrb[0].mxu0
  %v12508 = vadd.f32 %v12465, %v12507
  %v12509 = vpop.f32.mrb[0].mxu0
  %v12510 = vadd.f32 %v12467, %v12509
  %v12511 = vpop.f32.mrb[0].mxu0
  %v12512 = vadd.f32 %v12469, %v12511
  %12513 = vdwg.mxu0
  %12514 = vmatprep.subr.bf16.mxu0 %v9223
  %12515 = vmatpush1.bf16.msra.mxu0 %v9222
  %12516 = vmatprep.subr.bf16.mxu0 %v9225
  %12517 = vmatpush1.bf16.msra.mxu0 %v9224
  %12518 = vmatprep.subr.bf16.mxu0 %v9227
  %12519 = vmatpush1.bf16.msra.mxu0 %v9226
  %12520 = vmatprep.subr.bf16.mxu0 %v9229
  %12521 = vmatpush1.bf16.msra.mxu0 %v9228
  %12522 = vmatprep.subr.bf16.mxu0 %v9231
  %12523 = vmatpush1.bf16.msra.mxu0 %v9230
  %12524 = vmatprep.subr.bf16.mxu0 %v9233
  %12525 = vmatpush1.bf16.msra.mxu0 %v9232
  %12526 = vmatprep.subr.bf16.mxu0 %v9235
  %12527 = vmatpush1.bf16.msra.mxu0 %v9234
  %12528 = vmatprep.subr.bf16.mxu0 %v9237
  %12529 = vmatpush1.bf16.msra.mxu0 %v9236
  %12530 = vmatprep.subr.bf16.mxu0 %v9239
  %12531 = vmatpush1.bf16.msra.mxu0 %v9238
  %12532 = vmatprep.subr.bf16.mxu0 %v9241
  %12533 = vmatpush1.bf16.msra.mxu0 %v9240
  %12534 = vmatprep.subr.bf16.mxu0 %v9243
  %12535 = vmatpush1.bf16.msra.mxu0 %v9242
  %12536 = vmatprep.subr.bf16.mxu0 %v9245
  %12537 = vmatpush1.bf16.msra.mxu0 %v9244
  %12538 = vmatprep.subr.bf16.mxu0 %v9247
  %12539 = vmatpush1.bf16.msra.mxu0 %v9246
  %12540 = vmatprep.subr.bf16.mxu0 %v9249
  %12541 = vmatpush1.bf16.msra.mxu0 %v9248
  %12542 = vmatprep.subr.bf16.mxu0 %v9251
  %12543 = vmatpush1.bf16.msra.mxu0 %v9250
  %12544 = vmatprep.subr.bf16.mxu0 %v9253
  %12545 = vmatpush1.bf16.msra.mxu0 %v9252
  %12546 = vmatprep.mubr.bf16.mxu0 %v2371
  %12547 = vmatmul.mubr.bf16.gmra.mrb[0].mxu0 %v2370
  %v12548 = vpop.f32.mrb[0].mxu0
  %v12549 = vadd.f32 %v12506, %v12548
  %v12550 = vpop.f32.mrb[0].mxu0
  %v12551 = vadd.f32 %v12508, %v12550
  %v12552 = vpop.f32.mrb[0].mxu0
  %v12553 = vadd.f32 %v12510, %v12552
  %v12554 = vpop.f32.mrb[0].mxu0
  %v12555 = vadd.f32 %v12512, %v12554
  %12556 = vdwg.mxu0
  %12557 = vmatprep.subr.bf16.mxu0 %v9255
  %12558 = vmatpush1.bf16.msra.mxu0 %v9254
  %12559 = vmatprep.subr.bf16.mxu0 %v9257
  %12560 = vmatpush1.bf16.msra.mxu0 %v9256
  %12561 = vmatprep.subr.bf16.mxu0 %v9259
  %12562 = vmatpush1.bf16.msra.mxu0 %v9258
  %12563 = vmatprep.subr.bf16.mxu0 %v9261
  %12564 = vmatpush1.bf16.msra.mxu0 %v9260
  %12565 = vmatprep.subr.bf16.mxu0 %v9263
  %12566 = vmatpush1.bf16.msra.mxu0 %v9262
  %12567 = vmatprep.subr.bf16.mxu0 %v9265
  %12568 = vmatpush1.bf16.msra.mxu0 %v9264
  %12569 = vmatprep.subr.bf16.mxu0 %v9267
  %12570 = vmatpush1.bf16.msra.mxu0 %v9266
  %12571 = vmatprep.subr.bf16.mxu0 %v9269
  %12572 = vmatpush1.bf16.msra.mxu0 %v9268
  %12573 = vmatprep.subr.bf16.mxu0 %v9271
  %12574 = vmatpush1.bf16.msra.mxu0 %v9270
  %12575 = vmatprep.subr.bf16.mxu0 %v9273
  %12576 = vmatpush1.bf16.msra.mxu0 %v9272
  %12577 = vmatprep.subr.bf16.mxu0 %v9275
  %12578 = vmatpush1.bf16.msra.mxu0 %v9274
  %12579 = vmatprep.subr.bf16.mxu0 %v9277
  %12580 = vmatpush1.bf16.msra.mxu0 %v9276
  %12581 = vmatprep.subr.bf16.mxu0 %v9279
  %12582 = vmatpush1.bf16.msra.mxu0 %v9278
  %12583 = vmatprep.subr.bf16.mxu0 %v9281
  %12584 = vmatpush1.bf16.msra.mxu0 %v9280
  %12585 = vmatprep.subr.bf16.mxu0 %v9283
  %12586 = vmatpush1.bf16.msra.mxu0 %v9282
  %12587 = vmatprep.subr.bf16.mxu0 %v9285
  %12588 = vmatpush1.bf16.msra.mxu0 %v9284
  %12589 = vmatprep.mubr.bf16.mxu0 %v2373
  %12590 = vmatmul.mubr.bf16.gmra.mrb[0].mxu0 %v2372
  %v12591 = vpop.f32.mrb[0].mxu0
  %v12592 = vadd.f32 %v12549, %v12591
  %v12593 = vpop.f32.mrb[0].mxu0
  %v12594 = vadd.f32 %v12551, %v12593
  %v12595 = vpop.f32.mrb[0].mxu0
  %v12596 = vadd.f32 %v12553, %v12595
  %v12597 = vpop.f32.mrb[0].mxu0
  %v12598 = vadd.f32 %v12555, %v12597
  %12599 = vdwg.mxu0
  %12600 = vmatprep.subr.bf16.mxu0 %v9287
  %12601 = vmatpush1.bf16.msra.mxu0 %v9286
  %12602 = vmatprep.subr.bf16.mxu0 %v9289
  %12603 = vmatpush1.bf16.msra.mxu0 %v9288
  %12604 = vmatprep.subr.bf16.mxu0 %v9291
  %12605 = vmatpush1.bf16.msra.mxu0 %v9290
  %12606 = vmatprep.subr.bf16.mxu0 %v9293
  %12607 = vmatpush1.bf16.msra.mxu0 %v9292
  %12608 = vmatprep.subr.bf16.mxu0 %v9295
  %12609 = vmatpush1.bf16.msra.mxu0 %v9294
  %12610 = vmatprep.subr.bf16.mxu0 %v9297
  %12611 = vmatpush1.bf16.msra.mxu0 %v9296
  %12612 = vmatprep.subr.bf16.mxu0 %v9299
  %12613 = vmatpush1.bf16.msra.mxu0 %v9298
  %12614 = vmatprep.subr.bf16.mxu0 %v9301
  %12615 = vmatpush1.bf16.msra.mxu0 %v9300
  %12616 = vmatprep.subr.bf16.mxu0 %v9303
  %12617 = vmatpush1.bf16.msra.mxu0 %v9302
  %12618 = vmatprep.subr.bf16.mxu0 %v9305
  %12619 = vmatpush1.bf16.msra.mxu0 %v9304
  %12620 = vmatprep.subr.bf16.mxu0 %v9307
  %12621 = vmatpush1.bf16.msra.mxu0 %v9306
  %12622 = vmatprep.subr.bf16.mxu0 %v9309
  %12623 = vmatpush1.bf16.msra.mxu0 %v9308
  %12624 = vmatprep.subr.bf16.mxu0 %v9311
  %12625 = vmatpush1.bf16.msra.mxu0 %v9310
  %12626 = vmatprep.subr.bf16.mxu0 %v9313
  %12627 = vmatpush1.bf16.msra.mxu0 %v9312
  %12628 = vmatprep.subr.bf16.mxu0 %v9315
  %12629 = vmatpush1.bf16.msra.mxu0 %v9314
  %12630 = vmatprep.subr.bf16.mxu0 %v9317
  %12631 = vmatpush1.bf16.msra.mxu0 %v9316
  %12632 = vmatprep.mubr.bf16.mxu0 %v2375
  %12633 = vmatmul.mubr.bf16.gmra.mrb[0].mxu0 %v2374
  %v12634 = vpop.f32.mrb[0].mxu0
  %v12635 = vadd.f32 %v12592, %v12634
  %v12636 = vpop.f32.mrb[0].mxu0
  %v12637 = vadd.f32 %v12594, %v12636
  %v12638 = vpop.f32.mrb[0].mxu0
  %v12639 = vadd.f32 %v12596, %v12638
  %v12640 = vpop.f32.mrb[0].mxu0
  %v12641 = vadd.f32 %v12598, %v12640
  %12642 = vdwg.mxu0
  %12643 = vmatprep.subr.bf16.mxu0 %v9319
  %12644 = vmatpush1.bf16.msra.mxu0 %v9318
  %12645 = vmatprep.subr.bf16.mxu0 %v9321
  %12646 = vmatpush1.bf16.msra.mxu0 %v9320
  %12647 = vmatprep.subr.bf16.mxu0 %v9323
  %12648 = vmatpush1.bf16.msra.mxu0 %v9322
  %12649 = vmatprep.subr.bf16.mxu0 %v9325
  %12650 = vmatpush1.bf16.msra.mxu0 %v9324
  %12651 = vmatprep.subr.bf16.mxu0 %v9327
  %12652 = vmatpush1.bf16.msra.mxu0 %v9326
  %12653 = vmatprep.subr.bf16.mxu0 %v9329
  %12654 = vmatpush1.bf16.msra.mxu0 %v9328
  %12655 = vmatprep.subr.bf16.mxu0 %v9331
  %12656 = vmatpush1.bf16.msra.mxu0 %v9330
  %12657 = vmatprep.subr.bf16.mxu0 %v9333
  %12658 = vmatpush1.bf16.msra.mxu0 %v9332
  %12659 = vmatprep.subr.bf16.mxu0 %v9335
  %12660 = vmatpush1.bf16.msra.mxu0 %v9334
  %12661 = vmatprep.subr.bf16.mxu0 %v9337
  %12662 = vmatpush1.bf16.msra.mxu0 %v9336
  %12663 = vmatprep.subr.bf16.mxu0 %v9339
  %12664 = vmatpush1.bf16.msra.mxu0 %v9338
  %12665 = vmatprep.subr.bf16.mxu0 %v9341
  %12666 = vmatpush1.bf16.msra.mxu0 %v9340
  %12667 = vmatprep.subr.bf16.mxu0 %v9343
  %12668 = vmatpush1.bf16.msra.mxu0 %v9342
  %12669 = vmatprep.subr.bf16.mxu0 %v9345
  %12670 = vmatpush1.bf16.msra.mxu0 %v9344
  %12671 = vmatprep.subr.bf16.mxu0 %v9347
  %12672 = vmatpush1.bf16.msra.mxu0 %v9346
  %12673 = vmatprep.subr.bf16.mxu0 %v9349
  %12674 = vmatpush1.bf16.msra.mxu0 %v9348
  %12675 = vmatprep.mubr.bf16.mxu0 %v2377
  %12676 = vmatmul.mubr.bf16.gmra.mrb[0].mxu0 %v2376
  %v12677 = vpop.f32.mrb[0].mxu0
  %v12678 = vadd.f32 %v12635, %v12677
  %v12679 = vpop.f32.mrb[0].mxu0
  %v12680 = vadd.f32 %v12637, %v12679
  %v12681 = vpop.f32.mrb[0].mxu0
  %v12682 = vadd.f32 %v12639, %v12681
  %v12683 = vpop.f32.mrb[0].mxu0
  %v12684 = vadd.f32 %v12641, %v12683
  %12685 = vdwg.mxu0
  %12686 = vmatprep.subr.bf16.mxu0 %v9351
  %12687 = vmatpush1.bf16.msra.mxu0 %v9350
  %12688 = vmatprep.subr.bf16.mxu0 %v9353
  %12689 = vmatpush1.bf16.msra.mxu0 %v9352
  %12690 = vmatprep.subr.bf16.mxu0 %v9355
  %12691 = vmatpush1.bf16.msra.mxu0 %v9354
  %12692 = vmatprep.subr.bf16.mxu0 %v9357
  %12693 = vmatpush1.bf16.msra.mxu0 %v9356
  %12694 = vmatprep.subr.bf16.mxu0 %v9359
  %12695 = vmatpush1.bf16.msra.mxu0 %v9358
  %12696 = vmatprep.subr.bf16.mxu0 %v9361
  %12697 = vmatpush1.bf16.msra.mxu0 %v9360
  %12698 = vmatprep.subr.bf16.mxu0 %v9363
  %12699 = vmatpush1.bf16.msra.mxu0 %v9362
  %12700 = vmatprep.subr.bf16.mxu0 %v9365
  %12701 = vmatpush1.bf16.msra.mxu0 %v9364
  %12702 = vmatprep.subr.bf16.mxu0 %v9367
  %12703 = vmatpush1.bf16.msra.mxu0 %v9366
  %12704 = vmatprep.subr.bf16.mxu0 %v9369
  %12705 = vmatpush1.bf16.msra.mxu0 %v9368
  %12706 = vmatprep.subr.bf16.mxu0 %v9371
  %12707 = vmatpush1.bf16.msra.mxu0 %v9370
  %12708 = vmatprep.subr.bf16.mxu0 %v9373
  %12709 = vmatpush1.bf16.msra.mxu0 %v9372
  %12710 = vmatprep.subr.bf16.mxu0 %v9375
  %12711 = vmatpush1.bf16.msra.mxu0 %v9374
  %12712 = vmatprep.subr.bf16.mxu0 %v9377
  %12713 = vmatpush1.bf16.msra.mxu0 %v9376
  %12714 = vmatprep.subr.bf16.mxu0 %v9379
  %12715 = vmatpush1.bf16.msra.mxu0 %v9378
  %12716 = vmatprep.subr.bf16.mxu0 %v9381
  %12717 = vmatpush1.bf16.msra.mxu0 %v9380
  %12718 = vmatprep.mubr.bf16.mxu0 %v2379
  %12719 = vmatmul.mubr.bf16.gmra.mrb[0].mxu0 %v2378
  %v12720 = vpop.f32.mrb[0].mxu0
  %v12721 = vadd.f32 %v12678, %v12720
  %v12722 = vpop.f32.mrb[0].mxu0
  %v12723 = vadd.f32 %v12680, %v12722
  %v12724 = vpop.f32.mrb[0].mxu0
  %v12725 = vadd.f32 %v12682, %v12724
  %v12726 = vpop.f32.mrb[0].mxu0
  %v12727 = vadd.f32 %v12684, %v12726
  %12728 = vdwg.mxu0
  %12729 = vmatprep.subr.bf16.mxu0 %v9383
  %12730 = vmatpush1.bf16.msra.mxu0 %v9382
  %12731 = vmatprep.subr.bf16.mxu0 %v9385
  %12732 = vmatpush1.bf16.msra.mxu0 %v9384
  %12733 = vmatprep.subr.bf16.mxu0 %v9387
  %12734 = vmatpush1.bf16.msra.mxu0 %v9386
  %12735 = vmatprep.subr.bf16.mxu0 %v9389
  %12736 = vmatpush1.bf16.msra.mxu0 %v9388
  %12737 = vmatprep.subr.bf16.mxu0 %v9391
  %12738 = vmatpush1.bf16.msra.mxu0 %v9390
  %12739 = vmatprep.subr.bf16.mxu0 %v9393
  %12740 = vmatpush1.bf16.msra.mxu0 %v9392
  %12741 = vmatprep.subr.bf16.mxu0 %v9395
  %12742 = vmatpush1.bf16.msra.mxu0 %v9394
  %12743 = vmatprep.subr.bf16.mxu0 %v9397
  %12744 = vmatpush1.bf16.msra.mxu0 %v9396
  %12745 = vmatprep.subr.bf16.mxu0 %v9399
  %12746 = vmatpush1.bf16.msra.mxu0 %v9398
  %12747 = vmatprep.subr.bf16.mxu0 %v9401
  %12748 = vmatpush1.bf16.msra.mxu0 %v9400
  %12749 = vmatprep.subr.bf16.mxu0 %v9403
  %12750 = vmatpush1.bf16.msra.mxu0 %v9402
  %12751 = vmatprep.subr.bf16.mxu0 %v9405
  %12752 = vmatpush1.bf16.msra.mxu0 %v9404
  %12753 = vmatprep.subr.bf16.mxu0 %v9407
  %12754 = vmatpush1.bf16.msra.mxu0 %v9406
  %12755 = vmatprep.subr.bf16.mxu0 %v9409
  %12756 = vmatpush1.bf16.msra.mxu0 %v9408
  %12757 = vmatprep.subr.bf16.mxu0 %v9411
  %12758 = vmatpush1.bf16.msra.mxu0 %v9410
  %12759 = vmatprep.subr.bf16.mxu0 %v9413
  %12760 = vmatpush1.bf16.msra.mxu0 %v9412
  %12761 = vmatprep.mubr.bf16.mxu0 %v2381
  %12762 = vmatmul.mubr.bf16.gmra.mrb[0].mxu0 %v2380
  %v12763 = vpop.f32.mrb[0].mxu0
  %v12764 = vadd.f32 %v12721, %v12763
  %v12765 = vpop.f32.mrb[0].mxu0
  %v12766 = vadd.f32 %v12723, %v12765
  %v12767 = vpop.f32.mrb[0].mxu0
  %v12768 = vadd.f32 %v12725, %v12767
  %v12769 = vpop.f32.mrb[0].mxu0
  %v12770 = vadd.f32 %v12727, %v12769
  %12771 = vdwg.mxu0
  %12772 = vmatprep.subr.bf16.mxu0 %v9415
  %12773 = vmatpush1.bf16.msra.mxu0 %v9414
  %12774 = vmatprep.subr.bf16.mxu0 %v9417
  %12775 = vmatpush1.bf16.msra.mxu0 %v9416
  %12776 = vmatprep.subr.bf16.mxu0 %v9419
  %12777 = vmatpush1.bf16.msra.mxu0 %v9418
  %12778 = vmatprep.subr.bf16.mxu0 %v9421
  %12779 = vmatpush1.bf16.msra.mxu0 %v9420
  %12780 = vmatprep.subr.bf16.mxu0 %v9423
  %12781 = vmatpush1.bf16.msra.mxu0 %v9422
  %12782 = vmatprep.subr.bf16.mxu0 %v9425
  %12783 = vmatpush1.bf16.msra.mxu0 %v9424
  %12784 = vmatprep.subr.bf16.mxu0 %v9427
  %12785 = vmatpush1.bf16.msra.mxu0 %v9426
  %12786 = vmatprep.subr.bf16.mxu0 %v9429
  %12787 = vmatpush1.bf16.msra.mxu0 %v9428
  %12788 = vmatprep.subr.bf16.mxu0 %v9431
  %12789 = vmatpush1.bf16.msra.mxu0 %v9430
  %12790 = vmatprep.subr.bf16.mxu0 %v9433
  %12791 = vmatpush1.bf16.msra.mxu0 %v9432
  %12792 = vmatprep.subr.bf16.mxu0 %v9435
  %12793 = vmatpush1.bf16.msra.mxu0 %v9434
  %12794 = vmatprep.subr.bf16.mxu0 %v9437
  %12795 = vmatpush1.bf16.msra.mxu0 %v9436
  %12796 = vmatprep.subr.bf16.mxu0 %v9439
  %12797 = vmatpush1.bf16.msra.mxu0 %v9438
  %12798 = vmatprep.subr.bf16.mxu0 %v9441
  %12799 = vmatpush1.bf16.msra.mxu0 %v9440
  %12800 = vmatprep.subr.bf16.mxu0 %v9443
  %12801 = vmatpush1.bf16.msra.mxu0 %v9442
  %12802 = vmatprep.subr.bf16.mxu0 %v9445
  %12803 = vmatpush1.bf16.msra.mxu0 %v9444
  %12804 = vmatprep.mubr.bf16.mxu0 %v2383
  %12805 = vmatmul.mubr.bf16.gmra.mrb[0].mxu0 %v2382
  %v12806 = vpop.f32.mrb[0].mxu0
  %v12807 = vadd.f32 %v12764, %v12806
  %v12808 = vpop.f32.mrb[0].mxu0
  %v12809 = vadd.f32 %v12766, %v12808
  %v12810 = vpop.f32.mrb[0].mxu0
  %v12811 = vadd.f32 %v12768, %v12810
  %v12812 = vpop.f32.mrb[0].mxu0
  %v12813 = vadd.f32 %v12770, %v12812
  %12814 = vdwg.mxu0
  %12815 = vmatprep.subr.bf16.mxu0 %v9447
  %12816 = vmatpush1.bf16.msra.mxu0 %v9446
  %12817 = vmatprep.subr.bf16.mxu0 %v9449
  %12818 = vmatpush1.bf16.msra.mxu0 %v9448
  %12819 = vmatprep.subr.bf16.mxu0 %v9451
  %12820 = vmatpush1.bf16.msra.mxu0 %v9450
  %12821 = vmatprep.subr.bf16.mxu0 %v9453
  %12822 = vmatpush1.bf16.msra.mxu0 %v9452
  %12823 = vmatprep.subr.bf16.mxu0 %v9455
  %12824 = vmatpush1.bf16.msra.mxu0 %v9454
  %12825 = vmatprep.subr.bf16.mxu0 %v9457
  %12826 = vmatpush1.bf16.msra.mxu0 %v9456
  %12827 = vmatprep.subr.bf16.mxu0 %v9459
  %12828 = vmatpush1.bf16.msra.mxu0 %v9458
  %12829 = vmatprep.subr.bf16.mxu0 %v9461
  %12830 = vmatpush1.bf16.msra.mxu0 %v9460
  %12831 = vmatprep.subr.bf16.mxu0 %v9463
  %12832 = vmatpush1.bf16.msra.mxu0 %v9462
  %12833 = vmatprep.subr.bf16.mxu0 %v9465
  %12834 = vmatpush1.bf16.msra.mxu0 %v9464
  %12835 = vmatprep.subr.bf16.mxu0 %v9467
  %12836 = vmatpush1.bf16.msra.mxu0 %v9466
  %12837 = vmatprep.subr.bf16.mxu0 %v9469
  %12838 = vmatpush1.bf16.msra.mxu0 %v9468
  %12839 = vmatprep.subr.bf16.mxu0 %v9471
  %12840 = vmatpush1.bf16.msra.mxu0 %v9470
  %12841 = vmatprep.subr.bf16.mxu0 %v9473
  %12842 = vmatpush1.bf16.msra.mxu0 %v9472
  %12843 = vmatprep.subr.bf16.mxu0 %v9475
  %12844 = vmatpush1.bf16.msra.mxu0 %v9474
  %12845 = vmatprep.subr.bf16.mxu0 %v9477
  %12846 = vmatpush1.bf16.msra.mxu0 %v9476
  %12847 = vmatprep.mubr.bf16.mxu0 %v2385
  %12848 = vmatmul.mubr.bf16.gmra.mrb[0].mxu0 %v2384
  %v12849 = vpop.f32.mrb[0].mxu0
  %v12850 = vadd.f32 %v12807, %v12849
  %v12851 = vpop.f32.mrb[0].mxu0
  %v12852 = vadd.f32 %v12809, %v12851
  %v12853 = vpop.f32.mrb[0].mxu0
  %v12854 = vadd.f32 %v12811, %v12853
  %v12855 = vpop.f32.mrb[0].mxu0
  %v12856 = vadd.f32 %v12813, %v12855
  %12857 = vdwg.mxu0
  %12858 = vmatprep.subr.bf16.mxu0 %v9479
  %12859 = vmatpush1.bf16.msra.mxu0 %v9478
  %12860 = vmatprep.subr.bf16.mxu0 %v9481
  %12861 = vmatpush1.bf16.msra.mxu0 %v9480
  %12862 = vmatprep.subr.bf16.mxu0 %v9483
  %12863 = vmatpush1.bf16.msra.mxu0 %v9482
  %12864 = vmatprep.subr.bf16.mxu0 %v9485
  %12865 = vmatpush1.bf16.msra.mxu0 %v9484
  %12866 = vmatprep.subr.bf16.mxu0 %v9487
  %12867 = vmatpush1.bf16.msra.mxu0 %v9486
  %12868 = vmatprep.subr.bf16.mxu0 %v9489
  %12869 = vmatpush1.bf16.msra.mxu0 %v9488
  %12870 = vmatprep.subr.bf16.mxu0 %v9491
  %12871 = vmatpush1.bf16.msra.mxu0 %v9490
  %12872 = vmatprep.subr.bf16.mxu0 %v9493
  %12873 = vmatpush1.bf16.msra.mxu0 %v9492
  %12874 = vmatprep.subr.bf16.mxu0 %v9495
  %12875 = vmatpush1.bf16.msra.mxu0 %v9494
  %12876 = vmatprep.subr.bf16.mxu0 %v9497
  %12877 = vmatpush1.bf16.msra.mxu0 %v9496
  %12878 = vmatprep.subr.bf16.mxu0 %v9499
  %12879 = vmatpush1.bf16.msra.mxu0 %v9498
  %12880 = vmatprep.subr.bf16.mxu0 %v9501
  %12881 = vmatpush1.bf16.msra.mxu0 %v9500
  %12882 = vmatprep.subr.bf16.mxu0 %v9503
  %12883 = vmatpush1.bf16.msra.mxu0 %v9502
  %12884 = vmatprep.subr.bf16.mxu0 %v9505
  %12885 = vmatpush1.bf16.msra.mxu0 %v9504
  %12886 = vmatprep.subr.bf16.mxu0 %v9507
  %12887 = vmatpush1.bf16.msra.mxu0 %v9506
  %12888 = vmatprep.subr.bf16.mxu0 %v9509
  %12889 = vmatpush1.bf16.msra.mxu0 %v9508
  %12890 = vmatprep.mubr.bf16.mxu0 %v2387
  %12891 = vmatmul.mubr.bf16.gmra.mrb[0].mxu0 %v2386
  %v12892 = vpop.f32.mrb[0].mxu0
  %v12893 = vadd.f32 %v12850, %v12892
  %v12894 = vpop.f32.mrb[0].mxu0
  %v12895 = vadd.f32 %v12852, %v12894
  %v12896 = vpop.f32.mrb[0].mxu0
  %v12897 = vadd.f32 %v12854, %v12896
  %v12898 = vpop.f32.mrb[0].mxu0
  %v12899 = vadd.f32 %v12856, %v12898
  %12900 = vdwg.mxu0
  %12901 = vmatprep.subr.bf16.mxu0 %v9511
  %12902 = vmatpush1.bf16.msra.mxu0 %v9510
  %12903 = vmatprep.subr.bf16.mxu0 %v9513
  %12904 = vmatpush1.bf16.msra.mxu0 %v9512
  %12905 = vmatprep.subr.bf16.mxu0 %v9515
  %12906 = vmatpush1.bf16.msra.mxu0 %v9514
  %12907 = vmatprep.subr.bf16.mxu0 %v9517
  %12908 = vmatpush1.bf16.msra.mxu0 %v9516
  %12909 = vmatprep.subr.bf16.mxu0 %v9519
  %12910 = vmatpush1.bf16.msra.mxu0 %v9518
  %12911 = vmatprep.subr.bf16.mxu0 %v9521
  %12912 = vmatpush1.bf16.msra.mxu0 %v9520
  %12913 = vmatprep.subr.bf16.mxu0 %v9523
  %12914 = vmatpush1.bf16.msra.mxu0 %v9522
  %12915 = vmatprep.subr.bf16.mxu0 %v9525
  %12916 = vmatpush1.bf16.msra.mxu0 %v9524
  %12917 = vmatprep.subr.bf16.mxu0 %v9527
  %12918 = vmatpush1.bf16.msra.mxu0 %v9526
  %12919 = vmatprep.subr.bf16.mxu0 %v9529
  %12920 = vmatpush1.bf16.msra.mxu0 %v9528
  %12921 = vmatprep.subr.bf16.mxu0 %v9531
  %12922 = vmatpush1.bf16.msra.mxu0 %v9530
  %12923 = vmatprep.subr.bf16.mxu0 %v9533
  %12924 = vmatpush1.bf16.msra.mxu0 %v9532
  %12925 = vmatprep.subr.bf16.mxu0 %v9535
  %12926 = vmatpush1.bf16.msra.mxu0 %v9534
  %12927 = vmatprep.subr.bf16.mxu0 %v9537
  %12928 = vmatpush1.bf16.msra.mxu0 %v9536
  %12929 = vmatprep.subr.bf16.mxu0 %v9539
  %12930 = vmatpush1.bf16.msra.mxu0 %v9538
  %12931 = vmatprep.subr.bf16.mxu0 %v9541
  %12932 = vmatpush1.bf16.msra.mxu0 %v9540
  %12933 = vmatprep.mubr.bf16.mxu0 %v2389
  %12934 = vmatmul.mubr.bf16.gmra.mrb[0].mxu0 %v2388
  %v12935 = vpop.f32.mrb[0].mxu0
  %v12936 = vadd.f32 %v12893, %v12935
  %v12937 = vpop.f32.mrb[0].mxu0
  %v12938 = vadd.f32 %v12895, %v12937
  %v12939 = vpop.f32.mrb[0].mxu0
  %v12940 = vadd.f32 %v12897, %v12939
  %v12941 = vpop.f32.mrb[0].mxu0
  %v12942 = vadd.f32 %v12899, %v12941
  %12943 = vdwg.mxu0
  %12944 = vmatprep.subr.bf16.mxu0 %v9543
  %12945 = vmatpush1.bf16.msra.mxu0 %v9542
  %12946 = vmatprep.subr.bf16.mxu0 %v9545
  %12947 = vmatpush1.bf16.msra.mxu0 %v9544
  %12948 = vmatprep.subr.bf16.mxu0 %v9547
  %12949 = vmatpush1.bf16.msra.mxu0 %v9546
  %12950 = vmatprep.subr.bf16.mxu0 %v9549
  %12951 = vmatpush1.bf16.msra.mxu0 %v9548
  %12952 = vmatprep.subr.bf16.mxu0 %v9551
  %12953 = vmatpush1.bf16.msra.mxu0 %v9550
  %12954 = vmatprep.subr.bf16.mxu0 %v9553
  %12955 = vmatpush1.bf16.msra.mxu0 %v9552
  %12956 = vmatprep.subr.bf16.mxu0 %v9555
  %12957 = vmatpush1.bf16.msra.mxu0 %v9554
  %12958 = vmatprep.subr.bf16.mxu0 %v9557
  %12959 = vmatpush1.bf16.msra.mxu0 %v9556
  %12960 = vmatprep.subr.bf16.mxu0 %v9559
  %12961 = vmatpush1.bf16.msra.mxu0 %v9558
  %12962 = vmatprep.subr.bf16.mxu0 %v9561
  %12963 = vmatpush1.bf16.msra.mxu0 %v9560
  %12964 = vmatprep.subr.bf16.mxu0 %v9563
  %12965 = vmatpush1.bf16.msra.mxu0 %v9562
  %12966 = vmatprep.subr.bf16.mxu0 %v9565
  %12967 = vmatpush1.bf16.msra.mxu0 %v9564
  %12968 = vmatprep.subr.bf16.mxu0 %v9567
  %12969 = vmatpush1.bf16.msra.mxu0 %v9566
  %12970 = vmatprep.subr.bf16.mxu0 %v9569
  %12971 = vmatpush1.bf16.msra.mxu0 %v9568
  %12972 = vmatprep.subr.bf16.mxu0 %v9571
  %12973 = vmatpush1.bf16.msra.mxu0 %v9570
  %12974 = vmatprep.subr.bf16.mxu0 %v9573
  %12975 = vmatpush1.bf16.msra.mxu0 %v9572
  %12976 = vmatprep.mubr.bf16.mxu0 %v2391
  %12977 = vmatmul.mubr.bf16.gmra.mrb[0].mxu0 %v2390
  %v12978 = vpop.f32.mrb[0].mxu0
  %v12979 = vadd.f32 %v12936, %v12978
  %v12980 = vpop.f32.mrb[0].mxu0
  %v12981 = vadd.f32 %v12938, %v12980
  %v12982 = vpop.f32.mrb[0].mxu0
  %v12983 = vadd.f32 %v12940, %v12982
  %v12984 = vpop.f32.mrb[0].mxu0
  %v12985 = vadd.f32 %v12942, %v12984
  %12986 = vdwg.mxu0
  %12987 = vmatprep.subr.bf16.mxu0 %v9575
  %12988 = vmatpush1.bf16.msra.mxu0 %v9574
  %12989 = vmatprep.subr.bf16.mxu0 %v9577
  %12990 = vmatpush1.bf16.msra.mxu0 %v9576
  %12991 = vmatprep.subr.bf16.mxu0 %v9579
  %12992 = vmatpush1.bf16.msra.mxu0 %v9578
  %12993 = vmatprep.subr.bf16.mxu0 %v9581
  %12994 = vmatpush1.bf16.msra.mxu0 %v9580
  %12995 = vmatprep.subr.bf16.mxu0 %v9583
  %12996 = vmatpush1.bf16.msra.mxu0 %v9582
  %12997 = vmatprep.subr.bf16.mxu0 %v9585
  %12998 = vmatpush1.bf16.msra.mxu0 %v9584
  %12999 = vmatprep.subr.bf16.mxu0 %v9587
  %13000 = vmatpush1.bf16.msra.mxu0 %v9586
  %13001 = vmatprep.subr.bf16.mxu0 %v9589
  %13002 = vmatpush1.bf16.msra.mxu0 %v9588
  %13003 = vmatprep.subr.bf16.mxu0 %v9591
  %13004 = vmatpush1.bf16.msra.mxu0 %v9590
  %13005 = vmatprep.subr.bf16.mxu0 %v9593
  %13006 = vmatpush1.bf16.msra.mxu0 %v9592
  %13007 = vmatprep.subr.bf16.mxu0 %v9595
  %13008 = vmatpush1.bf16.msra.mxu0 %v9594
  %13009 = vmatprep.subr.bf16.mxu0 %v9597
  %13010 = vmatpush1.bf16.msra.mxu0 %v9596
  %13011 = vmatprep.subr.bf16.mxu0 %v9599
  %13012 = vmatpush1.bf16.msra.mxu0 %v9598
  %13013 = vmatprep.subr.bf16.mxu0 %v9601
  %13014 = vmatpush1.bf16.msra.mxu0 %v9600
  %13015 = vmatprep.subr.bf16.mxu0 %v9603
  %13016 = vmatpush1.bf16.msra.mxu0 %v9602
  %13017 = vmatprep.subr.bf16.mxu0 %v9605
  %13018 = vmatpush1.bf16.msra.mxu0 %v9604
  %13019 = vmatprep.mubr.bf16.mxu0 %v2393
  %13020 = vmatmul.mubr.bf16.gmra.mrb[0].mxu0 %v2392
  %v13021 = vpop.f32.mrb[0].mxu0
  %v13022 = vadd.f32 %v12979, %v13021
  %v13023 = vpop.f32.mrb[0].mxu0
  %v13024 = vadd.f32 %v12981, %v13023
  %v13025 = vpop.f32.mrb[0].mxu0
  %v13026 = vadd.f32 %v12983, %v13025
  %v13027 = vpop.f32.mrb[0].mxu0
  %v13028 = vadd.f32 %v12985, %v13027
  %13029 = vdwg.mxu0
  %13030 = vmatprep.subr.bf16.mxu0 %v9607
  %13031 = vmatpush1.bf16.msra.mxu0 %v9606
  %13032 = vmatprep.subr.bf16.mxu0 %v9609
  %13033 = vmatpush1.bf16.msra.mxu0 %v9608
  %13034 = vmatprep.subr.bf16.mxu0 %v9611
  %13035 = vmatpush1.bf16.msra.mxu0 %v9610
  %13036 = vmatprep.subr.bf16.mxu0 %v9613
  %13037 = vmatpush1.bf16.msra.mxu0 %v9612
  %13038 = vmatprep.subr.bf16.mxu0 %v9615
  %13039 = vmatpush1.bf16.msra.mxu0 %v9614
  %13040 = vmatprep.subr.bf16.mxu0 %v9617
  %13041 = vmatpush1.bf16.msra.mxu0 %v9616
  %13042 = vmatprep.subr.bf16.mxu0 %v9619
  %13043 = vmatpush1.bf16.msra.mxu0 %v9618
  %13044 = vmatprep.subr.bf16.mxu0 %v9621
  %13045 = vmatpush1.bf16.msra.mxu0 %v9620
  %13046 = vmatprep.subr.bf16.mxu0 %v9623
  %13047 = vmatpush1.bf16.msra.mxu0 %v9622
  %13048 = vmatprep.subr.bf16.mxu0 %v9625
  %13049 = vmatpush1.bf16.msra.mxu0 %v9624
  %13050 = vmatprep.subr.bf16.mxu0 %v9627
  %13051 = vmatpush1.bf16.msra.mxu0 %v9626
  %13052 = vmatprep.subr.bf16.mxu0 %v9629
  %13053 = vmatpush1.bf16.msra.mxu0 %v9628
  %13054 = vmatprep.subr.bf16.mxu0 %v9631
  %13055 = vmatpush1.bf16.msra.mxu0 %v9630
  %13056 = vmatprep.subr.bf16.mxu0 %v9633
  %13057 = vmatpush1.bf16.msra.mxu0 %v9632
  %13058 = vmatprep.subr.bf16.mxu0 %v9635
  %13059 = vmatpush1.bf16.msra.mxu0 %v9634
  %13060 = vmatprep.subr.bf16.mxu0 %v9637
  %13061 = vmatpush1.bf16.msra.mxu0 %v9636
  %13062 = vmatprep.mubr.bf16.mxu0 %v2395
  %13063 = vmatmul.mubr.bf16.gmra.mrb[0].mxu0 %v2394
  %v13064 = vpop.f32.mrb[0].mxu0
  %v13065 = vadd.f32 %v13022, %v13064
  %v13066 = vpop.f32.mrb[0].mxu0
  %v13067 = vadd.f32 %v13024, %v13066
  %v13068 = vpop.f32.mrb[0].mxu0
  %v13069 = vadd.f32 %v13026, %v13068
  %v13070 = vpop.f32.mrb[0].mxu0
  %v13071 = vadd.f32 %v13028, %v13070
  %13072 = vdwg.mxu0
  %13073 = vmatprep.subr.bf16.mxu0 %v9639
  %13074 = vmatpush1.bf16.msra.mxu0 %v9638
  %13075 = vmatprep.subr.bf16.mxu0 %v9641
  %13076 = vmatpush1.bf16.msra.mxu0 %v9640
  %13077 = vmatprep.subr.bf16.mxu0 %v9643
  %13078 = vmatpush1.bf16.msra.mxu0 %v9642
  %13079 = vmatprep.subr.bf16.mxu0 %v9645
  %13080 = vmatpush1.bf16.msra.mxu0 %v9644
  %13081 = vmatprep.subr.bf16.mxu0 %v9647
  %13082 = vmatpush1.bf16.msra.mxu0 %v9646
  %13083 = vmatprep.subr.bf16.mxu0 %v9649
  %13084 = vmatpush1.bf16.msra.mxu0 %v9648
  %13085 = vmatprep.subr.bf16.mxu0 %v9651
  %13086 = vmatpush1.bf16.msra.mxu0 %v9650
  %13087 = vmatprep.subr.bf16.mxu0 %v9653
  %13088 = vmatpush1.bf16.msra.mxu0 %v9652
  %13089 = vmatprep.subr.bf16.mxu0 %v9655
  %13090 = vmatpush1.bf16.msra.mxu0 %v9654
  %13091 = vmatprep.subr.bf16.mxu0 %v9657
  %13092 = vmatpush1.bf16.msra.mxu0 %v9656
  %13093 = vmatprep.subr.bf16.mxu0 %v9659
  %13094 = vmatpush1.bf16.msra.mxu0 %v9658
  %13095 = vmatprep.subr.bf16.mxu0 %v9661
  %13096 = vmatpush1.bf16.msra.mxu0 %v9660
  %13097 = vmatprep.subr.bf16.mxu0 %v9663
  %13098 = vmatpush1.bf16.msra.mxu0 %v9662
  %13099 = vmatprep.subr.bf16.mxu0 %v9665
  %13100 = vmatpush1.bf16.msra.mxu0 %v9664
  %13101 = vmatprep.subr.bf16.mxu0 %v9667
  %13102 = vmatpush1.bf16.msra.mxu0 %v9666
  %13103 = vmatprep.subr.bf16.mxu0 %v9669
  %13104 = vmatpush1.bf16.msra.mxu0 %v9668
  %13105 = vmatprep.mubr.bf16.mxu0 %v2397
  %13106 = vmatmul.mubr.bf16.gmra.mrb[0].mxu0 %v2396
  %v13107 = vpop.f32.mrb[0].mxu0
  %v13108 = vadd.f32 %v13065, %v13107
  %v13109 = vpop.f32.mrb[0].mxu0
  %v13110 = vadd.f32 %v13067, %v13109
  %v13111 = vpop.f32.mrb[0].mxu0
  %v13112 = vadd.f32 %v13069, %v13111
  %v13113 = vpop.f32.mrb[0].mxu0
  %v13114 = vadd.f32 %v13071, %v13113
  %13115 = vdwg.mxu0
  %13116 = vmatprep.subr.bf16.mxu0 %v9671
  %13117 = vmatpush1.bf16.msra.mxu0 %v9670
  %13118 = vmatprep.subr.bf16.mxu0 %v9673
  %13119 = vmatpush1.bf16.msra.mxu0 %v9672
  %13120 = vmatprep.subr.bf16.mxu0 %v9675
  %13121 = vmatpush1.bf16.msra.mxu0 %v9674
  %13122 = vmatprep.subr.bf16.mxu0 %v9677
  %13123 = vmatpush1.bf16.msra.mxu0 %v9676
  %13124 = vmatprep.subr.bf16.mxu0 %v9679
  %13125 = vmatpush1.bf16.msra.mxu0 %v9678
  %13126 = vmatprep.subr.bf16.mxu0 %v9681
  %13127 = vmatpush1.bf16.msra.mxu0 %v9680
  %13128 = vmatprep.subr.bf16.mxu0 %v9683
  %13129 = vmatpush1.bf16.msra.mxu0 %v9682
  %13130 = vmatprep.subr.bf16.mxu0 %v9685
  %13131 = vmatpush1.bf16.msra.mxu0 %v9684
  %13132 = vmatprep.subr.bf16.mxu0 %v9687
  %13133 = vmatpush1.bf16.msra.mxu0 %v9686
  %13134 = vmatprep.subr.bf16.mxu0 %v9689
  %13135 = vmatpush1.bf16.msra.mxu0 %v9688
  %13136 = vmatprep.subr.bf16.mxu0 %v9691
  %13137 = vmatpush1.bf16.msra.mxu0 %v9690
  %13138 = vmatprep.subr.bf16.mxu0 %v9693
  %13139 = vmatpush1.bf16.msra.mxu0 %v9692
  %13140 = vmatprep.subr.bf16.mxu0 %v9695
  %13141 = vmatpush1.bf16.msra.mxu0 %v9694
  %13142 = vmatprep.subr.bf16.mxu0 %v9697
  %13143 = vmatpush1.bf16.msra.mxu0 %v9696
  %13144 = vmatprep.subr.bf16.mxu0 %v9699
  %13145 = vmatpush1.bf16.msra.mxu0 %v9698
  %13146 = vmatprep.subr.bf16.mxu0 %v9701
  %13147 = vmatpush1.bf16.msra.mxu0 %v9700
  %13148 = vmatprep.mubr.bf16.mxu0 %v2399
  %13149 = vmatmul.mubr.bf16.gmra.mrb[0].mxu0 %v2398
  %v13150 = vpop.f32.mrb[0].mxu0
  %v13151 = vadd.f32 %v13108, %v13150
  %v13152 = vpop.f32.mrb[0].mxu0
  %v13153 = vadd.f32 %v13110, %v13152
  %v13154 = vpop.f32.mrb[0].mxu0
  %v13155 = vadd.f32 %v13112, %v13154
  %v13156 = vpop.f32.mrb[0].mxu0
  %v13157 = vadd.f32 %v13114, %v13156
  %13158 = vdwg.mxu0
  %13159 = vmatprep.subr.bf16.mxu0 %v9703
  %13160 = vmatpush1.bf16.msra.mxu0 %v9702
  %13161 = vmatprep.subr.bf16.mxu0 %v9705
  %13162 = vmatpush1.bf16.msra.mxu0 %v9704
  %13163 = vmatprep.subr.bf16.mxu0 %v9707
  %13164 = vmatpush1.bf16.msra.mxu0 %v9706
  %13165 = vmatprep.subr.bf16.mxu0 %v9709
  %13166 = vmatpush1.bf16.msra.mxu0 %v9708
  %13167 = vmatprep.subr.bf16.mxu0 %v9711
  %13168 = vmatpush1.bf16.msra.mxu0 %v9710
  %13169 = vmatprep.subr.bf16.mxu0 %v9713
  %13170 = vmatpush1.bf16.msra.mxu0 %v9712
  %13171 = vmatprep.subr.bf16.mxu0 %v9715
  %13172 = vmatpush1.bf16.msra.mxu0 %v9714
  %13173 = vmatprep.subr.bf16.mxu0 %v9717
  %13174 = vmatpush1.bf16.msra.mxu0 %v9716
  %13175 = vmatprep.subr.bf16.mxu0 %v9719
  %13176 = vmatpush1.bf16.msra.mxu0 %v9718
  %13177 = vmatprep.subr.bf16.mxu0 %v9721
  %13178 = vmatpush1.bf16.msra.mxu0 %v9720
  %13179 = vmatprep.subr.bf16.mxu0 %v9723
  %13180 = vmatpush1.bf16.msra.mxu0 %v9722
  %13181 = vmatprep.subr.bf16.mxu0 %v9725
  %13182 = vmatpush1.bf16.msra.mxu0 %v9724
  %13183 = vmatprep.subr.bf16.mxu0 %v9727
  %13184 = vmatpush1.bf16.msra.mxu0 %v9726
  %13185 = vmatprep.subr.bf16.mxu0 %v9729
  %13186 = vmatpush1.bf16.msra.mxu0 %v9728
  %13187 = vmatprep.subr.bf16.mxu0 %v9731
  %13188 = vmatpush1.bf16.msra.mxu0 %v9730
  %13189 = vmatprep.subr.bf16.mxu0 %v9733
  %13190 = vmatpush1.bf16.msra.mxu0 %v9732
  %13191 = vmatprep.mubr.bf16.mxu0 %v2401
  %13192 = vmatmul.mubr.bf16.gmra.mrb[0].mxu0 %v2400
  %v13193 = vpop.f32.mrb[0].mxu0
  %v13194 = vadd.f32 %v13151, %v13193
  %v13195 = vpop.f32.mrb[0].mxu0
  %v13196 = vadd.f32 %v13153, %v13195
  %v13197 = vpop.f32.mrb[0].mxu0
  %v13198 = vadd.f32 %v13155, %v13197
  %v13199 = vpop.f32.mrb[0].mxu0
  %v13200 = vadd.f32 %v13157, %v13199
  %13201 = vdwg.mxu0
  %13202 = vmatprep.subr.bf16.mxu0 %v9735
  %13203 = vmatpush1.bf16.msra.mxu0 %v9734
  %13204 = vmatprep.subr.bf16.mxu0 %v9737
  %13205 = vmatpush1.bf16.msra.mxu0 %v9736
  %13206 = vmatprep.subr.bf16.mxu0 %v9739
  %13207 = vmatpush1.bf16.msra.mxu0 %v9738
  %13208 = vmatprep.subr.bf16.mxu0 %v9741
  %13209 = vmatpush1.bf16.msra.mxu0 %v9740
  %13210 = vmatprep.subr.bf16.mxu0 %v9743
  %13211 = vmatpush1.bf16.msra.mxu0 %v9742
  %13212 = vmatprep.subr.bf16.mxu0 %v9745
  %13213 = vmatpush1.bf16.msra.mxu0 %v9744
  %13214 = vmatprep.subr.bf16.mxu0 %v9747
  %13215 = vmatpush1.bf16.msra.mxu0 %v9746
  %13216 = vmatprep.subr.bf16.mxu0 %v9749
  %13217 = vmatpush1.bf16.msra.mxu0 %v9748
  %13218 = vmatprep.subr.bf16.mxu0 %v9751
  %13219 = vmatpush1.bf16.msra.mxu0 %v9750
  %13220 = vmatprep.subr.bf16.mxu0 %v9753
  %13221 = vmatpush1.bf16.msra.mxu0 %v9752
  %13222 = vmatprep.subr.bf16.mxu0 %v9755
  %13223 = vmatpush1.bf16.msra.mxu0 %v9754
  %13224 = vmatprep.subr.bf16.mxu0 %v9757
  %13225 = vmatpush1.bf16.msra.mxu0 %v9756
  %13226 = vmatprep.subr.bf16.mxu0 %v9759
  %13227 = vmatpush1.bf16.msra.mxu0 %v9758
  %13228 = vmatprep.subr.bf16.mxu0 %v9761
  %13229 = vmatpush1.bf16.msra.mxu0 %v9760
  %13230 = vmatprep.subr.bf16.mxu0 %v9763
  %13231 = vmatpush1.bf16.msra.mxu0 %v9762
  %13232 = vmatprep.subr.bf16.mxu0 %v9765
  %13233 = vmatpush1.bf16.msra.mxu0 %v9764
  %13234 = vmatprep.mubr.bf16.mxu0 %v2403
  %13235 = vmatmul.mubr.bf16.gmra.mrb[0].mxu0 %v2402
  %v13236 = vpop.f32.mrb[0].mxu0
  %v13237 = vadd.f32 %v13194, %v13236
  %v13238 = vpop.f32.mrb[0].mxu0
  %v13239 = vadd.f32 %v13196, %v13238
  %v13240 = vpop.f32.mrb[0].mxu0
  %v13241 = vadd.f32 %v13198, %v13240
  %v13242 = vpop.f32.mrb[0].mxu0
  %v13243 = vadd.f32 %v13200, %v13242
  %13244 = vdwg.mxu0
  %13245 = vmatprep.subr.bf16.mxu0 %v9767
  %13246 = vmatpush1.bf16.msra.mxu0 %v9766
  %13247 = vmatprep.subr.bf16.mxu0 %v9769
  %13248 = vmatpush1.bf16.msra.mxu0 %v9768
  %13249 = vmatprep.subr.bf16.mxu0 %v9771
  %13250 = vmatpush1.bf16.msra.mxu0 %v9770
  %13251 = vmatprep.subr.bf16.mxu0 %v9773
  %13252 = vmatpush1.bf16.msra.mxu0 %v9772
  %13253 = vmatprep.subr.bf16.mxu0 %v9775
  %13254 = vmatpush1.bf16.msra.mxu0 %v9774
  %13255 = vmatprep.subr.bf16.mxu0 %v9777
  %13256 = vmatpush1.bf16.msra.mxu0 %v9776
  %13257 = vmatprep.subr.bf16.mxu0 %v9779
  %13258 = vmatpush1.bf16.msra.mxu0 %v9778
  %13259 = vmatprep.subr.bf16.mxu0 %v9781
  %13260 = vmatpush1.bf16.msra.mxu0 %v9780
  %13261 = vmatprep.subr.bf16.mxu0 %v9783
  %13262 = vmatpush1.bf16.msra.mxu0 %v9782
  %13263 = vmatprep.subr.bf16.mxu0 %v9785
  %13264 = vmatpush1.bf16.msra.mxu0 %v9784
  %13265 = vmatprep.subr.bf16.mxu0 %v9787
  %13266 = vmatpush1.bf16.msra.mxu0 %v9786
  %13267 = vmatprep.subr.bf16.mxu0 %v9789
  %13268 = vmatpush1.bf16.msra.mxu0 %v9788
  %13269 = vmatprep.subr.bf16.mxu0 %v9791
  %13270 = vmatpush1.bf16.msra.mxu0 %v9790
  %13271 = vmatprep.subr.bf16.mxu0 %v9793
  %13272 = vmatpush1.bf16.msra.mxu0 %v9792
  %13273 = vmatprep.subr.bf16.mxu0 %v9795
  %13274 = vmatpush1.bf16.msra.mxu0 %v9794
  %13275 = vmatprep.subr.bf16.mxu0 %v9797
  %13276 = vmatpush1.bf16.msra.mxu0 %v9796
  %13277 = vmatprep.mubr.bf16.mxu0 %v2405
  %13278 = vmatmul.mubr.bf16.gmra.mrb[0].mxu0 %v2404
  %v13279 = vpop.f32.mrb[0].mxu0
  %v13280 = vadd.f32 %v13237, %v13279
  %v13281 = vpop.f32.mrb[0].mxu0
  %v13282 = vadd.f32 %v13239, %v13281
  %v13283 = vpop.f32.mrb[0].mxu0
  %v13284 = vadd.f32 %v13241, %v13283
  %v13285 = vpop.f32.mrb[0].mxu0
  %v13286 = vadd.f32 %v13243, %v13285
  %13287 = vdwg.mxu0
  %13288 = vmatprep.subr.bf16.mxu0 %v9799
  %13289 = vmatpush1.bf16.msra.mxu0 %v9798
  %13290 = vmatprep.subr.bf16.mxu0 %v9801
  %13291 = vmatpush1.bf16.msra.mxu0 %v9800
  %13292 = vmatprep.subr.bf16.mxu0 %v9803
  %13293 = vmatpush1.bf16.msra.mxu0 %v9802
  %13294 = vmatprep.subr.bf16.mxu0 %v9805
  %13295 = vmatpush1.bf16.msra.mxu0 %v9804
  %13296 = vmatprep.subr.bf16.mxu0 %v9807
  %13297 = vmatpush1.bf16.msra.mxu0 %v9806
  %13298 = vmatprep.subr.bf16.mxu0 %v9809
  %13299 = vmatpush1.bf16.msra.mxu0 %v9808
  %13300 = vmatprep.subr.bf16.mxu0 %v9811
  %13301 = vmatpush1.bf16.msra.mxu0 %v9810
  %13302 = vmatprep.subr.bf16.mxu0 %v9813
  %13303 = vmatpush1.bf16.msra.mxu0 %v9812
  %13304 = vmatprep.subr.bf16.mxu0 %v9815
  %13305 = vmatpush1.bf16.msra.mxu0 %v9814
  %13306 = vmatprep.subr.bf16.mxu0 %v9817
  %13307 = vmatpush1.bf16.msra.mxu0 %v9816
  %13308 = vmatprep.subr.bf16.mxu0 %v9819
  %13309 = vmatpush1.bf16.msra.mxu0 %v9818
  %13310 = vmatprep.subr.bf16.mxu0 %v9821
  %13311 = vmatpush1.bf16.msra.mxu0 %v9820
  %13312 = vmatprep.subr.bf16.mxu0 %v9823
  %13313 = vmatpush1.bf16.msra.mxu0 %v9822
  %13314 = vmatprep.subr.bf16.mxu0 %v9825
  %13315 = vmatpush1.bf16.msra.mxu0 %v9824
  %13316 = vmatprep.subr.bf16.mxu0 %v9827
  %13317 = vmatpush1.bf16.msra.mxu0 %v9826
  %13318 = vmatprep.subr.bf16.mxu0 %v9829
  %13319 = vmatpush1.bf16.msra.mxu0 %v9828
  %13320 = vmatprep.mubr.bf16.mxu0 %v2407
  %13321 = vmatmul.mubr.bf16.gmra.mrb[0].mxu0 %v2406
  %v13322 = vpop.f32.mrb[0].mxu0
  %v13323 = vadd.f32 %v13280, %v13322
  %v13324 = vpop.f32.mrb[0].mxu0
  %v13325 = vadd.f32 %v13282, %v13324
  %v13326 = vpop.f32.mrb[0].mxu0
  %v13327 = vadd.f32 %v13284, %v13326
  %v13328 = vpop.f32.mrb[0].mxu0
  %v13329 = vadd.f32 %v13286, %v13328
  %13330 = vdwg.mxu0
  %13331 = vmatprep.subr.bf16.mxu0 %v9831
  %13332 = vmatpush1.bf16.msra.mxu0 %v9830
  %13333 = vmatprep.subr.bf16.mxu0 %v9833
  %13334 = vmatpush1.bf16.msra.mxu0 %v9832
  %13335 = vmatprep.subr.bf16.mxu0 %v9835
  %13336 = vmatpush1.bf16.msra.mxu0 %v9834
  %13337 = vmatprep.subr.bf16.mxu0 %v9837
  %13338 = vmatpush1.bf16.msra.mxu0 %v9836
  %13339 = vmatprep.subr.bf16.mxu0 %v9839
  %13340 = vmatpush1.bf16.msra.mxu0 %v9838
  %13341 = vmatprep.subr.bf16.mxu0 %v9841
  %13342 = vmatpush1.bf16.msra.mxu0 %v9840
  %13343 = vmatprep.subr.bf16.mxu0 %v9843
  %13344 = vmatpush1.bf16.msra.mxu0 %v9842
  %13345 = vmatprep.subr.bf16.mxu0 %v9845
  %13346 = vmatpush1.bf16.msra.mxu0 %v9844
  %13347 = vmatprep.subr.bf16.mxu0 %v9847
  %13348 = vmatpush1.bf16.msra.mxu0 %v9846
  %13349 = vmatprep.subr.bf16.mxu0 %v9849
  %13350 = vmatpush1.bf16.msra.mxu0 %v9848
  %13351 = vmatprep.subr.bf16.mxu0 %v9851
  %13352 = vmatpush1.bf16.msra.mxu0 %v9850
  %13353 = vmatprep.subr.bf16.mxu0 %v9853
  %13354 = vmatpush1.bf16.msra.mxu0 %v9852
  %13355 = vmatprep.subr.bf16.mxu0 %v9855
  %13356 = vmatpush1.bf16.msra.mxu0 %v9854
  %13357 = vmatprep.subr.bf16.mxu0 %v9857
  %13358 = vmatpush1.bf16.msra.mxu0 %v9856
  %13359 = vmatprep.subr.bf16.mxu0 %v9859
  %13360 = vmatpush1.bf16.msra.mxu0 %v9858
  %13361 = vmatprep.subr.bf16.mxu0 %v9861
  %13362 = vmatpush1.bf16.msra.mxu0 %v9860
  %13363 = vmatprep.mubr.bf16.mxu0 %v2409
  %13364 = vmatmul.mubr.bf16.gmra.mrb[0].mxu0 %v2408
  %v13365 = vpop.f32.mrb[0].mxu0
  %v13366 = vadd.f32 %v13323, %v13365
  %v13367 = vpop.f32.mrb[0].mxu0
  %v13368 = vadd.f32 %v13325, %v13367
  %v13369 = vpop.f32.mrb[0].mxu0
  %v13370 = vadd.f32 %v13327, %v13369
  %v13371 = vpop.f32.mrb[0].mxu0
  %v13372 = vadd.f32 %v13329, %v13371
  %13373 = vdwg.mxu0
  %13374 = vmatprep.subr.bf16.mxu0 %v9863
  %13375 = vmatpush1.bf16.msra.mxu0 %v9862
  %13376 = vmatprep.subr.bf16.mxu0 %v9865
  %13377 = vmatpush1.bf16.msra.mxu0 %v9864
  %13378 = vmatprep.subr.bf16.mxu0 %v9867
  %13379 = vmatpush1.bf16.msra.mxu0 %v9866
  %13380 = vmatprep.subr.bf16.mxu0 %v9869
  %13381 = vmatpush1.bf16.msra.mxu0 %v9868
  %13382 = vmatprep.subr.bf16.mxu0 %v9871
  %13383 = vmatpush1.bf16.msra.mxu0 %v9870
  %13384 = vmatprep.subr.bf16.mxu0 %v9873
  %13385 = vmatpush1.bf16.msra.mxu0 %v9872
  %13386 = vmatprep.subr.bf16.mxu0 %v9875
  %13387 = vmatpush1.bf16.msra.mxu0 %v9874
  %13388 = vmatprep.subr.bf16.mxu0 %v9877
  %13389 = vmatpush1.bf16.msra.mxu0 %v9876
  %13390 = vmatprep.subr.bf16.mxu0 %v9879
  %13391 = vmatpush1.bf16.msra.mxu0 %v9878
  %13392 = vmatprep.subr.bf16.mxu0 %v9881
  %13393 = vmatpush1.bf16.msra.mxu0 %v9880
  %13394 = vmatprep.subr.bf16.mxu0 %v9883
  %13395 = vmatpush1.bf16.msra.mxu0 %v9882
  %13396 = vmatprep.subr.bf16.mxu0 %v9885
  %13397 = vmatpush1.bf16.msra.mxu0 %v9884
  %13398 = vmatprep.subr.bf16.mxu0 %v9887
  %13399 = vmatpush1.bf16.msra.mxu0 %v9886
  %13400 = vmatprep.subr.bf16.mxu0 %v9889
  %13401 = vmatpush1.bf16.msra.mxu0 %v9888
  %13402 = vmatprep.subr.bf16.mxu0 %v9891
  %13403 = vmatpush1.bf16.msra.mxu0 %v9890
  %13404 = vmatprep.subr.bf16.mxu0 %v9893
  %13405 = vmatpush1.bf16.msra.mxu0 %v9892
  %13406 = vmatprep.mubr.bf16.mxu0 %v2411
  %13407 = vmatmul.mubr.bf16.gmra.mrb[0].mxu0 %v2410
  %v13408 = vpop.f32.mrb[0].mxu0
  %v13409 = vadd.f32 %v13366, %v13408
  %v13410 = vpop.f32.mrb[0].mxu0
  %v13411 = vadd.f32 %v13368, %v13410
  %v13412 = vpop.f32.mrb[0].mxu0
  %v13413 = vadd.f32 %v13370, %v13412
  %v13414 = vpop.f32.mrb[0].mxu0
  %v13415 = vadd.f32 %v13372, %v13414
  %13416 = vdwg.mxu0
  %13417 = vmatprep.subr.bf16.mxu0 %v9895
  %13418 = vmatpush1.bf16.msra.mxu0 %v9894
  %13419 = vmatprep.subr.bf16.mxu0 %v9897
  %13420 = vmatpush1.bf16.msra.mxu0 %v9896
  %13421 = vmatprep.subr.bf16.mxu0 %v9899
  %13422 = vmatpush1.bf16.msra.mxu0 %v9898
  %13423 = vmatprep.subr.bf16.mxu0 %v9901
  %13424 = vmatpush1.bf16.msra.mxu0 %v9900
  %13425 = vmatprep.subr.bf16.mxu0 %v9903
  %13426 = vmatpush1.bf16.msra.mxu0 %v9902
  %13427 = vmatprep.subr.bf16.mxu0 %v9905
  %13428 = vmatpush1.bf16.msra.mxu0 %v9904
  %13429 = vmatprep.subr.bf16.mxu0 %v9907
  %13430 = vmatpush1.bf16.msra.mxu0 %v9906
  %13431 = vmatprep.subr.bf16.mxu0 %v9909
  %13432 = vmatpush1.bf16.msra.mxu0 %v9908
  %13433 = vmatprep.subr.bf16.mxu0 %v9911
  %13434 = vmatpush1.bf16.msra.mxu0 %v9910
  %13435 = vmatprep.subr.bf16.mxu0 %v9913
  %13436 = vmatpush1.bf16.msra.mxu0 %v9912
  %13437 = vmatprep.subr.bf16.mxu0 %v9915
  %13438 = vmatpush1.bf16.msra.mxu0 %v9914
  %13439 = vmatprep.subr.bf16.mxu0 %v9917
  %13440 = vmatpush1.bf16.msra.mxu0 %v9916
  %13441 = vmatprep.subr.bf16.mxu0 %v9919
  %13442 = vmatpush1.bf16.msra.mxu0 %v9918
  %13443 = vmatprep.subr.bf16.mxu0 %v9921
  %13444 = vmatpush1.bf16.msra.mxu0 %v9920
  %13445 = vmatprep.subr.bf16.mxu0 %v9923
  %13446 = vmatpush1.bf16.msra.mxu0 %v9922
  %13447 = vmatprep.subr.bf16.mxu0 %v9925
  %13448 = vmatpush1.bf16.msra.mxu0 %v9924
  %13449 = vmatprep.mubr.bf16.mxu0 %v2413
  %13450 = vmatmul.mubr.bf16.gmra.mrb[0].mxu0 %v2412
  %v13451 = vpop.f32.mrb[0].mxu0
  %v13452 = vadd.f32 %v13409, %v13451
  %v13453 = vpop.f32.mrb[0].mxu0
  %v13454 = vadd.f32 %v13411, %v13453
  %v13455 = vpop.f32.mrb[0].mxu0
  %v13456 = vadd.f32 %v13413, %v13455
  %v13457 = vpop.f32.mrb[0].mxu0
  %v13458 = vadd.f32 %v13415, %v13457
  %13459 = vdwg.mxu0
  %13460 = vmatprep.subr.bf16.mxu0 %v9927
  %13461 = vmatpush1.bf16.msra.mxu0 %v9926
  %13462 = vmatprep.subr.bf16.mxu0 %v9929
  %13463 = vmatpush1.bf16.msra.mxu0 %v9928
  %13464 = vmatprep.subr.bf16.mxu0 %v9931
  %13465 = vmatpush1.bf16.msra.mxu0 %v9930
  %13466 = vmatprep.subr.bf16.mxu0 %v9933
  %13467 = vmatpush1.bf16.msra.mxu0 %v9932
  %13468 = vmatprep.subr.bf16.mxu0 %v9935
  %13469 = vmatpush1.bf16.msra.mxu0 %v9934
  %13470 = vmatprep.subr.bf16.mxu0 %v9937
  %13471 = vmatpush1.bf16.msra.mxu0 %v9936
  %13472 = vmatprep.subr.bf16.mxu0 %v9939
  %13473 = vmatpush1.bf16.msra.mxu0 %v9938
  %13474 = vmatprep.subr.bf16.mxu0 %v9941
  %13475 = vmatpush1.bf16.msra.mxu0 %v9940
  %13476 = vmatprep.subr.bf16.mxu0 %v9943
  %13477 = vmatpush1.bf16.msra.mxu0 %v9942
  %13478 = vmatprep.subr.bf16.mxu0 %v9945
  %13479 = vmatpush1.bf16.msra.mxu0 %v9944
  %13480 = vmatprep.subr.bf16.mxu0 %v9947
  %13481 = vmatpush1.bf16.msra.mxu0 %v9946
  %13482 = vmatprep.subr.bf16.mxu0 %v9949
  %13483 = vmatpush1.bf16.msra.mxu0 %v9948
  %13484 = vmatprep.subr.bf16.mxu0 %v9951
  %13485 = vmatpush1.bf16.msra.mxu0 %v9950
  %13486 = vmatprep.subr.bf16.mxu0 %v9953
  %13487 = vmatpush1.bf16.msra.mxu0 %v9952
  %13488 = vmatprep.subr.bf16.mxu0 %v9955
  %13489 = vmatpush1.bf16.msra.mxu0 %v9954
  %13490 = vmatprep.subr.bf16.mxu0 %v9957
  %13491 = vmatpush1.bf16.msra.mxu0 %v9956
  %13492 = vmatprep.mubr.bf16.mxu0 %v2415
  %13493 = vmatmul.mubr.bf16.gmra.mrb[0].mxu0 %v2414
  %v13494 = vpop.f32.mrb[0].mxu0
  %v13495 = vadd.f32 %v13452, %v13494
  %v13496 = vpop.f32.mrb[0].mxu0
  %v13497 = vadd.f32 %v13454, %v13496
  %v13498 = vpop.f32.mrb[0].mxu0
  %v13499 = vadd.f32 %v13456, %v13498
  %v13500 = vpop.f32.mrb[0].mxu0
  %v13501 = vadd.f32 %v13458, %v13500
  %13502 = vdwg.mxu0
  %13503 = vmatprep.subr.bf16.mxu0 %v9959
  %13504 = vmatpush1.bf16.msra.mxu0 %v9958
  %13505 = vmatprep.subr.bf16.mxu0 %v9961
  %13506 = vmatpush1.bf16.msra.mxu0 %v9960
  %13507 = vmatprep.subr.bf16.mxu0 %v9963
  %13508 = vmatpush1.bf16.msra.mxu0 %v9962
  %13509 = vmatprep.subr.bf16.mxu0 %v9965
  %13510 = vmatpush1.bf16.msra.mxu0 %v9964
  %13511 = vmatprep.subr.bf16.mxu0 %v9967
  %13512 = vmatpush1.bf16.msra.mxu0 %v9966
  %13513 = vmatprep.subr.bf16.mxu0 %v9969
  %13514 = vmatpush1.bf16.msra.mxu0 %v9968
  %13515 = vmatprep.subr.bf16.mxu0 %v9971
  %13516 = vmatpush1.bf16.msra.mxu0 %v9970
  %13517 = vmatprep.subr.bf16.mxu0 %v9973
  %13518 = vmatpush1.bf16.msra.mxu0 %v9972
  %13519 = vmatprep.subr.bf16.mxu0 %v9975
  %13520 = vmatpush1.bf16.msra.mxu0 %v9974
  %13521 = vmatprep.subr.bf16.mxu0 %v9977
  %13522 = vmatpush1.bf16.msra.mxu0 %v9976
  %13523 = vmatprep.subr.bf16.mxu0 %v9979
  %13524 = vmatpush1.bf16.msra.mxu0 %v9978
  %13525 = vmatprep.subr.bf16.mxu0 %v9981
  %13526 = vmatpush1.bf16.msra.mxu0 %v9980
  %13527 = vmatprep.subr.bf16.mxu0 %v9983
  %13528 = vmatpush1.bf16.msra.mxu0 %v9982
  %13529 = vmatprep.subr.bf16.mxu0 %v9985
  %13530 = vmatpush1.bf16.msra.mxu0 %v9984
  %13531 = vmatprep.subr.bf16.mxu0 %v9987
  %13532 = vmatpush1.bf16.msra.mxu0 %v9986
  %13533 = vmatprep.subr.bf16.mxu0 %v9989
  %13534 = vmatpush1.bf16.msra.mxu0 %v9988
  %13535 = vmatprep.mubr.bf16.mxu0 %v2417
  %13536 = vmatmul.mubr.bf16.gmra.mrb[0].mxu0 %v2416
  %v13537 = vpop.f32.mrb[0].mxu0
  %v13538 = vadd.f32 %v13495, %v13537
  %v13539 = vpop.f32.mrb[0].mxu0
  %v13540 = vadd.f32 %v13497, %v13539
  %v13541 = vpop.f32.mrb[0].mxu0
  %v13542 = vadd.f32 %v13499, %v13541
  %v13543 = vpop.f32.mrb[0].mxu0
  %v13544 = vadd.f32 %v13501, %v13543
  %13545 = vdwg.mxu0
  %13546 = vmatprep.subr.bf16.mxu0 %v9991
  %13547 = vmatpush1.bf16.msra.mxu0 %v9990
  %13548 = vmatprep.subr.bf16.mxu0 %v9993
  %13549 = vmatpush1.bf16.msra.mxu0 %v9992
  %13550 = vmatprep.subr.bf16.mxu0 %v9995
  %13551 = vmatpush1.bf16.msra.mxu0 %v9994
  %13552 = vmatprep.subr.bf16.mxu0 %v9997
  %13553 = vmatpush1.bf16.msra.mxu0 %v9996
  %13554 = vmatprep.subr.bf16.mxu0 %v9999
  %13555 = vmatpush1.bf16.msra.mxu0 %v9998
  %13556 = vmatprep.subr.bf16.mxu0 %v10001
  %13557 = vmatpush1.bf16.msra.mxu0 %v10000
  %13558 = vmatprep.subr.bf16.mxu0 %v10003
  %13559 = vmatpush1.bf16.msra.mxu0 %v10002
  %13560 = vmatprep.subr.bf16.mxu0 %v10005
  %13561 = vmatpush1.bf16.msra.mxu0 %v10004
  %13562 = vmatprep.subr.bf16.mxu0 %v10007
  %13563 = vmatpush1.bf16.msra.mxu0 %v10006
  %13564 = vmatprep.subr.bf16.mxu0 %v10009
  %13565 = vmatpush1.bf16.msra.mxu0 %v10008
  %13566 = vmatprep.subr.bf16.mxu0 %v10011
  %13567 = vmatpush1.bf16.msra.mxu0 %v10010
  %13568 = vmatprep.subr.bf16.mxu0 %v10013
  %13569 = vmatpush1.bf16.msra.mxu0 %v10012
  %13570 = vmatprep.subr.bf16.mxu0 %v10015
  %13571 = vmatpush1.bf16.msra.mxu0 %v10014
  %13572 = vmatprep.subr.bf16.mxu0 %v10017
  %13573 = vmatpush1.bf16.msra.mxu0 %v10016
  %13574 = vmatprep.subr.bf16.mxu0 %v10019
  %13575 = vmatpush1.bf16.msra.mxu0 %v10018
  %13576 = vmatprep.subr.bf16.mxu0 %v10021
  %13577 = vmatpush1.bf16.msra.mxu0 %v10020
  %13578 = vmatprep.mubr.bf16.mxu0 %v2419
  %13579 = vmatmul.mubr.bf16.gmra.mrb[0].mxu0 %v2418
  %v13580 = vpop.f32.mrb[0].mxu0
  %v13581 = vadd.f32 %v13538, %v13580
  %v13582 = vpop.f32.mrb[0].mxu0
  %v13583 = vadd.f32 %v13540, %v13582
  %v13584 = vpop.f32.mrb[0].mxu0
  %v13585 = vadd.f32 %v13542, %v13584
  %v13586 = vpop.f32.mrb[0].mxu0
  %v13587 = vadd.f32 %v13544, %v13586
  %13588 = vdwg.mxu0
  %13589 = vmatprep.subr.bf16.mxu0 %v10023
  %13590 = vmatpush1.bf16.msra.mxu0 %v10022
  %13591 = vmatprep.subr.bf16.mxu0 %v10025
  %13592 = vmatpush1.bf16.msra.mxu0 %v10024
  %13593 = vmatprep.subr.bf16.mxu0 %v10027
  %13594 = vmatpush1.bf16.msra.mxu0 %v10026
  %13595 = vmatprep.subr.bf16.mxu0 %v10029
  %13596 = vmatpush1.bf16.msra.mxu0 %v10028
  %13597 = vmatprep.subr.bf16.mxu0 %v10031
  %13598 = vmatpush1.bf16.msra.mxu0 %v10030
  %13599 = vmatprep.subr.bf16.mxu0 %v10033
  %13600 = vmatpush1.bf16.msra.mxu0 %v10032
  %13601 = vmatprep.subr.bf16.mxu0 %v10035
  %13602 = vmatpush1.bf16.msra.mxu0 %v10034
  %13603 = vmatprep.subr.bf16.mxu0 %v10037
  %13604 = vmatpush1.bf16.msra.mxu0 %v10036
  %13605 = vmatprep.subr.bf16.mxu0 %v10039
  %13606 = vmatpush1.bf16.msra.mxu0 %v10038
  %13607 = vmatprep.subr.bf16.mxu0 %v10041
  %13608 = vmatpush1.bf16.msra.mxu0 %v10040
  %13609 = vmatprep.subr.bf16.mxu0 %v10043
  %13610 = vmatpush1.bf16.msra.mxu0 %v10042
  %13611 = vmatprep.subr.bf16.mxu0 %v10045
  %13612 = vmatpush1.bf16.msra.mxu0 %v10044
  %13613 = vmatprep.subr.bf16.mxu0 %v10047
  %13614 = vmatpush1.bf16.msra.mxu0 %v10046
  %13615 = vmatprep.subr.bf16.mxu0 %v10049
  %13616 = vmatpush1.bf16.msra.mxu0 %v10048
  %13617 = vmatprep.subr.bf16.mxu0 %v10051
  %13618 = vmatpush1.bf16.msra.mxu0 %v10050
  %13619 = vmatprep.subr.bf16.mxu0 %v10053
  %13620 = vmatpush1.bf16.msra.mxu0 %v10052
  %13621 = vmatprep.mubr.bf16.mxu0 %v2421
  %13622 = vmatmul.mubr.bf16.gmra.mrb[0].mxu0 %v2420
  %v13623 = vpop.f32.mrb[0].mxu0
  %v13624 = vadd.f32 %v13581, %v13623
  %v13625 = vpop.f32.mrb[0].mxu0
  %v13626 = vadd.f32 %v13583, %v13625
  %v13627 = vpop.f32.mrb[0].mxu0
  %v13628 = vadd.f32 %v13585, %v13627
  %v13629 = vpop.f32.mrb[0].mxu0
  %v13630 = vadd.f32 %v13587, %v13629
  %13631 = vdwg.mxu0
  %13632 = vmatprep.subr.bf16.mxu0 %v10055
  %13633 = vmatpush1.bf16.msra.mxu0 %v10054
  %13634 = vmatprep.subr.bf16.mxu0 %v10057
  %13635 = vmatpush1.bf16.msra.mxu0 %v10056
  %13636 = vmatprep.subr.bf16.mxu0 %v10059
  %13637 = vmatpush1.bf16.msra.mxu0 %v10058
  %13638 = vmatprep.subr.bf16.mxu0 %v10061
  %13639 = vmatpush1.bf16.msra.mxu0 %v10060
  %13640 = vmatprep.subr.bf16.mxu0 %v10063
  %13641 = vmatpush1.bf16.msra.mxu0 %v10062
  %13642 = vmatprep.subr.bf16.mxu0 %v10065
  %13643 = vmatpush1.bf16.msra.mxu0 %v10064
  %13644 = vmatprep.subr.bf16.mxu0 %v10067
  %13645 = vmatpush1.bf16.msra.mxu0 %v10066
  %13646 = vmatprep.subr.bf16.mxu0 %v10069
  %13647 = vmatpush1.bf16.msra.mxu0 %v10068
  %13648 = vmatprep.subr.bf16.mxu0 %v10071
  %13649 = vmatpush1.bf16.msra.mxu0 %v10070
  %13650 = vmatprep.subr.bf16.mxu0 %v10073
  %13651 = vmatpush1.bf16.msra.mxu0 %v10072
  %13652 = vmatprep.subr.bf16.mxu0 %v10075
  %13653 = vmatpush1.bf16.msra.mxu0 %v10074
  %13654 = vmatprep.subr.bf16.mxu0 %v10077
  %13655 = vmatpush1.bf16.msra.mxu0 %v10076
  %13656 = vmatprep.subr.bf16.mxu0 %v10079
  %13657 = vmatpush1.bf16.msra.mxu0 %v10078
  %13658 = vmatprep.subr.bf16.mxu0 %v10081
  %13659 = vmatpush1.bf16.msra.mxu0 %v10080
  %13660 = vmatprep.subr.bf16.mxu0 %v10083
  %13661 = vmatpush1.bf16.msra.mxu0 %v10082
  %13662 = vmatprep.subr.bf16.mxu0 %v10085
  %13663 = vmatpush1.bf16.msra.mxu0 %v10084
  %13664 = vmatprep.mubr.bf16.mxu0 %v2423
  %13665 = vmatmul.mubr.bf16.gmra.mrb[0].mxu0 %v2422
  %v13666 = vpop.f32.mrb[0].mxu0
  %v13667 = vadd.f32 %v13624, %v13666
  %v13668 = vpop.f32.mrb[0].mxu0
  %v13669 = vadd.f32 %v13626, %v13668
  %v13670 = vpop.f32.mrb[0].mxu0
  %v13671 = vadd.f32 %v13628, %v13670
  %v13672 = vpop.f32.mrb[0].mxu0
  %v13673 = vadd.f32 %v13630, %v13672
  %13674 = vdwg.mxu0
  %13675 = vmatprep.subr.bf16.mxu0 %v10087
  %13676 = vmatpush1.bf16.msra.mxu0 %v10086
  %13677 = vmatprep.subr.bf16.mxu0 %v10089
  %13678 = vmatpush1.bf16.msra.mxu0 %v10088
  %13679 = vmatprep.subr.bf16.mxu0 %v10091
  %13680 = vmatpush1.bf16.msra.mxu0 %v10090
  %13681 = vmatprep.subr.bf16.mxu0 %v10093
  %13682 = vmatpush1.bf16.msra.mxu0 %v10092
  %13683 = vmatprep.subr.bf16.mxu0 %v10095
  %13684 = vmatpush1.bf16.msra.mxu0 %v10094
  %13685 = vmatprep.subr.bf16.mxu0 %v10097
  %13686 = vmatpush1.bf16.msra.mxu0 %v10096
  %13687 = vmatprep.subr.bf16.mxu0 %v10099
  %13688 = vmatpush1.bf16.msra.mxu0 %v10098
  %13689 = vmatprep.subr.bf16.mxu0 %v10101
  %13690 = vmatpush1.bf16.msra.mxu0 %v10100
  %13691 = vmatprep.subr.bf16.mxu0 %v10103
  %13692 = vmatpush1.bf16.msra.mxu0 %v10102
  %13693 = vmatprep.subr.bf16.mxu0 %v10105
  %13694 = vmatpush1.bf16.msra.mxu0 %v10104
  %13695 = vmatprep.subr.bf16.mxu0 %v10107
  %13696 = vmatpush1.bf16.msra.mxu0 %v10106
  %13697 = vmatprep.subr.bf16.mxu0 %v10109
  %13698 = vmatpush1.bf16.msra.mxu0 %v10108
  %13699 = vmatprep.subr.bf16.mxu0 %v10111
  %13700 = vmatpush1.bf16.msra.mxu0 %v10110
  %13701 = vmatprep.subr.bf16.mxu0 %v10113
  %13702 = vmatpush1.bf16.msra.mxu0 %v10112
  %13703 = vmatprep.subr.bf16.mxu0 %v10115
  %13704 = vmatpush1.bf16.msra.mxu0 %v10114
  %13705 = vmatprep.subr.bf16.mxu0 %v10117
  %13706 = vmatpush1.bf16.msra.mxu0 %v10116
  %13707 = vmatprep.mubr.bf16.mxu0 %v2425
  %13708 = vmatmul.mubr.bf16.gmra.mrb[0].mxu0 %v2424
  %v13709 = vpop.f32.mrb[0].mxu0
  %v13710 = vadd.f32 %v13667, %v13709
  %v13711 = vpop.f32.mrb[0].mxu0
  %v13712 = vadd.f32 %v13669, %v13711
  %v13713 = vpop.f32.mrb[0].mxu0
  %v13714 = vadd.f32 %v13671, %v13713
  %v13715 = vpop.f32.mrb[0].mxu0
  %v13716 = vadd.f32 %v13673, %v13715
  %13717 = vdwg.mxu0
  %v13718 = vmax.f32 %v13710, 0.0
  %v13719 = vmax.f32 %v13712, 0.0
  %v13720 = vmax.f32 %v13714, 0.0
  %v13721 = vmax.f32 %v13716, 0.0
  %v13722 = vld [vmem:[%s3] sm:$0xff]
  %v13723 = vld [vmem:[%s3 + $0x8] sm:$0xff]
  %v13724 = vld [vmem:[%s3 + $0x10] sm:$0xff]
  %v13725 = vld [vmem:[%s3 + $0x18] sm:$0xff]
  %v13726 = vld [vmem:[%s3 + $0x20] sm:$0xff]
  %v13727 = vld [vmem:[%s3 + $0x28] sm:$0xff]
  %v13728 = vld [vmem:[%s3 + $0x30] sm:$0xff]
  %v13729 = vld [vmem:[%s3 + $0x38] sm:$0xff]
  %v13730 = vld [vmem:[%s3 + $0x40] sm:$0xff]
  %v13731 = vld [vmem:[%s3 + $0x48] sm:$0xff]
  %v13732 = vld [vmem:[%s3 + $0x50] sm:$0xff]
  %v13733 = vld [vmem:[%s3 + $0x58] sm:$0xff]
  %v13734 = vld [vmem:[%s3 + $0x60] sm:$0xff]
  %v13735 = vld [vmem:[%s3 + $0x68] sm:$0xff]
  %v13736 = vld [vmem:[%s3 + $0x70] sm:$0xff]
  %v13737 = vld [vmem:[%s3 + $0x78] sm:$0xff]
  %v13738 = vld [vmem:[%s3 + $0x80] sm:$0xff]
  %v13739 = vld [vmem:[%s3 + $0x88] sm:$0xff]
  %v13740 = vld [vmem:[%s3 + $0x90] sm:$0xff]
  %v13741 = vld [vmem:[%s3 + $0x98] sm:$0xff]
  %v13742 = vld [vmem:[%s3 + $0xa0] sm:$0xff]
  %v13743 = vld [vmem:[%s3 + $0xa8] sm:$0xff]
  %v13744 = vld [vmem:[%s3 + $0xb0] sm:$0xff]
  %v13745 = vld [vmem:[%s3 + $0xb8] sm:$0xff]
  %v13746 = vld [vmem:[%s4] sm:$0x1]
  %v13748 = vlaneseq
  %v13749 = vshrl.u32 %v13748, 7
  %v13750 = vsub.s32 0, %v13749
  %v13751 = vrot.slane %v13746, %v13750
  %vm13753 = vcmask 523264
  %v13755 = vsel %vm13753, %v13719, 0
  %v13758 = vsel %vm13753, %v13721, 0
  %13760 = vmatprep.subr.mxu0 0.0
  %13761 = vmatpush1.msra.mxu0 %v13722
  %13762 = vmatprep.subr.mxu0 0.0
  %13763 = vmatpush1.msra.mxu0 %v13723
  %13764 = vmatprep.subr.mxu0 0.0
  %13765 = vmatpush1.msra.mxu0 %v13724
  %13766 = vmatprep.subr.mxu0 0.0
  %13767 = vmatpush1.msra.mxu0 %v13725
  %13768 = vmatprep.subr.mxu0 0.0
  %13769 = vmatpush1.msra.mxu0 %v13726
  %13770 = vmatprep.subr.mxu0 0.0
  %13771 = vmatpush1.msra.mxu0 %v13727
  %13772 = vmatprep.subr.mxu0 0.0
  %13773 = vmatpush1.msra.mxu0 %v13728
  %13774 = vmatprep.subr.mxu0 0.0
  %13775 = vmatpush1.msra.mxu0 %v13729
  %13776 = vmatprep.subr.mxu0 0.0
  %13777 = vmatpush1.msra.mxu0 %v13730
  %13778 = vmatprep.subr.mxu0 0.0
  %13779 = vmatpush1.msra.mxu0 %v13731
  %13780 = vmatprep.subr.mxu0 0.0
  %13781 = vmatpush1.msra.mxu0 %v13732
  %13782 = vmatprep.subr.mxu0 0.0
  %13783 = vmatpush1.msra.mxu0 %v13733
  %13784 = vmatprep.subr.mxu0 0.0
  %13785 = vmatpush1.msra.mxu0 %v13734
  %13786 = vmatprep.subr.mxu0 0.0
  %13787 = vmatpush1.msra.mxu0 %v13735
  %13788 = vmatprep.subr.mxu0 0.0
  %13789 = vmatpush1.msra.mxu0 %v13736
  %13790 = vmatprep.subr.mxu0 0.0
  %13791 = vmatpush1.msra.mxu0 %v13737
  %13792 = vmatprep.subr.mxu0 0.0
  %13793 = vmatpush1.msra.mxu0 %v13738
  %13794 = vmatprep.subr.mxu0 0.0
  %13795 = vmatpush1.msra.mxu0 %v13739
  %13796 = vmatprep.subr.mxu0 0.0
  %13797 = vmatpush1.msra.mxu0 %v13740
  %13798 = vmatprep.subr.mxu0 0.0
  %13799 = vmatpush1.msra.mxu0 %v13741
  %13800 = vmatprep.subr.mxu0 0.0
  %13801 = vmatpush1.msra.mxu0 %v13742
  %13802 = vmatprep.subr.mxu0 0.0
  %13803 = vmatpush1.msra.mxu0 %v13743
  %13804 = vmatprep.subr.mxu0 0.0
  %13805 = vmatpush1.msra.mxu0 %v13744
  %13806 = vmatprep.subr.mxu0 0.0
  %13807 = vmatpush1.msra.mxu0 %v13745
  %13808 = vmatprep.subr.mxu0 0.0
  %13809 = vmatpush1.msra.mxu0 0.0
  %13810 = vmatprep.subr.mxu0 0.0
  %13811 = vmatpush1.msra.mxu0 0.0
  %13812 = vmatprep.subr.mxu0 0.0
  %13813 = vmatpush1.msra.mxu0 0.0
  %13814 = vmatprep.subr.mxu0 0.0
  %13815 = vmatpush1.msra.mxu0 0.0
  %13816 = vmatprep.subr.mxu0 0.0
  %13817 = vmatpush1.msra.mxu0 0.0
  %13818 = vmatprep.subr.mxu0 0.0
  %13819 = vmatpush1.msra.mxu0 0.0
  %13820 = vmatprep.subr.mxu0 0.0
  %13821 = vmatpush1.msra.mxu0 0.0
  %13822 = vmatprep.subr.mxu0 0.0
  %13823 = vmatpush1.msra.mxu0 0.0
  %13824 = vmatprep.mubr.f32.mxu0 %v13755
  %13825 = vmatmul.mubr.f32.gmra.mrb[0].mxu0 %v13718
  %v13826 = vpop.f32.mrb[0].mxu0
  %v13827 = vadd.f32 %v13751, %v13826
  %v13828 = vpop.f32.mrb[0].mxu0
  %13829 = vmatprep.mubr.f32.mxu0 %v13758
  %13830 = vmatmul.mubr.f32.gmra.mrb[0].mxu0 %v13720
  %v13831 = vpop.f32.mrb[0].mxu0
  %v13832 = vadd.f32 %v13751, %v13831
  %v13833 = vpop.f32.mrb[0].mxu0
  %13834 = vdwg.mxu0
  %v13835 = vmax.f32 %v13827, 0.0
  %v13836 = vmax.f32 %v13832, 0.0
  %v13837 = vld [vmem:[%s5] sm:$0xff]
  %v13838 = vld [vmem:[%s5 + $0x8] sm:$0xff]
  %v13839 = vld [vmem:[%s5 + $0x10] sm:$0xff]
  %v13840 = vld [vmem:[%s6] sm:$0x1]
  %v13842 = vlaneseq
  %v13843 = vshrl.u32 %v13842, 7
  %v13844 = vsub.s32 0, %v13843
  %v13845 = vrot.slane %v13840, %v13844
  %vm13847 = vcmask 195584
  %v13849 = vsel %vm13847, %v13835, 0
  %v13852 = vsel %vm13847, %v13836, 0
  %13854 = vmatprep.subr.mxu0 0.0
  %13855 = vmatpush1.msra.mxu0 %v13837
  %13856 = vmatprep.subr.mxu0 0.0
  %13857 = vmatpush1.msra.mxu0 %v13838
  %13858 = vmatprep.subr.mxu0 0.0
  %13859 = vmatpush1.msra.mxu0 %v13839
  %13860 = vmatprep.subr.mxu0 0.0
  %13861 = vmatpush1.msra.mxu0 0.0
  %13862 = vmatprep.subr.mxu0 0.0
  %13863 = vmatpush1.msra.mxu0 0.0
  %13864 = vmatprep.subr.mxu0 0.0
  %13865 = vmatpush1.msra.mxu0 0.0
  %13866 = vmatprep.subr.mxu0 0.0
  %13867 = vmatpush1.msra.mxu0 0.0
  %13868 = vmatprep.subr.mxu0 0.0
  %13869 = vmatpush1.msra.mxu0 0.0
  %13870 = vmatprep.subr.mxu0 0.0
  %13871 = vmatpush1.msra.mxu0 0.0
  %13872 = vmatprep.subr.mxu0 0.0
  %13873 = vmatpush1.msra.mxu0 0.0
  %13874 = vmatprep.subr.mxu0 0.0
  %13875 = vmatpush1.msra.mxu0 0.0
  %13876 = vmatprep.subr.mxu0 0.0
  %13877 = vmatpush1.msra.mxu0 0.0
  %13878 = vmatprep.subr.mxu0 0.0
  %13879 = vmatpush1.msra.mxu0 0.0
  %13880 = vmatprep.subr.mxu0 0.0
  %13881 = vmatpush1.msra.mxu0 0.0
  %13882 = vmatprep.subr.mxu0 0.0
  %13883 = vmatpush1.msra.mxu0 0.0
  %13884 = vmatprep.subr.mxu0 0.0
  %13885 = vmatpush1.msra.mxu0 0.0
  %13886 = vmatprep.subr.mxu0 0.0
  %13887 = vmatpush1.msra.mxu0 0.0
  %13888 = vmatprep.subr.mxu0 0.0
  %13889 = vmatpush1.msra.mxu0 0.0
  %13890 = vmatprep.subr.mxu0 0.0
  %13891 = vmatpush1.msra.mxu0 0.0
  %13892 = vmatprep.subr.mxu0 0.0
  %13893 = vmatpush1.msra.mxu0 0.0
  %13894 = vmatprep.subr.mxu0 0.0
  %13895 = vmatpush1.msra.mxu0 0.0
  %13896 = vmatprep.subr.mxu0 0.0
  %13897 = vmatpush1.msra.mxu0 0.0
  %13898 = vmatprep.subr.mxu0 0.0
  %13899 = vmatpush1.msra.mxu0 0.0
  %13900 = vmatprep.subr.mxu0 0.0
  %13901 = vmatpush1.msra.mxu0 0.0
  %13902 = vmatprep.subr.mxu0 0.0
  %13903 = vmatpush1.msra.mxu0 0.0
  %13904 = vmatprep.subr.mxu0 0.0
  %13905 = vmatpush1.msra.mxu0 0.0
  %13906 = vmatprep.subr.mxu0 0.0
  %13907 = vmatpush1.msra.mxu0 0.0
  %13908 = vmatprep.subr.mxu0 0.0
  %13909 = vmatpush1.msra.mxu0 0.0
  %13910 = vmatprep.subr.mxu0 0.0
  %13911 = vmatpush1.msra.mxu0 0.0
  %13912 = vmatprep.subr.mxu0 0.0
  %13913 = vmatpush1.msra.mxu0 0.0
  %13914 = vmatprep.subr.mxu0 0.0
  %13915 = vmatpush1.msra.mxu0 0.0
  %13916 = vmatprep.subr.mxu0 0.0
  %13917 = vmatpush1.msra.mxu0 0.0
  %13918 = vmatprep.mubr.f32.mxu0 0.0
  %13919 = vmatmul.mubr.f32.gmra.mrb[0].mxu0 %v13849
  %v13920 = vpop.f32.mrb[0].mxu0
  %v13921 = vadd.f32 %v13845, %v13920
  %v13922 = vpop.f32.mrb[0].mxu0
  %13923 = vmatprep.mubr.f32.mxu0 0.0
  %13924 = vmatmul.mubr.f32.gmra.mrb[0].mxu0 %v13852
  %v13925 = vpop.f32.mrb[0].mxu0
  %v13926 = vadd.f32 %v13845, %v13925
  %v13927 = vpop.f32.mrb[0].mxu0
  %13928 = vdwg.mxu0
  %vm13929 = vcmask 48128
  %13930 = vst.msk [vmem:[%s7] sm:$0xff] %vm13929, %v13921
  %13931 = vst.msk [vmem:[%s7 + $0x8] sm:$0xff] %vm13929, %v13926
  // Predicated region
  $region30: #{tpu_custom_call.1} parent=0 // pred_check
    _
  $region31: #{tpu_custom_call.1} parent=0 // pred_check_branch
    %13933 = sbr.rel (0) target = $region33
  $region32: #{tpu_custom_call.1} parent=0 // pred_region
    _
  $region33: #{tpu_custom_call.1} parent=0 // pred_fallthru
    _
  // Predicated region
  $region34: #{tpu_custom_call.1} parent=0 // pred_check
    _
  $region35: #{tpu_custom_call.1} parent=0 // pred_check_branch
    %13935 = sbr.rel (0) target = $region37
  $region36: #{tpu_custom_call.1} parent=0 // pred_region
    _
  $region37: #{tpu_custom_call.1} parent=0 // pred_fallthru
    _

</llo_original>
